<compile_context>
chip_gen: v5e
topology: v5e:2x2
jax: 0.10.0
libtpu: 0.0.40
codegen_flags: <defaults>
</compile_context>

<pallas_src>
import functools

import jax
import jax.numpy as jnp
import numpy as np
from jax import lax
from jax.experimental import pallas as pl
from jax.experimental.pallas import tpu as pltpu


def _convt_leaky_kernel(x_ref, w_ref, b_ref, o_ref, *, K, H_out, W_out, alpha):
    # x_ref: (1, Hp, Wp, C_in)        bf16  dilated+padded input slab (one batch)
    # w_ref: (C_out, K*K*C_in)        bf16  flipped weight, contraction index = (kh, kw, ci)
    # b_ref: (C_out, 1)               f32
    # o_ref: (1, C_out, H_out*W_out)  f32   NCHW-flat output for this batch
    C_in = x_ref.shape[3]
    HW = H_out * W_out

    xv = x_ref[0]                                        # (Hp, Wp, C_in) bf16

    # im2col, built once: lhsT[m, (kh*K + kw)*C_in + ci] = xpad[oh+kh, ow+kw, ci]
    cols = []
    for kh in range(K):
        for kw in range(K):
            patch = xv[kh:kh + H_out, kw:kw + W_out, :]  # (H_out, W_out, C_in)
            cols.append(patch.reshape(HW, C_in))
    lhsT = jnp.concatenate(cols, axis=1)                 # (HW, K*K*C_in)

    # Single MXU matmul, transposed so the result is lane-dense: (C_out, HW).
    acc = lax.dot_general(
        w_ref[...], lhsT,
        dimension_numbers=(((1,), (1,)), ((), ())),      # contract K*K*C_in of both
        preferred_element_type=jnp.float32)              # (C_out, HW) f32

    acc = acc + b_ref[...]                               # bias, broadcast along lanes
    acc = jnp.where(acc >= 0.0, acc, alpha * acc)        # LeakyReLU(alpha)
    o_ref[0] = acc.astype(o_ref.dtype)


@functools.partial(jax.jit,
                   static_argnames=("stride", "padding", "out_padding", "alpha"))
def conv_unit_transpose(x_nchw, weight, bias, *, stride=1, padding=0,
                        out_padding=0, alpha=0.2):
    """Equivalent of nn.Sequential(ConvTranspose2d(...), LeakyReLU(alpha)).

    x_nchw : (N, C_in, H, W)
    weight : (C_in, C_out, K, K)   (PyTorch ConvTranspose2d layout)
    bias   : (C_out,)
    returns: (N, C_out, H_out, W_out), float32
    """
    N, C_in, H, W = x_nchw.shape
    _, C_out, K, _ = weight.shape
    H_out = (H - 1) * stride - 2 * padding + K + out_padding
    W_out = (W - 1) * stride - 2 * padding + K + out_padding
    HW = H_out * W_out

    # NCHW -> NHWC; zero-dilate by `stride` and pad so a stride-1 valid conv with
    # the flipped kernel reproduces the transposed convolution.  bf16 for DMA/MXU.
    x = jnp.transpose(x_nchw, (0, 2, 3, 1)).astype(jnp.float32)
    pad_lo = K - 1 - padding
    pad_hi = K - 1 - padding + out_padding
    x_pad = lax.pad(
        x, jnp.float32(0),
        ((0, 0, 0),
         (pad_lo, pad_hi, stride - 1),
         (pad_lo, pad_hi, stride - 1),
         (0, 0, 0))).astype(jnp.bfloat16)
    Hp, Wp = x_pad.shape[1], x_pad.shape[2]

    # w_mat[co, (kh*K + kw)*C_in + ci] = weight[ci, co, K-1-kh, K-1-kw]
    w_flip = weight[:, :, ::-1, ::-1]
    w_mat = jnp.transpose(w_flip, (1, 2, 3, 0)).reshape(C_out, K * K * C_in)
    w_mat = w_mat.astype(jnp.bfloat16)
    b2 = bias.reshape(C_out, 1).astype(jnp.float32)

    out_flat = pl.pallas_call(
        functools.partial(_convt_leaky_kernel, K=K, H_out=H_out, W_out=W_out,
                          alpha=alpha),
        out_shape=jax.ShapeDtypeStruct((N, C_out, HW), jnp.float32),
        grid=(N,),
        in_specs=[
            pl.BlockSpec((1, Hp, Wp, C_in), lambda n: (n, 0, 0, 0)),
            pl.BlockSpec((C_out, K * K * C_in), lambda n: (0, 0)),
            pl.BlockSpec((C_out, 1), lambda n: (0, 0)),
        ],
        out_specs=pl.BlockSpec((1, C_out, HW), lambda n: (n, 0, 0)),
        compiler_params=pltpu.CompilerParams(
            dimension_semantics=("parallel",)),
    )(x_pad, w_mat, b2)

    # (N, C_out, H_out*W_out) is already NCHW-flat: pure reshape, no transpose.
    return out_flat.reshape(N, C_out, H_out, W_out)


def _reference(x_nchw, weight, bias, *, stride, padding, out_padding, alpha):
    """Pure-JAX reference (inputs bf16-rounded to match the kernel's operands)."""
    C_in, C_out, K, _ = weight.shape
    xr = x_nchw.astype(jnp.bfloat16).astype(jnp.float32)
    wr = weight.astype(jnp.bfloat16).astype(jnp.float32)
    pad_lo = K - 1 - padding
    pad_hi = K - 1 - padding + out_padding
    # (C_out, C_in, K, K), spatially flipped
    w_oihw = jnp.transpose(wr[:, :, ::-1, ::-1], (1, 0, 2, 3))
    y = lax.conv_general_dilated(
        xr, w_oihw,
        window_strides=(1, 1),
        padding=[(pad_lo, pad_hi), (pad_lo, pad_hi)],
        lhs_dilation=(stride, stride),
        dimension_numbers=("NCHW", "OIHW", "NCHW"),
        precision=lax.Precision.HIGHEST,
        preferred_element_type=jnp.float32)
    y = y + bias.reshape(1, C_out, 1, 1).astype(jnp.float32)
    return jnp.where(y >= 0, y, alpha * y)


if __name__ == "__main__":
    # Module config: ConvUnitTranspose(in_channels=4, out_channels=8,
    #                                  kernel=4, stride=2, padding=1, out_padding=0)
    in_channels, out_channels, kernel = 4, 8, 4
    stride, padding, out_padding = 2, 1, 0
    N, H, W = 2, 16, 16

    key = jax.random.PRNGKey(0)
    kx, kw_, kb = jax.random.split(key, 3)
    x = jax.random.normal(kx, (N, in_channels, H, W), jnp.float32)
    weight = 0.1 * jax.random.normal(
        kw_, (in_channels, out_channels, kernel, kernel), jnp.float32)
    bias = 0.1 * jax.random.normal(kb, (out_channels,), jnp.float32)

    out = conv_unit_transpose(x, weight, bias, stride=stride, padding=padding,
                              out_padding=out_padding, alpha=0.2)
    out = jax.block_until_ready(out)

    ref = _reference(x, weight, bias, stride=stride, padding=padding,
                     out_padding=out_padding, alpha=0.2)

    H_out = (H - 1) * stride - 2 * padding + kernel + out_padding
    W_out = (W - 1) * stride - 2 * padding + kernel + out_padding
    assert out.shape == (N, out_channels, H_out, W_out), out.shape
    np.testing.assert_allclose(np.asarray(out), np.asarray(ref),
                               rtol=1e-2, atol=1e-2)
    print("KERNEL_OK")
</pallas_src>

<mosaic_0001>
module attributes {stable_mosaic.version = 11 : i64} {
  func.func @_convt_leaky_kernel(%arg0: i32, %arg1: memref<1x35x35x4xbf16, #tpu.memory_space<vmem>>, %arg2: memref<8x64xbf16, #tpu.memory_space<vmem>>, %arg3: memref<8x1xf32, #tpu.memory_space<vmem>>, %arg4: memref<1x8x1024xf32, #tpu.memory_space<vmem>>) attributes {dimension_semantics = [#tpu.dimension_semantics<parallel>], iteration_bounds = array<i64: 2>, scalar_prefetch = 0 : i64, scratch_operands = 0 : i64, tpu.core_type = #tpu.core_type<tc>, window_params = [{transform_indices = @transform_0, window_bounds = array<i64: 1, 35, 35, 4>}, {pipeline_mode = #tpu.pipeline_mode<synchronous>, transform_indices = @transform_1, window_bounds = array<i64: 8, 64>}, {pipeline_mode = #tpu.pipeline_mode<synchronous>, transform_indices = @transform_2, window_bounds = array<i64: 8, 1>}, {transform_indices = @transform_3, window_bounds = array<i64: 1, 8, 1024>}]} {
    %c0 = arith.constant 0 : index
    %c0_0 = arith.constant 0 : index
    %c0_1 = arith.constant 0 : index
    %c0_2 = arith.constant 0 : index
    %0 = vector.load %arg1[%c0, %c0_0, %c0_1, %c0_2] : memref<1x35x35x4xbf16, #tpu.memory_space<vmem>>, vector<1x35x35x4xbf16>
    %1 = vector.shape_cast %0 : vector<1x35x35x4xbf16> to vector<35x35x4xbf16>
    %2 = vector.extract_strided_slice %1 {offsets = [0, 0, 0], sizes = [32, 32, 4], strides = [1, 1, 1]} : vector<35x35x4xbf16> to vector<32x32x4xbf16>
    %3 = vector.shape_cast %2 : vector<32x32x4xbf16> to vector<1024x4xbf16>
    %4 = vector.extract_strided_slice %1 {offsets = [0, 1, 0], sizes = [32, 32, 4], strides = [1, 1, 1]} : vector<35x35x4xbf16> to vector<32x32x4xbf16>
    %5 = vector.shape_cast %4 : vector<32x32x4xbf16> to vector<1024x4xbf16>
    %6 = vector.extract_strided_slice %1 {offsets = [0, 2, 0], sizes = [32, 32, 4], strides = [1, 1, 1]} : vector<35x35x4xbf16> to vector<32x32x4xbf16>
    %7 = vector.shape_cast %6 : vector<32x32x4xbf16> to vector<1024x4xbf16>
    %8 = vector.extract_strided_slice %1 {offsets = [0, 3, 0], sizes = [32, 32, 4], strides = [1, 1, 1]} : vector<35x35x4xbf16> to vector<32x32x4xbf16>
    %9 = vector.shape_cast %8 : vector<32x32x4xbf16> to vector<1024x4xbf16>
    %10 = vector.extract_strided_slice %1 {offsets = [1, 0, 0], sizes = [32, 32, 4], strides = [1, 1, 1]} : vector<35x35x4xbf16> to vector<32x32x4xbf16>
    %11 = vector.shape_cast %10 : vector<32x32x4xbf16> to vector<1024x4xbf16>
    %12 = vector.extract_strided_slice %1 {offsets = [1, 1, 0], sizes = [32, 32, 4], strides = [1, 1, 1]} : vector<35x35x4xbf16> to vector<32x32x4xbf16>
    %13 = vector.shape_cast %12 : vector<32x32x4xbf16> to vector<1024x4xbf16>
    %14 = vector.extract_strided_slice %1 {offsets = [1, 2, 0], sizes = [32, 32, 4], strides = [1, 1, 1]} : vector<35x35x4xbf16> to vector<32x32x4xbf16>
    %15 = vector.shape_cast %14 : vector<32x32x4xbf16> to vector<1024x4xbf16>
    %16 = vector.extract_strided_slice %1 {offsets = [1, 3, 0], sizes = [32, 32, 4], strides = [1, 1, 1]} : vector<35x35x4xbf16> to vector<32x32x4xbf16>
    %17 = vector.shape_cast %16 : vector<32x32x4xbf16> to vector<1024x4xbf16>
    %18 = vector.extract_strided_slice %1 {offsets = [2, 0, 0], sizes = [32, 32, 4], strides = [1, 1, 1]} : vector<35x35x4xbf16> to vector<32x32x4xbf16>
    %19 = vector.shape_cast %18 : vector<32x32x4xbf16> to vector<1024x4xbf16>
    %20 = vector.extract_strided_slice %1 {offsets = [2, 1, 0], sizes = [32, 32, 4], strides = [1, 1, 1]} : vector<35x35x4xbf16> to vector<32x32x4xbf16>
    %21 = vector.shape_cast %20 : vector<32x32x4xbf16> to vector<1024x4xbf16>
    %22 = vector.extract_strided_slice %1 {offsets = [2, 2, 0], sizes = [32, 32, 4], strides = [1, 1, 1]} : vector<35x35x4xbf16> to vector<32x32x4xbf16>
    %23 = vector.shape_cast %22 : vector<32x32x4xbf16> to vector<1024x4xbf16>
    %24 = vector.extract_strided_slice %1 {offsets = [2, 3, 0], sizes = [32, 32, 4], strides = [1, 1, 1]} : vector<35x35x4xbf16> to vector<32x32x4xbf16>
    %25 = vector.shape_cast %24 : vector<32x32x4xbf16> to vector<1024x4xbf16>
    %26 = vector.extract_strided_slice %1 {offsets = [3, 0, 0], sizes = [32, 32, 4], strides = [1, 1, 1]} : vector<35x35x4xbf16> to vector<32x32x4xbf16>
    %27 = vector.shape_cast %26 : vector<32x32x4xbf16> to vector<1024x4xbf16>
    %28 = vector.extract_strided_slice %1 {offsets = [3, 1, 0], sizes = [32, 32, 4], strides = [1, 1, 1]} : vector<35x35x4xbf16> to vector<32x32x4xbf16>
    %29 = vector.shape_cast %28 : vector<32x32x4xbf16> to vector<1024x4xbf16>
    %30 = vector.extract_strided_slice %1 {offsets = [3, 2, 0], sizes = [32, 32, 4], strides = [1, 1, 1]} : vector<35x35x4xbf16> to vector<32x32x4xbf16>
    %31 = vector.shape_cast %30 : vector<32x32x4xbf16> to vector<1024x4xbf16>
    %32 = vector.extract_strided_slice %1 {offsets = [3, 3, 0], sizes = [32, 32, 4], strides = [1, 1, 1]} : vector<35x35x4xbf16> to vector<32x32x4xbf16>
    %33 = vector.shape_cast %32 : vector<32x32x4xbf16> to vector<1024x4xbf16>
    %34 = tpu.concatenate %3, %5, %7, %9, %11, %13, %15, %17, %19, %21, %23, %25, %27, %29, %31, %33 in 1 : vector<1024x4xbf16>, vector<1024x4xbf16>, vector<1024x4xbf16>, vector<1024x4xbf16>, vector<1024x4xbf16>, vector<1024x4xbf16>, vector<1024x4xbf16>, vector<1024x4xbf16>, vector<1024x4xbf16>, vector<1024x4xbf16>, vector<1024x4xbf16>, vector<1024x4xbf16>, vector<1024x4xbf16>, vector<1024x4xbf16>, vector<1024x4xbf16>, vector<1024x4xbf16> -> vector<1024x64xbf16>
    %c0_3 = arith.constant 0 : index
    %c0_4 = arith.constant 0 : index
    %35 = vector.load %arg2[%c0_3, %c0_4] : memref<8x64xbf16, #tpu.memory_space<vmem>>, vector<8x64xbf16>
    %cst = arith.constant dense<0.000000e+00> : vector<8x1024xf32>
    %36 = tpu.matmul %35, %34, %cst {dimension_numbers = #tpu.dot_dimension_numbers<[1], [1], [0], [0], [0, 0, 1, 0], [], []>} : vector<8x64xbf16>, vector<1024x64xbf16>, vector<8x1024xf32> -> vector<8x1024xf32>
    %c0_5 = arith.constant 0 : index
    %c0_6 = arith.constant 0 : index
    %37 = vector.load %arg3[%c0_5, %c0_6] : memref<8x1xf32, #tpu.memory_space<vmem>>, vector<8x1xf32>
    %38 = vector.broadcast %37 : vector<8x1xf32> to vector<8x1024xf32>
    %39 = arith.addf %36, %38 : vector<8x1024xf32>
    %cst_7 = arith.constant 0.000000e+00 : f32
    %40 = vector.broadcast %cst_7 : f32 to vector<8x1024xf32>
    %41 = arith.cmpf oge, %39, %40 : vector<8x1024xf32>
    %cst_8 = arith.constant 2.000000e-01 : f32
    %42 = vector.broadcast %cst_8 : f32 to vector<8x1024xf32>
    %43 = arith.mulf %42, %39 : vector<8x1024xf32>
    %44 = arith.select %41, %39, %43 : vector<8x1024xi1>, vector<8x1024xf32>
    %c0_9 = arith.constant 0 : index
    %c0_10 = arith.constant 0 : index
    %c0_11 = arith.constant 0 : index
    %45 = vector.load %arg4[%c0_9, %c0_10, %c0_11] : memref<1x8x1024xf32, #tpu.memory_space<vmem>>, vector<1x8x1024xf32>
    %46 = vector.shape_cast %45 : vector<1x8x1024xf32> to vector<8x1024xf32>
    %47 = vector.shape_cast %44 : vector<8x1024xf32> to vector<1x8x1024xf32>
    tpu.vector_store %arg4[%c0_9, %c0_10, %c0_11], %47 {strides = array<i32>} : memref<1x8x1024xf32, #tpu.memory_space<vmem>>, vector<1x8x1024xf32>,
    return
  }
  func.func @transform_0(%arg0: i32) -> (i32, i32, i32, i32) {
    %c0_i32 = arith.constant 0 : i32
    %c0_i32_0 = arith.constant 0 : i32
    %c0_i32_1 = arith.constant 0 : i32
    %c0_i32_2 = arith.constant 0 : i32
    return %arg0, %c0_i32, %c0_i32_0, %c0_i32_1 : i32, i32, i32, i32
  }
  func.func @transform_1(%arg0: i32) -> (i32, i32) {
    %c0_i32 = arith.constant 0 : i32
    %c0_i32_0 = arith.constant 0 : i32
    %c0_i32_1 = arith.constant 0 : i32
    return %c0_i32, %c0_i32_0 : i32, i32
  }
  func.func @transform_2(%arg0: i32) -> (i32, i32) {
    %c0_i32 = arith.constant 0 : i32
    %c0_i32_0 = arith.constant 0 : i32
    %c0_i32_1 = arith.constant 0 : i32
    return %c0_i32, %c0_i32_0 : i32, i32
  }
  func.func @transform_3(%arg0: i32) -> (i32, i32, i32) {
    %c0_i32 = arith.constant 0 : i32
    %c0_i32_0 = arith.constant 0 : i32
    %c0_i32_1 = arith.constant 0 : i32
    return %arg0, %c0_i32, %c0_i32_0 : i32, i32, i32
  }
}

</mosaic_0001>

<llo_original>
// kernel: conv_unit_transpose.1
$region0: #{conv_unit_transpose.1}
  #allocation0 [shape = 'u32[]', space=smem, size = 0x4, offset = 0x4, fixed_abs, tag = 'smem constant byte address 0x4 - core index']
  #allocation1 [shape = 'u32[72,128]{1,0:T(1,128)}', space=vmem, size = 0x9000, scoped, tag = 'internal scratch']
  %s0 = inlined_call_operand.vmem [shape: bf16[2,35,35,4], index: 0, kind: input, shape index: {}]
  %s1 = inlined_call_operand.vmem [shape: bf16[8,64], index: 1, kind: input, shape index: {}]
  %s2 = inlined_call_operand.vmem [shape: f32[8,1], index: 2, kind: input, shape index: {}]
  %s3 = inlined_call_operand.vmem [shape: f32[2,8,1024], index: 3, kind: output, shape index: {}]
  %s4 = sld [smem:[#allocation0]]
  $region45: #{conv_unit_transpose.1} parent=0
    _
  %s6 = ssub.s32 1, %s4
  %s7 = scalar_select 0, %s6, %s4
  loop: start=0, step=1, limit=4
  $region2: #{conv_unit_transpose.1} parent=0 // loop_pre_header
    _
  $region3: #{conv_unit_transpose.1} parent=0 // loop_header
    %s9 = sphi 0, %s13
    %p10 = scmp.ge.s32.totalorder %s9, 4
    %s19 = sphi 0, %s21
    %s22 = sphi 0, %s19
    %s23 = sphi 0, %s22
    %s39 = sphi 0, %s23
    %s43 = sphi 0, %s43
    %s45 = sphi 0, %s43
    %s46 = sphi 0, %s45
    %s60 = sphi 0, %s46
    %s64 = sphi 0, %s64
    %s66 = sphi 0, %s64
    %s67 = sphi 0, %s66
    %s81 = sphi 0, %s67
    %s87 = sphi 0, %s89
    %s90 = sphi 0, %s87
    %s91 = sphi 0, %s90
    %s107 = sphi 0, %s91
  $region4: #{conv_unit_transpose.1} parent=0 // loop_header_branch
    %12 = sbr.rel (%p10) target = $region8
  $region5: #{conv_unit_transpose.1} parent=0 // loop_body
    %s14 = ssub.s32 %s9, 1
    %s15 = ssub.s32 %s9, 2
    %s16 = sadd.s32 %s9, 1
    %s17 = ssub.s32 %s9, %s16
    %p18 = scmp.eq.s32.totalorder %s17, 0
    %s20 = sadd.s32 %s19, 1
    %s21 = scalar_select %p18, %s19, %s20
    %p24 = pneg %p18
    %p25 = scmp.eq.s32.totalorder %s9, 1
    %p26 = por %p24, %p25
    %p27 = scmp.ne.s32.totalorder %s19, %s22
    %p28 = scmp.eq.s32.totalorder %s9, 0
    %p29 = por %p27, %p28
    %p30 = scmp.ne.s32.totalorder %s19, %s22
    %p31 = scmp.eq.s32.totalorder %s14, 1
    %p32 = por %p30, %p31
    %p33 = scmp.ne.s32.totalorder %s22, %s23
    %p34 = scmp.eq.s32.totalorder %s14, 0
    %p35 = por %p33, %p34
    %p36 = scmp.ne.s32.totalorder %s22, %s23
    %p37 = scmp.eq.s32.totalorder %s15, 1
    %p38 = por %p36, %p37
    %p40 = scmp.ne.s32.totalorder %s23, %s39
    %p41 = scmp.eq.s32.totalorder %s15, 0
    %p42 = por %p40, %p41
    %s44 = sadd.s32 %s43, 1
    %p47 = scmp.eq.s32.totalorder %s9, 1
    %p48 = scmp.ne.s32.totalorder %s43, %s45
    %p49 = scmp.eq.s32.totalorder %s9, 0
    %p50 = por %p48, %p49
    %p51 = scmp.ne.s32.totalorder %s43, %s45
    %p52 = scmp.eq.s32.totalorder %s14, 1
    %p53 = por %p51, %p52
    %p54 = scmp.ne.s32.totalorder %s45, %s46
    %p55 = scmp.eq.s32.totalorder %s14, 0
    %p56 = por %p54, %p55
    %p57 = scmp.ne.s32.totalorder %s45, %s46
    %p58 = scmp.eq.s32.totalorder %s15, 1
    %p59 = por %p57, %p58
    %p61 = scmp.ne.s32.totalorder %s46, %s60
    %p62 = scmp.eq.s32.totalorder %s15, 0
    %p63 = por %p61, %p62
    %s65 = sadd.s32 %s64, 1
    %p68 = scmp.eq.s32.totalorder %s9, 1
    %p69 = scmp.ne.s32.totalorder %s64, %s66
    %p70 = scmp.eq.s32.totalorder %s9, 0
    %p71 = por %p69, %p70
    %p72 = scmp.ne.s32.totalorder %s64, %s66
    %p73 = scmp.eq.s32.totalorder %s14, 1
    %p74 = por %p72, %p73
    %p75 = scmp.ne.s32.totalorder %s66, %s67
    %p76 = scmp.eq.s32.totalorder %s14, 0
    %p77 = por %p75, %p76
    %p78 = scmp.ne.s32.totalorder %s66, %s67
    %p79 = scmp.eq.s32.totalorder %s15, 1
    %p80 = por %p78, %p79
    %p82 = scmp.ne.s32.totalorder %s67, %s81
    %p83 = scmp.eq.s32.totalorder %s15, 0
    %p84 = por %p82, %p83
    %s85 = ssub.s32 %s9, %s16
    %p86 = scmp.eq.s32.totalorder %s85, 0
    %s88 = sadd.s32 %s87, 1
    %s89 = scalar_select %p86, %s87, %s88
    %p92 = pneg %p86
    %p93 = scmp.eq.s32.totalorder %s9, 1
    %p94 = por %p92, %p93
    %p95 = scmp.ne.s32.totalorder %s87, %s90
    %p96 = scmp.eq.s32.totalorder %s9, 0
    %p97 = por %p95, %p96
    %p98 = scmp.ne.s32.totalorder %s87, %s90
    %p99 = scmp.eq.s32.totalorder %s14, 1
    %p100 = por %p98, %p99
    %p101 = scmp.ne.s32.totalorder %s90, %s91
    %p102 = scmp.eq.s32.totalorder %s14, 0
    %p103 = por %p101, %p102
    %p104 = scmp.ne.s32.totalorder %s90, %s91
    %p105 = scmp.eq.s32.totalorder %s15, 1
    %p106 = por %p104, %p105
    %p108 = scmp.ne.s32.totalorder %s91, %s107
    %p109 = scmp.eq.s32.totalorder %s15, 0
    %p110 = por %p108, %p109
    %p111 = scmp.le.s32.totalorder 1, %s9
    %p112 = scmp.lt.s32.totalorder %s9, 3
    %p113 = pnand %p111, %p112
    %p114 = pneg %p113
    // Predicated region
    $region9: #{conv_unit_transpose.1} parent=5 // pred_check
      _
    $region10: #{conv_unit_transpose.1} parent=5 // pred_check_branch
      %116 = sbr.rel (%p113) target = $region12
    $region11: #{conv_unit_transpose.1} parent=5 // pred_region
      %s117 = ssub.s32 %s9, 1
      // Predicated region
      $region13: #{conv_unit_transpose.1} parent=11 // pred_check
        %p118 = pneg %p56
      $region14: #{conv_unit_transpose.1} parent=11 // pred_check_branch
        %120 = sbr.rel (%p118) target = $region16
      $region15: #{conv_unit_transpose.1} parent=11 // pred_region
        _
      $region16: #{conv_unit_transpose.1} parent=11 // pred_fallthru
        _
      // Predicated region
      $region17: #{conv_unit_transpose.1} parent=11 // pred_check
        %p121 = pneg %p77
      $region18: #{conv_unit_transpose.1} parent=11 // pred_check_branch
        %123 = sbr.rel (%p121) target = $region20
      $region19: #{conv_unit_transpose.1} parent=11 // pred_region
        _
      $region20: #{conv_unit_transpose.1} parent=11 // pred_fallthru
        _
    $region12: #{conv_unit_transpose.1} parent=5 // pred_fallthru
      _
    %p124 = scmp.lt.s32.totalorder %s9, 2
    // Predicated region
    $region21: #{conv_unit_transpose.1} parent=5 // pred_check
      %p125 = pneg %p124
    $region22: #{conv_unit_transpose.1} parent=5 // pred_check_branch
      %127 = sbr.rel (%p125) target = $region24
    $region23: #{conv_unit_transpose.1} parent=5 // pred_region
      // Predicated region
      $region25: #{conv_unit_transpose.1} parent=23 // pred_check
        %p128 = pneg %p29
      $region26: #{conv_unit_transpose.1} parent=23 // pred_check_branch
        %130 = sbr.rel (%p128) target = $region28
      $region27: #{conv_unit_transpose.1} parent=23 // pred_region
        %p131 = scmp.lt.s32.totalorder %s9, 1
        %s132 = scalar_select %p131, %s9, 1
        %s133 = smul.addr %s132, 175
        %s134 = smul.addr %s133, 4
        %s135 = scalar_lea.vmem %s0, %s134
      $region28: #{conv_unit_transpose.1} parent=23 // pred_fallthru
        _
    $region24: #{conv_unit_transpose.1} parent=5 // pred_fallthru
      _
    %p136 = scmp.le.s32.totalorder 1, %s9
    %p137 = scmp.lt.s32.totalorder %s9, 3
    %p138 = pnand %p136, %p137
    %p139 = pneg %p138
    // Predicated region
    $region29: #{conv_unit_transpose.1} parent=5 // pred_check
      _
    $region30: #{conv_unit_transpose.1} parent=5 // pred_check_branch
      %141 = sbr.rel (%p138) target = $region32
    $region31: #{conv_unit_transpose.1} parent=5 // pred_region
      %s142 = ssub.s32 %s9, 1
      %p143 = scmp.lt.s32.totalorder %s14, 1
      %s144 = scalar_select %p143, %s14, 1
      %s145 = smul.addr %s144, 175
      %s146 = smul.addr %s145, 4
      %s147 = scalar_lea.vmem %s0, %s146
      %p148 = pneg %p35
      %p149 = pneg %p32
      %p150 = pneg %p56
      %p151 = pneg %p53
      %p152 = pneg %p77
      %p153 = pneg %p74
      %p154 = pneg %p103
      %p155 = pneg %p100
      %p156 = scmp.lt.s32.totalorder %s14, 1
      %s157 = scalar_select %p156, %s14, 1
      %s158 = smul.addr %s157, 8
      %s159 = smul.addr %s158, 8
      %s160 = scalar_lea.vmem %s3, %s159
      %p161 = scmp.lt.s32.totalorder %s14, 1
      %s162 = scalar_select %p161, %s14, 1
      %s163 = smul.addr %s162, 175
      %s164 = smul.addr %s163, 4
      %s165 = scalar_lea.vmem %s0, %s164
      %p166 = scmp.lt.s32.totalorder %s14, 1
      %s167 = scalar_select %p166, %s14, 1
      %s168 = smul.addr %s167, 8
      %s169 = smul.addr %s168, 8
      %s170 = scalar_lea.vmem %s3, %s169
      %v171 = vld [vmem:[%s165] sm:$0xf]
      %v172 = vld [vmem:[%s165 + $0x4] sm:$0xf]
      %v173 = vld [vmem:[%s165 + $0x8] sm:$0xf]
      %v174 = vld [vmem:[%s165 + $0xc] sm:$0xf]
      %v175 = vld [vmem:[%s165 + $0x10] sm:$0x3]
      %v176 = vld [vmem:[%s165 + $0x14] sm:$0xf]
      %v177 = vld [vmem:[%s165 + $0x18] sm:$0xf]
      %v178 = vld [vmem:[%s165 + $0x1c] sm:$0xf]
      %v179 = vld [vmem:[%s165 + $0x20] sm:$0xf]
      %v180 = vld [vmem:[%s165 + $0x24] sm:$0x3]
      %v181 = vld [vmem:[%s165 + $0x28] sm:$0xf]
      %v182 = vld [vmem:[%s165 + $0x2c] sm:$0xf]
      %v183 = vld [vmem:[%s165 + $0x30] sm:$0xf]
      %v184 = vld [vmem:[%s165 + $0x34] sm:$0xf]
      %v185 = vld [vmem:[%s165 + $0x38] sm:$0x3]
      %v186 = vld [vmem:[%s165 + $0x3c] sm:$0xf]
      %v187 = vld [vmem:[%s165 + $0x40] sm:$0xf]
      %v188 = vld [vmem:[%s165 + $0x44] sm:$0xf]
      %v189 = vld [vmem:[%s165 + $0x48] sm:$0xf]
      %v190 = vld [vmem:[%s165 + $0x4c] sm:$0x3]
      %v191 = vld [vmem:[%s165 + $0x50] sm:$0xf]
      %v192 = vld [vmem:[%s165 + $0x54] sm:$0xf]
      %v193 = vld [vmem:[%s165 + $0x58] sm:$0xf]
      %v194 = vld [vmem:[%s165 + $0x5c] sm:$0xf]
      %v195 = vld [vmem:[%s165 + $0x60] sm:$0x3]
      %v196 = vld [vmem:[%s165 + $0x64] sm:$0xf]
      %v197 = vld [vmem:[%s165 + $0x68] sm:$0xf]
      %v198 = vld [vmem:[%s165 + $0x6c] sm:$0xf]
      %v199 = vld [vmem:[%s165 + $0x70] sm:$0xf]
      %v200 = vld [vmem:[%s165 + $0x74] sm:$0x3]
      %v201 = vld [vmem:[%s165 + $0x78] sm:$0xf]
      %v202 = vld [vmem:[%s165 + $0x7c] sm:$0xf]
      %v203 = vld [vmem:[%s165 + $0x80] sm:$0xf]
      %v204 = vld [vmem:[%s165 + $0x84] sm:$0xf]
      %v205 = vld [vmem:[%s165 + $0x88] sm:$0x3]
      %v206 = vld [vmem:[%s165 + $0x8c] sm:$0xf]
      %v207 = vld [vmem:[%s165 + $0x90] sm:$0xf]
      %v208 = vld [vmem:[%s165 + $0x94] sm:$0xf]
      %v209 = vld [vmem:[%s165 + $0x98] sm:$0xf]
      %v210 = vld [vmem:[%s165 + $0x9c] sm:$0x3]
      %v211 = vld [vmem:[%s165 + $0xa0] sm:$0xf]
      %v212 = vld [vmem:[%s165 + $0xa4] sm:$0xf]
      %v213 = vld [vmem:[%s165 + $0xa8] sm:$0xf]
      %v214 = vld [vmem:[%s165 + $0xac] sm:$0xf]
      %v215 = vld [vmem:[%s165 + $0xb0] sm:$0x3]
      %v216 = vld [vmem:[%s165 + $0xb4] sm:$0xf]
      %v217 = vld [vmem:[%s165 + $0xb8] sm:$0xf]
      %v218 = vld [vmem:[%s165 + $0xbc] sm:$0xf]
      %v219 = vld [vmem:[%s165 + $0xc0] sm:$0xf]
      %v220 = vld [vmem:[%s165 + $0xc4] sm:$0x3]
      %v221 = vld [vmem:[%s165 + $0xc8] sm:$0xf]
      %v222 = vld [vmem:[%s165 + $0xcc] sm:$0xf]
      %v223 = vld [vmem:[%s165 + $0xd0] sm:$0xf]
      %v224 = vld [vmem:[%s165 + $0xd4] sm:$0xf]
      %v225 = vld [vmem:[%s165 + $0xd8] sm:$0x3]
      %v226 = vld [vmem:[%s165 + $0xdc] sm:$0xf]
      %v227 = vld [vmem:[%s165 + $0xe0] sm:$0xf]
      %v228 = vld [vmem:[%s165 + $0xe4] sm:$0xf]
      %v229 = vld [vmem:[%s165 + $0xe8] sm:$0xf]
      %v230 = vld [vmem:[%s165 + $0xec] sm:$0x3]
      %v231 = vld [vmem:[%s165 + $0xf0] sm:$0xf]
      %v232 = vld [vmem:[%s165 + $0xf4] sm:$0xf]
      %v233 = vld [vmem:[%s165 + $0xf8] sm:$0xf]
      %v234 = vld [vmem:[%s165 + $0xfc] sm:$0xf]
      %v235 = vld [vmem:[%s165 + $0x100] sm:$0x3]
      %v236 = vld [vmem:[%s165 + $0x104] sm:$0xf]
      %v237 = vld [vmem:[%s165 + $0x108] sm:$0xf]
      %v238 = vld [vmem:[%s165 + $0x10c] sm:$0xf]
      %v239 = vld [vmem:[%s165 + $0x110] sm:$0xf]
      %v240 = vld [vmem:[%s165 + $0x114] sm:$0x3]
      %v241 = vld [vmem:[%s165 + $0x118] sm:$0xf]
      %v242 = vld [vmem:[%s165 + $0x11c] sm:$0xf]
      %v243 = vld [vmem:[%s165 + $0x120] sm:$0xf]
      %v244 = vld [vmem:[%s165 + $0x124] sm:$0xf]
      %v245 = vld [vmem:[%s165 + $0x128] sm:$0x3]
      %v246 = vld [vmem:[%s165 + $0x12c] sm:$0xf]
      %v247 = vld [vmem:[%s165 + $0x130] sm:$0xf]
      %v248 = vld [vmem:[%s165 + $0x134] sm:$0xf]
      %v249 = vld [vmem:[%s165 + $0x138] sm:$0xf]
      %v250 = vld [vmem:[%s165 + $0x13c] sm:$0x3]
      %v251 = vld [vmem:[%s165 + $0x140] sm:$0xf]
      %v252 = vld [vmem:[%s165 + $0x144] sm:$0xf]
      %v253 = vld [vmem:[%s165 + $0x148] sm:$0xf]
      %v254 = vld [vmem:[%s165 + $0x14c] sm:$0xf]
      %v255 = vld [vmem:[%s165 + $0x150] sm:$0x3]
      %v256 = vld [vmem:[%s165 + $0x154] sm:$0xf]
      %v257 = vld [vmem:[%s165 + $0x158] sm:$0xf]
      %v258 = vld [vmem:[%s165 + $0x15c] sm:$0xf]
      %v259 = vld [vmem:[%s165 + $0x160] sm:$0xf]
      %v260 = vld [vmem:[%s165 + $0x164] sm:$0x3]
      %v261 = vld [vmem:[%s165 + $0x168] sm:$0xf]
      %v262 = vld [vmem:[%s165 + $0x16c] sm:$0xf]
      %v263 = vld [vmem:[%s165 + $0x170] sm:$0xf]
      %v264 = vld [vmem:[%s165 + $0x174] sm:$0xf]
      %v265 = vld [vmem:[%s165 + $0x178] sm:$0x3]
      %v266 = vld [vmem:[%s165 + $0x17c] sm:$0xf]
      %v267 = vld [vmem:[%s165 + $0x180] sm:$0xf]
      %v268 = vld [vmem:[%s165 + $0x184] sm:$0xf]
      %v269 = vld [vmem:[%s165 + $0x188] sm:$0xf]
      %v270 = vld [vmem:[%s165 + $0x18c] sm:$0x3]
      %v271 = vld [vmem:[%s165 + $0x190] sm:$0xf]
      %v272 = vld [vmem:[%s165 + $0x194] sm:$0xf]
      %v273 = vld [vmem:[%s165 + $0x198] sm:$0xf]
      %v274 = vld [vmem:[%s165 + $0x19c] sm:$0xf]
      %v275 = vld [vmem:[%s165 + $0x1a0] sm:$0x3]
      %v276 = vld [vmem:[%s165 + $0x1a4] sm:$0xf]
      %v277 = vld [vmem:[%s165 + $0x1a8] sm:$0xf]
      %v278 = vld [vmem:[%s165 + $0x1ac] sm:$0xf]
      %v279 = vld [vmem:[%s165 + $0x1b0] sm:$0xf]
      %v280 = vld [vmem:[%s165 + $0x1b4] sm:$0x3]
      %v281 = vld [vmem:[%s165 + $0x1b8] sm:$0xf]
      %v282 = vld [vmem:[%s165 + $0x1bc] sm:$0xf]
      %v283 = vld [vmem:[%s165 + $0x1c0] sm:$0xf]
      %v284 = vld [vmem:[%s165 + $0x1c4] sm:$0xf]
      %v285 = vld [vmem:[%s165 + $0x1c8] sm:$0x3]
      %v286 = vld [vmem:[%s165 + $0x1cc] sm:$0xf]
      %v287 = vld [vmem:[%s165 + $0x1d0] sm:$0xf]
      %v288 = vld [vmem:[%s165 + $0x1d4] sm:$0xf]
      %v289 = vld [vmem:[%s165 + $0x1d8] sm:$0xf]
      %v290 = vld [vmem:[%s165 + $0x1dc] sm:$0x3]
      %v291 = vld [vmem:[%s165 + $0x1e0] sm:$0xf]
      %v292 = vld [vmem:[%s165 + $0x1e4] sm:$0xf]
      %v293 = vld [vmem:[%s165 + $0x1e8] sm:$0xf]
      %v294 = vld [vmem:[%s165 + $0x1ec] sm:$0xf]
      %v295 = vld [vmem:[%s165 + $0x1f0] sm:$0x3]
      %v296 = vld [vmem:[%s165 + $0x1f4] sm:$0xf]
      %v297 = vld [vmem:[%s165 + $0x1f8] sm:$0xf]
      %v298 = vld [vmem:[%s165 + $0x1fc] sm:$0xf]
      %v299 = vld [vmem:[%s165 + $0x200] sm:$0xf]
      %v300 = vld [vmem:[%s165 + $0x204] sm:$0x3]
      %v301 = vld [vmem:[%s165 + $0x208] sm:$0xf]
      %v302 = vld [vmem:[%s165 + $0x20c] sm:$0xf]
      %v303 = vld [vmem:[%s165 + $0x210] sm:$0xf]
      %v304 = vld [vmem:[%s165 + $0x214] sm:$0xf]
      %v305 = vld [vmem:[%s165 + $0x218] sm:$0x3]
      %v306 = vld [vmem:[%s165 + $0x21c] sm:$0xf]
      %v307 = vld [vmem:[%s165 + $0x220] sm:$0xf]
      %v308 = vld [vmem:[%s165 + $0x224] sm:$0xf]
      %v309 = vld [vmem:[%s165 + $0x228] sm:$0xf]
      %v310 = vld [vmem:[%s165 + $0x22c] sm:$0x3]
      %v311 = vld [vmem:[%s165 + $0x230] sm:$0xf]
      %v312 = vld [vmem:[%s165 + $0x234] sm:$0xf]
      %v313 = vld [vmem:[%s165 + $0x238] sm:$0xf]
      %v314 = vld [vmem:[%s165 + $0x23c] sm:$0xf]
      %v315 = vld [vmem:[%s165 + $0x240] sm:$0x3]
      %v316 = vld [vmem:[%s165 + $0x244] sm:$0xf]
      %v317 = vld [vmem:[%s165 + $0x248] sm:$0xf]
      %v318 = vld [vmem:[%s165 + $0x24c] sm:$0xf]
      %v319 = vld [vmem:[%s165 + $0x250] sm:$0xf]
      %v320 = vld [vmem:[%s165 + $0x254] sm:$0x3]
      %v321 = vld [vmem:[%s165 + $0x258] sm:$0xf]
      %v322 = vld [vmem:[%s165 + $0x25c] sm:$0xf]
      %v323 = vld [vmem:[%s165 + $0x260] sm:$0xf]
      %v324 = vld [vmem:[%s165 + $0x264] sm:$0xf]
      %v325 = vld [vmem:[%s165 + $0x268] sm:$0x3]
      %v326 = vld [vmem:[%s165 + $0x26c] sm:$0xf]
      %v327 = vld [vmem:[%s165 + $0x270] sm:$0xf]
      %v328 = vld [vmem:[%s165 + $0x274] sm:$0xf]
      %v329 = vld [vmem:[%s165 + $0x278] sm:$0xf]
      %v330 = vld [vmem:[%s165 + $0x27c] sm:$0x3]
      %v331 = vld [vmem:[%s165 + $0x280] sm:$0xf]
      %v332 = vld [vmem:[%s165 + $0x284] sm:$0xf]
      %v333 = vld [vmem:[%s165 + $0x288] sm:$0xf]
      %v334 = vld [vmem:[%s165 + $0x28c] sm:$0xf]
      %v335 = vld [vmem:[%s165 + $0x290] sm:$0x3]
      %v336 = vld [vmem:[%s165 + $0x294] sm:$0xf]
      %v337 = vld [vmem:[%s165 + $0x298] sm:$0xf]
      %v338 = vld [vmem:[%s165 + $0x29c] sm:$0xf]
      %v339 = vld [vmem:[%s165 + $0x2a0] sm:$0xf]
      %v340 = vld [vmem:[%s165 + $0x2a4] sm:$0x3]
      %v341 = vld [vmem:[%s165 + $0x2a8] sm:$0xf]
      %v342 = vld [vmem:[%s165 + $0x2ac] sm:$0xf]
      %v343 = vld [vmem:[%s165 + $0x2b0] sm:$0xf]
      %v344 = vld [vmem:[%s165 + $0x2b4] sm:$0xf]
      %v345 = vld [vmem:[%s165 + $0x2b8] sm:$0x3]
      %vm346 = vsmask.f32 3328
      %vm347 = vsmask.f32 7440
      %vm348 = vmor %vm346, %vm347
      %v350 = vshrl.u32 %v171, 16
      %v352 = vrot.slane %v350, 4
      %v353 = vshll.u32 %v171, 16
      %v355 = vrot.slane %v353, 5
      %v356 = vor.u32 %v352, %v355
      %v357 = vrot.slane %v356, 4
      %v359 = vshll.u32 %v172, 16
      %v361 = vrot.slane %v359, 5
      %v362 = vsel %vm348, %v357, %v361
      %v363 = vshrl.u32 %v172, 16
      %v365 = vrot.slane %v363, 4
      %v366 = vor.u32 %v365, %v361
      %v367 = vrot.slane %v366, 4
      %v369 = vshll.u32 %v173, 16
      %v371 = vrot.slane %v369, 5
      %v372 = vsel %vm348, %v367, %v371
      %v373 = vshrl.u32 %v173, 16
      %v375 = vrot.slane %v373, 4
      %v376 = vor.u32 %v375, %v371
      %v377 = vrot.slane %v376, 4
      %v379 = vshll.u32 %v174, 16
      %v381 = vrot.slane %v379, 5
      %v382 = vsel %vm348, %v377, %v381
      %v383 = vshrl.u32 %v174, 16
      %v385 = vrot.slane %v383, 4
      %v386 = vor.u32 %v385, %v381
      %v387 = vrot.slane %v386, 4
      %v389 = vshll.u32 %v175, 16
      %v391 = vrot.slane %v389, 5
      %v392 = vsel %vm348, %v387, %v391
      %v394 = vshrl.u32 %v176, 16
      %v396 = vrot.slane %v394, 4
      %v397 = vshll.u32 %v176, 16
      %v399 = vrot.slane %v397, 5
      %v400 = vor.u32 %v396, %v399
      %v401 = vrot.slane %v400, 4
      %v403 = vshll.u32 %v177, 16
      %v405 = vrot.slane %v403, 5
      %v406 = vsel %vm348, %v401, %v405
      %v407 = vshrl.u32 %v177, 16
      %v409 = vrot.slane %v407, 4
      %v410 = vor.u32 %v409, %v405
      %v411 = vrot.slane %v410, 4
      %v413 = vshll.u32 %v178, 16
      %v415 = vrot.slane %v413, 5
      %v416 = vsel %vm348, %v411, %v415
      %v417 = vshrl.u32 %v178, 16
      %v419 = vrot.slane %v417, 4
      %v420 = vor.u32 %v419, %v415
      %v421 = vrot.slane %v420, 4
      %v423 = vshll.u32 %v179, 16
      %v425 = vrot.slane %v423, 5
      %v426 = vsel %vm348, %v421, %v425
      %v427 = vshrl.u32 %v179, 16
      %v429 = vrot.slane %v427, 4
      %v430 = vor.u32 %v429, %v425
      %v431 = vrot.slane %v430, 4
      %v433 = vshll.u32 %v180, 16
      %v435 = vrot.slane %v433, 5
      %v436 = vsel %vm348, %v431, %v435
      %v438 = vshrl.u32 %v181, 16
      %v440 = vrot.slane %v438, 4
      %v441 = vshll.u32 %v181, 16
      %v443 = vrot.slane %v441, 5
      %v444 = vor.u32 %v440, %v443
      %v445 = vrot.slane %v444, 4
      %v447 = vshll.u32 %v182, 16
      %v449 = vrot.slane %v447, 5
      %v450 = vsel %vm348, %v445, %v449
      %v451 = vshrl.u32 %v182, 16
      %v453 = vrot.slane %v451, 4
      %v454 = vor.u32 %v453, %v449
      %v455 = vrot.slane %v454, 4
      %v457 = vshll.u32 %v183, 16
      %v459 = vrot.slane %v457, 5
      %v460 = vsel %vm348, %v455, %v459
      %v461 = vshrl.u32 %v183, 16
      %v463 = vrot.slane %v461, 4
      %v464 = vor.u32 %v463, %v459
      %v465 = vrot.slane %v464, 4
      %v467 = vshll.u32 %v184, 16
      %v469 = vrot.slane %v467, 5
      %v470 = vsel %vm348, %v465, %v469
      %v471 = vshrl.u32 %v184, 16
      %v473 = vrot.slane %v471, 4
      %v474 = vor.u32 %v473, %v469
      %v475 = vrot.slane %v474, 4
      %v477 = vshll.u32 %v185, 16
      %v479 = vrot.slane %v477, 5
      %v480 = vsel %vm348, %v475, %v479
      %v482 = vshrl.u32 %v186, 16
      %v484 = vrot.slane %v482, 4
      %v485 = vshll.u32 %v186, 16
      %v487 = vrot.slane %v485, 5
      %v488 = vor.u32 %v484, %v487
      %v489 = vrot.slane %v488, 4
      %v491 = vshll.u32 %v187, 16
      %v493 = vrot.slane %v491, 5
      %v494 = vsel %vm348, %v489, %v493
      %v495 = vshrl.u32 %v187, 16
      %v497 = vrot.slane %v495, 4
      %v498 = vor.u32 %v497, %v493
      %v499 = vrot.slane %v498, 4
      %v501 = vshll.u32 %v188, 16
      %v503 = vrot.slane %v501, 5
      %v504 = vsel %vm348, %v499, %v503
      %v505 = vshrl.u32 %v188, 16
      %v507 = vrot.slane %v505, 4
      %v508 = vor.u32 %v507, %v503
      %v509 = vrot.slane %v508, 4
      %v511 = vshll.u32 %v189, 16
      %v513 = vrot.slane %v511, 5
      %v514 = vsel %vm348, %v509, %v513
      %v515 = vshrl.u32 %v189, 16
      %v517 = vrot.slane %v515, 4
      %v518 = vor.u32 %v517, %v513
      %v519 = vrot.slane %v518, 4
      %v521 = vshll.u32 %v190, 16
      %v523 = vrot.slane %v521, 5
      %v524 = vsel %vm348, %v519, %v523
      %v526 = vshrl.u32 %v191, 16
      %v528 = vrot.slane %v526, 4
      %v529 = vshll.u32 %v191, 16
      %v531 = vrot.slane %v529, 5
      %v532 = vor.u32 %v528, %v531
      %v533 = vrot.slane %v532, 4
      %v535 = vshll.u32 %v192, 16
      %v537 = vrot.slane %v535, 5
      %v538 = vsel %vm348, %v533, %v537
      %v539 = vshrl.u32 %v192, 16
      %v541 = vrot.slane %v539, 4
      %v542 = vor.u32 %v541, %v537
      %v543 = vrot.slane %v542, 4
      %v545 = vshll.u32 %v193, 16
      %v547 = vrot.slane %v545, 5
      %v548 = vsel %vm348, %v543, %v547
      %v549 = vshrl.u32 %v193, 16
      %v551 = vrot.slane %v549, 4
      %v552 = vor.u32 %v551, %v547
      %v553 = vrot.slane %v552, 4
      %v555 = vshll.u32 %v194, 16
      %v557 = vrot.slane %v555, 5
      %v558 = vsel %vm348, %v553, %v557
      %v559 = vshrl.u32 %v194, 16
      %v561 = vrot.slane %v559, 4
      %v562 = vor.u32 %v561, %v557
      %v563 = vrot.slane %v562, 4
      %v565 = vshll.u32 %v195, 16
      %v567 = vrot.slane %v565, 5
      %v568 = vsel %vm348, %v563, %v567
      %v570 = vshrl.u32 %v196, 16
      %v572 = vrot.slane %v570, 4
      %v573 = vshll.u32 %v196, 16
      %v575 = vrot.slane %v573, 5
      %v576 = vor.u32 %v572, %v575
      %v577 = vrot.slane %v576, 4
      %v579 = vshll.u32 %v197, 16
      %v581 = vrot.slane %v579, 5
      %v582 = vsel %vm348, %v577, %v581
      %v583 = vshrl.u32 %v197, 16
      %v585 = vrot.slane %v583, 4
      %v586 = vor.u32 %v585, %v581
      %v587 = vrot.slane %v586, 4
      %v589 = vshll.u32 %v198, 16
      %v591 = vrot.slane %v589, 5
      %v592 = vsel %vm348, %v587, %v591
      %v593 = vshrl.u32 %v198, 16
      %v595 = vrot.slane %v593, 4
      %v596 = vor.u32 %v595, %v591
      %v597 = vrot.slane %v596, 4
      %v599 = vshll.u32 %v199, 16
      %v601 = vrot.slane %v599, 5
      %v602 = vsel %vm348, %v597, %v601
      %v603 = vshrl.u32 %v199, 16
      %v605 = vrot.slane %v603, 4
      %v606 = vor.u32 %v605, %v601
      %v607 = vrot.slane %v606, 4
      %v609 = vshll.u32 %v200, 16
      %v611 = vrot.slane %v609, 5
      %v612 = vsel %vm348, %v607, %v611
      %v614 = vshrl.u32 %v201, 16
      %v616 = vrot.slane %v614, 4
      %v617 = vshll.u32 %v201, 16
      %v619 = vrot.slane %v617, 5
      %v620 = vor.u32 %v616, %v619
      %v621 = vrot.slane %v620, 4
      %v623 = vshll.u32 %v202, 16
      %v625 = vrot.slane %v623, 5
      %v626 = vsel %vm348, %v621, %v625
      %v627 = vshrl.u32 %v202, 16
      %v629 = vrot.slane %v627, 4
      %v630 = vor.u32 %v629, %v625
      %v631 = vrot.slane %v630, 4
      %v633 = vshll.u32 %v203, 16
      %v635 = vrot.slane %v633, 5
      %v636 = vsel %vm348, %v631, %v635
      %v637 = vshrl.u32 %v203, 16
      %v639 = vrot.slane %v637, 4
      %v640 = vor.u32 %v639, %v635
      %v641 = vrot.slane %v640, 4
      %v643 = vshll.u32 %v204, 16
      %v645 = vrot.slane %v643, 5
      %v646 = vsel %vm348, %v641, %v645
      %v647 = vshrl.u32 %v204, 16
      %v649 = vrot.slane %v647, 4
      %v650 = vor.u32 %v649, %v645
      %v651 = vrot.slane %v650, 4
      %v653 = vshll.u32 %v205, 16
      %v655 = vrot.slane %v653, 5
      %v656 = vsel %vm348, %v651, %v655
      %v658 = vshrl.u32 %v206, 16
      %v660 = vrot.slane %v658, 4
      %v661 = vshll.u32 %v206, 16
      %v663 = vrot.slane %v661, 5
      %v664 = vor.u32 %v660, %v663
      %v665 = vrot.slane %v664, 4
      %v667 = vshll.u32 %v207, 16
      %v669 = vrot.slane %v667, 5
      %v670 = vsel %vm348, %v665, %v669
      %v671 = vshrl.u32 %v207, 16
      %v673 = vrot.slane %v671, 4
      %v674 = vor.u32 %v673, %v669
      %v675 = vrot.slane %v674, 4
      %v677 = vshll.u32 %v208, 16
      %v679 = vrot.slane %v677, 5
      %v680 = vsel %vm348, %v675, %v679
      %v681 = vshrl.u32 %v208, 16
      %v683 = vrot.slane %v681, 4
      %v684 = vor.u32 %v683, %v679
      %v685 = vrot.slane %v684, 4
      %v687 = vshll.u32 %v209, 16
      %v689 = vrot.slane %v687, 5
      %v690 = vsel %vm348, %v685, %v689
      %v691 = vshrl.u32 %v209, 16
      %v693 = vrot.slane %v691, 4
      %v694 = vor.u32 %v693, %v689
      %v695 = vrot.slane %v694, 4
      %v697 = vshll.u32 %v210, 16
      %v699 = vrot.slane %v697, 5
      %v700 = vsel %vm348, %v695, %v699
      %v702 = vshrl.u32 %v211, 16
      %v704 = vrot.slane %v702, 4
      %v705 = vshll.u32 %v211, 16
      %v707 = vrot.slane %v705, 5
      %v708 = vor.u32 %v704, %v707
      %v709 = vrot.slane %v708, 4
      %v711 = vshll.u32 %v212, 16
      %v713 = vrot.slane %v711, 5
      %v714 = vsel %vm348, %v709, %v713
      %v715 = vshrl.u32 %v212, 16
      %v717 = vrot.slane %v715, 4
      %v718 = vor.u32 %v717, %v713
      %v719 = vrot.slane %v718, 4
      %v721 = vshll.u32 %v213, 16
      %v723 = vrot.slane %v721, 5
      %v724 = vsel %vm348, %v719, %v723
      %v725 = vshrl.u32 %v213, 16
      %v727 = vrot.slane %v725, 4
      %v728 = vor.u32 %v727, %v723
      %v729 = vrot.slane %v728, 4
      %v731 = vshll.u32 %v214, 16
      %v733 = vrot.slane %v731, 5
      %v734 = vsel %vm348, %v729, %v733
      %v735 = vshrl.u32 %v214, 16
      %v737 = vrot.slane %v735, 4
      %v738 = vor.u32 %v737, %v733
      %v739 = vrot.slane %v738, 4
      %v741 = vshll.u32 %v215, 16
      %v743 = vrot.slane %v741, 5
      %v744 = vsel %vm348, %v739, %v743
      %v746 = vshrl.u32 %v216, 16
      %v748 = vrot.slane %v746, 4
      %v749 = vshll.u32 %v216, 16
      %v751 = vrot.slane %v749, 5
      %v752 = vor.u32 %v748, %v751
      %v753 = vrot.slane %v752, 4
      %v755 = vshll.u32 %v217, 16
      %v757 = vrot.slane %v755, 5
      %v758 = vsel %vm348, %v753, %v757
      %v759 = vshrl.u32 %v217, 16
      %v761 = vrot.slane %v759, 4
      %v762 = vor.u32 %v761, %v757
      %v763 = vrot.slane %v762, 4
      %v765 = vshll.u32 %v218, 16
      %v767 = vrot.slane %v765, 5
      %v768 = vsel %vm348, %v763, %v767
      %v769 = vshrl.u32 %v218, 16
      %v771 = vrot.slane %v769, 4
      %v772 = vor.u32 %v771, %v767
      %v773 = vrot.slane %v772, 4
      %v775 = vshll.u32 %v219, 16
      %v777 = vrot.slane %v775, 5
      %v778 = vsel %vm348, %v773, %v777
      %v779 = vshrl.u32 %v219, 16
      %v781 = vrot.slane %v779, 4
      %v782 = vor.u32 %v781, %v777
      %v783 = vrot.slane %v782, 4
      %v785 = vshll.u32 %v220, 16
      %v787 = vrot.slane %v785, 5
      %v788 = vsel %vm348, %v783, %v787
      %v790 = vshrl.u32 %v221, 16
      %v792 = vrot.slane %v790, 4
      %v793 = vshll.u32 %v221, 16
      %v795 = vrot.slane %v793, 5
      %v796 = vor.u32 %v792, %v795
      %v797 = vrot.slane %v796, 4
      %v799 = vshll.u32 %v222, 16
      %v801 = vrot.slane %v799, 5
      %v802 = vsel %vm348, %v797, %v801
      %v803 = vshrl.u32 %v222, 16
      %v805 = vrot.slane %v803, 4
      %v806 = vor.u32 %v805, %v801
      %v807 = vrot.slane %v806, 4
      %v809 = vshll.u32 %v223, 16
      %v811 = vrot.slane %v809, 5
      %v812 = vsel %vm348, %v807, %v811
      %v813 = vshrl.u32 %v223, 16
      %v815 = vrot.slane %v813, 4
      %v816 = vor.u32 %v815, %v811
      %v817 = vrot.slane %v816, 4
      %v819 = vshll.u32 %v224, 16
      %v821 = vrot.slane %v819, 5
      %v822 = vsel %vm348, %v817, %v821
      %v823 = vshrl.u32 %v224, 16
      %v825 = vrot.slane %v823, 4
      %v826 = vor.u32 %v825, %v821
      %v827 = vrot.slane %v826, 4
      %v829 = vshll.u32 %v225, 16
      %v831 = vrot.slane %v829, 5
      %v832 = vsel %vm348, %v827, %v831
      %v834 = vshrl.u32 %v226, 16
      %v836 = vrot.slane %v834, 4
      %v837 = vshll.u32 %v226, 16
      %v839 = vrot.slane %v837, 5
      %v840 = vor.u32 %v836, %v839
      %v841 = vrot.slane %v840, 4
      %v843 = vshll.u32 %v227, 16
      %v845 = vrot.slane %v843, 5
      %v846 = vsel %vm348, %v841, %v845
      %v847 = vshrl.u32 %v227, 16
      %v849 = vrot.slane %v847, 4
      %v850 = vor.u32 %v849, %v845
      %v851 = vrot.slane %v850, 4
      %v853 = vshll.u32 %v228, 16
      %v855 = vrot.slane %v853, 5
      %v856 = vsel %vm348, %v851, %v855
      %v857 = vshrl.u32 %v228, 16
      %v859 = vrot.slane %v857, 4
      %v860 = vor.u32 %v859, %v855
      %v861 = vrot.slane %v860, 4
      %v863 = vshll.u32 %v229, 16
      %v865 = vrot.slane %v863, 5
      %v866 = vsel %vm348, %v861, %v865
      %v867 = vshrl.u32 %v229, 16
      %v869 = vrot.slane %v867, 4
      %v870 = vor.u32 %v869, %v865
      %v871 = vrot.slane %v870, 4
      %v873 = vshll.u32 %v230, 16
      %v875 = vrot.slane %v873, 5
      %v876 = vsel %vm348, %v871, %v875
      %v878 = vshrl.u32 %v231, 16
      %v880 = vrot.slane %v878, 4
      %v881 = vshll.u32 %v231, 16
      %v883 = vrot.slane %v881, 5
      %v884 = vor.u32 %v880, %v883
      %v885 = vrot.slane %v884, 4
      %v887 = vshll.u32 %v232, 16
      %v889 = vrot.slane %v887, 5
      %v890 = vsel %vm348, %v885, %v889
      %v891 = vshrl.u32 %v232, 16
      %v893 = vrot.slane %v891, 4
      %v894 = vor.u32 %v893, %v889
      %v895 = vrot.slane %v894, 4
      %v897 = vshll.u32 %v233, 16
      %v899 = vrot.slane %v897, 5
      %v900 = vsel %vm348, %v895, %v899
      %v901 = vshrl.u32 %v233, 16
      %v903 = vrot.slane %v901, 4
      %v904 = vor.u32 %v903, %v899
      %v905 = vrot.slane %v904, 4
      %v907 = vshll.u32 %v234, 16
      %v909 = vrot.slane %v907, 5
      %v910 = vsel %vm348, %v905, %v909
      %v911 = vshrl.u32 %v234, 16
      %v913 = vrot.slane %v911, 4
      %v914 = vor.u32 %v913, %v909
      %v915 = vrot.slane %v914, 4
      %v917 = vshll.u32 %v235, 16
      %v919 = vrot.slane %v917, 5
      %v920 = vsel %vm348, %v915, %v919
      %v922 = vshrl.u32 %v236, 16
      %v924 = vrot.slane %v922, 4
      %v925 = vshll.u32 %v236, 16
      %v927 = vrot.slane %v925, 5
      %v928 = vor.u32 %v924, %v927
      %v929 = vrot.slane %v928, 4
      %v931 = vshll.u32 %v237, 16
      %v933 = vrot.slane %v931, 5
      %v934 = vsel %vm348, %v929, %v933
      %v935 = vshrl.u32 %v237, 16
      %v937 = vrot.slane %v935, 4
      %v938 = vor.u32 %v937, %v933
      %v939 = vrot.slane %v938, 4
      %v941 = vshll.u32 %v238, 16
      %v943 = vrot.slane %v941, 5
      %v944 = vsel %vm348, %v939, %v943
      %v945 = vshrl.u32 %v238, 16
      %v947 = vrot.slane %v945, 4
      %v948 = vor.u32 %v947, %v943
      %v949 = vrot.slane %v948, 4
      %v951 = vshll.u32 %v239, 16
      %v953 = vrot.slane %v951, 5
      %v954 = vsel %vm348, %v949, %v953
      %v955 = vshrl.u32 %v239, 16
      %v957 = vrot.slane %v955, 4
      %v958 = vor.u32 %v957, %v953
      %v959 = vrot.slane %v958, 4
      %v961 = vshll.u32 %v240, 16
      %v963 = vrot.slane %v961, 5
      %v964 = vsel %vm348, %v959, %v963
      %v966 = vshrl.u32 %v241, 16
      %v968 = vrot.slane %v966, 4
      %v969 = vshll.u32 %v241, 16
      %v971 = vrot.slane %v969, 5
      %v972 = vor.u32 %v968, %v971
      %v973 = vrot.slane %v972, 4
      %v975 = vshll.u32 %v242, 16
      %v977 = vrot.slane %v975, 5
      %v978 = vsel %vm348, %v973, %v977
      %v979 = vshrl.u32 %v242, 16
      %v981 = vrot.slane %v979, 4
      %v982 = vor.u32 %v981, %v977
      %v983 = vrot.slane %v982, 4
      %v985 = vshll.u32 %v243, 16
      %v987 = vrot.slane %v985, 5
      %v988 = vsel %vm348, %v983, %v987
      %v989 = vshrl.u32 %v243, 16
      %v991 = vrot.slane %v989, 4
      %v992 = vor.u32 %v991, %v987
      %v993 = vrot.slane %v992, 4
      %v995 = vshll.u32 %v244, 16
      %v997 = vrot.slane %v995, 5
      %v998 = vsel %vm348, %v993, %v997
      %v999 = vshrl.u32 %v244, 16
      %v1001 = vrot.slane %v999, 4
      %v1002 = vor.u32 %v1001, %v997
      %v1003 = vrot.slane %v1002, 4
      %v1005 = vshll.u32 %v245, 16
      %v1007 = vrot.slane %v1005, 5
      %v1008 = vsel %vm348, %v1003, %v1007
      %v1010 = vshrl.u32 %v246, 16
      %v1012 = vrot.slane %v1010, 4
      %v1013 = vshll.u32 %v246, 16
      %v1015 = vrot.slane %v1013, 5
      %v1016 = vor.u32 %v1012, %v1015
      %v1017 = vrot.slane %v1016, 4
      %v1019 = vshll.u32 %v247, 16
      %v1021 = vrot.slane %v1019, 5
      %v1022 = vsel %vm348, %v1017, %v1021
      %v1023 = vshrl.u32 %v247, 16
      %v1025 = vrot.slane %v1023, 4
      %v1026 = vor.u32 %v1025, %v1021
      %v1027 = vrot.slane %v1026, 4
      %v1029 = vshll.u32 %v248, 16
      %v1031 = vrot.slane %v1029, 5
      %v1032 = vsel %vm348, %v1027, %v1031
      %v1033 = vshrl.u32 %v248, 16
      %v1035 = vrot.slane %v1033, 4
      %v1036 = vor.u32 %v1035, %v1031
      %v1037 = vrot.slane %v1036, 4
      %v1039 = vshll.u32 %v249, 16
      %v1041 = vrot.slane %v1039, 5
      %v1042 = vsel %vm348, %v1037, %v1041
      %v1043 = vshrl.u32 %v249, 16
      %v1045 = vrot.slane %v1043, 4
      %v1046 = vor.u32 %v1045, %v1041
      %v1047 = vrot.slane %v1046, 4
      %v1049 = vshll.u32 %v250, 16
      %v1051 = vrot.slane %v1049, 5
      %v1052 = vsel %vm348, %v1047, %v1051
      %v1054 = vshrl.u32 %v251, 16
      %v1056 = vrot.slane %v1054, 4
      %v1057 = vshll.u32 %v251, 16
      %v1059 = vrot.slane %v1057, 5
      %v1060 = vor.u32 %v1056, %v1059
      %v1061 = vrot.slane %v1060, 4
      %v1063 = vshll.u32 %v252, 16
      %v1065 = vrot.slane %v1063, 5
      %v1066 = vsel %vm348, %v1061, %v1065
      %v1067 = vshrl.u32 %v252, 16
      %v1069 = vrot.slane %v1067, 4
      %v1070 = vor.u32 %v1069, %v1065
      %v1071 = vrot.slane %v1070, 4
      %v1073 = vshll.u32 %v253, 16
      %v1075 = vrot.slane %v1073, 5
      %v1076 = vsel %vm348, %v1071, %v1075
      %v1077 = vshrl.u32 %v253, 16
      %v1079 = vrot.slane %v1077, 4
      %v1080 = vor.u32 %v1079, %v1075
      %v1081 = vrot.slane %v1080, 4
      %v1083 = vshll.u32 %v254, 16
      %v1085 = vrot.slane %v1083, 5
      %v1086 = vsel %vm348, %v1081, %v1085
      %v1087 = vshrl.u32 %v254, 16
      %v1089 = vrot.slane %v1087, 4
      %v1090 = vor.u32 %v1089, %v1085
      %v1091 = vrot.slane %v1090, 4
      %v1093 = vshll.u32 %v255, 16
      %v1095 = vrot.slane %v1093, 5
      %v1096 = vsel %vm348, %v1091, %v1095
      %v1098 = vshrl.u32 %v256, 16
      %v1100 = vrot.slane %v1098, 4
      %v1101 = vshll.u32 %v256, 16
      %v1103 = vrot.slane %v1101, 5
      %v1104 = vor.u32 %v1100, %v1103
      %v1105 = vrot.slane %v1104, 4
      %v1107 = vshll.u32 %v257, 16
      %v1109 = vrot.slane %v1107, 5
      %v1110 = vsel %vm348, %v1105, %v1109
      %v1111 = vshrl.u32 %v257, 16
      %v1113 = vrot.slane %v1111, 4
      %v1114 = vor.u32 %v1113, %v1109
      %v1115 = vrot.slane %v1114, 4
      %v1117 = vshll.u32 %v258, 16
      %v1119 = vrot.slane %v1117, 5
      %v1120 = vsel %vm348, %v1115, %v1119
      %v1121 = vshrl.u32 %v258, 16
      %v1123 = vrot.slane %v1121, 4
      %v1124 = vor.u32 %v1123, %v1119
      %v1125 = vrot.slane %v1124, 4
      %v1127 = vshll.u32 %v259, 16
      %v1129 = vrot.slane %v1127, 5
      %v1130 = vsel %vm348, %v1125, %v1129
      %v1131 = vshrl.u32 %v259, 16
      %v1133 = vrot.slane %v1131, 4
      %v1134 = vor.u32 %v1133, %v1129
      %v1135 = vrot.slane %v1134, 4
      %v1137 = vshll.u32 %v260, 16
      %v1139 = vrot.slane %v1137, 5
      %v1140 = vsel %vm348, %v1135, %v1139
      %v1142 = vshrl.u32 %v261, 16
      %v1144 = vrot.slane %v1142, 4
      %v1145 = vshll.u32 %v261, 16
      %v1147 = vrot.slane %v1145, 5
      %v1148 = vor.u32 %v1144, %v1147
      %v1149 = vrot.slane %v1148, 4
      %v1151 = vshll.u32 %v262, 16
      %v1153 = vrot.slane %v1151, 5
      %v1154 = vsel %vm348, %v1149, %v1153
      %v1155 = vshrl.u32 %v262, 16
      %v1157 = vrot.slane %v1155, 4
      %v1158 = vor.u32 %v1157, %v1153
      %v1159 = vrot.slane %v1158, 4
      %v1161 = vshll.u32 %v263, 16
      %v1163 = vrot.slane %v1161, 5
      %v1164 = vsel %vm348, %v1159, %v1163
      %v1165 = vshrl.u32 %v263, 16
      %v1167 = vrot.slane %v1165, 4
      %v1168 = vor.u32 %v1167, %v1163
      %v1169 = vrot.slane %v1168, 4
      %v1171 = vshll.u32 %v264, 16
      %v1173 = vrot.slane %v1171, 5
      %v1174 = vsel %vm348, %v1169, %v1173
      %v1175 = vshrl.u32 %v264, 16
      %v1177 = vrot.slane %v1175, 4
      %v1178 = vor.u32 %v1177, %v1173
      %v1179 = vrot.slane %v1178, 4
      %v1181 = vshll.u32 %v265, 16
      %v1183 = vrot.slane %v1181, 5
      %v1184 = vsel %vm348, %v1179, %v1183
      %v1186 = vshrl.u32 %v266, 16
      %v1188 = vrot.slane %v1186, 4
      %v1189 = vshll.u32 %v266, 16
      %v1191 = vrot.slane %v1189, 5
      %v1192 = vor.u32 %v1188, %v1191
      %v1193 = vrot.slane %v1192, 4
      %v1195 = vshll.u32 %v267, 16
      %v1197 = vrot.slane %v1195, 5
      %v1198 = vsel %vm348, %v1193, %v1197
      %v1199 = vshrl.u32 %v267, 16
      %v1201 = vrot.slane %v1199, 4
      %v1202 = vor.u32 %v1201, %v1197
      %v1203 = vrot.slane %v1202, 4
      %v1205 = vshll.u32 %v268, 16
      %v1207 = vrot.slane %v1205, 5
      %v1208 = vsel %vm348, %v1203, %v1207
      %v1209 = vshrl.u32 %v268, 16
      %v1211 = vrot.slane %v1209, 4
      %v1212 = vor.u32 %v1211, %v1207
      %v1213 = vrot.slane %v1212, 4
      %v1215 = vshll.u32 %v269, 16
      %v1217 = vrot.slane %v1215, 5
      %v1218 = vsel %vm348, %v1213, %v1217
      %v1219 = vshrl.u32 %v269, 16
      %v1221 = vrot.slane %v1219, 4
      %v1222 = vor.u32 %v1221, %v1217
      %v1223 = vrot.slane %v1222, 4
      %v1225 = vshll.u32 %v270, 16
      %v1227 = vrot.slane %v1225, 5
      %v1228 = vsel %vm348, %v1223, %v1227
      %v1230 = vshrl.u32 %v271, 16
      %v1232 = vrot.slane %v1230, 4
      %v1233 = vshll.u32 %v271, 16
      %v1235 = vrot.slane %v1233, 5
      %v1236 = vor.u32 %v1232, %v1235
      %v1237 = vrot.slane %v1236, 4
      %v1239 = vshll.u32 %v272, 16
      %v1241 = vrot.slane %v1239, 5
      %v1242 = vsel %vm348, %v1237, %v1241
      %v1243 = vshrl.u32 %v272, 16
      %v1245 = vrot.slane %v1243, 4
      %v1246 = vor.u32 %v1245, %v1241
      %v1247 = vrot.slane %v1246, 4
      %v1249 = vshll.u32 %v273, 16
      %v1251 = vrot.slane %v1249, 5
      %v1252 = vsel %vm348, %v1247, %v1251
      %v1253 = vshrl.u32 %v273, 16
      %v1255 = vrot.slane %v1253, 4
      %v1256 = vor.u32 %v1255, %v1251
      %v1257 = vrot.slane %v1256, 4
      %v1259 = vshll.u32 %v274, 16
      %v1261 = vrot.slane %v1259, 5
      %v1262 = vsel %vm348, %v1257, %v1261
      %v1263 = vshrl.u32 %v274, 16
      %v1265 = vrot.slane %v1263, 4
      %v1266 = vor.u32 %v1265, %v1261
      %v1267 = vrot.slane %v1266, 4
      %v1269 = vshll.u32 %v275, 16
      %v1271 = vrot.slane %v1269, 5
      %v1272 = vsel %vm348, %v1267, %v1271
      %v1274 = vshrl.u32 %v276, 16
      %v1276 = vrot.slane %v1274, 4
      %v1277 = vshll.u32 %v276, 16
      %v1279 = vrot.slane %v1277, 5
      %v1280 = vor.u32 %v1276, %v1279
      %v1281 = vrot.slane %v1280, 4
      %v1283 = vshll.u32 %v277, 16
      %v1285 = vrot.slane %v1283, 5
      %v1286 = vsel %vm348, %v1281, %v1285
      %v1287 = vshrl.u32 %v277, 16
      %v1289 = vrot.slane %v1287, 4
      %v1290 = vor.u32 %v1289, %v1285
      %v1291 = vrot.slane %v1290, 4
      %v1293 = vshll.u32 %v278, 16
      %v1295 = vrot.slane %v1293, 5
      %v1296 = vsel %vm348, %v1291, %v1295
      %v1297 = vshrl.u32 %v278, 16
      %v1299 = vrot.slane %v1297, 4
      %v1300 = vor.u32 %v1299, %v1295
      %v1301 = vrot.slane %v1300, 4
      %v1303 = vshll.u32 %v279, 16
      %v1305 = vrot.slane %v1303, 5
      %v1306 = vsel %vm348, %v1301, %v1305
      %v1307 = vshrl.u32 %v279, 16
      %v1309 = vrot.slane %v1307, 4
      %v1310 = vor.u32 %v1309, %v1305
      %v1311 = vrot.slane %v1310, 4
      %v1313 = vshll.u32 %v280, 16
      %v1315 = vrot.slane %v1313, 5
      %v1316 = vsel %vm348, %v1311, %v1315
      %v1318 = vshrl.u32 %v281, 16
      %v1320 = vrot.slane %v1318, 4
      %v1321 = vshll.u32 %v281, 16
      %v1323 = vrot.slane %v1321, 5
      %v1324 = vor.u32 %v1320, %v1323
      %v1325 = vrot.slane %v1324, 4
      %v1327 = vshll.u32 %v282, 16
      %v1329 = vrot.slane %v1327, 5
      %v1330 = vsel %vm348, %v1325, %v1329
      %v1331 = vshrl.u32 %v282, 16
      %v1333 = vrot.slane %v1331, 4
      %v1334 = vor.u32 %v1333, %v1329
      %v1335 = vrot.slane %v1334, 4
      %v1337 = vshll.u32 %v283, 16
      %v1339 = vrot.slane %v1337, 5
      %v1340 = vsel %vm348, %v1335, %v1339
      %v1341 = vshrl.u32 %v283, 16
      %v1343 = vrot.slane %v1341, 4
      %v1344 = vor.u32 %v1343, %v1339
      %v1345 = vrot.slane %v1344, 4
      %v1347 = vshll.u32 %v284, 16
      %v1349 = vrot.slane %v1347, 5
      %v1350 = vsel %vm348, %v1345, %v1349
      %v1351 = vshrl.u32 %v284, 16
      %v1353 = vrot.slane %v1351, 4
      %v1354 = vor.u32 %v1353, %v1349
      %v1355 = vrot.slane %v1354, 4
      %v1357 = vshll.u32 %v285, 16
      %v1359 = vrot.slane %v1357, 5
      %v1360 = vsel %vm348, %v1355, %v1359
      %v1362 = vshrl.u32 %v286, 16
      %v1364 = vrot.slane %v1362, 4
      %v1365 = vshll.u32 %v286, 16
      %v1367 = vrot.slane %v1365, 5
      %v1368 = vor.u32 %v1364, %v1367
      %v1369 = vrot.slane %v1368, 4
      %v1371 = vshll.u32 %v287, 16
      %v1373 = vrot.slane %v1371, 5
      %v1374 = vsel %vm348, %v1369, %v1373
      %v1375 = vshrl.u32 %v287, 16
      %v1377 = vrot.slane %v1375, 4
      %v1378 = vor.u32 %v1377, %v1373
      %v1379 = vrot.slane %v1378, 4
      %v1381 = vshll.u32 %v288, 16
      %v1383 = vrot.slane %v1381, 5
      %v1384 = vsel %vm348, %v1379, %v1383
      %v1385 = vshrl.u32 %v288, 16
      %v1387 = vrot.slane %v1385, 4
      %v1388 = vor.u32 %v1387, %v1383
      %v1389 = vrot.slane %v1388, 4
      %v1391 = vshll.u32 %v289, 16
      %v1393 = vrot.slane %v1391, 5
      %v1394 = vsel %vm348, %v1389, %v1393
      %v1395 = vshrl.u32 %v289, 16
      %v1397 = vrot.slane %v1395, 4
      %v1398 = vor.u32 %v1397, %v1393
      %v1399 = vrot.slane %v1398, 4
      %v1401 = vshll.u32 %v290, 16
      %v1403 = vrot.slane %v1401, 5
      %v1404 = vsel %vm348, %v1399, %v1403
      %v1406 = vshrl.u32 %v291, 16
      %v1408 = vrot.slane %v1406, 4
      %v1409 = vshll.u32 %v291, 16
      %v1411 = vrot.slane %v1409, 5
      %v1412 = vor.u32 %v1408, %v1411
      %v1413 = vrot.slane %v1412, 4
      %v1415 = vshll.u32 %v292, 16
      %v1417 = vrot.slane %v1415, 5
      %v1418 = vsel %vm348, %v1413, %v1417
      %v1419 = vshrl.u32 %v292, 16
      %v1421 = vrot.slane %v1419, 4
      %v1422 = vor.u32 %v1421, %v1417
      %v1423 = vrot.slane %v1422, 4
      %v1425 = vshll.u32 %v293, 16
      %v1427 = vrot.slane %v1425, 5
      %v1428 = vsel %vm348, %v1423, %v1427
      %v1429 = vshrl.u32 %v293, 16
      %v1431 = vrot.slane %v1429, 4
      %v1432 = vor.u32 %v1431, %v1427
      %v1433 = vrot.slane %v1432, 4
      %v1435 = vshll.u32 %v294, 16
      %v1437 = vrot.slane %v1435, 5
      %v1438 = vsel %vm348, %v1433, %v1437
      %v1439 = vshrl.u32 %v294, 16
      %v1441 = vrot.slane %v1439, 4
      %v1442 = vor.u32 %v1441, %v1437
      %v1443 = vrot.slane %v1442, 4
      %v1445 = vshll.u32 %v295, 16
      %v1447 = vrot.slane %v1445, 5
      %v1448 = vsel %vm348, %v1443, %v1447
      %v1450 = vshrl.u32 %v296, 16
      %v1452 = vrot.slane %v1450, 4
      %v1453 = vshll.u32 %v296, 16
      %v1455 = vrot.slane %v1453, 5
      %v1456 = vor.u32 %v1452, %v1455
      %v1457 = vrot.slane %v1456, 4
      %v1459 = vshll.u32 %v297, 16
      %v1461 = vrot.slane %v1459, 5
      %v1462 = vsel %vm348, %v1457, %v1461
      %v1463 = vshrl.u32 %v297, 16
      %v1465 = vrot.slane %v1463, 4
      %v1466 = vor.u32 %v1465, %v1461
      %v1467 = vrot.slane %v1466, 4
      %v1469 = vshll.u32 %v298, 16
      %v1471 = vrot.slane %v1469, 5
      %v1472 = vsel %vm348, %v1467, %v1471
      %v1473 = vshrl.u32 %v298, 16
      %v1475 = vrot.slane %v1473, 4
      %v1476 = vor.u32 %v1475, %v1471
      %v1477 = vrot.slane %v1476, 4
      %v1479 = vshll.u32 %v299, 16
      %v1481 = vrot.slane %v1479, 5
      %v1482 = vsel %vm348, %v1477, %v1481
      %v1483 = vshrl.u32 %v299, 16
      %v1485 = vrot.slane %v1483, 4
      %v1486 = vor.u32 %v1485, %v1481
      %v1487 = vrot.slane %v1486, 4
      %v1489 = vshll.u32 %v300, 16
      %v1491 = vrot.slane %v1489, 5
      %v1492 = vsel %vm348, %v1487, %v1491
      %v1494 = vshrl.u32 %v301, 16
      %v1496 = vrot.slane %v1494, 4
      %v1497 = vshll.u32 %v301, 16
      %v1499 = vrot.slane %v1497, 5
      %v1500 = vor.u32 %v1496, %v1499
      %v1501 = vrot.slane %v1500, 4
      %v1503 = vshll.u32 %v302, 16
      %v1505 = vrot.slane %v1503, 5
      %v1506 = vsel %vm348, %v1501, %v1505
      %v1507 = vshrl.u32 %v302, 16
      %v1509 = vrot.slane %v1507, 4
      %v1510 = vor.u32 %v1509, %v1505
      %v1511 = vrot.slane %v1510, 4
      %v1513 = vshll.u32 %v303, 16
      %v1515 = vrot.slane %v1513, 5
      %v1516 = vsel %vm348, %v1511, %v1515
      %v1517 = vshrl.u32 %v303, 16
      %v1519 = vrot.slane %v1517, 4
      %v1520 = vor.u32 %v1519, %v1515
      %v1521 = vrot.slane %v1520, 4
      %v1523 = vshll.u32 %v304, 16
      %v1525 = vrot.slane %v1523, 5
      %v1526 = vsel %vm348, %v1521, %v1525
      %v1527 = vshrl.u32 %v304, 16
      %v1529 = vrot.slane %v1527, 4
      %v1530 = vor.u32 %v1529, %v1525
      %v1531 = vrot.slane %v1530, 4
      %v1533 = vshll.u32 %v305, 16
      %v1535 = vrot.slane %v1533, 5
      %v1536 = vsel %vm348, %v1531, %v1535
      %v1538 = vshrl.u32 %v306, 16
      %v1540 = vrot.slane %v1538, 4
      %v1541 = vshll.u32 %v306, 16
      %v1543 = vrot.slane %v1541, 5
      %v1544 = vor.u32 %v1540, %v1543
      %v1545 = vrot.slane %v1544, 4
      %v1547 = vshll.u32 %v307, 16
      %v1549 = vrot.slane %v1547, 5
      %v1550 = vsel %vm348, %v1545, %v1549
      %v1551 = vshrl.u32 %v307, 16
      %v1553 = vrot.slane %v1551, 4
      %v1554 = vor.u32 %v1553, %v1549
      %v1555 = vrot.slane %v1554, 4
      %v1557 = vshll.u32 %v308, 16
      %v1559 = vrot.slane %v1557, 5
      %v1560 = vsel %vm348, %v1555, %v1559
      %v1561 = vshrl.u32 %v308, 16
      %v1563 = vrot.slane %v1561, 4
      %v1564 = vor.u32 %v1563, %v1559
      %v1565 = vrot.slane %v1564, 4
      %v1567 = vshll.u32 %v309, 16
      %v1569 = vrot.slane %v1567, 5
      %v1570 = vsel %vm348, %v1565, %v1569
      %v1571 = vshrl.u32 %v309, 16
      %v1573 = vrot.slane %v1571, 4
      %v1574 = vor.u32 %v1573, %v1569
      %v1575 = vrot.slane %v1574, 4
      %v1577 = vshll.u32 %v310, 16
      %v1579 = vrot.slane %v1577, 5
      %v1580 = vsel %vm348, %v1575, %v1579
      %v1582 = vshrl.u32 %v311, 16
      %v1584 = vrot.slane %v1582, 4
      %v1585 = vshll.u32 %v311, 16
      %v1587 = vrot.slane %v1585, 5
      %v1588 = vor.u32 %v1584, %v1587
      %v1589 = vrot.slane %v1588, 4
      %v1591 = vshll.u32 %v312, 16
      %v1593 = vrot.slane %v1591, 5
      %v1594 = vsel %vm348, %v1589, %v1593
      %v1595 = vshrl.u32 %v312, 16
      %v1597 = vrot.slane %v1595, 4
      %v1598 = vor.u32 %v1597, %v1593
      %v1599 = vrot.slane %v1598, 4
      %v1601 = vshll.u32 %v313, 16
      %v1603 = vrot.slane %v1601, 5
      %v1604 = vsel %vm348, %v1599, %v1603
      %v1605 = vshrl.u32 %v313, 16
      %v1607 = vrot.slane %v1605, 4
      %v1608 = vor.u32 %v1607, %v1603
      %v1609 = vrot.slane %v1608, 4
      %v1611 = vshll.u32 %v314, 16
      %v1613 = vrot.slane %v1611, 5
      %v1614 = vsel %vm348, %v1609, %v1613
      %v1615 = vshrl.u32 %v314, 16
      %v1617 = vrot.slane %v1615, 4
      %v1618 = vor.u32 %v1617, %v1613
      %v1619 = vrot.slane %v1618, 4
      %v1621 = vshll.u32 %v315, 16
      %v1623 = vrot.slane %v1621, 5
      %v1624 = vsel %vm348, %v1619, %v1623
      %v1626 = vshrl.u32 %v316, 16
      %v1628 = vrot.slane %v1626, 4
      %v1629 = vshll.u32 %v316, 16
      %v1631 = vrot.slane %v1629, 5
      %v1632 = vor.u32 %v1628, %v1631
      %v1633 = vrot.slane %v1632, 4
      %v1635 = vshll.u32 %v317, 16
      %v1637 = vrot.slane %v1635, 5
      %v1638 = vsel %vm348, %v1633, %v1637
      %v1639 = vshrl.u32 %v317, 16
      %v1641 = vrot.slane %v1639, 4
      %v1642 = vor.u32 %v1641, %v1637
      %v1643 = vrot.slane %v1642, 4
      %v1645 = vshll.u32 %v318, 16
      %v1647 = vrot.slane %v1645, 5
      %v1648 = vsel %vm348, %v1643, %v1647
      %v1649 = vshrl.u32 %v318, 16
      %v1651 = vrot.slane %v1649, 4
      %v1652 = vor.u32 %v1651, %v1647
      %v1653 = vrot.slane %v1652, 4
      %v1655 = vshll.u32 %v319, 16
      %v1657 = vrot.slane %v1655, 5
      %v1658 = vsel %vm348, %v1653, %v1657
      %v1659 = vshrl.u32 %v319, 16
      %v1661 = vrot.slane %v1659, 4
      %v1662 = vor.u32 %v1661, %v1657
      %v1663 = vrot.slane %v1662, 4
      %v1665 = vshll.u32 %v320, 16
      %v1667 = vrot.slane %v1665, 5
      %v1668 = vsel %vm348, %v1663, %v1667
      %v1670 = vshrl.u32 %v321, 16
      %v1672 = vrot.slane %v1670, 4
      %v1673 = vshll.u32 %v321, 16
      %v1675 = vrot.slane %v1673, 5
      %v1676 = vor.u32 %v1672, %v1675
      %v1677 = vrot.slane %v1676, 4
      %v1679 = vshll.u32 %v322, 16
      %v1681 = vrot.slane %v1679, 5
      %v1682 = vsel %vm348, %v1677, %v1681
      %v1683 = vshrl.u32 %v322, 16
      %v1685 = vrot.slane %v1683, 4
      %v1686 = vor.u32 %v1685, %v1681
      %v1687 = vrot.slane %v1686, 4
      %v1689 = vshll.u32 %v323, 16
      %v1691 = vrot.slane %v1689, 5
      %v1692 = vsel %vm348, %v1687, %v1691
      %v1693 = vshrl.u32 %v323, 16
      %v1695 = vrot.slane %v1693, 4
      %v1696 = vor.u32 %v1695, %v1691
      %v1697 = vrot.slane %v1696, 4
      %v1699 = vshll.u32 %v324, 16
      %v1701 = vrot.slane %v1699, 5
      %v1702 = vsel %vm348, %v1697, %v1701
      %v1703 = vshrl.u32 %v324, 16
      %v1705 = vrot.slane %v1703, 4
      %v1706 = vor.u32 %v1705, %v1701
      %v1707 = vrot.slane %v1706, 4
      %v1709 = vshll.u32 %v325, 16
      %v1711 = vrot.slane %v1709, 5
      %v1712 = vsel %vm348, %v1707, %v1711
      %v1714 = vshrl.u32 %v326, 16
      %v1716 = vrot.slane %v1714, 4
      %v1717 = vshll.u32 %v326, 16
      %v1719 = vrot.slane %v1717, 5
      %v1720 = vor.u32 %v1716, %v1719
      %v1721 = vrot.slane %v1720, 4
      %v1723 = vshll.u32 %v327, 16
      %v1725 = vrot.slane %v1723, 5
      %v1726 = vsel %vm348, %v1721, %v1725
      %v1727 = vshrl.u32 %v327, 16
      %v1729 = vrot.slane %v1727, 4
      %v1730 = vor.u32 %v1729, %v1725
      %v1731 = vrot.slane %v1730, 4
      %v1733 = vshll.u32 %v328, 16
      %v1735 = vrot.slane %v1733, 5
      %v1736 = vsel %vm348, %v1731, %v1735
      %v1737 = vshrl.u32 %v328, 16
      %v1739 = vrot.slane %v1737, 4
      %v1740 = vor.u32 %v1739, %v1735
      %v1741 = vrot.slane %v1740, 4
      %v1743 = vshll.u32 %v329, 16
      %v1745 = vrot.slane %v1743, 5
      %v1746 = vsel %vm348, %v1741, %v1745
      %v1747 = vshrl.u32 %v329, 16
      %v1749 = vrot.slane %v1747, 4
      %v1750 = vor.u32 %v1749, %v1745
      %v1751 = vrot.slane %v1750, 4
      %v1753 = vshll.u32 %v330, 16
      %v1755 = vrot.slane %v1753, 5
      %v1756 = vsel %vm348, %v1751, %v1755
      %vm1917 = vcmask 1042432
      %vm1918 = vcmask 1046532
      %vm1919 = vmor %vm1917, %vm1918
      %v1920 = vrot.slane %v171, 5
      %v1921 = vrot.slane %v1920, 4
      %v1922 = vrot.slane %v172, 5
      %v1923 = vsel %vm1919, %v1921, %v1922
      %v1924 = vrot.slane %v1922, 4
      %v1925 = vrot.slane %v173, 5
      %v1926 = vsel %vm1919, %v1924, %v1925
      %v1927 = vrot.slane %v1925, 4
      %v1928 = vrot.slane %v174, 5
      %v1929 = vsel %vm1919, %v1927, %v1928
      %v1930 = vrot.slane %v1928, 4
      %v1931 = vrot.slane %v175, 5
      %v1932 = vsel %vm1919, %v1930, %v1931
      %v1933 = vrot.slane %v176, 5
      %v1934 = vrot.slane %v1933, 4
      %v1935 = vrot.slane %v177, 5
      %v1936 = vsel %vm1919, %v1934, %v1935
      %v1937 = vrot.slane %v1935, 4
      %v1938 = vrot.slane %v178, 5
      %v1939 = vsel %vm1919, %v1937, %v1938
      %v1940 = vrot.slane %v1938, 4
      %v1941 = vrot.slane %v179, 5
      %v1942 = vsel %vm1919, %v1940, %v1941
      %v1943 = vrot.slane %v1941, 4
      %v1944 = vrot.slane %v180, 5
      %v1945 = vsel %vm1919, %v1943, %v1944
      %v1946 = vrot.slane %v181, 5
      %v1947 = vrot.slane %v1946, 4
      %v1948 = vrot.slane %v182, 5
      %v1949 = vsel %vm1919, %v1947, %v1948
      %v1950 = vrot.slane %v1948, 4
      %v1951 = vrot.slane %v183, 5
      %v1952 = vsel %vm1919, %v1950, %v1951
      %v1953 = vrot.slane %v1951, 4
      %v1954 = vrot.slane %v184, 5
      %v1955 = vsel %vm1919, %v1953, %v1954
      %v1956 = vrot.slane %v1954, 4
      %v1957 = vrot.slane %v185, 5
      %v1958 = vsel %vm1919, %v1956, %v1957
      %v1959 = vrot.slane %v186, 5
      %v1960 = vrot.slane %v1959, 4
      %v1961 = vrot.slane %v187, 5
      %v1962 = vsel %vm1919, %v1960, %v1961
      %v1963 = vrot.slane %v1961, 4
      %v1964 = vrot.slane %v188, 5
      %v1965 = vsel %vm1919, %v1963, %v1964
      %v1966 = vrot.slane %v1964, 4
      %v1967 = vrot.slane %v189, 5
      %v1968 = vsel %vm1919, %v1966, %v1967
      %v1969 = vrot.slane %v1967, 4
      %v1970 = vrot.slane %v190, 5
      %v1971 = vsel %vm1919, %v1969, %v1970
      %v1972 = vrot.slane %v191, 5
      %v1973 = vrot.slane %v1972, 4
      %v1974 = vrot.slane %v192, 5
      %v1975 = vsel %vm1919, %v1973, %v1974
      %v1976 = vrot.slane %v1974, 4
      %v1977 = vrot.slane %v193, 5
      %v1978 = vsel %vm1919, %v1976, %v1977
      %v1979 = vrot.slane %v1977, 4
      %v1980 = vrot.slane %v194, 5
      %v1981 = vsel %vm1919, %v1979, %v1980
      %v1982 = vrot.slane %v1980, 4
      %v1983 = vrot.slane %v195, 5
      %v1984 = vsel %vm1919, %v1982, %v1983
      %v1985 = vrot.slane %v196, 5
      %v1986 = vrot.slane %v1985, 4
      %v1987 = vrot.slane %v197, 5
      %v1988 = vsel %vm1919, %v1986, %v1987
      %v1989 = vrot.slane %v1987, 4
      %v1990 = vrot.slane %v198, 5
      %v1991 = vsel %vm1919, %v1989, %v1990
      %v1992 = vrot.slane %v1990, 4
      %v1993 = vrot.slane %v199, 5
      %v1994 = vsel %vm1919, %v1992, %v1993
      %v1995 = vrot.slane %v1993, 4
      %v1996 = vrot.slane %v200, 5
      %v1997 = vsel %vm1919, %v1995, %v1996
      %v1998 = vrot.slane %v201, 5
      %v1999 = vrot.slane %v1998, 4
      %v2000 = vrot.slane %v202, 5
      %v2001 = vsel %vm1919, %v1999, %v2000
      %v2002 = vrot.slane %v2000, 4
      %v2003 = vrot.slane %v203, 5
      %v2004 = vsel %vm1919, %v2002, %v2003
      %v2005 = vrot.slane %v2003, 4
      %v2006 = vrot.slane %v204, 5
      %v2007 = vsel %vm1919, %v2005, %v2006
      %v2008 = vrot.slane %v2006, 4
      %v2009 = vrot.slane %v205, 5
      %v2010 = vsel %vm1919, %v2008, %v2009
      %v2011 = vrot.slane %v206, 5
      %v2012 = vrot.slane %v2011, 4
      %v2013 = vrot.slane %v207, 5
      %v2014 = vsel %vm1919, %v2012, %v2013
      %v2015 = vrot.slane %v2013, 4
      %v2016 = vrot.slane %v208, 5
      %v2017 = vsel %vm1919, %v2015, %v2016
      %v2018 = vrot.slane %v2016, 4
      %v2019 = vrot.slane %v209, 5
      %v2020 = vsel %vm1919, %v2018, %v2019
      %v2021 = vrot.slane %v2019, 4
      %v2022 = vrot.slane %v210, 5
      %v2023 = vsel %vm1919, %v2021, %v2022
      %v2024 = vrot.slane %v211, 5
      %v2025 = vrot.slane %v2024, 4
      %v2026 = vrot.slane %v212, 5
      %v2027 = vsel %vm1919, %v2025, %v2026
      %v2028 = vrot.slane %v2026, 4
      %v2029 = vrot.slane %v213, 5
      %v2030 = vsel %vm1919, %v2028, %v2029
      %v2031 = vrot.slane %v2029, 4
      %v2032 = vrot.slane %v214, 5
      %v2033 = vsel %vm1919, %v2031, %v2032
      %v2034 = vrot.slane %v2032, 4
      %v2035 = vrot.slane %v215, 5
      %v2036 = vsel %vm1919, %v2034, %v2035
      %v2037 = vrot.slane %v216, 5
      %v2038 = vrot.slane %v2037, 4
      %v2039 = vrot.slane %v217, 5
      %v2040 = vsel %vm1919, %v2038, %v2039
      %v2041 = vrot.slane %v2039, 4
      %v2042 = vrot.slane %v218, 5
      %v2043 = vsel %vm1919, %v2041, %v2042
      %v2044 = vrot.slane %v2042, 4
      %v2045 = vrot.slane %v219, 5
      %v2046 = vsel %vm1919, %v2044, %v2045
      %v2047 = vrot.slane %v2045, 4
      %v2048 = vrot.slane %v220, 5
      %v2049 = vsel %vm1919, %v2047, %v2048
      %v2050 = vrot.slane %v221, 5
      %v2051 = vrot.slane %v2050, 4
      %v2052 = vrot.slane %v222, 5
      %v2053 = vsel %vm1919, %v2051, %v2052
      %v2054 = vrot.slane %v2052, 4
      %v2055 = vrot.slane %v223, 5
      %v2056 = vsel %vm1919, %v2054, %v2055
      %v2057 = vrot.slane %v2055, 4
      %v2058 = vrot.slane %v224, 5
      %v2059 = vsel %vm1919, %v2057, %v2058
      %v2060 = vrot.slane %v2058, 4
      %v2061 = vrot.slane %v225, 5
      %v2062 = vsel %vm1919, %v2060, %v2061
      %v2063 = vrot.slane %v226, 5
      %v2064 = vrot.slane %v2063, 4
      %v2065 = vrot.slane %v227, 5
      %v2066 = vsel %vm1919, %v2064, %v2065
      %v2067 = vrot.slane %v2065, 4
      %v2068 = vrot.slane %v228, 5
      %v2069 = vsel %vm1919, %v2067, %v2068
      %v2070 = vrot.slane %v2068, 4
      %v2071 = vrot.slane %v229, 5
      %v2072 = vsel %vm1919, %v2070, %v2071
      %v2073 = vrot.slane %v2071, 4
      %v2074 = vrot.slane %v230, 5
      %v2075 = vsel %vm1919, %v2073, %v2074
      %v2076 = vrot.slane %v231, 5
      %v2077 = vrot.slane %v2076, 4
      %v2078 = vrot.slane %v232, 5
      %v2079 = vsel %vm1919, %v2077, %v2078
      %v2080 = vrot.slane %v2078, 4
      %v2081 = vrot.slane %v233, 5
      %v2082 = vsel %vm1919, %v2080, %v2081
      %v2083 = vrot.slane %v2081, 4
      %v2084 = vrot.slane %v234, 5
      %v2085 = vsel %vm1919, %v2083, %v2084
      %v2086 = vrot.slane %v2084, 4
      %v2087 = vrot.slane %v235, 5
      %v2088 = vsel %vm1919, %v2086, %v2087
      %v2089 = vrot.slane %v236, 5
      %v2090 = vrot.slane %v2089, 4
      %v2091 = vrot.slane %v237, 5
      %v2092 = vsel %vm1919, %v2090, %v2091
      %v2093 = vrot.slane %v2091, 4
      %v2094 = vrot.slane %v238, 5
      %v2095 = vsel %vm1919, %v2093, %v2094
      %v2096 = vrot.slane %v2094, 4
      %v2097 = vrot.slane %v239, 5
      %v2098 = vsel %vm1919, %v2096, %v2097
      %v2099 = vrot.slane %v2097, 4
      %v2100 = vrot.slane %v240, 5
      %v2101 = vsel %vm1919, %v2099, %v2100
      %v2102 = vrot.slane %v241, 5
      %v2103 = vrot.slane %v2102, 4
      %v2104 = vrot.slane %v242, 5
      %v2105 = vsel %vm1919, %v2103, %v2104
      %v2106 = vrot.slane %v2104, 4
      %v2107 = vrot.slane %v243, 5
      %v2108 = vsel %vm1919, %v2106, %v2107
      %v2109 = vrot.slane %v2107, 4
      %v2110 = vrot.slane %v244, 5
      %v2111 = vsel %vm1919, %v2109, %v2110
      %v2112 = vrot.slane %v2110, 4
      %v2113 = vrot.slane %v245, 5
      %v2114 = vsel %vm1919, %v2112, %v2113
      %v2115 = vrot.slane %v246, 5
      %v2116 = vrot.slane %v2115, 4
      %v2117 = vrot.slane %v247, 5
      %v2118 = vsel %vm1919, %v2116, %v2117
      %v2119 = vrot.slane %v2117, 4
      %v2120 = vrot.slane %v248, 5
      %v2121 = vsel %vm1919, %v2119, %v2120
      %v2122 = vrot.slane %v2120, 4
      %v2123 = vrot.slane %v249, 5
      %v2124 = vsel %vm1919, %v2122, %v2123
      %v2125 = vrot.slane %v2123, 4
      %v2126 = vrot.slane %v250, 5
      %v2127 = vsel %vm1919, %v2125, %v2126
      %v2128 = vrot.slane %v251, 5
      %v2129 = vrot.slane %v2128, 4
      %v2130 = vrot.slane %v252, 5
      %v2131 = vsel %vm1919, %v2129, %v2130
      %v2132 = vrot.slane %v2130, 4
      %v2133 = vrot.slane %v253, 5
      %v2134 = vsel %vm1919, %v2132, %v2133
      %v2135 = vrot.slane %v2133, 4
      %v2136 = vrot.slane %v254, 5
      %v2137 = vsel %vm1919, %v2135, %v2136
      %v2138 = vrot.slane %v2136, 4
      %v2139 = vrot.slane %v255, 5
      %v2140 = vsel %vm1919, %v2138, %v2139
      %v2141 = vrot.slane %v256, 5
      %v2142 = vrot.slane %v2141, 4
      %v2143 = vrot.slane %v257, 5
      %v2144 = vsel %vm1919, %v2142, %v2143
      %v2145 = vrot.slane %v2143, 4
      %v2146 = vrot.slane %v258, 5
      %v2147 = vsel %vm1919, %v2145, %v2146
      %v2148 = vrot.slane %v2146, 4
      %v2149 = vrot.slane %v259, 5
      %v2150 = vsel %vm1919, %v2148, %v2149
      %v2151 = vrot.slane %v2149, 4
      %v2152 = vrot.slane %v260, 5
      %v2153 = vsel %vm1919, %v2151, %v2152
      %v2154 = vrot.slane %v261, 5
      %v2155 = vrot.slane %v2154, 4
      %v2156 = vrot.slane %v262, 5
      %v2157 = vsel %vm1919, %v2155, %v2156
      %v2158 = vrot.slane %v2156, 4
      %v2159 = vrot.slane %v263, 5
      %v2160 = vsel %vm1919, %v2158, %v2159
      %v2161 = vrot.slane %v2159, 4
      %v2162 = vrot.slane %v264, 5
      %v2163 = vsel %vm1919, %v2161, %v2162
      %v2164 = vrot.slane %v2162, 4
      %v2165 = vrot.slane %v265, 5
      %v2166 = vsel %vm1919, %v2164, %v2165
      %v2167 = vrot.slane %v266, 5
      %v2168 = vrot.slane %v2167, 4
      %v2169 = vrot.slane %v267, 5
      %v2170 = vsel %vm1919, %v2168, %v2169
      %v2171 = vrot.slane %v2169, 4
      %v2172 = vrot.slane %v268, 5
      %v2173 = vsel %vm1919, %v2171, %v2172
      %v2174 = vrot.slane %v2172, 4
      %v2175 = vrot.slane %v269, 5
      %v2176 = vsel %vm1919, %v2174, %v2175
      %v2177 = vrot.slane %v2175, 4
      %v2178 = vrot.slane %v270, 5
      %v2179 = vsel %vm1919, %v2177, %v2178
      %v2180 = vrot.slane %v271, 5
      %v2181 = vrot.slane %v2180, 4
      %v2182 = vrot.slane %v272, 5
      %v2183 = vsel %vm1919, %v2181, %v2182
      %v2184 = vrot.slane %v2182, 4
      %v2185 = vrot.slane %v273, 5
      %v2186 = vsel %vm1919, %v2184, %v2185
      %v2187 = vrot.slane %v2185, 4
      %v2188 = vrot.slane %v274, 5
      %v2189 = vsel %vm1919, %v2187, %v2188
      %v2190 = vrot.slane %v2188, 4
      %v2191 = vrot.slane %v275, 5
      %v2192 = vsel %vm1919, %v2190, %v2191
      %v2193 = vrot.slane %v276, 5
      %v2194 = vrot.slane %v2193, 4
      %v2195 = vrot.slane %v277, 5
      %v2196 = vsel %vm1919, %v2194, %v2195
      %v2197 = vrot.slane %v2195, 4
      %v2198 = vrot.slane %v278, 5
      %v2199 = vsel %vm1919, %v2197, %v2198
      %v2200 = vrot.slane %v2198, 4
      %v2201 = vrot.slane %v279, 5
      %v2202 = vsel %vm1919, %v2200, %v2201
      %v2203 = vrot.slane %v2201, 4
      %v2204 = vrot.slane %v280, 5
      %v2205 = vsel %vm1919, %v2203, %v2204
      %v2206 = vrot.slane %v281, 5
      %v2207 = vrot.slane %v2206, 4
      %v2208 = vrot.slane %v282, 5
      %v2209 = vsel %vm1919, %v2207, %v2208
      %v2210 = vrot.slane %v2208, 4
      %v2211 = vrot.slane %v283, 5
      %v2212 = vsel %vm1919, %v2210, %v2211
      %v2213 = vrot.slane %v2211, 4
      %v2214 = vrot.slane %v284, 5
      %v2215 = vsel %vm1919, %v2213, %v2214
      %v2216 = vrot.slane %v2214, 4
      %v2217 = vrot.slane %v285, 5
      %v2218 = vsel %vm1919, %v2216, %v2217
      %v2219 = vrot.slane %v286, 5
      %v2220 = vrot.slane %v2219, 4
      %v2221 = vrot.slane %v287, 5
      %v2222 = vsel %vm1919, %v2220, %v2221
      %v2223 = vrot.slane %v2221, 4
      %v2224 = vrot.slane %v288, 5
      %v2225 = vsel %vm1919, %v2223, %v2224
      %v2226 = vrot.slane %v2224, 4
      %v2227 = vrot.slane %v289, 5
      %v2228 = vsel %vm1919, %v2226, %v2227
      %v2229 = vrot.slane %v2227, 4
      %v2230 = vrot.slane %v290, 5
      %v2231 = vsel %vm1919, %v2229, %v2230
      %v2232 = vrot.slane %v291, 5
      %v2233 = vrot.slane %v2232, 4
      %v2234 = vrot.slane %v292, 5
      %v2235 = vsel %vm1919, %v2233, %v2234
      %v2236 = vrot.slane %v2234, 4
      %v2237 = vrot.slane %v293, 5
      %v2238 = vsel %vm1919, %v2236, %v2237
      %v2239 = vrot.slane %v2237, 4
      %v2240 = vrot.slane %v294, 5
      %v2241 = vsel %vm1919, %v2239, %v2240
      %v2242 = vrot.slane %v2240, 4
      %v2243 = vrot.slane %v295, 5
      %v2244 = vsel %vm1919, %v2242, %v2243
      %v2245 = vrot.slane %v296, 5
      %v2246 = vrot.slane %v2245, 4
      %v2247 = vrot.slane %v297, 5
      %v2248 = vsel %vm1919, %v2246, %v2247
      %v2249 = vrot.slane %v2247, 4
      %v2250 = vrot.slane %v298, 5
      %v2251 = vsel %vm1919, %v2249, %v2250
      %v2252 = vrot.slane %v2250, 4
      %v2253 = vrot.slane %v299, 5
      %v2254 = vsel %vm1919, %v2252, %v2253
      %v2255 = vrot.slane %v2253, 4
      %v2256 = vrot.slane %v300, 5
      %v2257 = vsel %vm1919, %v2255, %v2256
      %v2258 = vrot.slane %v301, 5
      %v2259 = vrot.slane %v2258, 4
      %v2260 = vrot.slane %v302, 5
      %v2261 = vsel %vm1919, %v2259, %v2260
      %v2262 = vrot.slane %v2260, 4
      %v2263 = vrot.slane %v303, 5
      %v2264 = vsel %vm1919, %v2262, %v2263
      %v2265 = vrot.slane %v2263, 4
      %v2266 = vrot.slane %v304, 5
      %v2267 = vsel %vm1919, %v2265, %v2266
      %v2268 = vrot.slane %v2266, 4
      %v2269 = vrot.slane %v305, 5
      %v2270 = vsel %vm1919, %v2268, %v2269
      %v2271 = vrot.slane %v306, 5
      %v2272 = vrot.slane %v2271, 4
      %v2273 = vrot.slane %v307, 5
      %v2274 = vsel %vm1919, %v2272, %v2273
      %v2275 = vrot.slane %v2273, 4
      %v2276 = vrot.slane %v308, 5
      %v2277 = vsel %vm1919, %v2275, %v2276
      %v2278 = vrot.slane %v2276, 4
      %v2279 = vrot.slane %v309, 5
      %v2280 = vsel %vm1919, %v2278, %v2279
      %v2281 = vrot.slane %v2279, 4
      %v2282 = vrot.slane %v310, 5
      %v2283 = vsel %vm1919, %v2281, %v2282
      %v2284 = vrot.slane %v311, 5
      %v2285 = vrot.slane %v2284, 4
      %v2286 = vrot.slane %v312, 5
      %v2287 = vsel %vm1919, %v2285, %v2286
      %v2288 = vrot.slane %v2286, 4
      %v2289 = vrot.slane %v313, 5
      %v2290 = vsel %vm1919, %v2288, %v2289
      %v2291 = vrot.slane %v2289, 4
      %v2292 = vrot.slane %v314, 5
      %v2293 = vsel %vm1919, %v2291, %v2292
      %v2294 = vrot.slane %v2292, 4
      %v2295 = vrot.slane %v315, 5
      %v2296 = vsel %vm1919, %v2294, %v2295
      %v2297 = vrot.slane %v316, 5
      %v2298 = vrot.slane %v2297, 4
      %v2299 = vrot.slane %v317, 5
      %v2300 = vsel %vm1919, %v2298, %v2299
      %v2301 = vrot.slane %v2299, 4
      %v2302 = vrot.slane %v318, 5
      %v2303 = vsel %vm1919, %v2301, %v2302
      %v2304 = vrot.slane %v2302, 4
      %v2305 = vrot.slane %v319, 5
      %v2306 = vsel %vm1919, %v2304, %v2305
      %v2307 = vrot.slane %v2305, 4
      %v2308 = vrot.slane %v320, 5
      %v2309 = vsel %vm1919, %v2307, %v2308
      %v2310 = vrot.slane %v321, 5
      %v2311 = vrot.slane %v2310, 4
      %v2312 = vrot.slane %v322, 5
      %v2313 = vsel %vm1919, %v2311, %v2312
      %v2314 = vrot.slane %v2312, 4
      %v2315 = vrot.slane %v323, 5
      %v2316 = vsel %vm1919, %v2314, %v2315
      %v2317 = vrot.slane %v2315, 4
      %v2318 = vrot.slane %v324, 5
      %v2319 = vsel %vm1919, %v2317, %v2318
      %v2320 = vrot.slane %v2318, 4
      %v2321 = vrot.slane %v325, 5
      %v2322 = vsel %vm1919, %v2320, %v2321
      %v2323 = vrot.slane %v326, 5
      %v2324 = vrot.slane %v2323, 4
      %v2325 = vrot.slane %v327, 5
      %v2326 = vsel %vm1919, %v2324, %v2325
      %v2327 = vrot.slane %v2325, 4
      %v2328 = vrot.slane %v328, 5
      %v2329 = vsel %vm1919, %v2327, %v2328
      %v2330 = vrot.slane %v2328, 4
      %v2331 = vrot.slane %v329, 5
      %v2332 = vsel %vm1919, %v2330, %v2331
      %v2333 = vrot.slane %v2331, 4
      %v2334 = vrot.slane %v330, 5
      %v2335 = vsel %vm1919, %v2333, %v2334
      %vm2336 = vsmask.f32 2304
      %vm2337 = vsmask.f32 6416
      %vm2338 = vmor %vm2336, %vm2337
      %v2339 = vrot.slane %v350, 5
      %v2340 = vrot.slane %v353, 6
      %v2341 = vor.u32 %v2339, %v2340
      %v2342 = vrot.slane %v2341, 4
      %v2343 = vrot.slane %v363, 5
      %v2344 = vrot.slane %v359, 6
      %v2345 = vor.u32 %v2343, %v2344
      %v2346 = vsel %vm2338, %v2342, %v2345
      %v2347 = vrot.slane %v2345, 4
      %v2348 = vrot.slane %v373, 5
      %v2349 = vrot.slane %v369, 6
      %v2350 = vor.u32 %v2348, %v2349
      %v2351 = vsel %vm2338, %v2347, %v2350
      %v2352 = vrot.slane %v2350, 4
      %v2353 = vrot.slane %v383, 5
      %v2354 = vrot.slane %v379, 6
      %v2355 = vor.u32 %v2353, %v2354
      %v2356 = vsel %vm2338, %v2352, %v2355
      %v2357 = vrot.slane %v2355, 4
      %v2358 = vshrl.u32 %v175, 16
      %v2360 = vrot.slane %v2358, 5
      %v2361 = vrot.slane %v389, 6
      %v2362 = vor.u32 %v2360, %v2361
      %v2363 = vsel %vm2338, %v2357, %v2362
      %v2364 = vrot.slane %v394, 5
      %v2365 = vrot.slane %v397, 6
      %v2366 = vor.u32 %v2364, %v2365
      %v2367 = vrot.slane %v2366, 4
      %v2368 = vrot.slane %v407, 5
      %v2369 = vrot.slane %v403, 6
      %v2370 = vor.u32 %v2368, %v2369
      %v2371 = vsel %vm2338, %v2367, %v2370
      %v2372 = vrot.slane %v2370, 4
      %v2373 = vrot.slane %v417, 5
      %v2374 = vrot.slane %v413, 6
      %v2375 = vor.u32 %v2373, %v2374
      %v2376 = vsel %vm2338, %v2372, %v2375
      %v2377 = vrot.slane %v2375, 4
      %v2378 = vrot.slane %v427, 5
      %v2379 = vrot.slane %v423, 6
      %v2380 = vor.u32 %v2378, %v2379
      %v2381 = vsel %vm2338, %v2377, %v2380
      %v2382 = vrot.slane %v2380, 4
      %v2383 = vshrl.u32 %v180, 16
      %v2385 = vrot.slane %v2383, 5
      %v2386 = vrot.slane %v433, 6
      %v2387 = vor.u32 %v2385, %v2386
      %v2388 = vsel %vm2338, %v2382, %v2387
      %v2389 = vrot.slane %v438, 5
      %v2390 = vrot.slane %v441, 6
      %v2391 = vor.u32 %v2389, %v2390
      %v2392 = vrot.slane %v2391, 4
      %v2393 = vrot.slane %v451, 5
      %v2394 = vrot.slane %v447, 6
      %v2395 = vor.u32 %v2393, %v2394
      %v2396 = vsel %vm2338, %v2392, %v2395
      %v2397 = vrot.slane %v2395, 4
      %v2398 = vrot.slane %v461, 5
      %v2399 = vrot.slane %v457, 6
      %v2400 = vor.u32 %v2398, %v2399
      %v2401 = vsel %vm2338, %v2397, %v2400
      %v2402 = vrot.slane %v2400, 4
      %v2403 = vrot.slane %v471, 5
      %v2404 = vrot.slane %v467, 6
      %v2405 = vor.u32 %v2403, %v2404
      %v2406 = vsel %vm2338, %v2402, %v2405
      %v2407 = vrot.slane %v2405, 4
      %v2408 = vshrl.u32 %v185, 16
      %v2410 = vrot.slane %v2408, 5
      %v2411 = vrot.slane %v477, 6
      %v2412 = vor.u32 %v2410, %v2411
      %v2413 = vsel %vm2338, %v2407, %v2412
      %v2414 = vrot.slane %v482, 5
      %v2415 = vrot.slane %v485, 6
      %v2416 = vor.u32 %v2414, %v2415
      %v2417 = vrot.slane %v2416, 4
      %v2418 = vrot.slane %v495, 5
      %v2419 = vrot.slane %v491, 6
      %v2420 = vor.u32 %v2418, %v2419
      %v2421 = vsel %vm2338, %v2417, %v2420
      %v2422 = vrot.slane %v2420, 4
      %v2423 = vrot.slane %v505, 5
      %v2424 = vrot.slane %v501, 6
      %v2425 = vor.u32 %v2423, %v2424
      %v2426 = vsel %vm2338, %v2422, %v2425
      %v2427 = vrot.slane %v2425, 4
      %v2428 = vrot.slane %v515, 5
      %v2429 = vrot.slane %v511, 6
      %v2430 = vor.u32 %v2428, %v2429
      %v2431 = vsel %vm2338, %v2427, %v2430
      %v2432 = vrot.slane %v2430, 4
      %v2433 = vshrl.u32 %v190, 16
      %v2435 = vrot.slane %v2433, 5
      %v2436 = vrot.slane %v521, 6
      %v2437 = vor.u32 %v2435, %v2436
      %v2438 = vsel %vm2338, %v2432, %v2437
      %v2439 = vrot.slane %v526, 5
      %v2440 = vrot.slane %v529, 6
      %v2441 = vor.u32 %v2439, %v2440
      %v2442 = vrot.slane %v2441, 4
      %v2443 = vrot.slane %v539, 5
      %v2444 = vrot.slane %v535, 6
      %v2445 = vor.u32 %v2443, %v2444
      %v2446 = vsel %vm2338, %v2442, %v2445
      %v2447 = vrot.slane %v2445, 4
      %v2448 = vrot.slane %v549, 5
      %v2449 = vrot.slane %v545, 6
      %v2450 = vor.u32 %v2448, %v2449
      %v2451 = vsel %vm2338, %v2447, %v2450
      %v2452 = vrot.slane %v2450, 4
      %v2453 = vrot.slane %v559, 5
      %v2454 = vrot.slane %v555, 6
      %v2455 = vor.u32 %v2453, %v2454
      %v2456 = vsel %vm2338, %v2452, %v2455
      %v2457 = vrot.slane %v2455, 4
      %v2458 = vshrl.u32 %v195, 16
      %v2460 = vrot.slane %v2458, 5
      %v2461 = vrot.slane %v565, 6
      %v2462 = vor.u32 %v2460, %v2461
      %v2463 = vsel %vm2338, %v2457, %v2462
      %v2464 = vrot.slane %v570, 5
      %v2465 = vrot.slane %v573, 6
      %v2466 = vor.u32 %v2464, %v2465
      %v2467 = vrot.slane %v2466, 4
      %v2468 = vrot.slane %v583, 5
      %v2469 = vrot.slane %v579, 6
      %v2470 = vor.u32 %v2468, %v2469
      %v2471 = vsel %vm2338, %v2467, %v2470
      %v2472 = vrot.slane %v2470, 4
      %v2473 = vrot.slane %v593, 5
      %v2474 = vrot.slane %v589, 6
      %v2475 = vor.u32 %v2473, %v2474
      %v2476 = vsel %vm2338, %v2472, %v2475
      %v2477 = vrot.slane %v2475, 4
      %v2478 = vrot.slane %v603, 5
      %v2479 = vrot.slane %v599, 6
      %v2480 = vor.u32 %v2478, %v2479
      %v2481 = vsel %vm2338, %v2477, %v2480
      %v2482 = vrot.slane %v2480, 4
      %v2483 = vshrl.u32 %v200, 16
      %v2485 = vrot.slane %v2483, 5
      %v2486 = vrot.slane %v609, 6
      %v2487 = vor.u32 %v2485, %v2486
      %v2488 = vsel %vm2338, %v2482, %v2487
      %v2489 = vrot.slane %v614, 5
      %v2490 = vrot.slane %v617, 6
      %v2491 = vor.u32 %v2489, %v2490
      %v2492 = vrot.slane %v2491, 4
      %v2493 = vrot.slane %v627, 5
      %v2494 = vrot.slane %v623, 6
      %v2495 = vor.u32 %v2493, %v2494
      %v2496 = vsel %vm2338, %v2492, %v2495
      %v2497 = vrot.slane %v2495, 4
      %v2498 = vrot.slane %v637, 5
      %v2499 = vrot.slane %v633, 6
      %v2500 = vor.u32 %v2498, %v2499
      %v2501 = vsel %vm2338, %v2497, %v2500
      %v2502 = vrot.slane %v2500, 4
      %v2503 = vrot.slane %v647, 5
      %v2504 = vrot.slane %v643, 6
      %v2505 = vor.u32 %v2503, %v2504
      %v2506 = vsel %vm2338, %v2502, %v2505
      %v2507 = vrot.slane %v2505, 4
      %v2508 = vshrl.u32 %v205, 16
      %v2510 = vrot.slane %v2508, 5
      %v2511 = vrot.slane %v653, 6
      %v2512 = vor.u32 %v2510, %v2511
      %v2513 = vsel %vm2338, %v2507, %v2512
      %v2514 = vrot.slane %v658, 5
      %v2515 = vrot.slane %v661, 6
      %v2516 = vor.u32 %v2514, %v2515
      %v2517 = vrot.slane %v2516, 4
      %v2518 = vrot.slane %v671, 5
      %v2519 = vrot.slane %v667, 6
      %v2520 = vor.u32 %v2518, %v2519
      %v2521 = vsel %vm2338, %v2517, %v2520
      %v2522 = vrot.slane %v2520, 4
      %v2523 = vrot.slane %v681, 5
      %v2524 = vrot.slane %v677, 6
      %v2525 = vor.u32 %v2523, %v2524
      %v2526 = vsel %vm2338, %v2522, %v2525
      %v2527 = vrot.slane %v2525, 4
      %v2528 = vrot.slane %v691, 5
      %v2529 = vrot.slane %v687, 6
      %v2530 = vor.u32 %v2528, %v2529
      %v2531 = vsel %vm2338, %v2527, %v2530
      %v2532 = vrot.slane %v2530, 4
      %v2533 = vshrl.u32 %v210, 16
      %v2535 = vrot.slane %v2533, 5
      %v2536 = vrot.slane %v697, 6
      %v2537 = vor.u32 %v2535, %v2536
      %v2538 = vsel %vm2338, %v2532, %v2537
      %v2539 = vrot.slane %v702, 5
      %v2540 = vrot.slane %v705, 6
      %v2541 = vor.u32 %v2539, %v2540
      %v2542 = vrot.slane %v2541, 4
      %v2543 = vrot.slane %v715, 5
      %v2544 = vrot.slane %v711, 6
      %v2545 = vor.u32 %v2543, %v2544
      %v2546 = vsel %vm2338, %v2542, %v2545
      %v2547 = vrot.slane %v2545, 4
      %v2548 = vrot.slane %v725, 5
      %v2549 = vrot.slane %v721, 6
      %v2550 = vor.u32 %v2548, %v2549
      %v2551 = vsel %vm2338, %v2547, %v2550
      %v2552 = vrot.slane %v2550, 4
      %v2553 = vrot.slane %v735, 5
      %v2554 = vrot.slane %v731, 6
      %v2555 = vor.u32 %v2553, %v2554
      %v2556 = vsel %vm2338, %v2552, %v2555
      %v2557 = vrot.slane %v2555, 4
      %v2558 = vshrl.u32 %v215, 16
      %v2560 = vrot.slane %v2558, 5
      %v2561 = vrot.slane %v741, 6
      %v2562 = vor.u32 %v2560, %v2561
      %v2563 = vsel %vm2338, %v2557, %v2562
      %v2564 = vrot.slane %v746, 5
      %v2565 = vrot.slane %v749, 6
      %v2566 = vor.u32 %v2564, %v2565
      %v2567 = vrot.slane %v2566, 4
      %v2568 = vrot.slane %v759, 5
      %v2569 = vrot.slane %v755, 6
      %v2570 = vor.u32 %v2568, %v2569
      %v2571 = vsel %vm2338, %v2567, %v2570
      %v2572 = vrot.slane %v2570, 4
      %v2573 = vrot.slane %v769, 5
      %v2574 = vrot.slane %v765, 6
      %v2575 = vor.u32 %v2573, %v2574
      %v2576 = vsel %vm2338, %v2572, %v2575
      %v2577 = vrot.slane %v2575, 4
      %v2578 = vrot.slane %v779, 5
      %v2579 = vrot.slane %v775, 6
      %v2580 = vor.u32 %v2578, %v2579
      %v2581 = vsel %vm2338, %v2577, %v2580
      %v2582 = vrot.slane %v2580, 4
      %v2583 = vshrl.u32 %v220, 16
      %v2585 = vrot.slane %v2583, 5
      %v2586 = vrot.slane %v785, 6
      %v2587 = vor.u32 %v2585, %v2586
      %v2588 = vsel %vm2338, %v2582, %v2587
      %v2589 = vrot.slane %v790, 5
      %v2590 = vrot.slane %v793, 6
      %v2591 = vor.u32 %v2589, %v2590
      %v2592 = vrot.slane %v2591, 4
      %v2593 = vrot.slane %v803, 5
      %v2594 = vrot.slane %v799, 6
      %v2595 = vor.u32 %v2593, %v2594
      %v2596 = vsel %vm2338, %v2592, %v2595
      %v2597 = vrot.slane %v2595, 4
      %v2598 = vrot.slane %v813, 5
      %v2599 = vrot.slane %v809, 6
      %v2600 = vor.u32 %v2598, %v2599
      %v2601 = vsel %vm2338, %v2597, %v2600
      %v2602 = vrot.slane %v2600, 4
      %v2603 = vrot.slane %v823, 5
      %v2604 = vrot.slane %v819, 6
      %v2605 = vor.u32 %v2603, %v2604
      %v2606 = vsel %vm2338, %v2602, %v2605
      %v2607 = vrot.slane %v2605, 4
      %v2608 = vshrl.u32 %v225, 16
      %v2610 = vrot.slane %v2608, 5
      %v2611 = vrot.slane %v829, 6
      %v2612 = vor.u32 %v2610, %v2611
      %v2613 = vsel %vm2338, %v2607, %v2612
      %v2614 = vrot.slane %v834, 5
      %v2615 = vrot.slane %v837, 6
      %v2616 = vor.u32 %v2614, %v2615
      %v2617 = vrot.slane %v2616, 4
      %v2618 = vrot.slane %v847, 5
      %v2619 = vrot.slane %v843, 6
      %v2620 = vor.u32 %v2618, %v2619
      %v2621 = vsel %vm2338, %v2617, %v2620
      %v2622 = vrot.slane %v2620, 4
      %v2623 = vrot.slane %v857, 5
      %v2624 = vrot.slane %v853, 6
      %v2625 = vor.u32 %v2623, %v2624
      %v2626 = vsel %vm2338, %v2622, %v2625
      %v2627 = vrot.slane %v2625, 4
      %v2628 = vrot.slane %v867, 5
      %v2629 = vrot.slane %v863, 6
      %v2630 = vor.u32 %v2628, %v2629
      %v2631 = vsel %vm2338, %v2627, %v2630
      %v2632 = vrot.slane %v2630, 4
      %v2633 = vshrl.u32 %v230, 16
      %v2635 = vrot.slane %v2633, 5
      %v2636 = vrot.slane %v873, 6
      %v2637 = vor.u32 %v2635, %v2636
      %v2638 = vsel %vm2338, %v2632, %v2637
      %v2639 = vrot.slane %v878, 5
      %v2640 = vrot.slane %v881, 6
      %v2641 = vor.u32 %v2639, %v2640
      %v2642 = vrot.slane %v2641, 4
      %v2643 = vrot.slane %v891, 5
      %v2644 = vrot.slane %v887, 6
      %v2645 = vor.u32 %v2643, %v2644
      %v2646 = vsel %vm2338, %v2642, %v2645
      %v2647 = vrot.slane %v2645, 4
      %v2648 = vrot.slane %v901, 5
      %v2649 = vrot.slane %v897, 6
      %v2650 = vor.u32 %v2648, %v2649
      %v2651 = vsel %vm2338, %v2647, %v2650
      %v2652 = vrot.slane %v2650, 4
      %v2653 = vrot.slane %v911, 5
      %v2654 = vrot.slane %v907, 6
      %v2655 = vor.u32 %v2653, %v2654
      %v2656 = vsel %vm2338, %v2652, %v2655
      %v2657 = vrot.slane %v2655, 4
      %v2658 = vshrl.u32 %v235, 16
      %v2660 = vrot.slane %v2658, 5
      %v2661 = vrot.slane %v917, 6
      %v2662 = vor.u32 %v2660, %v2661
      %v2663 = vsel %vm2338, %v2657, %v2662
      %v2664 = vrot.slane %v922, 5
      %v2665 = vrot.slane %v925, 6
      %v2666 = vor.u32 %v2664, %v2665
      %v2667 = vrot.slane %v2666, 4
      %v2668 = vrot.slane %v935, 5
      %v2669 = vrot.slane %v931, 6
      %v2670 = vor.u32 %v2668, %v2669
      %v2671 = vsel %vm2338, %v2667, %v2670
      %v2672 = vrot.slane %v2670, 4
      %v2673 = vrot.slane %v945, 5
      %v2674 = vrot.slane %v941, 6
      %v2675 = vor.u32 %v2673, %v2674
      %v2676 = vsel %vm2338, %v2672, %v2675
      %v2677 = vrot.slane %v2675, 4
      %v2678 = vrot.slane %v955, 5
      %v2679 = vrot.slane %v951, 6
      %v2680 = vor.u32 %v2678, %v2679
      %v2681 = vsel %vm2338, %v2677, %v2680
      %v2682 = vrot.slane %v2680, 4
      %v2683 = vshrl.u32 %v240, 16
      %v2685 = vrot.slane %v2683, 5
      %v2686 = vrot.slane %v961, 6
      %v2687 = vor.u32 %v2685, %v2686
      %v2688 = vsel %vm2338, %v2682, %v2687
      %v2689 = vrot.slane %v966, 5
      %v2690 = vrot.slane %v969, 6
      %v2691 = vor.u32 %v2689, %v2690
      %v2692 = vrot.slane %v2691, 4
      %v2693 = vrot.slane %v979, 5
      %v2694 = vrot.slane %v975, 6
      %v2695 = vor.u32 %v2693, %v2694
      %v2696 = vsel %vm2338, %v2692, %v2695
      %v2697 = vrot.slane %v2695, 4
      %v2698 = vrot.slane %v989, 5
      %v2699 = vrot.slane %v985, 6
      %v2700 = vor.u32 %v2698, %v2699
      %v2701 = vsel %vm2338, %v2697, %v2700
      %v2702 = vrot.slane %v2700, 4
      %v2703 = vrot.slane %v999, 5
      %v2704 = vrot.slane %v995, 6
      %v2705 = vor.u32 %v2703, %v2704
      %v2706 = vsel %vm2338, %v2702, %v2705
      %v2707 = vrot.slane %v2705, 4
      %v2708 = vshrl.u32 %v245, 16
      %v2710 = vrot.slane %v2708, 5
      %v2711 = vrot.slane %v1005, 6
      %v2712 = vor.u32 %v2710, %v2711
      %v2713 = vsel %vm2338, %v2707, %v2712
      %v2714 = vrot.slane %v1010, 5
      %v2715 = vrot.slane %v1013, 6
      %v2716 = vor.u32 %v2714, %v2715
      %v2717 = vrot.slane %v2716, 4
      %v2718 = vrot.slane %v1023, 5
      %v2719 = vrot.slane %v1019, 6
      %v2720 = vor.u32 %v2718, %v2719
      %v2721 = vsel %vm2338, %v2717, %v2720
      %v2722 = vrot.slane %v2720, 4
      %v2723 = vrot.slane %v1033, 5
      %v2724 = vrot.slane %v1029, 6
      %v2725 = vor.u32 %v2723, %v2724
      %v2726 = vsel %vm2338, %v2722, %v2725
      %v2727 = vrot.slane %v2725, 4
      %v2728 = vrot.slane %v1043, 5
      %v2729 = vrot.slane %v1039, 6
      %v2730 = vor.u32 %v2728, %v2729
      %v2731 = vsel %vm2338, %v2727, %v2730
      %v2732 = vrot.slane %v2730, 4
      %v2733 = vshrl.u32 %v250, 16
      %v2735 = vrot.slane %v2733, 5
      %v2736 = vrot.slane %v1049, 6
      %v2737 = vor.u32 %v2735, %v2736
      %v2738 = vsel %vm2338, %v2732, %v2737
      %v2739 = vrot.slane %v1054, 5
      %v2740 = vrot.slane %v1057, 6
      %v2741 = vor.u32 %v2739, %v2740
      %v2742 = vrot.slane %v2741, 4
      %v2743 = vrot.slane %v1067, 5
      %v2744 = vrot.slane %v1063, 6
      %v2745 = vor.u32 %v2743, %v2744
      %v2746 = vsel %vm2338, %v2742, %v2745
      %v2747 = vrot.slane %v2745, 4
      %v2748 = vrot.slane %v1077, 5
      %v2749 = vrot.slane %v1073, 6
      %v2750 = vor.u32 %v2748, %v2749
      %v2751 = vsel %vm2338, %v2747, %v2750
      %v2752 = vrot.slane %v2750, 4
      %v2753 = vrot.slane %v1087, 5
      %v2754 = vrot.slane %v1083, 6
      %v2755 = vor.u32 %v2753, %v2754
      %v2756 = vsel %vm2338, %v2752, %v2755
      %v2757 = vrot.slane %v2755, 4
      %v2758 = vshrl.u32 %v255, 16
      %v2760 = vrot.slane %v2758, 5
      %v2761 = vrot.slane %v1093, 6
      %v2762 = vor.u32 %v2760, %v2761
      %v2763 = vsel %vm2338, %v2757, %v2762
      %v2764 = vrot.slane %v1098, 5
      %v2765 = vrot.slane %v1101, 6
      %v2766 = vor.u32 %v2764, %v2765
      %v2767 = vrot.slane %v2766, 4
      %v2768 = vrot.slane %v1111, 5
      %v2769 = vrot.slane %v1107, 6
      %v2770 = vor.u32 %v2768, %v2769
      %v2771 = vsel %vm2338, %v2767, %v2770
      %v2772 = vrot.slane %v2770, 4
      %v2773 = vrot.slane %v1121, 5
      %v2774 = vrot.slane %v1117, 6
      %v2775 = vor.u32 %v2773, %v2774
      %v2776 = vsel %vm2338, %v2772, %v2775
      %v2777 = vrot.slane %v2775, 4
      %v2778 = vrot.slane %v1131, 5
      %v2779 = vrot.slane %v1127, 6
      %v2780 = vor.u32 %v2778, %v2779
      %v2781 = vsel %vm2338, %v2777, %v2780
      %v2782 = vrot.slane %v2780, 4
      %v2783 = vshrl.u32 %v260, 16
      %v2785 = vrot.slane %v2783, 5
      %v2786 = vrot.slane %v1137, 6
      %v2787 = vor.u32 %v2785, %v2786
      %v2788 = vsel %vm2338, %v2782, %v2787
      %v2789 = vrot.slane %v1142, 5
      %v2790 = vrot.slane %v1145, 6
      %v2791 = vor.u32 %v2789, %v2790
      %v2792 = vrot.slane %v2791, 4
      %v2793 = vrot.slane %v1155, 5
      %v2794 = vrot.slane %v1151, 6
      %v2795 = vor.u32 %v2793, %v2794
      %v2796 = vsel %vm2338, %v2792, %v2795
      %v2797 = vrot.slane %v2795, 4
      %v2798 = vrot.slane %v1165, 5
      %v2799 = vrot.slane %v1161, 6
      %v2800 = vor.u32 %v2798, %v2799
      %v2801 = vsel %vm2338, %v2797, %v2800
      %v2802 = vrot.slane %v2800, 4
      %v2803 = vrot.slane %v1175, 5
      %v2804 = vrot.slane %v1171, 6
      %v2805 = vor.u32 %v2803, %v2804
      %v2806 = vsel %vm2338, %v2802, %v2805
      %v2807 = vrot.slane %v2805, 4
      %v2808 = vshrl.u32 %v265, 16
      %v2810 = vrot.slane %v2808, 5
      %v2811 = vrot.slane %v1181, 6
      %v2812 = vor.u32 %v2810, %v2811
      %v2813 = vsel %vm2338, %v2807, %v2812
      %v2814 = vrot.slane %v1186, 5
      %v2815 = vrot.slane %v1189, 6
      %v2816 = vor.u32 %v2814, %v2815
      %v2817 = vrot.slane %v2816, 4
      %v2818 = vrot.slane %v1199, 5
      %v2819 = vrot.slane %v1195, 6
      %v2820 = vor.u32 %v2818, %v2819
      %v2821 = vsel %vm2338, %v2817, %v2820
      %v2822 = vrot.slane %v2820, 4
      %v2823 = vrot.slane %v1209, 5
      %v2824 = vrot.slane %v1205, 6
      %v2825 = vor.u32 %v2823, %v2824
      %v2826 = vsel %vm2338, %v2822, %v2825
      %v2827 = vrot.slane %v2825, 4
      %v2828 = vrot.slane %v1219, 5
      %v2829 = vrot.slane %v1215, 6
      %v2830 = vor.u32 %v2828, %v2829
      %v2831 = vsel %vm2338, %v2827, %v2830
      %v2832 = vrot.slane %v2830, 4
      %v2833 = vshrl.u32 %v270, 16
      %v2835 = vrot.slane %v2833, 5
      %v2836 = vrot.slane %v1225, 6
      %v2837 = vor.u32 %v2835, %v2836
      %v2838 = vsel %vm2338, %v2832, %v2837
      %v2839 = vrot.slane %v1230, 5
      %v2840 = vrot.slane %v1233, 6
      %v2841 = vor.u32 %v2839, %v2840
      %v2842 = vrot.slane %v2841, 4
      %v2843 = vrot.slane %v1243, 5
      %v2844 = vrot.slane %v1239, 6
      %v2845 = vor.u32 %v2843, %v2844
      %v2846 = vsel %vm2338, %v2842, %v2845
      %v2847 = vrot.slane %v2845, 4
      %v2848 = vrot.slane %v1253, 5
      %v2849 = vrot.slane %v1249, 6
      %v2850 = vor.u32 %v2848, %v2849
      %v2851 = vsel %vm2338, %v2847, %v2850
      %v2852 = vrot.slane %v2850, 4
      %v2853 = vrot.slane %v1263, 5
      %v2854 = vrot.slane %v1259, 6
      %v2855 = vor.u32 %v2853, %v2854
      %v2856 = vsel %vm2338, %v2852, %v2855
      %v2857 = vrot.slane %v2855, 4
      %v2858 = vshrl.u32 %v275, 16
      %v2860 = vrot.slane %v2858, 5
      %v2861 = vrot.slane %v1269, 6
      %v2862 = vor.u32 %v2860, %v2861
      %v2863 = vsel %vm2338, %v2857, %v2862
      %v2864 = vrot.slane %v1274, 5
      %v2865 = vrot.slane %v1277, 6
      %v2866 = vor.u32 %v2864, %v2865
      %v2867 = vrot.slane %v2866, 4
      %v2868 = vrot.slane %v1287, 5
      %v2869 = vrot.slane %v1283, 6
      %v2870 = vor.u32 %v2868, %v2869
      %v2871 = vsel %vm2338, %v2867, %v2870
      %v2872 = vrot.slane %v2870, 4
      %v2873 = vrot.slane %v1297, 5
      %v2874 = vrot.slane %v1293, 6
      %v2875 = vor.u32 %v2873, %v2874
      %v2876 = vsel %vm2338, %v2872, %v2875
      %v2877 = vrot.slane %v2875, 4
      %v2878 = vrot.slane %v1307, 5
      %v2879 = vrot.slane %v1303, 6
      %v2880 = vor.u32 %v2878, %v2879
      %v2881 = vsel %vm2338, %v2877, %v2880
      %v2882 = vrot.slane %v2880, 4
      %v2883 = vshrl.u32 %v280, 16
      %v2885 = vrot.slane %v2883, 5
      %v2886 = vrot.slane %v1313, 6
      %v2887 = vor.u32 %v2885, %v2886
      %v2888 = vsel %vm2338, %v2882, %v2887
      %v2889 = vrot.slane %v1318, 5
      %v2890 = vrot.slane %v1321, 6
      %v2891 = vor.u32 %v2889, %v2890
      %v2892 = vrot.slane %v2891, 4
      %v2893 = vrot.slane %v1331, 5
      %v2894 = vrot.slane %v1327, 6
      %v2895 = vor.u32 %v2893, %v2894
      %v2896 = vsel %vm2338, %v2892, %v2895
      %v2897 = vrot.slane %v2895, 4
      %v2898 = vrot.slane %v1341, 5
      %v2899 = vrot.slane %v1337, 6
      %v2900 = vor.u32 %v2898, %v2899
      %v2901 = vsel %vm2338, %v2897, %v2900
      %v2902 = vrot.slane %v2900, 4
      %v2903 = vrot.slane %v1351, 5
      %v2904 = vrot.slane %v1347, 6
      %v2905 = vor.u32 %v2903, %v2904
      %v2906 = vsel %vm2338, %v2902, %v2905
      %v2907 = vrot.slane %v2905, 4
      %v2908 = vshrl.u32 %v285, 16
      %v2910 = vrot.slane %v2908, 5
      %v2911 = vrot.slane %v1357, 6
      %v2912 = vor.u32 %v2910, %v2911
      %v2913 = vsel %vm2338, %v2907, %v2912
      %v2914 = vrot.slane %v1362, 5
      %v2915 = vrot.slane %v1365, 6
      %v2916 = vor.u32 %v2914, %v2915
      %v2917 = vrot.slane %v2916, 4
      %v2918 = vrot.slane %v1375, 5
      %v2919 = vrot.slane %v1371, 6
      %v2920 = vor.u32 %v2918, %v2919
      %v2921 = vsel %vm2338, %v2917, %v2920
      %v2922 = vrot.slane %v2920, 4
      %v2923 = vrot.slane %v1385, 5
      %v2924 = vrot.slane %v1381, 6
      %v2925 = vor.u32 %v2923, %v2924
      %v2926 = vsel %vm2338, %v2922, %v2925
      %v2927 = vrot.slane %v2925, 4
      %v2928 = vrot.slane %v1395, 5
      %v2929 = vrot.slane %v1391, 6
      %v2930 = vor.u32 %v2928, %v2929
      %v2931 = vsel %vm2338, %v2927, %v2930
      %v2932 = vrot.slane %v2930, 4
      %v2933 = vshrl.u32 %v290, 16
      %v2935 = vrot.slane %v2933, 5
      %v2936 = vrot.slane %v1401, 6
      %v2937 = vor.u32 %v2935, %v2936
      %v2938 = vsel %vm2338, %v2932, %v2937
      %v2939 = vrot.slane %v1406, 5
      %v2940 = vrot.slane %v1409, 6
      %v2941 = vor.u32 %v2939, %v2940
      %v2942 = vrot.slane %v2941, 4
      %v2943 = vrot.slane %v1419, 5
      %v2944 = vrot.slane %v1415, 6
      %v2945 = vor.u32 %v2943, %v2944
      %v2946 = vsel %vm2338, %v2942, %v2945
      %v2947 = vrot.slane %v2945, 4
      %v2948 = vrot.slane %v1429, 5
      %v2949 = vrot.slane %v1425, 6
      %v2950 = vor.u32 %v2948, %v2949
      %v2951 = vsel %vm2338, %v2947, %v2950
      %v2952 = vrot.slane %v2950, 4
      %v2953 = vrot.slane %v1439, 5
      %v2954 = vrot.slane %v1435, 6
      %v2955 = vor.u32 %v2953, %v2954
      %v2956 = vsel %vm2338, %v2952, %v2955
      %v2957 = vrot.slane %v2955, 4
      %v2958 = vshrl.u32 %v295, 16
      %v2960 = vrot.slane %v2958, 5
      %v2961 = vrot.slane %v1445, 6
      %v2962 = vor.u32 %v2960, %v2961
      %v2963 = vsel %vm2338, %v2957, %v2962
      %v2964 = vrot.slane %v1450, 5
      %v2965 = vrot.slane %v1453, 6
      %v2966 = vor.u32 %v2964, %v2965
      %v2967 = vrot.slane %v2966, 4
      %v2968 = vrot.slane %v1463, 5
      %v2969 = vrot.slane %v1459, 6
      %v2970 = vor.u32 %v2968, %v2969
      %v2971 = vsel %vm2338, %v2967, %v2970
      %v2972 = vrot.slane %v2970, 4
      %v2973 = vrot.slane %v1473, 5
      %v2974 = vrot.slane %v1469, 6
      %v2975 = vor.u32 %v2973, %v2974
      %v2976 = vsel %vm2338, %v2972, %v2975
      %v2977 = vrot.slane %v2975, 4
      %v2978 = vrot.slane %v1483, 5
      %v2979 = vrot.slane %v1479, 6
      %v2980 = vor.u32 %v2978, %v2979
      %v2981 = vsel %vm2338, %v2977, %v2980
      %v2982 = vrot.slane %v2980, 4
      %v2983 = vshrl.u32 %v300, 16
      %v2985 = vrot.slane %v2983, 5
      %v2986 = vrot.slane %v1489, 6
      %v2987 = vor.u32 %v2985, %v2986
      %v2988 = vsel %vm2338, %v2982, %v2987
      %v2989 = vrot.slane %v1494, 5
      %v2990 = vrot.slane %v1497, 6
      %v2991 = vor.u32 %v2989, %v2990
      %v2992 = vrot.slane %v2991, 4
      %v2993 = vrot.slane %v1507, 5
      %v2994 = vrot.slane %v1503, 6
      %v2995 = vor.u32 %v2993, %v2994
      %v2996 = vsel %vm2338, %v2992, %v2995
      %v2997 = vrot.slane %v2995, 4
      %v2998 = vrot.slane %v1517, 5
      %v2999 = vrot.slane %v1513, 6
      %v3000 = vor.u32 %v2998, %v2999
      %v3001 = vsel %vm2338, %v2997, %v3000
      %v3002 = vrot.slane %v3000, 4
      %v3003 = vrot.slane %v1527, 5
      %v3004 = vrot.slane %v1523, 6
      %v3005 = vor.u32 %v3003, %v3004
      %v3006 = vsel %vm2338, %v3002, %v3005
      %v3007 = vrot.slane %v3005, 4
      %v3008 = vshrl.u32 %v305, 16
      %v3010 = vrot.slane %v3008, 5
      %v3011 = vrot.slane %v1533, 6
      %v3012 = vor.u32 %v3010, %v3011
      %v3013 = vsel %vm2338, %v3007, %v3012
      %v3014 = vrot.slane %v1538, 5
      %v3015 = vrot.slane %v1541, 6
      %v3016 = vor.u32 %v3014, %v3015
      %v3017 = vrot.slane %v3016, 4
      %v3018 = vrot.slane %v1551, 5
      %v3019 = vrot.slane %v1547, 6
      %v3020 = vor.u32 %v3018, %v3019
      %v3021 = vsel %vm2338, %v3017, %v3020
      %v3022 = vrot.slane %v3020, 4
      %v3023 = vrot.slane %v1561, 5
      %v3024 = vrot.slane %v1557, 6
      %v3025 = vor.u32 %v3023, %v3024
      %v3026 = vsel %vm2338, %v3022, %v3025
      %v3027 = vrot.slane %v3025, 4
      %v3028 = vrot.slane %v1571, 5
      %v3029 = vrot.slane %v1567, 6
      %v3030 = vor.u32 %v3028, %v3029
      %v3031 = vsel %vm2338, %v3027, %v3030
      %v3032 = vrot.slane %v3030, 4
      %v3033 = vshrl.u32 %v310, 16
      %v3035 = vrot.slane %v3033, 5
      %v3036 = vrot.slane %v1577, 6
      %v3037 = vor.u32 %v3035, %v3036
      %v3038 = vsel %vm2338, %v3032, %v3037
      %v3039 = vrot.slane %v1582, 5
      %v3040 = vrot.slane %v1585, 6
      %v3041 = vor.u32 %v3039, %v3040
      %v3042 = vrot.slane %v3041, 4
      %v3043 = vrot.slane %v1595, 5
      %v3044 = vrot.slane %v1591, 6
      %v3045 = vor.u32 %v3043, %v3044
      %v3046 = vsel %vm2338, %v3042, %v3045
      %v3047 = vrot.slane %v3045, 4
      %v3048 = vrot.slane %v1605, 5
      %v3049 = vrot.slane %v1601, 6
      %v3050 = vor.u32 %v3048, %v3049
      %v3051 = vsel %vm2338, %v3047, %v3050
      %v3052 = vrot.slane %v3050, 4
      %v3053 = vrot.slane %v1615, 5
      %v3054 = vrot.slane %v1611, 6
      %v3055 = vor.u32 %v3053, %v3054
      %v3056 = vsel %vm2338, %v3052, %v3055
      %v3057 = vrot.slane %v3055, 4
      %v3058 = vshrl.u32 %v315, 16
      %v3060 = vrot.slane %v3058, 5
      %v3061 = vrot.slane %v1621, 6
      %v3062 = vor.u32 %v3060, %v3061
      %v3063 = vsel %vm2338, %v3057, %v3062
      %v3064 = vrot.slane %v1626, 5
      %v3065 = vrot.slane %v1629, 6
      %v3066 = vor.u32 %v3064, %v3065
      %v3067 = vrot.slane %v3066, 4
      %v3068 = vrot.slane %v1639, 5
      %v3069 = vrot.slane %v1635, 6
      %v3070 = vor.u32 %v3068, %v3069
      %v3071 = vsel %vm2338, %v3067, %v3070
      %v3072 = vrot.slane %v3070, 4
      %v3073 = vrot.slane %v1649, 5
      %v3074 = vrot.slane %v1645, 6
      %v3075 = vor.u32 %v3073, %v3074
      %v3076 = vsel %vm2338, %v3072, %v3075
      %v3077 = vrot.slane %v3075, 4
      %v3078 = vrot.slane %v1659, 5
      %v3079 = vrot.slane %v1655, 6
      %v3080 = vor.u32 %v3078, %v3079
      %v3081 = vsel %vm2338, %v3077, %v3080
      %v3082 = vrot.slane %v3080, 4
      %v3083 = vshrl.u32 %v320, 16
      %v3085 = vrot.slane %v3083, 5
      %v3086 = vrot.slane %v1665, 6
      %v3087 = vor.u32 %v3085, %v3086
      %v3088 = vsel %vm2338, %v3082, %v3087
      %v3089 = vrot.slane %v1670, 5
      %v3090 = vrot.slane %v1673, 6
      %v3091 = vor.u32 %v3089, %v3090
      %v3092 = vrot.slane %v3091, 4
      %v3093 = vrot.slane %v1683, 5
      %v3094 = vrot.slane %v1679, 6
      %v3095 = vor.u32 %v3093, %v3094
      %v3096 = vsel %vm2338, %v3092, %v3095
      %v3097 = vrot.slane %v3095, 4
      %v3098 = vrot.slane %v1693, 5
      %v3099 = vrot.slane %v1689, 6
      %v3100 = vor.u32 %v3098, %v3099
      %v3101 = vsel %vm2338, %v3097, %v3100
      %v3102 = vrot.slane %v3100, 4
      %v3103 = vrot.slane %v1703, 5
      %v3104 = vrot.slane %v1699, 6
      %v3105 = vor.u32 %v3103, %v3104
      %v3106 = vsel %vm2338, %v3102, %v3105
      %v3107 = vrot.slane %v3105, 4
      %v3108 = vshrl.u32 %v325, 16
      %v3110 = vrot.slane %v3108, 5
      %v3111 = vrot.slane %v1709, 6
      %v3112 = vor.u32 %v3110, %v3111
      %v3113 = vsel %vm2338, %v3107, %v3112
      %v3114 = vrot.slane %v1714, 5
      %v3115 = vrot.slane %v1717, 6
      %v3116 = vor.u32 %v3114, %v3115
      %v3117 = vrot.slane %v3116, 4
      %v3118 = vrot.slane %v1727, 5
      %v3119 = vrot.slane %v1723, 6
      %v3120 = vor.u32 %v3118, %v3119
      %v3121 = vsel %vm2338, %v3117, %v3120
      %v3122 = vrot.slane %v3120, 4
      %v3123 = vrot.slane %v1737, 5
      %v3124 = vrot.slane %v1733, 6
      %v3125 = vor.u32 %v3123, %v3124
      %v3126 = vsel %vm2338, %v3122, %v3125
      %v3127 = vrot.slane %v3125, 4
      %v3128 = vrot.slane %v1747, 5
      %v3129 = vrot.slane %v1743, 6
      %v3130 = vor.u32 %v3128, %v3129
      %v3131 = vsel %vm2338, %v3127, %v3130
      %v3132 = vrot.slane %v3130, 4
      %v3133 = vshrl.u32 %v330, 16
      %v3135 = vrot.slane %v3133, 5
      %v3136 = vrot.slane %v1753, 6
      %v3137 = vor.u32 %v3135, %v3136
      %v3138 = vsel %vm2338, %v3132, %v3137
      %v3140 = vshrl.u32 %v331, 16
      %v3142 = vrot.slane %v3140, 4
      %v3143 = vshll.u32 %v331, 16
      %v3145 = vrot.slane %v3143, 5
      %v3146 = vor.u32 %v3142, %v3145
      %v3147 = vrot.slane %v3146, 4
      %v3149 = vshll.u32 %v332, 16
      %v3151 = vrot.slane %v3149, 5
      %v3152 = vsel %vm348, %v3147, %v3151
      %v3153 = vshrl.u32 %v332, 16
      %v3155 = vrot.slane %v3153, 4
      %v3156 = vor.u32 %v3155, %v3151
      %v3157 = vrot.slane %v3156, 4
      %v3159 = vshll.u32 %v333, 16
      %v3161 = vrot.slane %v3159, 5
      %v3162 = vsel %vm348, %v3157, %v3161
      %v3163 = vshrl.u32 %v333, 16
      %v3165 = vrot.slane %v3163, 4
      %v3166 = vor.u32 %v3165, %v3161
      %v3167 = vrot.slane %v3166, 4
      %v3169 = vshll.u32 %v334, 16
      %v3171 = vrot.slane %v3169, 5
      %v3172 = vsel %vm348, %v3167, %v3171
      %v3173 = vshrl.u32 %v334, 16
      %v3175 = vrot.slane %v3173, 4
      %v3176 = vor.u32 %v3175, %v3171
      %v3177 = vrot.slane %v3176, 4
      %v3179 = vshll.u32 %v335, 16
      %v3181 = vrot.slane %v3179, 5
      %v3182 = vsel %vm348, %v3177, %v3181
      %v3188 = vrot.slane %v331, 5
      %v3189 = vrot.slane %v3188, 4
      %v3190 = vrot.slane %v332, 5
      %v3191 = vsel %vm1919, %v3189, %v3190
      %v3192 = vrot.slane %v3190, 4
      %v3193 = vrot.slane %v333, 5
      %v3194 = vsel %vm1919, %v3192, %v3193
      %v3195 = vrot.slane %v3193, 4
      %v3196 = vrot.slane %v334, 5
      %v3197 = vsel %vm1919, %v3195, %v3196
      %v3198 = vrot.slane %v3196, 4
      %v3199 = vrot.slane %v335, 5
      %v3200 = vsel %vm1919, %v3198, %v3199
      %v3201 = vrot.slane %v3140, 5
      %v3202 = vrot.slane %v3143, 6
      %v3203 = vor.u32 %v3201, %v3202
      %v3204 = vrot.slane %v3203, 4
      %v3205 = vrot.slane %v3153, 5
      %v3206 = vrot.slane %v3149, 6
      %v3207 = vor.u32 %v3205, %v3206
      %v3208 = vsel %vm2338, %v3204, %v3207
      %v3209 = vrot.slane %v3207, 4
      %v3210 = vrot.slane %v3163, 5
      %v3211 = vrot.slane %v3159, 6
      %v3212 = vor.u32 %v3210, %v3211
      %v3213 = vsel %vm2338, %v3209, %v3212
      %v3214 = vrot.slane %v3212, 4
      %v3215 = vrot.slane %v3173, 5
      %v3216 = vrot.slane %v3169, 6
      %v3217 = vor.u32 %v3215, %v3216
      %v3218 = vsel %vm2338, %v3214, %v3217
      %v3219 = vrot.slane %v3217, 4
      %v3220 = vshrl.u32 %v335, 16
      %v3222 = vrot.slane %v3220, 5
      %v3223 = vrot.slane %v3179, 6
      %v3224 = vor.u32 %v3222, %v3223
      %v3225 = vsel %vm2338, %v3219, %v3224
      %v3227 = vshrl.u32 %v336, 16
      %v3229 = vrot.slane %v3227, 4
      %v3230 = vshll.u32 %v336, 16
      %v3232 = vrot.slane %v3230, 5
      %v3233 = vor.u32 %v3229, %v3232
      %v3234 = vrot.slane %v3233, 4
      %v3236 = vshll.u32 %v337, 16
      %v3238 = vrot.slane %v3236, 5
      %v3239 = vsel %vm348, %v3234, %v3238
      %v3240 = vshrl.u32 %v337, 16
      %v3242 = vrot.slane %v3240, 4
      %v3243 = vor.u32 %v3242, %v3238
      %v3244 = vrot.slane %v3243, 4
      %v3246 = vshll.u32 %v338, 16
      %v3248 = vrot.slane %v3246, 5
      %v3249 = vsel %vm348, %v3244, %v3248
      %v3250 = vshrl.u32 %v338, 16
      %v3252 = vrot.slane %v3250, 4
      %v3253 = vor.u32 %v3252, %v3248
      %v3254 = vrot.slane %v3253, 4
      %v3256 = vshll.u32 %v339, 16
      %v3258 = vrot.slane %v3256, 5
      %v3259 = vsel %vm348, %v3254, %v3258
      %v3260 = vshrl.u32 %v339, 16
      %v3262 = vrot.slane %v3260, 4
      %v3263 = vor.u32 %v3262, %v3258
      %v3264 = vrot.slane %v3263, 4
      %v3266 = vshll.u32 %v340, 16
      %v3268 = vrot.slane %v3266, 5
      %v3269 = vsel %vm348, %v3264, %v3268
      %v3275 = vrot.slane %v336, 5
      %v3276 = vrot.slane %v3275, 4
      %v3277 = vrot.slane %v337, 5
      %v3278 = vsel %vm1919, %v3276, %v3277
      %v3279 = vrot.slane %v3277, 4
      %v3280 = vrot.slane %v338, 5
      %v3281 = vsel %vm1919, %v3279, %v3280
      %v3282 = vrot.slane %v3280, 4
      %v3283 = vrot.slane %v339, 5
      %v3284 = vsel %vm1919, %v3282, %v3283
      %v3285 = vrot.slane %v3283, 4
      %v3286 = vrot.slane %v340, 5
      %v3287 = vsel %vm1919, %v3285, %v3286
      %v3288 = vrot.slane %v3227, 5
      %v3289 = vrot.slane %v3230, 6
      %v3290 = vor.u32 %v3288, %v3289
      %v3291 = vrot.slane %v3290, 4
      %v3292 = vrot.slane %v3240, 5
      %v3293 = vrot.slane %v3236, 6
      %v3294 = vor.u32 %v3292, %v3293
      %v3295 = vsel %vm2338, %v3291, %v3294
      %v3296 = vrot.slane %v3294, 4
      %v3297 = vrot.slane %v3250, 5
      %v3298 = vrot.slane %v3246, 6
      %v3299 = vor.u32 %v3297, %v3298
      %v3300 = vsel %vm2338, %v3296, %v3299
      %v3301 = vrot.slane %v3299, 4
      %v3302 = vrot.slane %v3260, 5
      %v3303 = vrot.slane %v3256, 6
      %v3304 = vor.u32 %v3302, %v3303
      %v3305 = vsel %vm2338, %v3301, %v3304
      %v3306 = vrot.slane %v3304, 4
      %v3307 = vshrl.u32 %v340, 16
      %v3309 = vrot.slane %v3307, 5
      %v3310 = vrot.slane %v3266, 6
      %v3311 = vor.u32 %v3309, %v3310
      %v3312 = vsel %vm2338, %v3306, %v3311
      %v3314 = vshrl.u32 %v341, 16
      %v3316 = vrot.slane %v3314, 4
      %v3317 = vshll.u32 %v341, 16
      %v3319 = vrot.slane %v3317, 5
      %v3320 = vor.u32 %v3316, %v3319
      %v3321 = vrot.slane %v3320, 4
      %v3323 = vshll.u32 %v342, 16
      %v3325 = vrot.slane %v3323, 5
      %v3326 = vsel %vm348, %v3321, %v3325
      %v3327 = vshrl.u32 %v342, 16
      %v3329 = vrot.slane %v3327, 4
      %v3330 = vor.u32 %v3329, %v3325
      %v3331 = vrot.slane %v3330, 4
      %v3333 = vshll.u32 %v343, 16
      %v3335 = vrot.slane %v3333, 5
      %v3336 = vsel %vm348, %v3331, %v3335
      %v3337 = vshrl.u32 %v343, 16
      %v3339 = vrot.slane %v3337, 4
      %v3340 = vor.u32 %v3339, %v3335
      %v3341 = vrot.slane %v3340, 4
      %v3343 = vshll.u32 %v344, 16
      %v3345 = vrot.slane %v3343, 5
      %v3346 = vsel %vm348, %v3341, %v3345
      %v3347 = vshrl.u32 %v344, 16
      %v3349 = vrot.slane %v3347, 4
      %v3350 = vor.u32 %v3349, %v3345
      %v3351 = vrot.slane %v3350, 4
      %v3353 = vshll.u32 %v345, 16
      %v3355 = vrot.slane %v3353, 5
      %v3356 = vsel %vm348, %v3351, %v3355
      %v3362 = vrot.slane %v341, 5
      %v3363 = vrot.slane %v3362, 4
      %v3364 = vrot.slane %v342, 5
      %v3365 = vsel %vm1919, %v3363, %v3364
      %v3366 = vrot.slane %v3364, 4
      %v3367 = vrot.slane %v343, 5
      %v3368 = vsel %vm1919, %v3366, %v3367
      %v3369 = vrot.slane %v3367, 4
      %v3370 = vrot.slane %v344, 5
      %v3371 = vsel %vm1919, %v3369, %v3370
      %v3372 = vrot.slane %v3370, 4
      %v3373 = vrot.slane %v345, 5
      %v3374 = vsel %vm1919, %v3372, %v3373
      %v3375 = vrot.slane %v3314, 5
      %v3376 = vrot.slane %v3317, 6
      %v3377 = vor.u32 %v3375, %v3376
      %v3378 = vrot.slane %v3377, 4
      %v3379 = vrot.slane %v3327, 5
      %v3380 = vrot.slane %v3323, 6
      %v3381 = vor.u32 %v3379, %v3380
      %v3382 = vsel %vm2338, %v3378, %v3381
      %v3383 = vrot.slane %v3381, 4
      %v3384 = vrot.slane %v3337, 5
      %v3385 = vrot.slane %v3333, 6
      %v3386 = vor.u32 %v3384, %v3385
      %v3387 = vsel %vm2338, %v3383, %v3386
      %v3388 = vrot.slane %v3386, 4
      %v3389 = vrot.slane %v3347, 5
      %v3390 = vrot.slane %v3343, 6
      %v3391 = vor.u32 %v3389, %v3390
      %v3392 = vsel %vm2338, %v3388, %v3391
      %v3393 = vrot.slane %v3391, 4
      %v3394 = vshrl.u32 %v345, 16
      %v3396 = vrot.slane %v3394, 5
      %v3397 = vrot.slane %v3353, 6
      %v3398 = vor.u32 %v3396, %v3397
      %v3399 = vsel %vm2338, %v3393, %v3398
      %v3400 = vunpack.c.l.b16 %v171
      %v3401 = vunpack.c.l.b16 %v172
      %v3402 = vunpack.c.l.b16 %v173
      %v3403 = vunpack.c.l.b16 %v174
      %v3404 = vunpack.c.l.b16 %v176
      %v3405 = vunpack.c.l.b16 %v177
      %v3406 = vunpack.c.l.b16 %v178
      %v3407 = vunpack.c.l.b16 %v179
      %v3408 = vunpack.c.l.b16 %v181
      %v3409 = vunpack.c.l.b16 %v182
      %v3410 = vunpack.c.l.b16 %v183
      %v3411 = vunpack.c.l.b16 %v184
      %v3412 = vunpack.c.l.b16 %v186
      %v3413 = vunpack.c.l.b16 %v187
      %v3414 = vunpack.c.l.b16 %v188
      %v3415 = vunpack.c.l.b16 %v189
      %v3416 = vunpack.c.l.b16 %v191
      %v3417 = vunpack.c.l.b16 %v192
      %v3418 = vunpack.c.l.b16 %v193
      %v3419 = vunpack.c.l.b16 %v194
      %v3420 = vunpack.c.l.b16 %v196
      %v3421 = vunpack.c.l.b16 %v197
      %v3422 = vunpack.c.l.b16 %v198
      %v3423 = vunpack.c.l.b16 %v199
      %v3424 = vunpack.c.l.b16 %v201
      %v3425 = vunpack.c.l.b16 %v202
      %v3426 = vunpack.c.l.b16 %v203
      %v3427 = vunpack.c.l.b16 %v204
      %v3428 = vunpack.c.l.b16 %v206
      %v3429 = vunpack.c.l.b16 %v207
      %v3430 = vunpack.c.l.b16 %v208
      %v3431 = vunpack.c.l.b16 %v209
      %v3432 = vunpack.c.l.b16 %v211
      %v3433 = vunpack.c.l.b16 %v212
      %v3434 = vunpack.c.l.b16 %v213
      %v3435 = vunpack.c.l.b16 %v214
      %v3436 = vunpack.c.l.b16 %v216
      %v3437 = vunpack.c.l.b16 %v217
      %v3438 = vunpack.c.l.b16 %v218
      %v3439 = vunpack.c.l.b16 %v219
      %v3440 = vunpack.c.l.b16 %v221
      %v3441 = vunpack.c.l.b16 %v222
      %v3442 = vunpack.c.l.b16 %v223
      %v3443 = vunpack.c.l.b16 %v224
      %v3444 = vunpack.c.l.b16 %v226
      %v3445 = vunpack.c.l.b16 %v227
      %v3446 = vunpack.c.l.b16 %v228
      %v3447 = vunpack.c.l.b16 %v229
      %v3448 = vunpack.c.l.b16 %v231
      %v3449 = vunpack.c.l.b16 %v232
      %v3450 = vunpack.c.l.b16 %v233
      %v3451 = vunpack.c.l.b16 %v234
      %v3452 = vunpack.c.l.b16 %v236
      %v3453 = vunpack.c.l.b16 %v237
      %v3454 = vunpack.c.l.b16 %v238
      %v3455 = vunpack.c.l.b16 %v239
      %v3456 = vunpack.c.l.b16 %v241
      %v3457 = vunpack.c.l.b16 %v242
      %v3458 = vunpack.c.l.b16 %v243
      %v3459 = vunpack.c.l.b16 %v244
      %v3460 = vunpack.c.l.b16 %v246
      %v3461 = vunpack.c.l.b16 %v247
      %v3462 = vunpack.c.l.b16 %v248
      %v3463 = vunpack.c.l.b16 %v249
      %v3464 = vunpack.c.l.b16 %v251
      %v3465 = vunpack.c.l.b16 %v252
      %v3466 = vunpack.c.l.b16 %v253
      %v3467 = vunpack.c.l.b16 %v254
      %v3468 = vunpack.c.l.b16 %v256
      %v3469 = vunpack.c.l.b16 %v257
      %v3470 = vunpack.c.l.b16 %v258
      %v3471 = vunpack.c.l.b16 %v259
      %v3472 = vunpack.c.l.b16 %v261
      %v3473 = vunpack.c.l.b16 %v262
      %v3474 = vunpack.c.l.b16 %v263
      %v3475 = vunpack.c.l.b16 %v264
      %v3476 = vunpack.c.l.b16 %v266
      %v3477 = vunpack.c.l.b16 %v267
      %v3478 = vunpack.c.l.b16 %v268
      %v3479 = vunpack.c.l.b16 %v269
      %v3480 = vunpack.c.l.b16 %v271
      %v3481 = vunpack.c.l.b16 %v272
      %v3482 = vunpack.c.l.b16 %v273
      %v3483 = vunpack.c.l.b16 %v274
      %v3484 = vunpack.c.l.b16 %v276
      %v3485 = vunpack.c.l.b16 %v277
      %v3486 = vunpack.c.l.b16 %v278
      %v3487 = vunpack.c.l.b16 %v279
      %v3488 = vunpack.c.l.b16 %v281
      %v3489 = vunpack.c.l.b16 %v282
      %v3490 = vunpack.c.l.b16 %v283
      %v3491 = vunpack.c.l.b16 %v284
      %v3492 = vunpack.c.l.b16 %v286
      %v3493 = vunpack.c.l.b16 %v287
      %v3494 = vunpack.c.l.b16 %v288
      %v3495 = vunpack.c.l.b16 %v289
      %v3496 = vunpack.c.l.b16 %v291
      %v3497 = vunpack.c.l.b16 %v292
      %v3498 = vunpack.c.l.b16 %v293
      %v3499 = vunpack.c.l.b16 %v294
      %v3500 = vunpack.c.l.b16 %v296
      %v3501 = vunpack.c.l.b16 %v297
      %v3502 = vunpack.c.l.b16 %v298
      %v3503 = vunpack.c.l.b16 %v299
      %v3504 = vunpack.c.l.b16 %v301
      %v3505 = vunpack.c.l.b16 %v302
      %v3506 = vunpack.c.l.b16 %v303
      %v3507 = vunpack.c.l.b16 %v304
      %v3508 = vunpack.c.l.b16 %v306
      %v3509 = vunpack.c.l.b16 %v307
      %v3510 = vunpack.c.l.b16 %v308
      %v3511 = vunpack.c.l.b16 %v309
      %v3512 = vunpack.c.l.b16 %v311
      %v3513 = vunpack.c.l.b16 %v312
      %v3514 = vunpack.c.l.b16 %v313
      %v3515 = vunpack.c.l.b16 %v314
      %v3516 = vunpack.c.l.b16 %v316
      %v3517 = vunpack.c.l.b16 %v317
      %v3518 = vunpack.c.l.b16 %v318
      %v3519 = vunpack.c.l.b16 %v319
      %v3520 = vunpack.c.l.b16 %v321
      %v3521 = vunpack.c.l.b16 %v322
      %v3522 = vunpack.c.l.b16 %v323
      %v3523 = vunpack.c.l.b16 %v324
      %v3524 = vunpack.c.l.b16 %v326
      %v3525 = vunpack.c.l.b16 %v327
      %v3526 = vunpack.c.l.b16 %v328
      %v3527 = vunpack.c.l.b16 %v329
      %v3528 = vpack.c.b16 %v3401, %v3400
      %v3529 = vpack.c.b16 %v3403, %v3402
      %v3530 = vpack.c.b16 %v3405, %v3404
      %v3531 = vpack.c.b16 %v3407, %v3406
      %v3532 = vpack.c.b16 %v3409, %v3408
      %v3533 = vpack.c.b16 %v3411, %v3410
      %v3534 = vpack.c.b16 %v3413, %v3412
      %v3535 = vpack.c.b16 %v3415, %v3414
      %v3536 = vpack.c.b16 %v3417, %v3416
      %v3537 = vpack.c.b16 %v3419, %v3418
      %v3538 = vpack.c.b16 %v3421, %v3420
      %v3539 = vpack.c.b16 %v3423, %v3422
      %v3540 = vpack.c.b16 %v3425, %v3424
      %v3541 = vpack.c.b16 %v3427, %v3426
      %v3542 = vpack.c.b16 %v3429, %v3428
      %v3543 = vpack.c.b16 %v3431, %v3430
      %v3544 = vpack.c.b16 %v3433, %v3432
      %v3545 = vpack.c.b16 %v3435, %v3434
      %v3546 = vpack.c.b16 %v3437, %v3436
      %v3547 = vpack.c.b16 %v3439, %v3438
      %v3548 = vpack.c.b16 %v3441, %v3440
      %v3549 = vpack.c.b16 %v3443, %v3442
      %v3550 = vpack.c.b16 %v3445, %v3444
      %v3551 = vpack.c.b16 %v3447, %v3446
      %v3552 = vpack.c.b16 %v3449, %v3448
      %v3553 = vpack.c.b16 %v3451, %v3450
      %v3554 = vpack.c.b16 %v3453, %v3452
      %v3555 = vpack.c.b16 %v3455, %v3454
      %v3556 = vpack.c.b16 %v3457, %v3456
      %v3557 = vpack.c.b16 %v3459, %v3458
      %v3558 = vpack.c.b16 %v3461, %v3460
      %v3559 = vpack.c.b16 %v3463, %v3462
      %v3560 = vpack.c.b16 %v3465, %v3464
      %v3561 = vpack.c.b16 %v3467, %v3466
      %v3562 = vpack.c.b16 %v3469, %v3468
      %v3563 = vpack.c.b16 %v3471, %v3470
      %v3564 = vpack.c.b16 %v3473, %v3472
      %v3565 = vpack.c.b16 %v3475, %v3474
      %v3566 = vpack.c.b16 %v3477, %v3476
      %v3567 = vpack.c.b16 %v3479, %v3478
      %v3568 = vpack.c.b16 %v3481, %v3480
      %v3569 = vpack.c.b16 %v3483, %v3482
      %v3570 = vpack.c.b16 %v3485, %v3484
      %v3571 = vpack.c.b16 %v3487, %v3486
      %v3572 = vpack.c.b16 %v3489, %v3488
      %v3573 = vpack.c.b16 %v3491, %v3490
      %v3574 = vpack.c.b16 %v3493, %v3492
      %v3575 = vpack.c.b16 %v3495, %v3494
      %v3576 = vpack.c.b16 %v3497, %v3496
      %v3577 = vpack.c.b16 %v3499, %v3498
      %v3578 = vpack.c.b16 %v3501, %v3500
      %v3579 = vpack.c.b16 %v3503, %v3502
      %v3580 = vpack.c.b16 %v3505, %v3504
      %v3581 = vpack.c.b16 %v3507, %v3506
      %v3582 = vpack.c.b16 %v3509, %v3508
      %v3583 = vpack.c.b16 %v3511, %v3510
      %v3584 = vpack.c.b16 %v3513, %v3512
      %v3585 = vpack.c.b16 %v3515, %v3514
      %v3586 = vpack.c.b16 %v3517, %v3516
      %v3587 = vpack.c.b16 %v3519, %v3518
      %v3588 = vpack.c.b16 %v3521, %v3520
      %v3589 = vpack.c.b16 %v3523, %v3522
      %v3590 = vpack.c.b16 %v3525, %v3524
      %v3591 = vpack.c.b16 %v3527, %v3526
      %v3592 = vunpack.c.l.b16 %v362
      %v3593 = vunpack.c.l.b16 %v372
      %v3594 = vunpack.c.l.b16 %v382
      %v3595 = vunpack.c.l.b16 %v392
      %v3596 = vunpack.c.l.b16 %v406
      %v3597 = vunpack.c.l.b16 %v416
      %v3598 = vunpack.c.l.b16 %v426
      %v3599 = vunpack.c.l.b16 %v436
      %v3600 = vunpack.c.l.b16 %v450
      %v3601 = vunpack.c.l.b16 %v460
      %v3602 = vunpack.c.l.b16 %v470
      %v3603 = vunpack.c.l.b16 %v480
      %v3604 = vunpack.c.l.b16 %v494
      %v3605 = vunpack.c.l.b16 %v504
      %v3606 = vunpack.c.l.b16 %v514
      %v3607 = vunpack.c.l.b16 %v524
      %v3608 = vunpack.c.l.b16 %v538
      %v3609 = vunpack.c.l.b16 %v548
      %v3610 = vunpack.c.l.b16 %v558
      %v3611 = vunpack.c.l.b16 %v568
      %v3612 = vunpack.c.l.b16 %v582
      %v3613 = vunpack.c.l.b16 %v592
      %v3614 = vunpack.c.l.b16 %v602
      %v3615 = vunpack.c.l.b16 %v612
      %v3616 = vunpack.c.l.b16 %v626
      %v3617 = vunpack.c.l.b16 %v636
      %v3618 = vunpack.c.l.b16 %v646
      %v3619 = vunpack.c.l.b16 %v656
      %v3620 = vunpack.c.l.b16 %v670
      %v3621 = vunpack.c.l.b16 %v680
      %v3622 = vunpack.c.l.b16 %v690
      %v3623 = vunpack.c.l.b16 %v700
      %v3624 = vunpack.c.l.b16 %v714
      %v3625 = vunpack.c.l.b16 %v724
      %v3626 = vunpack.c.l.b16 %v734
      %v3627 = vunpack.c.l.b16 %v744
      %v3628 = vunpack.c.l.b16 %v758
      %v3629 = vunpack.c.l.b16 %v768
      %v3630 = vunpack.c.l.b16 %v778
      %v3631 = vunpack.c.l.b16 %v788
      %v3632 = vunpack.c.l.b16 %v802
      %v3633 = vunpack.c.l.b16 %v812
      %v3634 = vunpack.c.l.b16 %v822
      %v3635 = vunpack.c.l.b16 %v832
      %v3636 = vunpack.c.l.b16 %v846
      %v3637 = vunpack.c.l.b16 %v856
      %v3638 = vunpack.c.l.b16 %v866
      %v3639 = vunpack.c.l.b16 %v876
      %v3640 = vunpack.c.l.b16 %v890
      %v3641 = vunpack.c.l.b16 %v900
      %v3642 = vunpack.c.l.b16 %v910
      %v3643 = vunpack.c.l.b16 %v920
      %v3644 = vunpack.c.l.b16 %v934
      %v3645 = vunpack.c.l.b16 %v944
      %v3646 = vunpack.c.l.b16 %v954
      %v3647 = vunpack.c.l.b16 %v964
      %v3648 = vunpack.c.l.b16 %v978
      %v3649 = vunpack.c.l.b16 %v988
      %v3650 = vunpack.c.l.b16 %v998
      %v3651 = vunpack.c.l.b16 %v1008
      %v3652 = vunpack.c.l.b16 %v1022
      %v3653 = vunpack.c.l.b16 %v1032
      %v3654 = vunpack.c.l.b16 %v1042
      %v3655 = vunpack.c.l.b16 %v1052
      %v3656 = vunpack.c.l.b16 %v1066
      %v3657 = vunpack.c.l.b16 %v1076
      %v3658 = vunpack.c.l.b16 %v1086
      %v3659 = vunpack.c.l.b16 %v1096
      %v3660 = vunpack.c.l.b16 %v1110
      %v3661 = vunpack.c.l.b16 %v1120
      %v3662 = vunpack.c.l.b16 %v1130
      %v3663 = vunpack.c.l.b16 %v1140
      %v3664 = vunpack.c.l.b16 %v1154
      %v3665 = vunpack.c.l.b16 %v1164
      %v3666 = vunpack.c.l.b16 %v1174
      %v3667 = vunpack.c.l.b16 %v1184
      %v3668 = vunpack.c.l.b16 %v1198
      %v3669 = vunpack.c.l.b16 %v1208
      %v3670 = vunpack.c.l.b16 %v1218
      %v3671 = vunpack.c.l.b16 %v1228
      %v3672 = vunpack.c.l.b16 %v1242
      %v3673 = vunpack.c.l.b16 %v1252
      %v3674 = vunpack.c.l.b16 %v1262
      %v3675 = vunpack.c.l.b16 %v1272
      %v3676 = vunpack.c.l.b16 %v1286
      %v3677 = vunpack.c.l.b16 %v1296
      %v3678 = vunpack.c.l.b16 %v1306
      %v3679 = vunpack.c.l.b16 %v1316
      %v3680 = vunpack.c.l.b16 %v1330
      %v3681 = vunpack.c.l.b16 %v1340
      %v3682 = vunpack.c.l.b16 %v1350
      %v3683 = vunpack.c.l.b16 %v1360
      %v3684 = vunpack.c.l.b16 %v1374
      %v3685 = vunpack.c.l.b16 %v1384
      %v3686 = vunpack.c.l.b16 %v1394
      %v3687 = vunpack.c.l.b16 %v1404
      %v3688 = vunpack.c.l.b16 %v1418
      %v3689 = vunpack.c.l.b16 %v1428
      %v3690 = vunpack.c.l.b16 %v1438
      %v3691 = vunpack.c.l.b16 %v1448
      %v3692 = vunpack.c.l.b16 %v1462
      %v3693 = vunpack.c.l.b16 %v1472
      %v3694 = vunpack.c.l.b16 %v1482
      %v3695 = vunpack.c.l.b16 %v1492
      %v3696 = vunpack.c.l.b16 %v1506
      %v3697 = vunpack.c.l.b16 %v1516
      %v3698 = vunpack.c.l.b16 %v1526
      %v3699 = vunpack.c.l.b16 %v1536
      %v3700 = vunpack.c.l.b16 %v1550
      %v3701 = vunpack.c.l.b16 %v1560
      %v3702 = vunpack.c.l.b16 %v1570
      %v3703 = vunpack.c.l.b16 %v1580
      %v3704 = vunpack.c.l.b16 %v1594
      %v3705 = vunpack.c.l.b16 %v1604
      %v3706 = vunpack.c.l.b16 %v1614
      %v3707 = vunpack.c.l.b16 %v1624
      %v3708 = vunpack.c.l.b16 %v1638
      %v3709 = vunpack.c.l.b16 %v1648
      %v3710 = vunpack.c.l.b16 %v1658
      %v3711 = vunpack.c.l.b16 %v1668
      %v3712 = vunpack.c.l.b16 %v1682
      %v3713 = vunpack.c.l.b16 %v1692
      %v3714 = vunpack.c.l.b16 %v1702
      %v3715 = vunpack.c.l.b16 %v1712
      %v3716 = vunpack.c.l.b16 %v1726
      %v3717 = vunpack.c.l.b16 %v1736
      %v3718 = vunpack.c.l.b16 %v1746
      %v3719 = vunpack.c.l.b16 %v1756
      %v3720 = vpack.c.b16 %v3593, %v3592
      %v3721 = vpack.c.b16 %v3595, %v3594
      %v3722 = vpack.c.b16 %v3597, %v3596
      %v3723 = vpack.c.b16 %v3599, %v3598
      %v3724 = vpack.c.b16 %v3601, %v3600
      %v3725 = vpack.c.b16 %v3603, %v3602
      %v3726 = vpack.c.b16 %v3605, %v3604
      %v3727 = vpack.c.b16 %v3607, %v3606
      %v3728 = vpack.c.b16 %v3609, %v3608
      %v3729 = vpack.c.b16 %v3611, %v3610
      %v3730 = vpack.c.b16 %v3613, %v3612
      %v3731 = vpack.c.b16 %v3615, %v3614
      %v3732 = vpack.c.b16 %v3617, %v3616
      %v3733 = vpack.c.b16 %v3619, %v3618
      %v3734 = vpack.c.b16 %v3621, %v3620
      %v3735 = vpack.c.b16 %v3623, %v3622
      %v3736 = vpack.c.b16 %v3625, %v3624
      %v3737 = vpack.c.b16 %v3627, %v3626
      %v3738 = vpack.c.b16 %v3629, %v3628
      %v3739 = vpack.c.b16 %v3631, %v3630
      %v3740 = vpack.c.b16 %v3633, %v3632
      %v3741 = vpack.c.b16 %v3635, %v3634
      %v3742 = vpack.c.b16 %v3637, %v3636
      %v3743 = vpack.c.b16 %v3639, %v3638
      %v3744 = vpack.c.b16 %v3641, %v3640
      %v3745 = vpack.c.b16 %v3643, %v3642
      %v3746 = vpack.c.b16 %v3645, %v3644
      %v3747 = vpack.c.b16 %v3647, %v3646
      %v3748 = vpack.c.b16 %v3649, %v3648
      %v3749 = vpack.c.b16 %v3651, %v3650
      %v3750 = vpack.c.b16 %v3653, %v3652
      %v3751 = vpack.c.b16 %v3655, %v3654
      %v3752 = vpack.c.b16 %v3657, %v3656
      %v3753 = vpack.c.b16 %v3659, %v3658
      %v3754 = vpack.c.b16 %v3661, %v3660
      %v3755 = vpack.c.b16 %v3663, %v3662
      %v3756 = vpack.c.b16 %v3665, %v3664
      %v3757 = vpack.c.b16 %v3667, %v3666
      %v3758 = vpack.c.b16 %v3669, %v3668
      %v3759 = vpack.c.b16 %v3671, %v3670
      %v3760 = vpack.c.b16 %v3673, %v3672
      %v3761 = vpack.c.b16 %v3675, %v3674
      %v3762 = vpack.c.b16 %v3677, %v3676
      %v3763 = vpack.c.b16 %v3679, %v3678
      %v3764 = vpack.c.b16 %v3681, %v3680
      %v3765 = vpack.c.b16 %v3683, %v3682
      %v3766 = vpack.c.b16 %v3685, %v3684
      %v3767 = vpack.c.b16 %v3687, %v3686
      %v3768 = vpack.c.b16 %v3689, %v3688
      %v3769 = vpack.c.b16 %v3691, %v3690
      %v3770 = vpack.c.b16 %v3693, %v3692
      %v3771 = vpack.c.b16 %v3695, %v3694
      %v3772 = vpack.c.b16 %v3697, %v3696
      %v3773 = vpack.c.b16 %v3699, %v3698
      %v3774 = vpack.c.b16 %v3701, %v3700
      %v3775 = vpack.c.b16 %v3703, %v3702
      %v3776 = vpack.c.b16 %v3705, %v3704
      %v3777 = vpack.c.b16 %v3707, %v3706
      %v3778 = vpack.c.b16 %v3709, %v3708
      %v3779 = vpack.c.b16 %v3711, %v3710
      %v3780 = vpack.c.b16 %v3713, %v3712
      %v3781 = vpack.c.b16 %v3715, %v3714
      %v3782 = vpack.c.b16 %v3717, %v3716
      %v3783 = vpack.c.b16 %v3719, %v3718
      %3784 = vrot.lane.b32.xlu0 %v3720, 4
      %v3785 = vpop.permute.xlu0 %3784
      %3786 = vrot.lane.b32.xlu0 %v3721, 4
      %v3787 = vpop.permute.xlu0 %3786
      %3788 = vrot.lane.b32.xlu0 %v3722, 4
      %v3789 = vpop.permute.xlu0 %3788
      %3790 = vrot.lane.b32.xlu0 %v3723, 4
      %v3791 = vpop.permute.xlu0 %3790
      %3792 = vrot.lane.b32.xlu0 %v3724, 4
      %v3793 = vpop.permute.xlu0 %3792
      %3794 = vrot.lane.b32.xlu0 %v3725, 4
      %v3795 = vpop.permute.xlu0 %3794
      %3796 = vrot.lane.b32.xlu0 %v3726, 4
      %v3797 = vpop.permute.xlu0 %3796
      %3798 = vrot.lane.b32.xlu0 %v3727, 4
      %v3799 = vpop.permute.xlu0 %3798
      %3800 = vrot.lane.b32.xlu0 %v3728, 4
      %v3801 = vpop.permute.xlu0 %3800
      %3802 = vrot.lane.b32.xlu0 %v3729, 4
      %v3803 = vpop.permute.xlu0 %3802
      %3804 = vrot.lane.b32.xlu0 %v3730, 4
      %v3805 = vpop.permute.xlu0 %3804
      %3806 = vrot.lane.b32.xlu0 %v3731, 4
      %v3807 = vpop.permute.xlu0 %3806
      %3808 = vrot.lane.b32.xlu0 %v3732, 4
      %v3809 = vpop.permute.xlu0 %3808
      %3810 = vrot.lane.b32.xlu0 %v3733, 4
      %v3811 = vpop.permute.xlu0 %3810
      %3812 = vrot.lane.b32.xlu0 %v3734, 4
      %v3813 = vpop.permute.xlu0 %3812
      %3814 = vrot.lane.b32.xlu0 %v3735, 4
      %v3815 = vpop.permute.xlu0 %3814
      %3816 = vrot.lane.b32.xlu0 %v3736, 4
      %v3817 = vpop.permute.xlu0 %3816
      %3818 = vrot.lane.b32.xlu0 %v3737, 4
      %v3819 = vpop.permute.xlu0 %3818
      %3820 = vrot.lane.b32.xlu0 %v3738, 4
      %v3821 = vpop.permute.xlu0 %3820
      %3822 = vrot.lane.b32.xlu0 %v3739, 4
      %v3823 = vpop.permute.xlu0 %3822
      %3824 = vrot.lane.b32.xlu0 %v3740, 4
      %v3825 = vpop.permute.xlu0 %3824
      %3826 = vrot.lane.b32.xlu0 %v3741, 4
      %v3827 = vpop.permute.xlu0 %3826
      %3828 = vrot.lane.b32.xlu0 %v3742, 4
      %v3829 = vpop.permute.xlu0 %3828
      %3830 = vrot.lane.b32.xlu0 %v3743, 4
      %v3831 = vpop.permute.xlu0 %3830
      %3832 = vrot.lane.b32.xlu0 %v3744, 4
      %v3833 = vpop.permute.xlu0 %3832
      %3834 = vrot.lane.b32.xlu0 %v3745, 4
      %v3835 = vpop.permute.xlu0 %3834
      %3836 = vrot.lane.b32.xlu0 %v3746, 4
      %v3837 = vpop.permute.xlu0 %3836
      %3838 = vrot.lane.b32.xlu0 %v3747, 4
      %v3839 = vpop.permute.xlu0 %3838
      %3840 = vrot.lane.b32.xlu0 %v3748, 4
      %v3841 = vpop.permute.xlu0 %3840
      %3842 = vrot.lane.b32.xlu0 %v3749, 4
      %v3843 = vpop.permute.xlu0 %3842
      %3844 = vrot.lane.b32.xlu0 %v3750, 4
      %v3845 = vpop.permute.xlu0 %3844
      %3846 = vrot.lane.b32.xlu0 %v3751, 4
      %v3847 = vpop.permute.xlu0 %3846
      %3848 = vrot.lane.b32.xlu0 %v3752, 4
      %v3849 = vpop.permute.xlu0 %3848
      %3850 = vrot.lane.b32.xlu0 %v3753, 4
      %v3851 = vpop.permute.xlu0 %3850
      %3852 = vrot.lane.b32.xlu0 %v3754, 4
      %v3853 = vpop.permute.xlu0 %3852
      %3854 = vrot.lane.b32.xlu0 %v3755, 4
      %v3855 = vpop.permute.xlu0 %3854
      %3856 = vrot.lane.b32.xlu0 %v3756, 4
      %v3857 = vpop.permute.xlu0 %3856
      %3858 = vrot.lane.b32.xlu0 %v3757, 4
      %v3859 = vpop.permute.xlu0 %3858
      %3860 = vrot.lane.b32.xlu0 %v3758, 4
      %v3861 = vpop.permute.xlu0 %3860
      %3862 = vrot.lane.b32.xlu0 %v3759, 4
      %v3863 = vpop.permute.xlu0 %3862
      %3864 = vrot.lane.b32.xlu0 %v3760, 4
      %v3865 = vpop.permute.xlu0 %3864
      %3866 = vrot.lane.b32.xlu0 %v3761, 4
      %v3867 = vpop.permute.xlu0 %3866
      %3868 = vrot.lane.b32.xlu0 %v3762, 4
      %v3869 = vpop.permute.xlu0 %3868
      %3870 = vrot.lane.b32.xlu0 %v3763, 4
      %v3871 = vpop.permute.xlu0 %3870
      %3872 = vrot.lane.b32.xlu0 %v3764, 4
      %v3873 = vpop.permute.xlu0 %3872
      %3874 = vrot.lane.b32.xlu0 %v3765, 4
      %v3875 = vpop.permute.xlu0 %3874
      %3876 = vrot.lane.b32.xlu0 %v3766, 4
      %v3877 = vpop.permute.xlu0 %3876
      %3878 = vrot.lane.b32.xlu0 %v3767, 4
      %v3879 = vpop.permute.xlu0 %3878
      %3880 = vrot.lane.b32.xlu0 %v3768, 4
      %v3881 = vpop.permute.xlu0 %3880
      %3882 = vrot.lane.b32.xlu0 %v3769, 4
      %v3883 = vpop.permute.xlu0 %3882
      %3884 = vrot.lane.b32.xlu0 %v3770, 4
      %v3885 = vpop.permute.xlu0 %3884
      %3886 = vrot.lane.b32.xlu0 %v3771, 4
      %v3887 = vpop.permute.xlu0 %3886
      %3888 = vrot.lane.b32.xlu0 %v3772, 4
      %v3889 = vpop.permute.xlu0 %3888
      %3890 = vrot.lane.b32.xlu0 %v3773, 4
      %v3891 = vpop.permute.xlu0 %3890
      %3892 = vrot.lane.b32.xlu0 %v3774, 4
      %v3893 = vpop.permute.xlu0 %3892
      %3894 = vrot.lane.b32.xlu0 %v3775, 4
      %v3895 = vpop.permute.xlu0 %3894
      %3896 = vrot.lane.b32.xlu0 %v3776, 4
      %v3897 = vpop.permute.xlu0 %3896
      %3898 = vrot.lane.b32.xlu0 %v3777, 4
      %v3899 = vpop.permute.xlu0 %3898
      %3900 = vrot.lane.b32.xlu0 %v3778, 4
      %v3901 = vpop.permute.xlu0 %3900
      %3902 = vrot.lane.b32.xlu0 %v3779, 4
      %v3903 = vpop.permute.xlu0 %3902
      %3904 = vrot.lane.b32.xlu0 %v3780, 4
      %v3905 = vpop.permute.xlu0 %3904
      %3906 = vrot.lane.b32.xlu0 %v3781, 4
      %v3907 = vpop.permute.xlu0 %3906
      %3908 = vrot.lane.b32.xlu0 %v3782, 4
      %v3909 = vpop.permute.xlu0 %3908
      %3910 = vrot.lane.b32.xlu0 %v3783, 4
      %v3911 = vpop.permute.xlu0 %3910
      %v3912 = vunpack.c.l.b16 %v1923
      %v3913 = vunpack.c.l.b16 %v1926
      %v3914 = vunpack.c.l.b16 %v1929
      %v3915 = vunpack.c.l.b16 %v1932
      %v3916 = vunpack.c.l.b16 %v1936
      %v3917 = vunpack.c.l.b16 %v1939
      %v3918 = vunpack.c.l.b16 %v1942
      %v3919 = vunpack.c.l.b16 %v1945
      %v3920 = vunpack.c.l.b16 %v1949
      %v3921 = vunpack.c.l.b16 %v1952
      %v3922 = vunpack.c.l.b16 %v1955
      %v3923 = vunpack.c.l.b16 %v1958
      %v3924 = vunpack.c.l.b16 %v1962
      %v3925 = vunpack.c.l.b16 %v1965
      %v3926 = vunpack.c.l.b16 %v1968
      %v3927 = vunpack.c.l.b16 %v1971
      %v3928 = vunpack.c.l.b16 %v1975
      %v3929 = vunpack.c.l.b16 %v1978
      %v3930 = vunpack.c.l.b16 %v1981
      %v3931 = vunpack.c.l.b16 %v1984
      %v3932 = vunpack.c.l.b16 %v1988
      %v3933 = vunpack.c.l.b16 %v1991
      %v3934 = vunpack.c.l.b16 %v1994
      %v3935 = vunpack.c.l.b16 %v1997
      %v3936 = vunpack.c.l.b16 %v2001
      %v3937 = vunpack.c.l.b16 %v2004
      %v3938 = vunpack.c.l.b16 %v2007
      %v3939 = vunpack.c.l.b16 %v2010
      %v3940 = vunpack.c.l.b16 %v2014
      %v3941 = vunpack.c.l.b16 %v2017
      %v3942 = vunpack.c.l.b16 %v2020
      %v3943 = vunpack.c.l.b16 %v2023
      %v3944 = vunpack.c.l.b16 %v2027
      %v3945 = vunpack.c.l.b16 %v2030
      %v3946 = vunpack.c.l.b16 %v2033
      %v3947 = vunpack.c.l.b16 %v2036
      %v3948 = vunpack.c.l.b16 %v2040
      %v3949 = vunpack.c.l.b16 %v2043
      %v3950 = vunpack.c.l.b16 %v2046
      %v3951 = vunpack.c.l.b16 %v2049
      %v3952 = vunpack.c.l.b16 %v2053
      %v3953 = vunpack.c.l.b16 %v2056
      %v3954 = vunpack.c.l.b16 %v2059
      %v3955 = vunpack.c.l.b16 %v2062
      %v3956 = vunpack.c.l.b16 %v2066
      %v3957 = vunpack.c.l.b16 %v2069
      %v3958 = vunpack.c.l.b16 %v2072
      %v3959 = vunpack.c.l.b16 %v2075
      %v3960 = vunpack.c.l.b16 %v2079
      %v3961 = vunpack.c.l.b16 %v2082
      %v3962 = vunpack.c.l.b16 %v2085
      %v3963 = vunpack.c.l.b16 %v2088
      %v3964 = vunpack.c.l.b16 %v2092
      %v3965 = vunpack.c.l.b16 %v2095
      %v3966 = vunpack.c.l.b16 %v2098
      %v3967 = vunpack.c.l.b16 %v2101
      %v3968 = vunpack.c.l.b16 %v2105
      %v3969 = vunpack.c.l.b16 %v2108
      %v3970 = vunpack.c.l.b16 %v2111
      %v3971 = vunpack.c.l.b16 %v2114
      %v3972 = vunpack.c.l.b16 %v2118
      %v3973 = vunpack.c.l.b16 %v2121
      %v3974 = vunpack.c.l.b16 %v2124
      %v3975 = vunpack.c.l.b16 %v2127
      %v3976 = vunpack.c.l.b16 %v2131
      %v3977 = vunpack.c.l.b16 %v2134
      %v3978 = vunpack.c.l.b16 %v2137
      %v3979 = vunpack.c.l.b16 %v2140
      %v3980 = vunpack.c.l.b16 %v2144
      %v3981 = vunpack.c.l.b16 %v2147
      %v3982 = vunpack.c.l.b16 %v2150
      %v3983 = vunpack.c.l.b16 %v2153
      %v3984 = vunpack.c.l.b16 %v2157
      %v3985 = vunpack.c.l.b16 %v2160
      %v3986 = vunpack.c.l.b16 %v2163
      %v3987 = vunpack.c.l.b16 %v2166
      %v3988 = vunpack.c.l.b16 %v2170
      %v3989 = vunpack.c.l.b16 %v2173
      %v3990 = vunpack.c.l.b16 %v2176
      %v3991 = vunpack.c.l.b16 %v2179
      %v3992 = vunpack.c.l.b16 %v2183
      %v3993 = vunpack.c.l.b16 %v2186
      %v3994 = vunpack.c.l.b16 %v2189
      %v3995 = vunpack.c.l.b16 %v2192
      %v3996 = vunpack.c.l.b16 %v2196
      %v3997 = vunpack.c.l.b16 %v2199
      %v3998 = vunpack.c.l.b16 %v2202
      %v3999 = vunpack.c.l.b16 %v2205
      %v4000 = vunpack.c.l.b16 %v2209
      %v4001 = vunpack.c.l.b16 %v2212
      %v4002 = vunpack.c.l.b16 %v2215
      %v4003 = vunpack.c.l.b16 %v2218
      %v4004 = vunpack.c.l.b16 %v2222
      %v4005 = vunpack.c.l.b16 %v2225
      %v4006 = vunpack.c.l.b16 %v2228
      %v4007 = vunpack.c.l.b16 %v2231
      %v4008 = vunpack.c.l.b16 %v2235
      %v4009 = vunpack.c.l.b16 %v2238
      %v4010 = vunpack.c.l.b16 %v2241
      %v4011 = vunpack.c.l.b16 %v2244
      %v4012 = vunpack.c.l.b16 %v2248
      %v4013 = vunpack.c.l.b16 %v2251
      %v4014 = vunpack.c.l.b16 %v2254
      %v4015 = vunpack.c.l.b16 %v2257
      %v4016 = vunpack.c.l.b16 %v2261
      %v4017 = vunpack.c.l.b16 %v2264
      %v4018 = vunpack.c.l.b16 %v2267
      %v4019 = vunpack.c.l.b16 %v2270
      %v4020 = vunpack.c.l.b16 %v2274
      %v4021 = vunpack.c.l.b16 %v2277
      %v4022 = vunpack.c.l.b16 %v2280
      %v4023 = vunpack.c.l.b16 %v2283
      %v4024 = vunpack.c.l.b16 %v2287
      %v4025 = vunpack.c.l.b16 %v2290
      %v4026 = vunpack.c.l.b16 %v2293
      %v4027 = vunpack.c.l.b16 %v2296
      %v4028 = vunpack.c.l.b16 %v2300
      %v4029 = vunpack.c.l.b16 %v2303
      %v4030 = vunpack.c.l.b16 %v2306
      %v4031 = vunpack.c.l.b16 %v2309
      %v4032 = vunpack.c.l.b16 %v2313
      %v4033 = vunpack.c.l.b16 %v2316
      %v4034 = vunpack.c.l.b16 %v2319
      %v4035 = vunpack.c.l.b16 %v2322
      %v4036 = vunpack.c.l.b16 %v2326
      %v4037 = vunpack.c.l.b16 %v2329
      %v4038 = vunpack.c.l.b16 %v2332
      %v4039 = vunpack.c.l.b16 %v2335
      %v4040 = vpack.c.b16 %v3913, %v3912
      %v4041 = vpack.c.b16 %v3915, %v3914
      %v4042 = vpack.c.b16 %v3917, %v3916
      %v4043 = vpack.c.b16 %v3919, %v3918
      %v4044 = vpack.c.b16 %v3921, %v3920
      %v4045 = vpack.c.b16 %v3923, %v3922
      %v4046 = vpack.c.b16 %v3925, %v3924
      %v4047 = vpack.c.b16 %v3927, %v3926
      %v4048 = vpack.c.b16 %v3929, %v3928
      %v4049 = vpack.c.b16 %v3931, %v3930
      %v4050 = vpack.c.b16 %v3933, %v3932
      %v4051 = vpack.c.b16 %v3935, %v3934
      %v4052 = vpack.c.b16 %v3937, %v3936
      %v4053 = vpack.c.b16 %v3939, %v3938
      %v4054 = vpack.c.b16 %v3941, %v3940
      %v4055 = vpack.c.b16 %v3943, %v3942
      %v4056 = vpack.c.b16 %v3945, %v3944
      %v4057 = vpack.c.b16 %v3947, %v3946
      %v4058 = vpack.c.b16 %v3949, %v3948
      %v4059 = vpack.c.b16 %v3951, %v3950
      %v4060 = vpack.c.b16 %v3953, %v3952
      %v4061 = vpack.c.b16 %v3955, %v3954
      %v4062 = vpack.c.b16 %v3957, %v3956
      %v4063 = vpack.c.b16 %v3959, %v3958
      %v4064 = vpack.c.b16 %v3961, %v3960
      %v4065 = vpack.c.b16 %v3963, %v3962
      %v4066 = vpack.c.b16 %v3965, %v3964
      %v4067 = vpack.c.b16 %v3967, %v3966
      %v4068 = vpack.c.b16 %v3969, %v3968
      %v4069 = vpack.c.b16 %v3971, %v3970
      %v4070 = vpack.c.b16 %v3973, %v3972
      %v4071 = vpack.c.b16 %v3975, %v3974
      %v4072 = vpack.c.b16 %v3977, %v3976
      %v4073 = vpack.c.b16 %v3979, %v3978
      %v4074 = vpack.c.b16 %v3981, %v3980
      %v4075 = vpack.c.b16 %v3983, %v3982
      %v4076 = vpack.c.b16 %v3985, %v3984
      %v4077 = vpack.c.b16 %v3987, %v3986
      %v4078 = vpack.c.b16 %v3989, %v3988
      %v4079 = vpack.c.b16 %v3991, %v3990
      %v4080 = vpack.c.b16 %v3993, %v3992
      %v4081 = vpack.c.b16 %v3995, %v3994
      %v4082 = vpack.c.b16 %v3997, %v3996
      %v4083 = vpack.c.b16 %v3999, %v3998
      %v4084 = vpack.c.b16 %v4001, %v4000
      %v4085 = vpack.c.b16 %v4003, %v4002
      %v4086 = vpack.c.b16 %v4005, %v4004
      %v4087 = vpack.c.b16 %v4007, %v4006
      %v4088 = vpack.c.b16 %v4009, %v4008
      %v4089 = vpack.c.b16 %v4011, %v4010
      %v4090 = vpack.c.b16 %v4013, %v4012
      %v4091 = vpack.c.b16 %v4015, %v4014
      %v4092 = vpack.c.b16 %v4017, %v4016
      %v4093 = vpack.c.b16 %v4019, %v4018
      %v4094 = vpack.c.b16 %v4021, %v4020
      %v4095 = vpack.c.b16 %v4023, %v4022
      %v4096 = vpack.c.b16 %v4025, %v4024
      %v4097 = vpack.c.b16 %v4027, %v4026
      %v4098 = vpack.c.b16 %v4029, %v4028
      %v4099 = vpack.c.b16 %v4031, %v4030
      %v4100 = vpack.c.b16 %v4033, %v4032
      %v4101 = vpack.c.b16 %v4035, %v4034
      %v4102 = vpack.c.b16 %v4037, %v4036
      %v4103 = vpack.c.b16 %v4039, %v4038
      %4104 = vrot.lane.b32.xlu0 %v4040, 8
      %v4105 = vpop.permute.xlu0 %4104
      %4106 = vrot.lane.b32.xlu0 %v4041, 8
      %v4107 = vpop.permute.xlu0 %4106
      %4108 = vrot.lane.b32.xlu0 %v4042, 8
      %v4109 = vpop.permute.xlu0 %4108
      %4110 = vrot.lane.b32.xlu0 %v4043, 8
      %v4111 = vpop.permute.xlu0 %4110
      %4112 = vrot.lane.b32.xlu0 %v4044, 8
      %v4113 = vpop.permute.xlu0 %4112
      %4114 = vrot.lane.b32.xlu0 %v4045, 8
      %v4115 = vpop.permute.xlu0 %4114
      %4116 = vrot.lane.b32.xlu0 %v4046, 8
      %v4117 = vpop.permute.xlu0 %4116
      %4118 = vrot.lane.b32.xlu0 %v4047, 8
      %v4119 = vpop.permute.xlu0 %4118
      %4120 = vrot.lane.b32.xlu0 %v4048, 8
      %v4121 = vpop.permute.xlu0 %4120
      %4122 = vrot.lane.b32.xlu0 %v4049, 8
      %v4123 = vpop.permute.xlu0 %4122
      %4124 = vrot.lane.b32.xlu0 %v4050, 8
      %v4125 = vpop.permute.xlu0 %4124
      %4126 = vrot.lane.b32.xlu0 %v4051, 8
      %v4127 = vpop.permute.xlu0 %4126
      %4128 = vrot.lane.b32.xlu0 %v4052, 8
      %v4129 = vpop.permute.xlu0 %4128
      %4130 = vrot.lane.b32.xlu0 %v4053, 8
      %v4131 = vpop.permute.xlu0 %4130
      %4132 = vrot.lane.b32.xlu0 %v4054, 8
      %v4133 = vpop.permute.xlu0 %4132
      %4134 = vrot.lane.b32.xlu0 %v4055, 8
      %v4135 = vpop.permute.xlu0 %4134
      %4136 = vrot.lane.b32.xlu0 %v4056, 8
      %v4137 = vpop.permute.xlu0 %4136
      %4138 = vrot.lane.b32.xlu0 %v4057, 8
      %v4139 = vpop.permute.xlu0 %4138
      %4140 = vrot.lane.b32.xlu0 %v4058, 8
      %v4141 = vpop.permute.xlu0 %4140
      %4142 = vrot.lane.b32.xlu0 %v4059, 8
      %v4143 = vpop.permute.xlu0 %4142
      %4144 = vrot.lane.b32.xlu0 %v4060, 8
      %v4145 = vpop.permute.xlu0 %4144
      %4146 = vrot.lane.b32.xlu0 %v4061, 8
      %v4147 = vpop.permute.xlu0 %4146
      %4148 = vrot.lane.b32.xlu0 %v4062, 8
      %v4149 = vpop.permute.xlu0 %4148
      %4150 = vrot.lane.b32.xlu0 %v4063, 8
      %v4151 = vpop.permute.xlu0 %4150
      %4152 = vrot.lane.b32.xlu0 %v4064, 8
      %v4153 = vpop.permute.xlu0 %4152
      %4154 = vrot.lane.b32.xlu0 %v4065, 8
      %v4155 = vpop.permute.xlu0 %4154
      %4156 = vrot.lane.b32.xlu0 %v4066, 8
      %v4157 = vpop.permute.xlu0 %4156
      %4158 = vrot.lane.b32.xlu0 %v4067, 8
      %v4159 = vpop.permute.xlu0 %4158
      %4160 = vrot.lane.b32.xlu0 %v4068, 8
      %v4161 = vpop.permute.xlu0 %4160
      %4162 = vrot.lane.b32.xlu0 %v4069, 8
      %v4163 = vpop.permute.xlu0 %4162
      %4164 = vrot.lane.b32.xlu0 %v4070, 8
      %v4165 = vpop.permute.xlu0 %4164
      %4166 = vrot.lane.b32.xlu0 %v4071, 8
      %v4167 = vpop.permute.xlu0 %4166
      %4168 = vrot.lane.b32.xlu0 %v4072, 8
      %v4169 = vpop.permute.xlu0 %4168
      %4170 = vrot.lane.b32.xlu0 %v4073, 8
      %v4171 = vpop.permute.xlu0 %4170
      %4172 = vrot.lane.b32.xlu0 %v4074, 8
      %v4173 = vpop.permute.xlu0 %4172
      %4174 = vrot.lane.b32.xlu0 %v4075, 8
      %v4175 = vpop.permute.xlu0 %4174
      %4176 = vrot.lane.b32.xlu0 %v4076, 8
      %v4177 = vpop.permute.xlu0 %4176
      %4178 = vrot.lane.b32.xlu0 %v4077, 8
      %v4179 = vpop.permute.xlu0 %4178
      %4180 = vrot.lane.b32.xlu0 %v4078, 8
      %v4181 = vpop.permute.xlu0 %4180
      %4182 = vrot.lane.b32.xlu0 %v4079, 8
      %v4183 = vpop.permute.xlu0 %4182
      %4184 = vrot.lane.b32.xlu0 %v4080, 8
      %v4185 = vpop.permute.xlu0 %4184
      %4186 = vrot.lane.b32.xlu0 %v4081, 8
      %v4187 = vpop.permute.xlu0 %4186
      %4188 = vrot.lane.b32.xlu0 %v4082, 8
      %v4189 = vpop.permute.xlu0 %4188
      %4190 = vrot.lane.b32.xlu0 %v4083, 8
      %v4191 = vpop.permute.xlu0 %4190
      %4192 = vrot.lane.b32.xlu0 %v4084, 8
      %v4193 = vpop.permute.xlu0 %4192
      %4194 = vrot.lane.b32.xlu0 %v4085, 8
      %v4195 = vpop.permute.xlu0 %4194
      %4196 = vrot.lane.b32.xlu0 %v4086, 8
      %v4197 = vpop.permute.xlu0 %4196
      %4198 = vrot.lane.b32.xlu0 %v4087, 8
      %v4199 = vpop.permute.xlu0 %4198
      %4200 = vrot.lane.b32.xlu0 %v4088, 8
      %v4201 = vpop.permute.xlu0 %4200
      %4202 = vrot.lane.b32.xlu0 %v4089, 8
      %v4203 = vpop.permute.xlu0 %4202
      %4204 = vrot.lane.b32.xlu0 %v4090, 8
      %v4205 = vpop.permute.xlu0 %4204
      %4206 = vrot.lane.b32.xlu0 %v4091, 8
      %v4207 = vpop.permute.xlu0 %4206
      %4208 = vrot.lane.b32.xlu0 %v4092, 8
      %v4209 = vpop.permute.xlu0 %4208
      %4210 = vrot.lane.b32.xlu0 %v4093, 8
      %v4211 = vpop.permute.xlu0 %4210
      %4212 = vrot.lane.b32.xlu0 %v4094, 8
      %v4213 = vpop.permute.xlu0 %4212
      %4214 = vrot.lane.b32.xlu0 %v4095, 8
      %v4215 = vpop.permute.xlu0 %4214
      %4216 = vrot.lane.b32.xlu0 %v4096, 8
      %v4217 = vpop.permute.xlu0 %4216
      %4218 = vrot.lane.b32.xlu0 %v4097, 8
      %v4219 = vpop.permute.xlu0 %4218
      %4220 = vrot.lane.b32.xlu0 %v4098, 8
      %v4221 = vpop.permute.xlu0 %4220
      %4222 = vrot.lane.b32.xlu0 %v4099, 8
      %v4223 = vpop.permute.xlu0 %4222
      %4224 = vrot.lane.b32.xlu0 %v4100, 8
      %v4225 = vpop.permute.xlu0 %4224
      %4226 = vrot.lane.b32.xlu0 %v4101, 8
      %v4227 = vpop.permute.xlu0 %4226
      %4228 = vrot.lane.b32.xlu0 %v4102, 8
      %v4229 = vpop.permute.xlu0 %4228
      %4230 = vrot.lane.b32.xlu0 %v4103, 8
      %v4231 = vpop.permute.xlu0 %4230
      %v4232 = vunpack.c.l.b16 %v2346
      %v4233 = vunpack.c.l.b16 %v2351
      %v4234 = vunpack.c.l.b16 %v2356
      %v4235 = vunpack.c.l.b16 %v2363
      %v4236 = vunpack.c.l.b16 %v2371
      %v4237 = vunpack.c.l.b16 %v2376
      %v4238 = vunpack.c.l.b16 %v2381
      %v4239 = vunpack.c.l.b16 %v2388
      %v4240 = vunpack.c.l.b16 %v2396
      %v4241 = vunpack.c.l.b16 %v2401
      %v4242 = vunpack.c.l.b16 %v2406
      %v4243 = vunpack.c.l.b16 %v2413
      %v4244 = vunpack.c.l.b16 %v2421
      %v4245 = vunpack.c.l.b16 %v2426
      %v4246 = vunpack.c.l.b16 %v2431
      %v4247 = vunpack.c.l.b16 %v2438
      %v4248 = vunpack.c.l.b16 %v2446
      %v4249 = vunpack.c.l.b16 %v2451
      %v4250 = vunpack.c.l.b16 %v2456
      %v4251 = vunpack.c.l.b16 %v2463
      %v4252 = vunpack.c.l.b16 %v2471
      %v4253 = vunpack.c.l.b16 %v2476
      %v4254 = vunpack.c.l.b16 %v2481
      %v4255 = vunpack.c.l.b16 %v2488
      %v4256 = vunpack.c.l.b16 %v2496
      %v4257 = vunpack.c.l.b16 %v2501
      %v4258 = vunpack.c.l.b16 %v2506
      %v4259 = vunpack.c.l.b16 %v2513
      %v4260 = vunpack.c.l.b16 %v2521
      %v4261 = vunpack.c.l.b16 %v2526
      %v4262 = vunpack.c.l.b16 %v2531
      %v4263 = vunpack.c.l.b16 %v2538
      %v4264 = vunpack.c.l.b16 %v2546
      %v4265 = vunpack.c.l.b16 %v2551
      %v4266 = vunpack.c.l.b16 %v2556
      %v4267 = vunpack.c.l.b16 %v2563
      %v4268 = vunpack.c.l.b16 %v2571
      %v4269 = vunpack.c.l.b16 %v2576
      %v4270 = vunpack.c.l.b16 %v2581
      %v4271 = vunpack.c.l.b16 %v2588
      %v4272 = vunpack.c.l.b16 %v2596
      %v4273 = vunpack.c.l.b16 %v2601
      %v4274 = vunpack.c.l.b16 %v2606
      %v4275 = vunpack.c.l.b16 %v2613
      %v4276 = vunpack.c.l.b16 %v2621
      %v4277 = vunpack.c.l.b16 %v2626
      %v4278 = vunpack.c.l.b16 %v2631
      %v4279 = vunpack.c.l.b16 %v2638
      %v4280 = vunpack.c.l.b16 %v2646
      %v4281 = vunpack.c.l.b16 %v2651
      %v4282 = vunpack.c.l.b16 %v2656
      %v4283 = vunpack.c.l.b16 %v2663
      %v4284 = vunpack.c.l.b16 %v2671
      %v4285 = vunpack.c.l.b16 %v2676
      %v4286 = vunpack.c.l.b16 %v2681
      %v4287 = vunpack.c.l.b16 %v2688
      %v4288 = vunpack.c.l.b16 %v2696
      %v4289 = vunpack.c.l.b16 %v2701
      %v4290 = vunpack.c.l.b16 %v2706
      %v4291 = vunpack.c.l.b16 %v2713
      %v4292 = vunpack.c.l.b16 %v2721
      %v4293 = vunpack.c.l.b16 %v2726
      %v4294 = vunpack.c.l.b16 %v2731
      %v4295 = vunpack.c.l.b16 %v2738
      %v4296 = vunpack.c.l.b16 %v2746
      %v4297 = vunpack.c.l.b16 %v2751
      %v4298 = vunpack.c.l.b16 %v2756
      %v4299 = vunpack.c.l.b16 %v2763
      %v4300 = vunpack.c.l.b16 %v2771
      %v4301 = vunpack.c.l.b16 %v2776
      %v4302 = vunpack.c.l.b16 %v2781
      %v4303 = vunpack.c.l.b16 %v2788
      %v4304 = vunpack.c.l.b16 %v2796
      %v4305 = vunpack.c.l.b16 %v2801
      %v4306 = vunpack.c.l.b16 %v2806
      %v4307 = vunpack.c.l.b16 %v2813
      %v4308 = vunpack.c.l.b16 %v2821
      %v4309 = vunpack.c.l.b16 %v2826
      %v4310 = vunpack.c.l.b16 %v2831
      %v4311 = vunpack.c.l.b16 %v2838
      %v4312 = vunpack.c.l.b16 %v2846
      %v4313 = vunpack.c.l.b16 %v2851
      %v4314 = vunpack.c.l.b16 %v2856
      %v4315 = vunpack.c.l.b16 %v2863
      %v4316 = vunpack.c.l.b16 %v2871
      %v4317 = vunpack.c.l.b16 %v2876
      %v4318 = vunpack.c.l.b16 %v2881
      %v4319 = vunpack.c.l.b16 %v2888
      %v4320 = vunpack.c.l.b16 %v2896
      %v4321 = vunpack.c.l.b16 %v2901
      %v4322 = vunpack.c.l.b16 %v2906
      %v4323 = vunpack.c.l.b16 %v2913
      %v4324 = vunpack.c.l.b16 %v2921
      %v4325 = vunpack.c.l.b16 %v2926
      %v4326 = vunpack.c.l.b16 %v2931
      %v4327 = vunpack.c.l.b16 %v2938
      %v4328 = vunpack.c.l.b16 %v2946
      %v4329 = vunpack.c.l.b16 %v2951
      %v4330 = vunpack.c.l.b16 %v2956
      %v4331 = vunpack.c.l.b16 %v2963
      %v4332 = vunpack.c.l.b16 %v2971
      %v4333 = vunpack.c.l.b16 %v2976
      %v4334 = vunpack.c.l.b16 %v2981
      %v4335 = vunpack.c.l.b16 %v2988
      %v4336 = vunpack.c.l.b16 %v2996
      %v4337 = vunpack.c.l.b16 %v3001
      %v4338 = vunpack.c.l.b16 %v3006
      %v4339 = vunpack.c.l.b16 %v3013
      %v4340 = vunpack.c.l.b16 %v3021
      %v4341 = vunpack.c.l.b16 %v3026
      %v4342 = vunpack.c.l.b16 %v3031
      %v4343 = vunpack.c.l.b16 %v3038
      %v4344 = vunpack.c.l.b16 %v3046
      %v4345 = vunpack.c.l.b16 %v3051
      %v4346 = vunpack.c.l.b16 %v3056
      %v4347 = vunpack.c.l.b16 %v3063
      %v4348 = vunpack.c.l.b16 %v3071
      %v4349 = vunpack.c.l.b16 %v3076
      %v4350 = vunpack.c.l.b16 %v3081
      %v4351 = vunpack.c.l.b16 %v3088
      %v4352 = vunpack.c.l.b16 %v3096
      %v4353 = vunpack.c.l.b16 %v3101
      %v4354 = vunpack.c.l.b16 %v3106
      %v4355 = vunpack.c.l.b16 %v3113
      %v4356 = vunpack.c.l.b16 %v3121
      %v4357 = vunpack.c.l.b16 %v3126
      %v4358 = vunpack.c.l.b16 %v3131
      %v4359 = vunpack.c.l.b16 %v3138
      %v4360 = vpack.c.b16 %v4233, %v4232
      %v4361 = vpack.c.b16 %v4235, %v4234
      %v4362 = vpack.c.b16 %v4237, %v4236
      %v4363 = vpack.c.b16 %v4239, %v4238
      %v4364 = vpack.c.b16 %v4241, %v4240
      %v4365 = vpack.c.b16 %v4243, %v4242
      %v4366 = vpack.c.b16 %v4245, %v4244
      %v4367 = vpack.c.b16 %v4247, %v4246
      %v4368 = vpack.c.b16 %v4249, %v4248
      %v4369 = vpack.c.b16 %v4251, %v4250
      %v4370 = vpack.c.b16 %v4253, %v4252
      %v4371 = vpack.c.b16 %v4255, %v4254
      %v4372 = vpack.c.b16 %v4257, %v4256
      %v4373 = vpack.c.b16 %v4259, %v4258
      %v4374 = vpack.c.b16 %v4261, %v4260
      %v4375 = vpack.c.b16 %v4263, %v4262
      %v4376 = vpack.c.b16 %v4265, %v4264
      %v4377 = vpack.c.b16 %v4267, %v4266
      %v4378 = vpack.c.b16 %v4269, %v4268
      %v4379 = vpack.c.b16 %v4271, %v4270
      %v4380 = vpack.c.b16 %v4273, %v4272
      %v4381 = vpack.c.b16 %v4275, %v4274
      %v4382 = vpack.c.b16 %v4277, %v4276
      %v4383 = vpack.c.b16 %v4279, %v4278
      %v4384 = vpack.c.b16 %v4281, %v4280
      %v4385 = vpack.c.b16 %v4283, %v4282
      %v4386 = vpack.c.b16 %v4285, %v4284
      %v4387 = vpack.c.b16 %v4287, %v4286
      %v4388 = vpack.c.b16 %v4289, %v4288
      %v4389 = vpack.c.b16 %v4291, %v4290
      %v4390 = vpack.c.b16 %v4293, %v4292
      %v4391 = vpack.c.b16 %v4295, %v4294
      %v4392 = vpack.c.b16 %v4297, %v4296
      %v4393 = vpack.c.b16 %v4299, %v4298
      %v4394 = vpack.c.b16 %v4301, %v4300
      %v4395 = vpack.c.b16 %v4303, %v4302
      %v4396 = vpack.c.b16 %v4305, %v4304
      %v4397 = vpack.c.b16 %v4307, %v4306
      %v4398 = vpack.c.b16 %v4309, %v4308
      %v4399 = vpack.c.b16 %v4311, %v4310
      %v4400 = vpack.c.b16 %v4313, %v4312
      %v4401 = vpack.c.b16 %v4315, %v4314
      %v4402 = vpack.c.b16 %v4317, %v4316
      %v4403 = vpack.c.b16 %v4319, %v4318
      %v4404 = vpack.c.b16 %v4321, %v4320
      %v4405 = vpack.c.b16 %v4323, %v4322
      %v4406 = vpack.c.b16 %v4325, %v4324
      %v4407 = vpack.c.b16 %v4327, %v4326
      %v4408 = vpack.c.b16 %v4329, %v4328
      %v4409 = vpack.c.b16 %v4331, %v4330
      %v4410 = vpack.c.b16 %v4333, %v4332
      %v4411 = vpack.c.b16 %v4335, %v4334
      %v4412 = vpack.c.b16 %v4337, %v4336
      %v4413 = vpack.c.b16 %v4339, %v4338
      %v4414 = vpack.c.b16 %v4341, %v4340
      %v4415 = vpack.c.b16 %v4343, %v4342
      %v4416 = vpack.c.b16 %v4345, %v4344
      %v4417 = vpack.c.b16 %v4347, %v4346
      %v4418 = vpack.c.b16 %v4349, %v4348
      %v4419 = vpack.c.b16 %v4351, %v4350
      %v4420 = vpack.c.b16 %v4353, %v4352
      %v4421 = vpack.c.b16 %v4355, %v4354
      %v4422 = vpack.c.b16 %v4357, %v4356
      %v4423 = vpack.c.b16 %v4359, %v4358
      %4424 = vrot.lane.b32.xlu0 %v4360, 12
      %v4425 = vpop.permute.xlu0 %4424
      %4426 = vrot.lane.b32.xlu0 %v4361, 12
      %v4427 = vpop.permute.xlu0 %4426
      %4428 = vrot.lane.b32.xlu0 %v4362, 12
      %v4429 = vpop.permute.xlu0 %4428
      %4430 = vrot.lane.b32.xlu0 %v4363, 12
      %v4431 = vpop.permute.xlu0 %4430
      %4432 = vrot.lane.b32.xlu0 %v4364, 12
      %v4433 = vpop.permute.xlu0 %4432
      %4434 = vrot.lane.b32.xlu0 %v4365, 12
      %v4435 = vpop.permute.xlu0 %4434
      %4436 = vrot.lane.b32.xlu0 %v4366, 12
      %v4437 = vpop.permute.xlu0 %4436
      %4438 = vrot.lane.b32.xlu0 %v4367, 12
      %v4439 = vpop.permute.xlu0 %4438
      %4440 = vrot.lane.b32.xlu0 %v4368, 12
      %v4441 = vpop.permute.xlu0 %4440
      %4442 = vrot.lane.b32.xlu0 %v4369, 12
      %v4443 = vpop.permute.xlu0 %4442
      %4444 = vrot.lane.b32.xlu0 %v4370, 12
      %v4445 = vpop.permute.xlu0 %4444
      %4446 = vrot.lane.b32.xlu0 %v4371, 12
      %v4447 = vpop.permute.xlu0 %4446
      %4448 = vrot.lane.b32.xlu0 %v4372, 12
      %v4449 = vpop.permute.xlu0 %4448
      %4450 = vrot.lane.b32.xlu0 %v4373, 12
      %v4451 = vpop.permute.xlu0 %4450
      %4452 = vrot.lane.b32.xlu0 %v4374, 12
      %v4453 = vpop.permute.xlu0 %4452
      %4454 = vrot.lane.b32.xlu0 %v4375, 12
      %v4455 = vpop.permute.xlu0 %4454
      %4456 = vrot.lane.b32.xlu0 %v4376, 12
      %v4457 = vpop.permute.xlu0 %4456
      %4458 = vrot.lane.b32.xlu0 %v4377, 12
      %v4459 = vpop.permute.xlu0 %4458
      %4460 = vrot.lane.b32.xlu0 %v4378, 12
      %v4461 = vpop.permute.xlu0 %4460
      %4462 = vrot.lane.b32.xlu0 %v4379, 12
      %v4463 = vpop.permute.xlu0 %4462
      %4464 = vrot.lane.b32.xlu0 %v4380, 12
      %v4465 = vpop.permute.xlu0 %4464
      %4466 = vrot.lane.b32.xlu0 %v4381, 12
      %v4467 = vpop.permute.xlu0 %4466
      %4468 = vrot.lane.b32.xlu0 %v4382, 12
      %v4469 = vpop.permute.xlu0 %4468
      %4470 = vrot.lane.b32.xlu0 %v4383, 12
      %v4471 = vpop.permute.xlu0 %4470
      %4472 = vrot.lane.b32.xlu0 %v4384, 12
      %v4473 = vpop.permute.xlu0 %4472
      %4474 = vrot.lane.b32.xlu0 %v4385, 12
      %v4475 = vpop.permute.xlu0 %4474
      %4476 = vrot.lane.b32.xlu0 %v4386, 12
      %v4477 = vpop.permute.xlu0 %4476
      %4478 = vrot.lane.b32.xlu0 %v4387, 12
      %v4479 = vpop.permute.xlu0 %4478
      %4480 = vrot.lane.b32.xlu0 %v4388, 12
      %v4481 = vpop.permute.xlu0 %4480
      %4482 = vrot.lane.b32.xlu0 %v4389, 12
      %v4483 = vpop.permute.xlu0 %4482
      %4484 = vrot.lane.b32.xlu0 %v4390, 12
      %v4485 = vpop.permute.xlu0 %4484
      %4486 = vrot.lane.b32.xlu0 %v4391, 12
      %v4487 = vpop.permute.xlu0 %4486
      %4488 = vrot.lane.b32.xlu0 %v4392, 12
      %v4489 = vpop.permute.xlu0 %4488
      %4490 = vrot.lane.b32.xlu0 %v4393, 12
      %v4491 = vpop.permute.xlu0 %4490
      %4492 = vrot.lane.b32.xlu0 %v4394, 12
      %v4493 = vpop.permute.xlu0 %4492
      %4494 = vrot.lane.b32.xlu0 %v4395, 12
      %v4495 = vpop.permute.xlu0 %4494
      %4496 = vrot.lane.b32.xlu0 %v4396, 12
      %v4497 = vpop.permute.xlu0 %4496
      %4498 = vrot.lane.b32.xlu0 %v4397, 12
      %v4499 = vpop.permute.xlu0 %4498
      %4500 = vrot.lane.b32.xlu0 %v4398, 12
      %v4501 = vpop.permute.xlu0 %4500
      %4502 = vrot.lane.b32.xlu0 %v4399, 12
      %v4503 = vpop.permute.xlu0 %4502
      %4504 = vrot.lane.b32.xlu0 %v4400, 12
      %v4505 = vpop.permute.xlu0 %4504
      %4506 = vrot.lane.b32.xlu0 %v4401, 12
      %v4507 = vpop.permute.xlu0 %4506
      %4508 = vrot.lane.b32.xlu0 %v4402, 12
      %v4509 = vpop.permute.xlu0 %4508
      %4510 = vrot.lane.b32.xlu0 %v4403, 12
      %v4511 = vpop.permute.xlu0 %4510
      %4512 = vrot.lane.b32.xlu0 %v4404, 12
      %v4513 = vpop.permute.xlu0 %4512
      %4514 = vrot.lane.b32.xlu0 %v4405, 12
      %v4515 = vpop.permute.xlu0 %4514
      %4516 = vrot.lane.b32.xlu0 %v4406, 12
      %v4517 = vpop.permute.xlu0 %4516
      %4518 = vrot.lane.b32.xlu0 %v4407, 12
      %v4519 = vpop.permute.xlu0 %4518
      %4520 = vrot.lane.b32.xlu0 %v4408, 12
      %v4521 = vpop.permute.xlu0 %4520
      %4522 = vrot.lane.b32.xlu0 %v4409, 12
      %v4523 = vpop.permute.xlu0 %4522
      %4524 = vrot.lane.b32.xlu0 %v4410, 12
      %v4525 = vpop.permute.xlu0 %4524
      %4526 = vrot.lane.b32.xlu0 %v4411, 12
      %v4527 = vpop.permute.xlu0 %4526
      %4528 = vrot.lane.b32.xlu0 %v4412, 12
      %v4529 = vpop.permute.xlu0 %4528
      %4530 = vrot.lane.b32.xlu0 %v4413, 12
      %v4531 = vpop.permute.xlu0 %4530
      %4532 = vrot.lane.b32.xlu0 %v4414, 12
      %v4533 = vpop.permute.xlu0 %4532
      %4534 = vrot.lane.b32.xlu0 %v4415, 12
      %v4535 = vpop.permute.xlu0 %4534
      %4536 = vrot.lane.b32.xlu0 %v4416, 12
      %v4537 = vpop.permute.xlu0 %4536
      %4538 = vrot.lane.b32.xlu0 %v4417, 12
      %v4539 = vpop.permute.xlu0 %4538
      %4540 = vrot.lane.b32.xlu0 %v4418, 12
      %v4541 = vpop.permute.xlu0 %4540
      %4542 = vrot.lane.b32.xlu0 %v4419, 12
      %v4543 = vpop.permute.xlu0 %4542
      %4544 = vrot.lane.b32.xlu0 %v4420, 12
      %v4545 = vpop.permute.xlu0 %4544
      %4546 = vrot.lane.b32.xlu0 %v4421, 12
      %v4547 = vpop.permute.xlu0 %4546
      %4548 = vrot.lane.b32.xlu0 %v4422, 12
      %v4549 = vpop.permute.xlu0 %4548
      %4550 = vrot.lane.b32.xlu0 %v4423, 12
      %v4551 = vpop.permute.xlu0 %4550
      %v4552 = vunpack.c.l.b16 %v331
      %v4553 = vunpack.c.l.b16 %v332
      %v4554 = vunpack.c.l.b16 %v333
      %v4555 = vunpack.c.l.b16 %v334
      %v4556 = vpack.c.b16 %v4553, %v4552
      %v4557 = vpack.c.b16 %v4555, %v4554
      %4558 = vrot.lane.b32.xlu0 %v3530, 16
      %v4559 = vpop.permute.xlu0 %4558
      %4560 = vrot.lane.b32.xlu0 %v3531, 16
      %v4561 = vpop.permute.xlu0 %4560
      %4562 = vrot.lane.b32.xlu0 %v3532, 16
      %v4563 = vpop.permute.xlu0 %4562
      %4564 = vrot.lane.b32.xlu0 %v3533, 16
      %v4565 = vpop.permute.xlu0 %4564
      %4566 = vrot.lane.b32.xlu0 %v3534, 16
      %v4567 = vpop.permute.xlu0 %4566
      %4568 = vrot.lane.b32.xlu0 %v3535, 16
      %v4569 = vpop.permute.xlu0 %4568
      %4570 = vrot.lane.b32.xlu0 %v3536, 16
      %v4571 = vpop.permute.xlu0 %4570
      %4572 = vrot.lane.b32.xlu0 %v3537, 16
      %v4573 = vpop.permute.xlu0 %4572
      %4574 = vrot.lane.b32.xlu0 %v3538, 16
      %v4575 = vpop.permute.xlu0 %4574
      %4576 = vrot.lane.b32.xlu0 %v3539, 16
      %v4577 = vpop.permute.xlu0 %4576
      %4578 = vrot.lane.b32.xlu0 %v3540, 16
      %v4579 = vpop.permute.xlu0 %4578
      %4580 = vrot.lane.b32.xlu0 %v3541, 16
      %v4581 = vpop.permute.xlu0 %4580
      %4582 = vrot.lane.b32.xlu0 %v3542, 16
      %v4583 = vpop.permute.xlu0 %4582
      %4584 = vrot.lane.b32.xlu0 %v3543, 16
      %v4585 = vpop.permute.xlu0 %4584
      %4586 = vrot.lane.b32.xlu0 %v3544, 16
      %v4587 = vpop.permute.xlu0 %4586
      %4588 = vrot.lane.b32.xlu0 %v3545, 16
      %v4589 = vpop.permute.xlu0 %4588
      %4590 = vrot.lane.b32.xlu0 %v3546, 16
      %v4591 = vpop.permute.xlu0 %4590
      %4592 = vrot.lane.b32.xlu0 %v3547, 16
      %v4593 = vpop.permute.xlu0 %4592
      %4594 = vrot.lane.b32.xlu0 %v3548, 16
      %v4595 = vpop.permute.xlu0 %4594
      %4596 = vrot.lane.b32.xlu0 %v3549, 16
      %v4597 = vpop.permute.xlu0 %4596
      %4598 = vrot.lane.b32.xlu0 %v3550, 16
      %v4599 = vpop.permute.xlu0 %4598
      %4600 = vrot.lane.b32.xlu0 %v3551, 16
      %v4601 = vpop.permute.xlu0 %4600
      %4602 = vrot.lane.b32.xlu0 %v3552, 16
      %v4603 = vpop.permute.xlu0 %4602
      %4604 = vrot.lane.b32.xlu0 %v3553, 16
      %v4605 = vpop.permute.xlu0 %4604
      %4606 = vrot.lane.b32.xlu0 %v3554, 16
      %v4607 = vpop.permute.xlu0 %4606
      %4608 = vrot.lane.b32.xlu0 %v3555, 16
      %v4609 = vpop.permute.xlu0 %4608
      %4610 = vrot.lane.b32.xlu0 %v3556, 16
      %v4611 = vpop.permute.xlu0 %4610
      %4612 = vrot.lane.b32.xlu0 %v3557, 16
      %v4613 = vpop.permute.xlu0 %4612
      %4614 = vrot.lane.b32.xlu0 %v3558, 16
      %v4615 = vpop.permute.xlu0 %4614
      %4616 = vrot.lane.b32.xlu0 %v3559, 16
      %v4617 = vpop.permute.xlu0 %4616
      %4618 = vrot.lane.b32.xlu0 %v3560, 16
      %v4619 = vpop.permute.xlu0 %4618
      %4620 = vrot.lane.b32.xlu0 %v3561, 16
      %v4621 = vpop.permute.xlu0 %4620
      %4622 = vrot.lane.b32.xlu0 %v3562, 16
      %v4623 = vpop.permute.xlu0 %4622
      %4624 = vrot.lane.b32.xlu0 %v3563, 16
      %v4625 = vpop.permute.xlu0 %4624
      %4626 = vrot.lane.b32.xlu0 %v3564, 16
      %v4627 = vpop.permute.xlu0 %4626
      %4628 = vrot.lane.b32.xlu0 %v3565, 16
      %v4629 = vpop.permute.xlu0 %4628
      %4630 = vrot.lane.b32.xlu0 %v3566, 16
      %v4631 = vpop.permute.xlu0 %4630
      %4632 = vrot.lane.b32.xlu0 %v3567, 16
      %v4633 = vpop.permute.xlu0 %4632
      %4634 = vrot.lane.b32.xlu0 %v3568, 16
      %v4635 = vpop.permute.xlu0 %4634
      %4636 = vrot.lane.b32.xlu0 %v3569, 16
      %v4637 = vpop.permute.xlu0 %4636
      %4638 = vrot.lane.b32.xlu0 %v3570, 16
      %v4639 = vpop.permute.xlu0 %4638
      %4640 = vrot.lane.b32.xlu0 %v3571, 16
      %v4641 = vpop.permute.xlu0 %4640
      %4642 = vrot.lane.b32.xlu0 %v3572, 16
      %v4643 = vpop.permute.xlu0 %4642
      %4644 = vrot.lane.b32.xlu0 %v3573, 16
      %v4645 = vpop.permute.xlu0 %4644
      %4646 = vrot.lane.b32.xlu0 %v3574, 16
      %v4647 = vpop.permute.xlu0 %4646
      %4648 = vrot.lane.b32.xlu0 %v3575, 16
      %v4649 = vpop.permute.xlu0 %4648
      %4650 = vrot.lane.b32.xlu0 %v3576, 16
      %v4651 = vpop.permute.xlu0 %4650
      %4652 = vrot.lane.b32.xlu0 %v3577, 16
      %v4653 = vpop.permute.xlu0 %4652
      %4654 = vrot.lane.b32.xlu0 %v3578, 16
      %v4655 = vpop.permute.xlu0 %4654
      %4656 = vrot.lane.b32.xlu0 %v3579, 16
      %v4657 = vpop.permute.xlu0 %4656
      %4658 = vrot.lane.b32.xlu0 %v3580, 16
      %v4659 = vpop.permute.xlu0 %4658
      %4660 = vrot.lane.b32.xlu0 %v3581, 16
      %v4661 = vpop.permute.xlu0 %4660
      %4662 = vrot.lane.b32.xlu0 %v3582, 16
      %v4663 = vpop.permute.xlu0 %4662
      %4664 = vrot.lane.b32.xlu0 %v3583, 16
      %v4665 = vpop.permute.xlu0 %4664
      %4666 = vrot.lane.b32.xlu0 %v3584, 16
      %v4667 = vpop.permute.xlu0 %4666
      %4668 = vrot.lane.b32.xlu0 %v3585, 16
      %v4669 = vpop.permute.xlu0 %4668
      %4670 = vrot.lane.b32.xlu0 %v3586, 16
      %v4671 = vpop.permute.xlu0 %4670
      %4672 = vrot.lane.b32.xlu0 %v3587, 16
      %v4673 = vpop.permute.xlu0 %4672
      %4674 = vrot.lane.b32.xlu0 %v3588, 16
      %v4675 = vpop.permute.xlu0 %4674
      %4676 = vrot.lane.b32.xlu0 %v3589, 16
      %v4677 = vpop.permute.xlu0 %4676
      %4678 = vrot.lane.b32.xlu0 %v3590, 16
      %v4679 = vpop.permute.xlu0 %4678
      %4680 = vrot.lane.b32.xlu0 %v3591, 16
      %v4681 = vpop.permute.xlu0 %4680
      %4682 = vrot.lane.b32.xlu0 %v4556, 16
      %v4683 = vpop.permute.xlu0 %4682
      %4684 = vrot.lane.b32.xlu0 %v4557, 16
      %v4685 = vpop.permute.xlu0 %4684
      %v4686 = vunpack.c.l.b16 %v3152
      %v4687 = vunpack.c.l.b16 %v3162
      %v4688 = vunpack.c.l.b16 %v3172
      %v4689 = vunpack.c.l.b16 %v3182
      %v4690 = vpack.c.b16 %v4687, %v4686
      %v4691 = vpack.c.b16 %v4689, %v4688
      %4692 = vrot.lane.b32.xlu0 %v3722, 20
      %v4693 = vpop.permute.xlu0 %4692
      %4694 = vrot.lane.b32.xlu0 %v3723, 20
      %v4695 = vpop.permute.xlu0 %4694
      %4696 = vrot.lane.b32.xlu0 %v3724, 20
      %v4697 = vpop.permute.xlu0 %4696
      %4698 = vrot.lane.b32.xlu0 %v3725, 20
      %v4699 = vpop.permute.xlu0 %4698
      %4700 = vrot.lane.b32.xlu0 %v3726, 20
      %v4701 = vpop.permute.xlu0 %4700
      %4702 = vrot.lane.b32.xlu0 %v3727, 20
      %v4703 = vpop.permute.xlu0 %4702
      %4704 = vrot.lane.b32.xlu0 %v3728, 20
      %v4705 = vpop.permute.xlu0 %4704
      %4706 = vrot.lane.b32.xlu0 %v3729, 20
      %v4707 = vpop.permute.xlu0 %4706
      %4708 = vrot.lane.b32.xlu0 %v3730, 20
      %v4709 = vpop.permute.xlu0 %4708
      %4710 = vrot.lane.b32.xlu0 %v3731, 20
      %v4711 = vpop.permute.xlu0 %4710
      %4712 = vrot.lane.b32.xlu0 %v3732, 20
      %v4713 = vpop.permute.xlu0 %4712
      %4714 = vrot.lane.b32.xlu0 %v3733, 20
      %v4715 = vpop.permute.xlu0 %4714
      %4716 = vrot.lane.b32.xlu0 %v3734, 20
      %v4717 = vpop.permute.xlu0 %4716
      %4718 = vrot.lane.b32.xlu0 %v3735, 20
      %v4719 = vpop.permute.xlu0 %4718
      %4720 = vrot.lane.b32.xlu0 %v3736, 20
      %v4721 = vpop.permute.xlu0 %4720
      %4722 = vrot.lane.b32.xlu0 %v3737, 20
      %v4723 = vpop.permute.xlu0 %4722
      %4724 = vrot.lane.b32.xlu0 %v3738, 20
      %v4725 = vpop.permute.xlu0 %4724
      %4726 = vrot.lane.b32.xlu0 %v3739, 20
      %v4727 = vpop.permute.xlu0 %4726
      %4728 = vrot.lane.b32.xlu0 %v3740, 20
      %v4729 = vpop.permute.xlu0 %4728
      %4730 = vrot.lane.b32.xlu0 %v3741, 20
      %v4731 = vpop.permute.xlu0 %4730
      %4732 = vrot.lane.b32.xlu0 %v3742, 20
      %v4733 = vpop.permute.xlu0 %4732
      %4734 = vrot.lane.b32.xlu0 %v3743, 20
      %v4735 = vpop.permute.xlu0 %4734
      %4736 = vrot.lane.b32.xlu0 %v3744, 20
      %v4737 = vpop.permute.xlu0 %4736
      %4738 = vrot.lane.b32.xlu0 %v3745, 20
      %v4739 = vpop.permute.xlu0 %4738
      %4740 = vrot.lane.b32.xlu0 %v3746, 20
      %v4741 = vpop.permute.xlu0 %4740
      %4742 = vrot.lane.b32.xlu0 %v3747, 20
      %v4743 = vpop.permute.xlu0 %4742
      %4744 = vrot.lane.b32.xlu0 %v3748, 20
      %v4745 = vpop.permute.xlu0 %4744
      %4746 = vrot.lane.b32.xlu0 %v3749, 20
      %v4747 = vpop.permute.xlu0 %4746
      %4748 = vrot.lane.b32.xlu0 %v3750, 20
      %v4749 = vpop.permute.xlu0 %4748
      %4750 = vrot.lane.b32.xlu0 %v3751, 20
      %v4751 = vpop.permute.xlu0 %4750
      %4752 = vrot.lane.b32.xlu0 %v3752, 20
      %v4753 = vpop.permute.xlu0 %4752
      %4754 = vrot.lane.b32.xlu0 %v3753, 20
      %v4755 = vpop.permute.xlu0 %4754
      %4756 = vrot.lane.b32.xlu0 %v3754, 20
      %v4757 = vpop.permute.xlu0 %4756
      %4758 = vrot.lane.b32.xlu0 %v3755, 20
      %v4759 = vpop.permute.xlu0 %4758
      %4760 = vrot.lane.b32.xlu0 %v3756, 20
      %v4761 = vpop.permute.xlu0 %4760
      %4762 = vrot.lane.b32.xlu0 %v3757, 20
      %v4763 = vpop.permute.xlu0 %4762
      %4764 = vrot.lane.b32.xlu0 %v3758, 20
      %v4765 = vpop.permute.xlu0 %4764
      %4766 = vrot.lane.b32.xlu0 %v3759, 20
      %v4767 = vpop.permute.xlu0 %4766
      %4768 = vrot.lane.b32.xlu0 %v3760, 20
      %v4769 = vpop.permute.xlu0 %4768
      %4770 = vrot.lane.b32.xlu0 %v3761, 20
      %v4771 = vpop.permute.xlu0 %4770
      %4772 = vrot.lane.b32.xlu0 %v3762, 20
      %v4773 = vpop.permute.xlu0 %4772
      %4774 = vrot.lane.b32.xlu0 %v3763, 20
      %v4775 = vpop.permute.xlu0 %4774
      %4776 = vrot.lane.b32.xlu0 %v3764, 20
      %v4777 = vpop.permute.xlu0 %4776
      %4778 = vrot.lane.b32.xlu0 %v3765, 20
      %v4779 = vpop.permute.xlu0 %4778
      %4780 = vrot.lane.b32.xlu0 %v3766, 20
      %v4781 = vpop.permute.xlu0 %4780
      %4782 = vrot.lane.b32.xlu0 %v3767, 20
      %v4783 = vpop.permute.xlu0 %4782
      %4784 = vrot.lane.b32.xlu0 %v3768, 20
      %v4785 = vpop.permute.xlu0 %4784
      %4786 = vrot.lane.b32.xlu0 %v3769, 20
      %v4787 = vpop.permute.xlu0 %4786
      %4788 = vrot.lane.b32.xlu0 %v3770, 20
      %v4789 = vpop.permute.xlu0 %4788
      %4790 = vrot.lane.b32.xlu0 %v3771, 20
      %v4791 = vpop.permute.xlu0 %4790
      %4792 = vrot.lane.b32.xlu0 %v3772, 20
      %v4793 = vpop.permute.xlu0 %4792
      %4794 = vrot.lane.b32.xlu0 %v3773, 20
      %v4795 = vpop.permute.xlu0 %4794
      %4796 = vrot.lane.b32.xlu0 %v3774, 20
      %v4797 = vpop.permute.xlu0 %4796
      %4798 = vrot.lane.b32.xlu0 %v3775, 20
      %v4799 = vpop.permute.xlu0 %4798
      %4800 = vrot.lane.b32.xlu0 %v3776, 20
      %v4801 = vpop.permute.xlu0 %4800
      %4802 = vrot.lane.b32.xlu0 %v3777, 20
      %v4803 = vpop.permute.xlu0 %4802
      %4804 = vrot.lane.b32.xlu0 %v3778, 20
      %v4805 = vpop.permute.xlu0 %4804
      %4806 = vrot.lane.b32.xlu0 %v3779, 20
      %v4807 = vpop.permute.xlu0 %4806
      %4808 = vrot.lane.b32.xlu0 %v3780, 20
      %v4809 = vpop.permute.xlu0 %4808
      %4810 = vrot.lane.b32.xlu0 %v3781, 20
      %v4811 = vpop.permute.xlu0 %4810
      %4812 = vrot.lane.b32.xlu0 %v3782, 20
      %v4813 = vpop.permute.xlu0 %4812
      %4814 = vrot.lane.b32.xlu0 %v3783, 20
      %v4815 = vpop.permute.xlu0 %4814
      %4816 = vrot.lane.b32.xlu0 %v4690, 20
      %v4817 = vpop.permute.xlu0 %4816
      %4818 = vrot.lane.b32.xlu0 %v4691, 20
      %v4819 = vpop.permute.xlu0 %4818
      %v4820 = vunpack.c.l.b16 %v3191
      %v4821 = vunpack.c.l.b16 %v3194
      %v4822 = vunpack.c.l.b16 %v3197
      %v4823 = vunpack.c.l.b16 %v3200
      %v4824 = vpack.c.b16 %v4821, %v4820
      %v4825 = vpack.c.b16 %v4823, %v4822
      %4826 = vrot.lane.b32.xlu0 %v4042, 24
      %v4827 = vpop.permute.xlu0 %4826
      %4828 = vrot.lane.b32.xlu0 %v4043, 24
      %v4829 = vpop.permute.xlu0 %4828
      %4830 = vrot.lane.b32.xlu0 %v4044, 24
      %v4831 = vpop.permute.xlu0 %4830
      %4832 = vrot.lane.b32.xlu0 %v4045, 24
      %v4833 = vpop.permute.xlu0 %4832
      %4834 = vrot.lane.b32.xlu0 %v4046, 24
      %v4835 = vpop.permute.xlu0 %4834
      %4836 = vrot.lane.b32.xlu0 %v4047, 24
      %v4837 = vpop.permute.xlu0 %4836
      %4838 = vrot.lane.b32.xlu0 %v4048, 24
      %v4839 = vpop.permute.xlu0 %4838
      %4840 = vrot.lane.b32.xlu0 %v4049, 24
      %v4841 = vpop.permute.xlu0 %4840
      %4842 = vrot.lane.b32.xlu0 %v4050, 24
      %v4843 = vpop.permute.xlu0 %4842
      %4844 = vrot.lane.b32.xlu0 %v4051, 24
      %v4845 = vpop.permute.xlu0 %4844
      %4846 = vrot.lane.b32.xlu0 %v4052, 24
      %v4847 = vpop.permute.xlu0 %4846
      %4848 = vrot.lane.b32.xlu0 %v4053, 24
      %v4849 = vpop.permute.xlu0 %4848
      %4850 = vrot.lane.b32.xlu0 %v4054, 24
      %v4851 = vpop.permute.xlu0 %4850
      %4852 = vrot.lane.b32.xlu0 %v4055, 24
      %v4853 = vpop.permute.xlu0 %4852
      %4854 = vrot.lane.b32.xlu0 %v4056, 24
      %v4855 = vpop.permute.xlu0 %4854
      %4856 = vrot.lane.b32.xlu0 %v4057, 24
      %v4857 = vpop.permute.xlu0 %4856
      %4858 = vrot.lane.b32.xlu0 %v4058, 24
      %v4859 = vpop.permute.xlu0 %4858
      %4860 = vrot.lane.b32.xlu0 %v4059, 24
      %v4861 = vpop.permute.xlu0 %4860
      %4862 = vrot.lane.b32.xlu0 %v4060, 24
      %v4863 = vpop.permute.xlu0 %4862
      %4864 = vrot.lane.b32.xlu0 %v4061, 24
      %v4865 = vpop.permute.xlu0 %4864
      %4866 = vrot.lane.b32.xlu0 %v4062, 24
      %v4867 = vpop.permute.xlu0 %4866
      %4868 = vrot.lane.b32.xlu0 %v4063, 24
      %v4869 = vpop.permute.xlu0 %4868
      %4870 = vrot.lane.b32.xlu0 %v4064, 24
      %v4871 = vpop.permute.xlu0 %4870
      %4872 = vrot.lane.b32.xlu0 %v4065, 24
      %v4873 = vpop.permute.xlu0 %4872
      %4874 = vrot.lane.b32.xlu0 %v4066, 24
      %v4875 = vpop.permute.xlu0 %4874
      %4876 = vrot.lane.b32.xlu0 %v4067, 24
      %v4877 = vpop.permute.xlu0 %4876
      %4878 = vrot.lane.b32.xlu0 %v4068, 24
      %v4879 = vpop.permute.xlu0 %4878
      %4880 = vrot.lane.b32.xlu0 %v4069, 24
      %v4881 = vpop.permute.xlu0 %4880
      %4882 = vrot.lane.b32.xlu0 %v4070, 24
      %v4883 = vpop.permute.xlu0 %4882
      %4884 = vrot.lane.b32.xlu0 %v4071, 24
      %v4885 = vpop.permute.xlu0 %4884
      %4886 = vrot.lane.b32.xlu0 %v4072, 24
      %v4887 = vpop.permute.xlu0 %4886
      %4888 = vrot.lane.b32.xlu0 %v4073, 24
      %v4889 = vpop.permute.xlu0 %4888
      %4890 = vrot.lane.b32.xlu0 %v4074, 24
      %v4891 = vpop.permute.xlu0 %4890
      %4892 = vrot.lane.b32.xlu0 %v4075, 24
      %v4893 = vpop.permute.xlu0 %4892
      %4894 = vrot.lane.b32.xlu0 %v4076, 24
      %v4895 = vpop.permute.xlu0 %4894
      %4896 = vrot.lane.b32.xlu0 %v4077, 24
      %v4897 = vpop.permute.xlu0 %4896
      %4898 = vrot.lane.b32.xlu0 %v4078, 24
      %v4899 = vpop.permute.xlu0 %4898
      %4900 = vrot.lane.b32.xlu0 %v4079, 24
      %v4901 = vpop.permute.xlu0 %4900
      %4902 = vrot.lane.b32.xlu0 %v4080, 24
      %v4903 = vpop.permute.xlu0 %4902
      %4904 = vrot.lane.b32.xlu0 %v4081, 24
      %v4905 = vpop.permute.xlu0 %4904
      %4906 = vrot.lane.b32.xlu0 %v4082, 24
      %v4907 = vpop.permute.xlu0 %4906
      %4908 = vrot.lane.b32.xlu0 %v4083, 24
      %v4909 = vpop.permute.xlu0 %4908
      %4910 = vrot.lane.b32.xlu0 %v4084, 24
      %v4911 = vpop.permute.xlu0 %4910
      %4912 = vrot.lane.b32.xlu0 %v4085, 24
      %v4913 = vpop.permute.xlu0 %4912
      %4914 = vrot.lane.b32.xlu0 %v4086, 24
      %v4915 = vpop.permute.xlu0 %4914
      %4916 = vrot.lane.b32.xlu0 %v4087, 24
      %v4917 = vpop.permute.xlu0 %4916
      %4918 = vrot.lane.b32.xlu0 %v4088, 24
      %v4919 = vpop.permute.xlu0 %4918
      %4920 = vrot.lane.b32.xlu0 %v4089, 24
      %v4921 = vpop.permute.xlu0 %4920
      %4922 = vrot.lane.b32.xlu0 %v4090, 24
      %v4923 = vpop.permute.xlu0 %4922
      %4924 = vrot.lane.b32.xlu0 %v4091, 24
      %v4925 = vpop.permute.xlu0 %4924
      %4926 = vrot.lane.b32.xlu0 %v4092, 24
      %v4927 = vpop.permute.xlu0 %4926
      %4928 = vrot.lane.b32.xlu0 %v4093, 24
      %v4929 = vpop.permute.xlu0 %4928
      %4930 = vrot.lane.b32.xlu0 %v4094, 24
      %v4931 = vpop.permute.xlu0 %4930
      %4932 = vrot.lane.b32.xlu0 %v4095, 24
      %v4933 = vpop.permute.xlu0 %4932
      %4934 = vrot.lane.b32.xlu0 %v4096, 24
      %v4935 = vpop.permute.xlu0 %4934
      %4936 = vrot.lane.b32.xlu0 %v4097, 24
      %v4937 = vpop.permute.xlu0 %4936
      %4938 = vrot.lane.b32.xlu0 %v4098, 24
      %v4939 = vpop.permute.xlu0 %4938
      %4940 = vrot.lane.b32.xlu0 %v4099, 24
      %v4941 = vpop.permute.xlu0 %4940
      %4942 = vrot.lane.b32.xlu0 %v4100, 24
      %v4943 = vpop.permute.xlu0 %4942
      %4944 = vrot.lane.b32.xlu0 %v4101, 24
      %v4945 = vpop.permute.xlu0 %4944
      %4946 = vrot.lane.b32.xlu0 %v4102, 24
      %v4947 = vpop.permute.xlu0 %4946
      %4948 = vrot.lane.b32.xlu0 %v4103, 24
      %v4949 = vpop.permute.xlu0 %4948
      %4950 = vrot.lane.b32.xlu0 %v4824, 24
      %v4951 = vpop.permute.xlu0 %4950
      %4952 = vrot.lane.b32.xlu0 %v4825, 24
      %v4953 = vpop.permute.xlu0 %4952
      %v4954 = vunpack.c.l.b16 %v3208
      %v4955 = vunpack.c.l.b16 %v3213
      %v4956 = vunpack.c.l.b16 %v3218
      %v4957 = vunpack.c.l.b16 %v3225
      %v4958 = vpack.c.b16 %v4955, %v4954
      %v4959 = vpack.c.b16 %v4957, %v4956
      %4960 = vrot.lane.b32.xlu0 %v4362, 28
      %v4961 = vpop.permute.xlu0 %4960
      %4962 = vrot.lane.b32.xlu0 %v4363, 28
      %v4963 = vpop.permute.xlu0 %4962
      %4964 = vrot.lane.b32.xlu0 %v4364, 28
      %v4965 = vpop.permute.xlu0 %4964
      %4966 = vrot.lane.b32.xlu0 %v4365, 28
      %v4967 = vpop.permute.xlu0 %4966
      %4968 = vrot.lane.b32.xlu0 %v4366, 28
      %v4969 = vpop.permute.xlu0 %4968
      %4970 = vrot.lane.b32.xlu0 %v4367, 28
      %v4971 = vpop.permute.xlu0 %4970
      %4972 = vrot.lane.b32.xlu0 %v4368, 28
      %v4973 = vpop.permute.xlu0 %4972
      %4974 = vrot.lane.b32.xlu0 %v4369, 28
      %v4975 = vpop.permute.xlu0 %4974
      %4976 = vrot.lane.b32.xlu0 %v4370, 28
      %v4977 = vpop.permute.xlu0 %4976
      %4978 = vrot.lane.b32.xlu0 %v4371, 28
      %v4979 = vpop.permute.xlu0 %4978
      %4980 = vrot.lane.b32.xlu0 %v4372, 28
      %v4981 = vpop.permute.xlu0 %4980
      %4982 = vrot.lane.b32.xlu0 %v4373, 28
      %v4983 = vpop.permute.xlu0 %4982
      %4984 = vrot.lane.b32.xlu0 %v4374, 28
      %v4985 = vpop.permute.xlu0 %4984
      %4986 = vrot.lane.b32.xlu0 %v4375, 28
      %v4987 = vpop.permute.xlu0 %4986
      %4988 = vrot.lane.b32.xlu0 %v4376, 28
      %v4989 = vpop.permute.xlu0 %4988
      %4990 = vrot.lane.b32.xlu0 %v4377, 28
      %v4991 = vpop.permute.xlu0 %4990
      %4992 = vrot.lane.b32.xlu0 %v4378, 28
      %v4993 = vpop.permute.xlu0 %4992
      %4994 = vrot.lane.b32.xlu0 %v4379, 28
      %v4995 = vpop.permute.xlu0 %4994
      %4996 = vrot.lane.b32.xlu0 %v4380, 28
      %v4997 = vpop.permute.xlu0 %4996
      %4998 = vrot.lane.b32.xlu0 %v4381, 28
      %v4999 = vpop.permute.xlu0 %4998
      %5000 = vrot.lane.b32.xlu0 %v4382, 28
      %v5001 = vpop.permute.xlu0 %5000
      %5002 = vrot.lane.b32.xlu0 %v4383, 28
      %v5003 = vpop.permute.xlu0 %5002
      %5004 = vrot.lane.b32.xlu0 %v4384, 28
      %v5005 = vpop.permute.xlu0 %5004
      %5006 = vrot.lane.b32.xlu0 %v4385, 28
      %v5007 = vpop.permute.xlu0 %5006
      %5008 = vrot.lane.b32.xlu0 %v4386, 28
      %v5009 = vpop.permute.xlu0 %5008
      %5010 = vrot.lane.b32.xlu0 %v4387, 28
      %v5011 = vpop.permute.xlu0 %5010
      %5012 = vrot.lane.b32.xlu0 %v4388, 28
      %v5013 = vpop.permute.xlu0 %5012
      %5014 = vrot.lane.b32.xlu0 %v4389, 28
      %v5015 = vpop.permute.xlu0 %5014
      %5016 = vrot.lane.b32.xlu0 %v4390, 28
      %v5017 = vpop.permute.xlu0 %5016
      %5018 = vrot.lane.b32.xlu0 %v4391, 28
      %v5019 = vpop.permute.xlu0 %5018
      %5020 = vrot.lane.b32.xlu0 %v4392, 28
      %v5021 = vpop.permute.xlu0 %5020
      %5022 = vrot.lane.b32.xlu0 %v4393, 28
      %v5023 = vpop.permute.xlu0 %5022
      %5024 = vrot.lane.b32.xlu0 %v4394, 28
      %v5025 = vpop.permute.xlu0 %5024
      %5026 = vrot.lane.b32.xlu0 %v4395, 28
      %v5027 = vpop.permute.xlu0 %5026
      %5028 = vrot.lane.b32.xlu0 %v4396, 28
      %v5029 = vpop.permute.xlu0 %5028
      %5030 = vrot.lane.b32.xlu0 %v4397, 28
      %v5031 = vpop.permute.xlu0 %5030
      %5032 = vrot.lane.b32.xlu0 %v4398, 28
      %v5033 = vpop.permute.xlu0 %5032
      %5034 = vrot.lane.b32.xlu0 %v4399, 28
      %v5035 = vpop.permute.xlu0 %5034
      %5036 = vrot.lane.b32.xlu0 %v4400, 28
      %v5037 = vpop.permute.xlu0 %5036
      %5038 = vrot.lane.b32.xlu0 %v4401, 28
      %v5039 = vpop.permute.xlu0 %5038
      %5040 = vrot.lane.b32.xlu0 %v4402, 28
      %v5041 = vpop.permute.xlu0 %5040
      %5042 = vrot.lane.b32.xlu0 %v4403, 28
      %v5043 = vpop.permute.xlu0 %5042
      %5044 = vrot.lane.b32.xlu0 %v4404, 28
      %v5045 = vpop.permute.xlu0 %5044
      %5046 = vrot.lane.b32.xlu0 %v4405, 28
      %v5047 = vpop.permute.xlu0 %5046
      %5048 = vrot.lane.b32.xlu0 %v4406, 28
      %v5049 = vpop.permute.xlu0 %5048
      %5050 = vrot.lane.b32.xlu0 %v4407, 28
      %v5051 = vpop.permute.xlu0 %5050
      %5052 = vrot.lane.b32.xlu0 %v4408, 28
      %v5053 = vpop.permute.xlu0 %5052
      %5054 = vrot.lane.b32.xlu0 %v4409, 28
      %v5055 = vpop.permute.xlu0 %5054
      %5056 = vrot.lane.b32.xlu0 %v4410, 28
      %v5057 = vpop.permute.xlu0 %5056
      %5058 = vrot.lane.b32.xlu0 %v4411, 28
      %v5059 = vpop.permute.xlu0 %5058
      %5060 = vrot.lane.b32.xlu0 %v4412, 28
      %v5061 = vpop.permute.xlu0 %5060
      %5062 = vrot.lane.b32.xlu0 %v4413, 28
      %v5063 = vpop.permute.xlu0 %5062
      %5064 = vrot.lane.b32.xlu0 %v4414, 28
      %v5065 = vpop.permute.xlu0 %5064
      %5066 = vrot.lane.b32.xlu0 %v4415, 28
      %v5067 = vpop.permute.xlu0 %5066
      %5068 = vrot.lane.b32.xlu0 %v4416, 28
      %v5069 = vpop.permute.xlu0 %5068
      %5070 = vrot.lane.b32.xlu0 %v4417, 28
      %v5071 = vpop.permute.xlu0 %5070
      %5072 = vrot.lane.b32.xlu0 %v4418, 28
      %v5073 = vpop.permute.xlu0 %5072
      %5074 = vrot.lane.b32.xlu0 %v4419, 28
      %v5075 = vpop.permute.xlu0 %5074
      %5076 = vrot.lane.b32.xlu0 %v4420, 28
      %v5077 = vpop.permute.xlu0 %5076
      %5078 = vrot.lane.b32.xlu0 %v4421, 28
      %v5079 = vpop.permute.xlu0 %5078
      %5080 = vrot.lane.b32.xlu0 %v4422, 28
      %v5081 = vpop.permute.xlu0 %5080
      %5082 = vrot.lane.b32.xlu0 %v4423, 28
      %v5083 = vpop.permute.xlu0 %5082
      %5084 = vrot.lane.b32.xlu0 %v4958, 28
      %v5085 = vpop.permute.xlu0 %5084
      %5086 = vrot.lane.b32.xlu0 %v4959, 28
      %v5087 = vpop.permute.xlu0 %5086
      %v5088 = vunpack.c.l.b16 %v336
      %v5089 = vunpack.c.l.b16 %v337
      %v5090 = vunpack.c.l.b16 %v338
      %v5091 = vunpack.c.l.b16 %v339
      %v5092 = vpack.c.b16 %v5089, %v5088
      %v5093 = vpack.c.b16 %v5091, %v5090
      %5094 = vrot.lane.b32.xlu0 %v3532, 32
      %v5095 = vpop.permute.xlu0 %5094
      %5096 = vrot.lane.b32.xlu0 %v3533, 32
      %v5097 = vpop.permute.xlu0 %5096
      %5098 = vrot.lane.b32.xlu0 %v3534, 32
      %v5099 = vpop.permute.xlu0 %5098
      %5100 = vrot.lane.b32.xlu0 %v3535, 32
      %v5101 = vpop.permute.xlu0 %5100
      %5102 = vrot.lane.b32.xlu0 %v3536, 32
      %v5103 = vpop.permute.xlu0 %5102
      %5104 = vrot.lane.b32.xlu0 %v3537, 32
      %v5105 = vpop.permute.xlu0 %5104
      %5106 = vrot.lane.b32.xlu0 %v3538, 32
      %v5107 = vpop.permute.xlu0 %5106
      %5108 = vrot.lane.b32.xlu0 %v3539, 32
      %v5109 = vpop.permute.xlu0 %5108
      %5110 = vrot.lane.b32.xlu0 %v3540, 32
      %v5111 = vpop.permute.xlu0 %5110
      %5112 = vrot.lane.b32.xlu0 %v3541, 32
      %v5113 = vpop.permute.xlu0 %5112
      %5114 = vrot.lane.b32.xlu0 %v3542, 32
      %v5115 = vpop.permute.xlu0 %5114
      %5116 = vrot.lane.b32.xlu0 %v3543, 32
      %v5117 = vpop.permute.xlu0 %5116
      %5118 = vrot.lane.b32.xlu0 %v3544, 32
      %v5119 = vpop.permute.xlu0 %5118
      %5120 = vrot.lane.b32.xlu0 %v3545, 32
      %v5121 = vpop.permute.xlu0 %5120
      %5122 = vrot.lane.b32.xlu0 %v3546, 32
      %v5123 = vpop.permute.xlu0 %5122
      %5124 = vrot.lane.b32.xlu0 %v3547, 32
      %v5125 = vpop.permute.xlu0 %5124
      %5126 = vrot.lane.b32.xlu0 %v3548, 32
      %v5127 = vpop.permute.xlu0 %5126
      %5128 = vrot.lane.b32.xlu0 %v3549, 32
      %v5129 = vpop.permute.xlu0 %5128
      %5130 = vrot.lane.b32.xlu0 %v3550, 32
      %v5131 = vpop.permute.xlu0 %5130
      %5132 = vrot.lane.b32.xlu0 %v3551, 32
      %v5133 = vpop.permute.xlu0 %5132
      %5134 = vrot.lane.b32.xlu0 %v3552, 32
      %v5135 = vpop.permute.xlu0 %5134
      %5136 = vrot.lane.b32.xlu0 %v3553, 32
      %v5137 = vpop.permute.xlu0 %5136
      %5138 = vrot.lane.b32.xlu0 %v3554, 32
      %v5139 = vpop.permute.xlu0 %5138
      %5140 = vrot.lane.b32.xlu0 %v3555, 32
      %v5141 = vpop.permute.xlu0 %5140
      %5142 = vrot.lane.b32.xlu0 %v3556, 32
      %v5143 = vpop.permute.xlu0 %5142
      %5144 = vrot.lane.b32.xlu0 %v3557, 32
      %v5145 = vpop.permute.xlu0 %5144
      %5146 = vrot.lane.b32.xlu0 %v3558, 32
      %v5147 = vpop.permute.xlu0 %5146
      %5148 = vrot.lane.b32.xlu0 %v3559, 32
      %v5149 = vpop.permute.xlu0 %5148
      %5150 = vrot.lane.b32.xlu0 %v3560, 32
      %v5151 = vpop.permute.xlu0 %5150
      %5152 = vrot.lane.b32.xlu0 %v3561, 32
      %v5153 = vpop.permute.xlu0 %5152
      %5154 = vrot.lane.b32.xlu0 %v3562, 32
      %v5155 = vpop.permute.xlu0 %5154
      %5156 = vrot.lane.b32.xlu0 %v3563, 32
      %v5157 = vpop.permute.xlu0 %5156
      %5158 = vrot.lane.b32.xlu0 %v3564, 32
      %v5159 = vpop.permute.xlu0 %5158
      %5160 = vrot.lane.b32.xlu0 %v3565, 32
      %v5161 = vpop.permute.xlu0 %5160
      %5162 = vrot.lane.b32.xlu0 %v3566, 32
      %v5163 = vpop.permute.xlu0 %5162
      %5164 = vrot.lane.b32.xlu0 %v3567, 32
      %v5165 = vpop.permute.xlu0 %5164
      %5166 = vrot.lane.b32.xlu0 %v3568, 32
      %v5167 = vpop.permute.xlu0 %5166
      %5168 = vrot.lane.b32.xlu0 %v3569, 32
      %v5169 = vpop.permute.xlu0 %5168
      %5170 = vrot.lane.b32.xlu0 %v3570, 32
      %v5171 = vpop.permute.xlu0 %5170
      %5172 = vrot.lane.b32.xlu0 %v3571, 32
      %v5173 = vpop.permute.xlu0 %5172
      %5174 = vrot.lane.b32.xlu0 %v3572, 32
      %v5175 = vpop.permute.xlu0 %5174
      %5176 = vrot.lane.b32.xlu0 %v3573, 32
      %v5177 = vpop.permute.xlu0 %5176
      %5178 = vrot.lane.b32.xlu0 %v3574, 32
      %v5179 = vpop.permute.xlu0 %5178
      %5180 = vrot.lane.b32.xlu0 %v3575, 32
      %v5181 = vpop.permute.xlu0 %5180
      %5182 = vrot.lane.b32.xlu0 %v3576, 32
      %v5183 = vpop.permute.xlu0 %5182
      %5184 = vrot.lane.b32.xlu0 %v3577, 32
      %v5185 = vpop.permute.xlu0 %5184
      %5186 = vrot.lane.b32.xlu0 %v3578, 32
      %v5187 = vpop.permute.xlu0 %5186
      %5188 = vrot.lane.b32.xlu0 %v3579, 32
      %v5189 = vpop.permute.xlu0 %5188
      %5190 = vrot.lane.b32.xlu0 %v3580, 32
      %v5191 = vpop.permute.xlu0 %5190
      %5192 = vrot.lane.b32.xlu0 %v3581, 32
      %v5193 = vpop.permute.xlu0 %5192
      %5194 = vrot.lane.b32.xlu0 %v3582, 32
      %v5195 = vpop.permute.xlu0 %5194
      %5196 = vrot.lane.b32.xlu0 %v3583, 32
      %v5197 = vpop.permute.xlu0 %5196
      %5198 = vrot.lane.b32.xlu0 %v3584, 32
      %v5199 = vpop.permute.xlu0 %5198
      %5200 = vrot.lane.b32.xlu0 %v3585, 32
      %v5201 = vpop.permute.xlu0 %5200
      %5202 = vrot.lane.b32.xlu0 %v3586, 32
      %v5203 = vpop.permute.xlu0 %5202
      %5204 = vrot.lane.b32.xlu0 %v3587, 32
      %v5205 = vpop.permute.xlu0 %5204
      %5206 = vrot.lane.b32.xlu0 %v3588, 32
      %v5207 = vpop.permute.xlu0 %5206
      %5208 = vrot.lane.b32.xlu0 %v3589, 32
      %v5209 = vpop.permute.xlu0 %5208
      %5210 = vrot.lane.b32.xlu0 %v3590, 32
      %v5211 = vpop.permute.xlu0 %5210
      %5212 = vrot.lane.b32.xlu0 %v3591, 32
      %v5213 = vpop.permute.xlu0 %5212
      %5214 = vrot.lane.b32.xlu0 %v4556, 32
      %v5215 = vpop.permute.xlu0 %5214
      %5216 = vrot.lane.b32.xlu0 %v4557, 32
      %v5217 = vpop.permute.xlu0 %5216
      %5218 = vrot.lane.b32.xlu0 %v5092, 32
      %v5219 = vpop.permute.xlu0 %5218
      %5220 = vrot.lane.b32.xlu0 %v5093, 32
      %v5221 = vpop.permute.xlu0 %5220
      %v5222 = vunpack.c.l.b16 %v3239
      %v5223 = vunpack.c.l.b16 %v3249
      %v5224 = vunpack.c.l.b16 %v3259
      %v5225 = vunpack.c.l.b16 %v3269
      %v5226 = vpack.c.b16 %v5223, %v5222
      %v5227 = vpack.c.b16 %v5225, %v5224
      %5228 = vrot.lane.b32.xlu0 %v3724, 36
      %v5229 = vpop.permute.xlu0 %5228
      %5230 = vrot.lane.b32.xlu0 %v3725, 36
      %v5231 = vpop.permute.xlu0 %5230
      %5232 = vrot.lane.b32.xlu0 %v3726, 36
      %v5233 = vpop.permute.xlu0 %5232
      %5234 = vrot.lane.b32.xlu0 %v3727, 36
      %v5235 = vpop.permute.xlu0 %5234
      %5236 = vrot.lane.b32.xlu0 %v3728, 36
      %v5237 = vpop.permute.xlu0 %5236
      %5238 = vrot.lane.b32.xlu0 %v3729, 36
      %v5239 = vpop.permute.xlu0 %5238
      %5240 = vrot.lane.b32.xlu0 %v3730, 36
      %v5241 = vpop.permute.xlu0 %5240
      %5242 = vrot.lane.b32.xlu0 %v3731, 36
      %v5243 = vpop.permute.xlu0 %5242
      %5244 = vrot.lane.b32.xlu0 %v3732, 36
      %v5245 = vpop.permute.xlu0 %5244
      %5246 = vrot.lane.b32.xlu0 %v3733, 36
      %v5247 = vpop.permute.xlu0 %5246
      %5248 = vrot.lane.b32.xlu0 %v3734, 36
      %v5249 = vpop.permute.xlu0 %5248
      %5250 = vrot.lane.b32.xlu0 %v3735, 36
      %v5251 = vpop.permute.xlu0 %5250
      %5252 = vrot.lane.b32.xlu0 %v3736, 36
      %v5253 = vpop.permute.xlu0 %5252
      %5254 = vrot.lane.b32.xlu0 %v3737, 36
      %v5255 = vpop.permute.xlu0 %5254
      %5256 = vrot.lane.b32.xlu0 %v3738, 36
      %v5257 = vpop.permute.xlu0 %5256
      %5258 = vrot.lane.b32.xlu0 %v3739, 36
      %v5259 = vpop.permute.xlu0 %5258
      %5260 = vrot.lane.b32.xlu0 %v3740, 36
      %v5261 = vpop.permute.xlu0 %5260
      %5262 = vrot.lane.b32.xlu0 %v3741, 36
      %v5263 = vpop.permute.xlu0 %5262
      %5264 = vrot.lane.b32.xlu0 %v3742, 36
      %v5265 = vpop.permute.xlu0 %5264
      %5266 = vrot.lane.b32.xlu0 %v3743, 36
      %v5267 = vpop.permute.xlu0 %5266
      %5268 = vrot.lane.b32.xlu0 %v3744, 36
      %v5269 = vpop.permute.xlu0 %5268
      %5270 = vrot.lane.b32.xlu0 %v3745, 36
      %v5271 = vpop.permute.xlu0 %5270
      %5272 = vrot.lane.b32.xlu0 %v3746, 36
      %v5273 = vpop.permute.xlu0 %5272
      %5274 = vrot.lane.b32.xlu0 %v3747, 36
      %v5275 = vpop.permute.xlu0 %5274
      %5276 = vrot.lane.b32.xlu0 %v3748, 36
      %v5277 = vpop.permute.xlu0 %5276
      %5278 = vrot.lane.b32.xlu0 %v3749, 36
      %v5279 = vpop.permute.xlu0 %5278
      %5280 = vrot.lane.b32.xlu0 %v3750, 36
      %v5281 = vpop.permute.xlu0 %5280
      %5282 = vrot.lane.b32.xlu0 %v3751, 36
      %v5283 = vpop.permute.xlu0 %5282
      %5284 = vrot.lane.b32.xlu0 %v3752, 36
      %v5285 = vpop.permute.xlu0 %5284
      %5286 = vrot.lane.b32.xlu0 %v3753, 36
      %v5287 = vpop.permute.xlu0 %5286
      %5288 = vrot.lane.b32.xlu0 %v3754, 36
      %v5289 = vpop.permute.xlu0 %5288
      %5290 = vrot.lane.b32.xlu0 %v3755, 36
      %v5291 = vpop.permute.xlu0 %5290
      %5292 = vrot.lane.b32.xlu0 %v3756, 36
      %v5293 = vpop.permute.xlu0 %5292
      %5294 = vrot.lane.b32.xlu0 %v3757, 36
      %v5295 = vpop.permute.xlu0 %5294
      %5296 = vrot.lane.b32.xlu0 %v3758, 36
      %v5297 = vpop.permute.xlu0 %5296
      %5298 = vrot.lane.b32.xlu0 %v3759, 36
      %v5299 = vpop.permute.xlu0 %5298
      %5300 = vrot.lane.b32.xlu0 %v3760, 36
      %v5301 = vpop.permute.xlu0 %5300
      %5302 = vrot.lane.b32.xlu0 %v3761, 36
      %v5303 = vpop.permute.xlu0 %5302
      %5304 = vrot.lane.b32.xlu0 %v3762, 36
      %v5305 = vpop.permute.xlu0 %5304
      %5306 = vrot.lane.b32.xlu0 %v3763, 36
      %v5307 = vpop.permute.xlu0 %5306
      %5308 = vrot.lane.b32.xlu0 %v3764, 36
      %v5309 = vpop.permute.xlu0 %5308
      %5310 = vrot.lane.b32.xlu0 %v3765, 36
      %v5311 = vpop.permute.xlu0 %5310
      %5312 = vrot.lane.b32.xlu0 %v3766, 36
      %v5313 = vpop.permute.xlu0 %5312
      %5314 = vrot.lane.b32.xlu0 %v3767, 36
      %v5315 = vpop.permute.xlu0 %5314
      %5316 = vrot.lane.b32.xlu0 %v3768, 36
      %v5317 = vpop.permute.xlu0 %5316
      %5318 = vrot.lane.b32.xlu0 %v3769, 36
      %v5319 = vpop.permute.xlu0 %5318
      %5320 = vrot.lane.b32.xlu0 %v3770, 36
      %v5321 = vpop.permute.xlu0 %5320
      %5322 = vrot.lane.b32.xlu0 %v3771, 36
      %v5323 = vpop.permute.xlu0 %5322
      %5324 = vrot.lane.b32.xlu0 %v3772, 36
      %v5325 = vpop.permute.xlu0 %5324
      %5326 = vrot.lane.b32.xlu0 %v3773, 36
      %v5327 = vpop.permute.xlu0 %5326
      %5328 = vrot.lane.b32.xlu0 %v3774, 36
      %v5329 = vpop.permute.xlu0 %5328
      %5330 = vrot.lane.b32.xlu0 %v3775, 36
      %v5331 = vpop.permute.xlu0 %5330
      %5332 = vrot.lane.b32.xlu0 %v3776, 36
      %v5333 = vpop.permute.xlu0 %5332
      %5334 = vrot.lane.b32.xlu0 %v3777, 36
      %v5335 = vpop.permute.xlu0 %5334
      %5336 = vrot.lane.b32.xlu0 %v3778, 36
      %v5337 = vpop.permute.xlu0 %5336
      %5338 = vrot.lane.b32.xlu0 %v3779, 36
      %v5339 = vpop.permute.xlu0 %5338
      %5340 = vrot.lane.b32.xlu0 %v3780, 36
      %v5341 = vpop.permute.xlu0 %5340
      %5342 = vrot.lane.b32.xlu0 %v3781, 36
      %v5343 = vpop.permute.xlu0 %5342
      %5344 = vrot.lane.b32.xlu0 %v3782, 36
      %v5345 = vpop.permute.xlu0 %5344
      %5346 = vrot.lane.b32.xlu0 %v3783, 36
      %v5347 = vpop.permute.xlu0 %5346
      %5348 = vrot.lane.b32.xlu0 %v4690, 36
      %v5349 = vpop.permute.xlu0 %5348
      %5350 = vrot.lane.b32.xlu0 %v4691, 36
      %v5351 = vpop.permute.xlu0 %5350
      %5352 = vrot.lane.b32.xlu0 %v5226, 36
      %v5353 = vpop.permute.xlu0 %5352
      %5354 = vrot.lane.b32.xlu0 %v5227, 36
      %v5355 = vpop.permute.xlu0 %5354
      %v5356 = vunpack.c.l.b16 %v3278
      %v5357 = vunpack.c.l.b16 %v3281
      %v5358 = vunpack.c.l.b16 %v3284
      %v5359 = vunpack.c.l.b16 %v3287
      %v5360 = vpack.c.b16 %v5357, %v5356
      %v5361 = vpack.c.b16 %v5359, %v5358
      %5362 = vrot.lane.b32.xlu0 %v4044, 40
      %v5363 = vpop.permute.xlu0 %5362
      %5364 = vrot.lane.b32.xlu0 %v4045, 40
      %v5365 = vpop.permute.xlu0 %5364
      %5366 = vrot.lane.b32.xlu0 %v4046, 40
      %v5367 = vpop.permute.xlu0 %5366
      %5368 = vrot.lane.b32.xlu0 %v4047, 40
      %v5369 = vpop.permute.xlu0 %5368
      %5370 = vrot.lane.b32.xlu0 %v4048, 40
      %v5371 = vpop.permute.xlu0 %5370
      %5372 = vrot.lane.b32.xlu0 %v4049, 40
      %v5373 = vpop.permute.xlu0 %5372
      %5374 = vrot.lane.b32.xlu0 %v4050, 40
      %v5375 = vpop.permute.xlu0 %5374
      %5376 = vrot.lane.b32.xlu0 %v4051, 40
      %v5377 = vpop.permute.xlu0 %5376
      %5378 = vrot.lane.b32.xlu0 %v4052, 40
      %v5379 = vpop.permute.xlu0 %5378
      %5380 = vrot.lane.b32.xlu0 %v4053, 40
      %v5381 = vpop.permute.xlu0 %5380
      %5382 = vrot.lane.b32.xlu0 %v4054, 40
      %v5383 = vpop.permute.xlu0 %5382
      %5384 = vrot.lane.b32.xlu0 %v4055, 40
      %v5385 = vpop.permute.xlu0 %5384
      %5386 = vrot.lane.b32.xlu0 %v4056, 40
      %v5387 = vpop.permute.xlu0 %5386
      %5388 = vrot.lane.b32.xlu0 %v4057, 40
      %v5389 = vpop.permute.xlu0 %5388
      %5390 = vrot.lane.b32.xlu0 %v4058, 40
      %v5391 = vpop.permute.xlu0 %5390
      %5392 = vrot.lane.b32.xlu0 %v4059, 40
      %v5393 = vpop.permute.xlu0 %5392
      %5394 = vrot.lane.b32.xlu0 %v4060, 40
      %v5395 = vpop.permute.xlu0 %5394
      %5396 = vrot.lane.b32.xlu0 %v4061, 40
      %v5397 = vpop.permute.xlu0 %5396
      %5398 = vrot.lane.b32.xlu0 %v4062, 40
      %v5399 = vpop.permute.xlu0 %5398
      %5400 = vrot.lane.b32.xlu0 %v4063, 40
      %v5401 = vpop.permute.xlu0 %5400
      %5402 = vrot.lane.b32.xlu0 %v4064, 40
      %v5403 = vpop.permute.xlu0 %5402
      %5404 = vrot.lane.b32.xlu0 %v4065, 40
      %v5405 = vpop.permute.xlu0 %5404
      %5406 = vrot.lane.b32.xlu0 %v4066, 40
      %v5407 = vpop.permute.xlu0 %5406
      %5408 = vrot.lane.b32.xlu0 %v4067, 40
      %v5409 = vpop.permute.xlu0 %5408
      %5410 = vrot.lane.b32.xlu0 %v4068, 40
      %v5411 = vpop.permute.xlu0 %5410
      %5412 = vrot.lane.b32.xlu0 %v4069, 40
      %v5413 = vpop.permute.xlu0 %5412
      %5414 = vrot.lane.b32.xlu0 %v4070, 40
      %v5415 = vpop.permute.xlu0 %5414
      %5416 = vrot.lane.b32.xlu0 %v4071, 40
      %v5417 = vpop.permute.xlu0 %5416
      %5418 = vrot.lane.b32.xlu0 %v4072, 40
      %v5419 = vpop.permute.xlu0 %5418
      %5420 = vrot.lane.b32.xlu0 %v4073, 40
      %v5421 = vpop.permute.xlu0 %5420
      %5422 = vrot.lane.b32.xlu0 %v4074, 40
      %v5423 = vpop.permute.xlu0 %5422
      %5424 = vrot.lane.b32.xlu0 %v4075, 40
      %v5425 = vpop.permute.xlu0 %5424
      %5426 = vrot.lane.b32.xlu0 %v4076, 40
      %v5427 = vpop.permute.xlu0 %5426
      %5428 = vrot.lane.b32.xlu0 %v4077, 40
      %v5429 = vpop.permute.xlu0 %5428
      %5430 = vrot.lane.b32.xlu0 %v4078, 40
      %v5431 = vpop.permute.xlu0 %5430
      %5432 = vrot.lane.b32.xlu0 %v4079, 40
      %v5433 = vpop.permute.xlu0 %5432
      %5434 = vrot.lane.b32.xlu0 %v4080, 40
      %v5435 = vpop.permute.xlu0 %5434
      %5436 = vrot.lane.b32.xlu0 %v4081, 40
      %v5437 = vpop.permute.xlu0 %5436
      %5438 = vrot.lane.b32.xlu0 %v4082, 40
      %v5439 = vpop.permute.xlu0 %5438
      %5440 = vrot.lane.b32.xlu0 %v4083, 40
      %v5441 = vpop.permute.xlu0 %5440
      %5442 = vrot.lane.b32.xlu0 %v4084, 40
      %v5443 = vpop.permute.xlu0 %5442
      %5444 = vrot.lane.b32.xlu0 %v4085, 40
      %v5445 = vpop.permute.xlu0 %5444
      %5446 = vrot.lane.b32.xlu0 %v4086, 40
      %v5447 = vpop.permute.xlu0 %5446
      %5448 = vrot.lane.b32.xlu0 %v4087, 40
      %v5449 = vpop.permute.xlu0 %5448
      %5450 = vrot.lane.b32.xlu0 %v4088, 40
      %v5451 = vpop.permute.xlu0 %5450
      %5452 = vrot.lane.b32.xlu0 %v4089, 40
      %v5453 = vpop.permute.xlu0 %5452
      %5454 = vrot.lane.b32.xlu0 %v4090, 40
      %v5455 = vpop.permute.xlu0 %5454
      %5456 = vrot.lane.b32.xlu0 %v4091, 40
      %v5457 = vpop.permute.xlu0 %5456
      %5458 = vrot.lane.b32.xlu0 %v4092, 40
      %v5459 = vpop.permute.xlu0 %5458
      %5460 = vrot.lane.b32.xlu0 %v4093, 40
      %v5461 = vpop.permute.xlu0 %5460
      %5462 = vrot.lane.b32.xlu0 %v4094, 40
      %v5463 = vpop.permute.xlu0 %5462
      %5464 = vrot.lane.b32.xlu0 %v4095, 40
      %v5465 = vpop.permute.xlu0 %5464
      %5466 = vrot.lane.b32.xlu0 %v4096, 40
      %v5467 = vpop.permute.xlu0 %5466
      %5468 = vrot.lane.b32.xlu0 %v4097, 40
      %v5469 = vpop.permute.xlu0 %5468
      %5470 = vrot.lane.b32.xlu0 %v4098, 40
      %v5471 = vpop.permute.xlu0 %5470
      %5472 = vrot.lane.b32.xlu0 %v4099, 40
      %v5473 = vpop.permute.xlu0 %5472
      %5474 = vrot.lane.b32.xlu0 %v4100, 40
      %v5475 = vpop.permute.xlu0 %5474
      %5476 = vrot.lane.b32.xlu0 %v4101, 40
      %v5477 = vpop.permute.xlu0 %5476
      %5478 = vrot.lane.b32.xlu0 %v4102, 40
      %v5479 = vpop.permute.xlu0 %5478
      %5480 = vrot.lane.b32.xlu0 %v4103, 40
      %v5481 = vpop.permute.xlu0 %5480
      %5482 = vrot.lane.b32.xlu0 %v4824, 40
      %v5483 = vpop.permute.xlu0 %5482
      %5484 = vrot.lane.b32.xlu0 %v4825, 40
      %v5485 = vpop.permute.xlu0 %5484
      %5486 = vrot.lane.b32.xlu0 %v5360, 40
      %v5487 = vpop.permute.xlu0 %5486
      %5488 = vrot.lane.b32.xlu0 %v5361, 40
      %v5489 = vpop.permute.xlu0 %5488
      %v5490 = vunpack.c.l.b16 %v3295
      %v5491 = vunpack.c.l.b16 %v3300
      %v5492 = vunpack.c.l.b16 %v3305
      %v5493 = vunpack.c.l.b16 %v3312
      %v5494 = vpack.c.b16 %v5491, %v5490
      %v5495 = vpack.c.b16 %v5493, %v5492
      %5496 = vrot.lane.b32.xlu0 %v4364, 44
      %v5497 = vpop.permute.xlu0 %5496
      %5498 = vrot.lane.b32.xlu0 %v4365, 44
      %v5499 = vpop.permute.xlu0 %5498
      %5500 = vrot.lane.b32.xlu0 %v4366, 44
      %v5501 = vpop.permute.xlu0 %5500
      %5502 = vrot.lane.b32.xlu0 %v4367, 44
      %v5503 = vpop.permute.xlu0 %5502
      %5504 = vrot.lane.b32.xlu0 %v4368, 44
      %v5505 = vpop.permute.xlu0 %5504
      %5506 = vrot.lane.b32.xlu0 %v4369, 44
      %v5507 = vpop.permute.xlu0 %5506
      %5508 = vrot.lane.b32.xlu0 %v4370, 44
      %v5509 = vpop.permute.xlu0 %5508
      %5510 = vrot.lane.b32.xlu0 %v4371, 44
      %v5511 = vpop.permute.xlu0 %5510
      %5512 = vrot.lane.b32.xlu0 %v4372, 44
      %v5513 = vpop.permute.xlu0 %5512
      %5514 = vrot.lane.b32.xlu0 %v4373, 44
      %v5515 = vpop.permute.xlu0 %5514
      %5516 = vrot.lane.b32.xlu0 %v4374, 44
      %v5517 = vpop.permute.xlu0 %5516
      %5518 = vrot.lane.b32.xlu0 %v4375, 44
      %v5519 = vpop.permute.xlu0 %5518
      %5520 = vrot.lane.b32.xlu0 %v4376, 44
      %v5521 = vpop.permute.xlu0 %5520
      %5522 = vrot.lane.b32.xlu0 %v4377, 44
      %v5523 = vpop.permute.xlu0 %5522
      %5524 = vrot.lane.b32.xlu0 %v4378, 44
      %v5525 = vpop.permute.xlu0 %5524
      %5526 = vrot.lane.b32.xlu0 %v4379, 44
      %v5527 = vpop.permute.xlu0 %5526
      %5528 = vrot.lane.b32.xlu0 %v4380, 44
      %v5529 = vpop.permute.xlu0 %5528
      %5530 = vrot.lane.b32.xlu0 %v4381, 44
      %v5531 = vpop.permute.xlu0 %5530
      %5532 = vrot.lane.b32.xlu0 %v4382, 44
      %v5533 = vpop.permute.xlu0 %5532
      %5534 = vrot.lane.b32.xlu0 %v4383, 44
      %v5535 = vpop.permute.xlu0 %5534
      %5536 = vrot.lane.b32.xlu0 %v4384, 44
      %v5537 = vpop.permute.xlu0 %5536
      %5538 = vrot.lane.b32.xlu0 %v4385, 44
      %v5539 = vpop.permute.xlu0 %5538
      %5540 = vrot.lane.b32.xlu0 %v4386, 44
      %v5541 = vpop.permute.xlu0 %5540
      %5542 = vrot.lane.b32.xlu0 %v4387, 44
      %v5543 = vpop.permute.xlu0 %5542
      %5544 = vrot.lane.b32.xlu0 %v4388, 44
      %v5545 = vpop.permute.xlu0 %5544
      %5546 = vrot.lane.b32.xlu0 %v4389, 44
      %v5547 = vpop.permute.xlu0 %5546
      %5548 = vrot.lane.b32.xlu0 %v4390, 44
      %v5549 = vpop.permute.xlu0 %5548
      %5550 = vrot.lane.b32.xlu0 %v4391, 44
      %v5551 = vpop.permute.xlu0 %5550
      %5552 = vrot.lane.b32.xlu0 %v4392, 44
      %v5553 = vpop.permute.xlu0 %5552
      %5554 = vrot.lane.b32.xlu0 %v4393, 44
      %v5555 = vpop.permute.xlu0 %5554
      %5556 = vrot.lane.b32.xlu0 %v4394, 44
      %v5557 = vpop.permute.xlu0 %5556
      %5558 = vrot.lane.b32.xlu0 %v4395, 44
      %v5559 = vpop.permute.xlu0 %5558
      %5560 = vrot.lane.b32.xlu0 %v4396, 44
      %v5561 = vpop.permute.xlu0 %5560
      %5562 = vrot.lane.b32.xlu0 %v4397, 44
      %v5563 = vpop.permute.xlu0 %5562
      %5564 = vrot.lane.b32.xlu0 %v4398, 44
      %v5565 = vpop.permute.xlu0 %5564
      %5566 = vrot.lane.b32.xlu0 %v4399, 44
      %v5567 = vpop.permute.xlu0 %5566
      %5568 = vrot.lane.b32.xlu0 %v4400, 44
      %v5569 = vpop.permute.xlu0 %5568
      %5570 = vrot.lane.b32.xlu0 %v4401, 44
      %v5571 = vpop.permute.xlu0 %5570
      %5572 = vrot.lane.b32.xlu0 %v4402, 44
      %v5573 = vpop.permute.xlu0 %5572
      %5574 = vrot.lane.b32.xlu0 %v4403, 44
      %v5575 = vpop.permute.xlu0 %5574
      %5576 = vrot.lane.b32.xlu0 %v4404, 44
      %v5577 = vpop.permute.xlu0 %5576
      %5578 = vrot.lane.b32.xlu0 %v4405, 44
      %v5579 = vpop.permute.xlu0 %5578
      %5580 = vrot.lane.b32.xlu0 %v4406, 44
      %v5581 = vpop.permute.xlu0 %5580
      %5582 = vrot.lane.b32.xlu0 %v4407, 44
      %v5583 = vpop.permute.xlu0 %5582
      %5584 = vrot.lane.b32.xlu0 %v4408, 44
      %v5585 = vpop.permute.xlu0 %5584
      %5586 = vrot.lane.b32.xlu0 %v4409, 44
      %v5587 = vpop.permute.xlu0 %5586
      %5588 = vrot.lane.b32.xlu0 %v4410, 44
      %v5589 = vpop.permute.xlu0 %5588
      %5590 = vrot.lane.b32.xlu0 %v4411, 44
      %v5591 = vpop.permute.xlu0 %5590
      %5592 = vrot.lane.b32.xlu0 %v4412, 44
      %v5593 = vpop.permute.xlu0 %5592
      %5594 = vrot.lane.b32.xlu0 %v4413, 44
      %v5595 = vpop.permute.xlu0 %5594
      %5596 = vrot.lane.b32.xlu0 %v4414, 44
      %v5597 = vpop.permute.xlu0 %5596
      %5598 = vrot.lane.b32.xlu0 %v4415, 44
      %v5599 = vpop.permute.xlu0 %5598
      %5600 = vrot.lane.b32.xlu0 %v4416, 44
      %v5601 = vpop.permute.xlu0 %5600
      %5602 = vrot.lane.b32.xlu0 %v4417, 44
      %v5603 = vpop.permute.xlu0 %5602
      %5604 = vrot.lane.b32.xlu0 %v4418, 44
      %v5605 = vpop.permute.xlu0 %5604
      %5606 = vrot.lane.b32.xlu0 %v4419, 44
      %v5607 = vpop.permute.xlu0 %5606
      %5608 = vrot.lane.b32.xlu0 %v4420, 44
      %v5609 = vpop.permute.xlu0 %5608
      %5610 = vrot.lane.b32.xlu0 %v4421, 44
      %v5611 = vpop.permute.xlu0 %5610
      %5612 = vrot.lane.b32.xlu0 %v4422, 44
      %v5613 = vpop.permute.xlu0 %5612
      %5614 = vrot.lane.b32.xlu0 %v4423, 44
      %v5615 = vpop.permute.xlu0 %5614
      %5616 = vrot.lane.b32.xlu0 %v4958, 44
      %v5617 = vpop.permute.xlu0 %5616
      %5618 = vrot.lane.b32.xlu0 %v4959, 44
      %v5619 = vpop.permute.xlu0 %5618
      %5620 = vrot.lane.b32.xlu0 %v5494, 44
      %v5621 = vpop.permute.xlu0 %5620
      %5622 = vrot.lane.b32.xlu0 %v5495, 44
      %v5623 = vpop.permute.xlu0 %5622
      %v5624 = vunpack.c.l.b16 %v341
      %v5625 = vunpack.c.l.b16 %v342
      %v5626 = vunpack.c.l.b16 %v343
      %v5627 = vunpack.c.l.b16 %v344
      %v5628 = vpack.c.b16 %v5625, %v5624
      %v5629 = vpack.c.b16 %v5627, %v5626
      %5630 = vrot.lane.b32.xlu0 %v3534, 48
      %v5631 = vpop.permute.xlu0 %5630
      %5632 = vrot.lane.b32.xlu0 %v3535, 48
      %v5633 = vpop.permute.xlu0 %5632
      %5634 = vrot.lane.b32.xlu0 %v3536, 48
      %v5635 = vpop.permute.xlu0 %5634
      %5636 = vrot.lane.b32.xlu0 %v3537, 48
      %v5637 = vpop.permute.xlu0 %5636
      %5638 = vrot.lane.b32.xlu0 %v3538, 48
      %v5639 = vpop.permute.xlu0 %5638
      %5640 = vrot.lane.b32.xlu0 %v3539, 48
      %v5641 = vpop.permute.xlu0 %5640
      %5642 = vrot.lane.b32.xlu0 %v3540, 48
      %v5643 = vpop.permute.xlu0 %5642
      %5644 = vrot.lane.b32.xlu0 %v3541, 48
      %v5645 = vpop.permute.xlu0 %5644
      %5646 = vrot.lane.b32.xlu0 %v3542, 48
      %v5647 = vpop.permute.xlu0 %5646
      %5648 = vrot.lane.b32.xlu0 %v3543, 48
      %v5649 = vpop.permute.xlu0 %5648
      %5650 = vrot.lane.b32.xlu0 %v3544, 48
      %v5651 = vpop.permute.xlu0 %5650
      %5652 = vrot.lane.b32.xlu0 %v3545, 48
      %v5653 = vpop.permute.xlu0 %5652
      %5654 = vrot.lane.b32.xlu0 %v3546, 48
      %v5655 = vpop.permute.xlu0 %5654
      %5656 = vrot.lane.b32.xlu0 %v3547, 48
      %v5657 = vpop.permute.xlu0 %5656
      %5658 = vrot.lane.b32.xlu0 %v3548, 48
      %v5659 = vpop.permute.xlu0 %5658
      %5660 = vrot.lane.b32.xlu0 %v3549, 48
      %v5661 = vpop.permute.xlu0 %5660
      %5662 = vrot.lane.b32.xlu0 %v3550, 48
      %v5663 = vpop.permute.xlu0 %5662
      %5664 = vrot.lane.b32.xlu0 %v3551, 48
      %v5665 = vpop.permute.xlu0 %5664
      %5666 = vrot.lane.b32.xlu0 %v3552, 48
      %v5667 = vpop.permute.xlu0 %5666
      %5668 = vrot.lane.b32.xlu0 %v3553, 48
      %v5669 = vpop.permute.xlu0 %5668
      %5670 = vrot.lane.b32.xlu0 %v3554, 48
      %v5671 = vpop.permute.xlu0 %5670
      %5672 = vrot.lane.b32.xlu0 %v3555, 48
      %v5673 = vpop.permute.xlu0 %5672
      %5674 = vrot.lane.b32.xlu0 %v3556, 48
      %v5675 = vpop.permute.xlu0 %5674
      %5676 = vrot.lane.b32.xlu0 %v3557, 48
      %v5677 = vpop.permute.xlu0 %5676
      %5678 = vrot.lane.b32.xlu0 %v3558, 48
      %v5679 = vpop.permute.xlu0 %5678
      %5680 = vrot.lane.b32.xlu0 %v3559, 48
      %v5681 = vpop.permute.xlu0 %5680
      %5682 = vrot.lane.b32.xlu0 %v3560, 48
      %v5683 = vpop.permute.xlu0 %5682
      %5684 = vrot.lane.b32.xlu0 %v3561, 48
      %v5685 = vpop.permute.xlu0 %5684
      %5686 = vrot.lane.b32.xlu0 %v3562, 48
      %v5687 = vpop.permute.xlu0 %5686
      %5688 = vrot.lane.b32.xlu0 %v3563, 48
      %v5689 = vpop.permute.xlu0 %5688
      %5690 = vrot.lane.b32.xlu0 %v3564, 48
      %v5691 = vpop.permute.xlu0 %5690
      %5692 = vrot.lane.b32.xlu0 %v3565, 48
      %v5693 = vpop.permute.xlu0 %5692
      %5694 = vrot.lane.b32.xlu0 %v3566, 48
      %v5695 = vpop.permute.xlu0 %5694
      %5696 = vrot.lane.b32.xlu0 %v3567, 48
      %v5697 = vpop.permute.xlu0 %5696
      %5698 = vrot.lane.b32.xlu0 %v3568, 48
      %v5699 = vpop.permute.xlu0 %5698
      %5700 = vrot.lane.b32.xlu0 %v3569, 48
      %v5701 = vpop.permute.xlu0 %5700
      %5702 = vrot.lane.b32.xlu0 %v3570, 48
      %v5703 = vpop.permute.xlu0 %5702
      %5704 = vrot.lane.b32.xlu0 %v3571, 48
      %v5705 = vpop.permute.xlu0 %5704
      %5706 = vrot.lane.b32.xlu0 %v3572, 48
      %v5707 = vpop.permute.xlu0 %5706
      %5708 = vrot.lane.b32.xlu0 %v3573, 48
      %v5709 = vpop.permute.xlu0 %5708
      %5710 = vrot.lane.b32.xlu0 %v3574, 48
      %v5711 = vpop.permute.xlu0 %5710
      %5712 = vrot.lane.b32.xlu0 %v3575, 48
      %v5713 = vpop.permute.xlu0 %5712
      %5714 = vrot.lane.b32.xlu0 %v3576, 48
      %v5715 = vpop.permute.xlu0 %5714
      %5716 = vrot.lane.b32.xlu0 %v3577, 48
      %v5717 = vpop.permute.xlu0 %5716
      %5718 = vrot.lane.b32.xlu0 %v3578, 48
      %v5719 = vpop.permute.xlu0 %5718
      %5720 = vrot.lane.b32.xlu0 %v3579, 48
      %v5721 = vpop.permute.xlu0 %5720
      %5722 = vrot.lane.b32.xlu0 %v3580, 48
      %v5723 = vpop.permute.xlu0 %5722
      %5724 = vrot.lane.b32.xlu0 %v3581, 48
      %v5725 = vpop.permute.xlu0 %5724
      %5726 = vrot.lane.b32.xlu0 %v3582, 48
      %v5727 = vpop.permute.xlu0 %5726
      %5728 = vrot.lane.b32.xlu0 %v3583, 48
      %v5729 = vpop.permute.xlu0 %5728
      %5730 = vrot.lane.b32.xlu0 %v3584, 48
      %v5731 = vpop.permute.xlu0 %5730
      %5732 = vrot.lane.b32.xlu0 %v3585, 48
      %v5733 = vpop.permute.xlu0 %5732
      %5734 = vrot.lane.b32.xlu0 %v3586, 48
      %v5735 = vpop.permute.xlu0 %5734
      %5736 = vrot.lane.b32.xlu0 %v3587, 48
      %v5737 = vpop.permute.xlu0 %5736
      %5738 = vrot.lane.b32.xlu0 %v3588, 48
      %v5739 = vpop.permute.xlu0 %5738
      %5740 = vrot.lane.b32.xlu0 %v3589, 48
      %v5741 = vpop.permute.xlu0 %5740
      %5742 = vrot.lane.b32.xlu0 %v3590, 48
      %v5743 = vpop.permute.xlu0 %5742
      %5744 = vrot.lane.b32.xlu0 %v3591, 48
      %v5745 = vpop.permute.xlu0 %5744
      %5746 = vrot.lane.b32.xlu0 %v4556, 48
      %v5747 = vpop.permute.xlu0 %5746
      %5748 = vrot.lane.b32.xlu0 %v4557, 48
      %v5749 = vpop.permute.xlu0 %5748
      %5750 = vrot.lane.b32.xlu0 %v5092, 48
      %v5751 = vpop.permute.xlu0 %5750
      %5752 = vrot.lane.b32.xlu0 %v5093, 48
      %v5753 = vpop.permute.xlu0 %5752
      %5754 = vrot.lane.b32.xlu0 %v5628, 48
      %v5755 = vpop.permute.xlu0 %5754
      %5756 = vrot.lane.b32.xlu0 %v5629, 48
      %v5757 = vpop.permute.xlu0 %5756
      %v5758 = vunpack.c.l.b16 %v3326
      %v5759 = vunpack.c.l.b16 %v3336
      %v5760 = vunpack.c.l.b16 %v3346
      %v5761 = vunpack.c.l.b16 %v3356
      %v5762 = vpack.c.b16 %v5759, %v5758
      %v5763 = vpack.c.b16 %v5761, %v5760
      %5764 = vrot.lane.b32.xlu0 %v3726, 52
      %v5765 = vpop.permute.xlu0 %5764
      %5766 = vrot.lane.b32.xlu0 %v3727, 52
      %v5767 = vpop.permute.xlu0 %5766
      %5768 = vrot.lane.b32.xlu0 %v3728, 52
      %v5769 = vpop.permute.xlu0 %5768
      %5770 = vrot.lane.b32.xlu0 %v3729, 52
      %v5771 = vpop.permute.xlu0 %5770
      %5772 = vrot.lane.b32.xlu0 %v3730, 52
      %v5773 = vpop.permute.xlu0 %5772
      %5774 = vrot.lane.b32.xlu0 %v3731, 52
      %v5775 = vpop.permute.xlu0 %5774
      %5776 = vrot.lane.b32.xlu0 %v3732, 52
      %v5777 = vpop.permute.xlu0 %5776
      %5778 = vrot.lane.b32.xlu0 %v3733, 52
      %v5779 = vpop.permute.xlu0 %5778
      %5780 = vrot.lane.b32.xlu0 %v3734, 52
      %v5781 = vpop.permute.xlu0 %5780
      %5782 = vrot.lane.b32.xlu0 %v3735, 52
      %v5783 = vpop.permute.xlu0 %5782
      %5784 = vrot.lane.b32.xlu0 %v3736, 52
      %v5785 = vpop.permute.xlu0 %5784
      %5786 = vrot.lane.b32.xlu0 %v3737, 52
      %v5787 = vpop.permute.xlu0 %5786
      %5788 = vrot.lane.b32.xlu0 %v3738, 52
      %v5789 = vpop.permute.xlu0 %5788
      %5790 = vrot.lane.b32.xlu0 %v3739, 52
      %v5791 = vpop.permute.xlu0 %5790
      %5792 = vrot.lane.b32.xlu0 %v3740, 52
      %v5793 = vpop.permute.xlu0 %5792
      %5794 = vrot.lane.b32.xlu0 %v3741, 52
      %v5795 = vpop.permute.xlu0 %5794
      %5796 = vrot.lane.b32.xlu0 %v3742, 52
      %v5797 = vpop.permute.xlu0 %5796
      %5798 = vrot.lane.b32.xlu0 %v3743, 52
      %v5799 = vpop.permute.xlu0 %5798
      %5800 = vrot.lane.b32.xlu0 %v3744, 52
      %v5801 = vpop.permute.xlu0 %5800
      %5802 = vrot.lane.b32.xlu0 %v3745, 52
      %v5803 = vpop.permute.xlu0 %5802
      %5804 = vrot.lane.b32.xlu0 %v3746, 52
      %v5805 = vpop.permute.xlu0 %5804
      %5806 = vrot.lane.b32.xlu0 %v3747, 52
      %v5807 = vpop.permute.xlu0 %5806
      %5808 = vrot.lane.b32.xlu0 %v3748, 52
      %v5809 = vpop.permute.xlu0 %5808
      %5810 = vrot.lane.b32.xlu0 %v3749, 52
      %v5811 = vpop.permute.xlu0 %5810
      %5812 = vrot.lane.b32.xlu0 %v3750, 52
      %v5813 = vpop.permute.xlu0 %5812
      %5814 = vrot.lane.b32.xlu0 %v3751, 52
      %v5815 = vpop.permute.xlu0 %5814
      %5816 = vrot.lane.b32.xlu0 %v3752, 52
      %v5817 = vpop.permute.xlu0 %5816
      %5818 = vrot.lane.b32.xlu0 %v3753, 52
      %v5819 = vpop.permute.xlu0 %5818
      %5820 = vrot.lane.b32.xlu0 %v3754, 52
      %v5821 = vpop.permute.xlu0 %5820
      %5822 = vrot.lane.b32.xlu0 %v3755, 52
      %v5823 = vpop.permute.xlu0 %5822
      %5824 = vrot.lane.b32.xlu0 %v3756, 52
      %v5825 = vpop.permute.xlu0 %5824
      %5826 = vrot.lane.b32.xlu0 %v3757, 52
      %v5827 = vpop.permute.xlu0 %5826
      %5828 = vrot.lane.b32.xlu0 %v3758, 52
      %v5829 = vpop.permute.xlu0 %5828
      %5830 = vrot.lane.b32.xlu0 %v3759, 52
      %v5831 = vpop.permute.xlu0 %5830
      %5832 = vrot.lane.b32.xlu0 %v3760, 52
      %v5833 = vpop.permute.xlu0 %5832
      %5834 = vrot.lane.b32.xlu0 %v3761, 52
      %v5835 = vpop.permute.xlu0 %5834
      %5836 = vrot.lane.b32.xlu0 %v3762, 52
      %v5837 = vpop.permute.xlu0 %5836
      %5838 = vrot.lane.b32.xlu0 %v3763, 52
      %v5839 = vpop.permute.xlu0 %5838
      %5840 = vrot.lane.b32.xlu0 %v3764, 52
      %v5841 = vpop.permute.xlu0 %5840
      %5842 = vrot.lane.b32.xlu0 %v3765, 52
      %v5843 = vpop.permute.xlu0 %5842
      %5844 = vrot.lane.b32.xlu0 %v3766, 52
      %v5845 = vpop.permute.xlu0 %5844
      %5846 = vrot.lane.b32.xlu0 %v3767, 52
      %v5847 = vpop.permute.xlu0 %5846
      %5848 = vrot.lane.b32.xlu0 %v3768, 52
      %v5849 = vpop.permute.xlu0 %5848
      %5850 = vrot.lane.b32.xlu0 %v3769, 52
      %v5851 = vpop.permute.xlu0 %5850
      %5852 = vrot.lane.b32.xlu0 %v3770, 52
      %v5853 = vpop.permute.xlu0 %5852
      %5854 = vrot.lane.b32.xlu0 %v3771, 52
      %v5855 = vpop.permute.xlu0 %5854
      %5856 = vrot.lane.b32.xlu0 %v3772, 52
      %v5857 = vpop.permute.xlu0 %5856
      %5858 = vrot.lane.b32.xlu0 %v3773, 52
      %v5859 = vpop.permute.xlu0 %5858
      %5860 = vrot.lane.b32.xlu0 %v3774, 52
      %v5861 = vpop.permute.xlu0 %5860
      %5862 = vrot.lane.b32.xlu0 %v3775, 52
      %v5863 = vpop.permute.xlu0 %5862
      %5864 = vrot.lane.b32.xlu0 %v3776, 52
      %v5865 = vpop.permute.xlu0 %5864
      %5866 = vrot.lane.b32.xlu0 %v3777, 52
      %v5867 = vpop.permute.xlu0 %5866
      %5868 = vrot.lane.b32.xlu0 %v3778, 52
      %v5869 = vpop.permute.xlu0 %5868
      %5870 = vrot.lane.b32.xlu0 %v3779, 52
      %v5871 = vpop.permute.xlu0 %5870
      %5872 = vrot.lane.b32.xlu0 %v3780, 52
      %v5873 = vpop.permute.xlu0 %5872
      %5874 = vrot.lane.b32.xlu0 %v3781, 52
      %v5875 = vpop.permute.xlu0 %5874
      %5876 = vrot.lane.b32.xlu0 %v3782, 52
      %v5877 = vpop.permute.xlu0 %5876
      %5878 = vrot.lane.b32.xlu0 %v3783, 52
      %v5879 = vpop.permute.xlu0 %5878
      %5880 = vrot.lane.b32.xlu0 %v4690, 52
      %v5881 = vpop.permute.xlu0 %5880
      %5882 = vrot.lane.b32.xlu0 %v4691, 52
      %v5883 = vpop.permute.xlu0 %5882
      %5884 = vrot.lane.b32.xlu0 %v5226, 52
      %v5885 = vpop.permute.xlu0 %5884
      %5886 = vrot.lane.b32.xlu0 %v5227, 52
      %v5887 = vpop.permute.xlu0 %5886
      %5888 = vrot.lane.b32.xlu0 %v5762, 52
      %v5889 = vpop.permute.xlu0 %5888
      %5890 = vrot.lane.b32.xlu0 %v5763, 52
      %v5891 = vpop.permute.xlu0 %5890
      %v5892 = vunpack.c.l.b16 %v3365
      %v5893 = vunpack.c.l.b16 %v3368
      %v5894 = vunpack.c.l.b16 %v3371
      %v5895 = vunpack.c.l.b16 %v3374
      %v5896 = vpack.c.b16 %v5893, %v5892
      %v5897 = vpack.c.b16 %v5895, %v5894
      %5898 = vrot.lane.b32.xlu0 %v4046, 56
      %v5899 = vpop.permute.xlu0 %5898
      %5900 = vrot.lane.b32.xlu0 %v4047, 56
      %v5901 = vpop.permute.xlu0 %5900
      %5902 = vrot.lane.b32.xlu0 %v4048, 56
      %v5903 = vpop.permute.xlu0 %5902
      %5904 = vrot.lane.b32.xlu0 %v4049, 56
      %v5905 = vpop.permute.xlu0 %5904
      %5906 = vrot.lane.b32.xlu0 %v4050, 56
      %v5907 = vpop.permute.xlu0 %5906
      %5908 = vrot.lane.b32.xlu0 %v4051, 56
      %v5909 = vpop.permute.xlu0 %5908
      %5910 = vrot.lane.b32.xlu0 %v4052, 56
      %v5911 = vpop.permute.xlu0 %5910
      %5912 = vrot.lane.b32.xlu0 %v4053, 56
      %v5913 = vpop.permute.xlu0 %5912
      %5914 = vrot.lane.b32.xlu0 %v4054, 56
      %v5915 = vpop.permute.xlu0 %5914
      %5916 = vrot.lane.b32.xlu0 %v4055, 56
      %v5917 = vpop.permute.xlu0 %5916
      %5918 = vrot.lane.b32.xlu0 %v4056, 56
      %v5919 = vpop.permute.xlu0 %5918
      %5920 = vrot.lane.b32.xlu0 %v4057, 56
      %v5921 = vpop.permute.xlu0 %5920
      %5922 = vrot.lane.b32.xlu0 %v4058, 56
      %v5923 = vpop.permute.xlu0 %5922
      %5924 = vrot.lane.b32.xlu0 %v4059, 56
      %v5925 = vpop.permute.xlu0 %5924
      %5926 = vrot.lane.b32.xlu0 %v4060, 56
      %v5927 = vpop.permute.xlu0 %5926
      %5928 = vrot.lane.b32.xlu0 %v4061, 56
      %v5929 = vpop.permute.xlu0 %5928
      %5930 = vrot.lane.b32.xlu0 %v4062, 56
      %v5931 = vpop.permute.xlu0 %5930
      %5932 = vrot.lane.b32.xlu0 %v4063, 56
      %v5933 = vpop.permute.xlu0 %5932
      %5934 = vrot.lane.b32.xlu0 %v4064, 56
      %v5935 = vpop.permute.xlu0 %5934
      %5936 = vrot.lane.b32.xlu0 %v4065, 56
      %v5937 = vpop.permute.xlu0 %5936
      %5938 = vrot.lane.b32.xlu0 %v4066, 56
      %v5939 = vpop.permute.xlu0 %5938
      %5940 = vrot.lane.b32.xlu0 %v4067, 56
      %v5941 = vpop.permute.xlu0 %5940
      %5942 = vrot.lane.b32.xlu0 %v4068, 56
      %v5943 = vpop.permute.xlu0 %5942
      %5944 = vrot.lane.b32.xlu0 %v4069, 56
      %v5945 = vpop.permute.xlu0 %5944
      %5946 = vrot.lane.b32.xlu0 %v4070, 56
      %v5947 = vpop.permute.xlu0 %5946
      %5948 = vrot.lane.b32.xlu0 %v4071, 56
      %v5949 = vpop.permute.xlu0 %5948
      %5950 = vrot.lane.b32.xlu0 %v4072, 56
      %v5951 = vpop.permute.xlu0 %5950
      %5952 = vrot.lane.b32.xlu0 %v4073, 56
      %v5953 = vpop.permute.xlu0 %5952
      %5954 = vrot.lane.b32.xlu0 %v4074, 56
      %v5955 = vpop.permute.xlu0 %5954
      %5956 = vrot.lane.b32.xlu0 %v4075, 56
      %v5957 = vpop.permute.xlu0 %5956
      %5958 = vrot.lane.b32.xlu0 %v4076, 56
      %v5959 = vpop.permute.xlu0 %5958
      %5960 = vrot.lane.b32.xlu0 %v4077, 56
      %v5961 = vpop.permute.xlu0 %5960
      %5962 = vrot.lane.b32.xlu0 %v4078, 56
      %v5963 = vpop.permute.xlu0 %5962
      %5964 = vrot.lane.b32.xlu0 %v4079, 56
      %v5965 = vpop.permute.xlu0 %5964
      %5966 = vrot.lane.b32.xlu0 %v4080, 56
      %v5967 = vpop.permute.xlu0 %5966
      %5968 = vrot.lane.b32.xlu0 %v4081, 56
      %v5969 = vpop.permute.xlu0 %5968
      %5970 = vrot.lane.b32.xlu0 %v4082, 56
      %v5971 = vpop.permute.xlu0 %5970
      %5972 = vrot.lane.b32.xlu0 %v4083, 56
      %v5973 = vpop.permute.xlu0 %5972
      %5974 = vrot.lane.b32.xlu0 %v4084, 56
      %v5975 = vpop.permute.xlu0 %5974
      %5976 = vrot.lane.b32.xlu0 %v4085, 56
      %v5977 = vpop.permute.xlu0 %5976
      %5978 = vrot.lane.b32.xlu0 %v4086, 56
      %v5979 = vpop.permute.xlu0 %5978
      %5980 = vrot.lane.b32.xlu0 %v4087, 56
      %v5981 = vpop.permute.xlu0 %5980
      %5982 = vrot.lane.b32.xlu0 %v4088, 56
      %v5983 = vpop.permute.xlu0 %5982
      %5984 = vrot.lane.b32.xlu0 %v4089, 56
      %v5985 = vpop.permute.xlu0 %5984
      %5986 = vrot.lane.b32.xlu0 %v4090, 56
      %v5987 = vpop.permute.xlu0 %5986
      %5988 = vrot.lane.b32.xlu0 %v4091, 56
      %v5989 = vpop.permute.xlu0 %5988
      %5990 = vrot.lane.b32.xlu0 %v4092, 56
      %v5991 = vpop.permute.xlu0 %5990
      %5992 = vrot.lane.b32.xlu0 %v4093, 56
      %v5993 = vpop.permute.xlu0 %5992
      %5994 = vrot.lane.b32.xlu0 %v4094, 56
      %v5995 = vpop.permute.xlu0 %5994
      %5996 = vrot.lane.b32.xlu0 %v4095, 56
      %v5997 = vpop.permute.xlu0 %5996
      %5998 = vrot.lane.b32.xlu0 %v4096, 56
      %v5999 = vpop.permute.xlu0 %5998
      %6000 = vrot.lane.b32.xlu0 %v4097, 56
      %v6001 = vpop.permute.xlu0 %6000
      %6002 = vrot.lane.b32.xlu0 %v4098, 56
      %v6003 = vpop.permute.xlu0 %6002
      %6004 = vrot.lane.b32.xlu0 %v4099, 56
      %v6005 = vpop.permute.xlu0 %6004
      %6006 = vrot.lane.b32.xlu0 %v4100, 56
      %v6007 = vpop.permute.xlu0 %6006
      %6008 = vrot.lane.b32.xlu0 %v4101, 56
      %v6009 = vpop.permute.xlu0 %6008
      %6010 = vrot.lane.b32.xlu0 %v4102, 56
      %v6011 = vpop.permute.xlu0 %6010
      %6012 = vrot.lane.b32.xlu0 %v4103, 56
      %v6013 = vpop.permute.xlu0 %6012
      %6014 = vrot.lane.b32.xlu0 %v4824, 56
      %v6015 = vpop.permute.xlu0 %6014
      %6016 = vrot.lane.b32.xlu0 %v4825, 56
      %v6017 = vpop.permute.xlu0 %6016
      %6018 = vrot.lane.b32.xlu0 %v5360, 56
      %v6019 = vpop.permute.xlu0 %6018
      %6020 = vrot.lane.b32.xlu0 %v5361, 56
      %v6021 = vpop.permute.xlu0 %6020
      %6022 = vrot.lane.b32.xlu0 %v5896, 56
      %v6023 = vpop.permute.xlu0 %6022
      %6024 = vrot.lane.b32.xlu0 %v5897, 56
      %v6025 = vpop.permute.xlu0 %6024
      %v6026 = vunpack.c.l.b16 %v3382
      %v6027 = vunpack.c.l.b16 %v3387
      %v6028 = vunpack.c.l.b16 %v3392
      %v6029 = vunpack.c.l.b16 %v3399
      %v6030 = vpack.c.b16 %v6027, %v6026
      %v6031 = vpack.c.b16 %v6029, %v6028
      %6032 = vrot.lane.b32.xlu0 %v4366, 60
      %v6033 = vpop.permute.xlu0 %6032
      %6034 = vrot.lane.b32.xlu0 %v4367, 60
      %v6035 = vpop.permute.xlu0 %6034
      %6036 = vrot.lane.b32.xlu0 %v4368, 60
      %v6037 = vpop.permute.xlu0 %6036
      %6038 = vrot.lane.b32.xlu0 %v4369, 60
      %v6039 = vpop.permute.xlu0 %6038
      %6040 = vrot.lane.b32.xlu0 %v4370, 60
      %v6041 = vpop.permute.xlu0 %6040
      %6042 = vrot.lane.b32.xlu0 %v4371, 60
      %v6043 = vpop.permute.xlu0 %6042
      %6044 = vrot.lane.b32.xlu0 %v4372, 60
      %v6045 = vpop.permute.xlu0 %6044
      %6046 = vrot.lane.b32.xlu0 %v4373, 60
      %v6047 = vpop.permute.xlu0 %6046
      %6048 = vrot.lane.b32.xlu0 %v4374, 60
      %v6049 = vpop.permute.xlu0 %6048
      %6050 = vrot.lane.b32.xlu0 %v4375, 60
      %v6051 = vpop.permute.xlu0 %6050
      %6052 = vrot.lane.b32.xlu0 %v4376, 60
      %v6053 = vpop.permute.xlu0 %6052
      %6054 = vrot.lane.b32.xlu0 %v4377, 60
      %v6055 = vpop.permute.xlu0 %6054
      %6056 = vrot.lane.b32.xlu0 %v4378, 60
      %v6057 = vpop.permute.xlu0 %6056
      %6058 = vrot.lane.b32.xlu0 %v4379, 60
      %v6059 = vpop.permute.xlu0 %6058
      %6060 = vrot.lane.b32.xlu0 %v4380, 60
      %v6061 = vpop.permute.xlu0 %6060
      %6062 = vrot.lane.b32.xlu0 %v4381, 60
      %v6063 = vpop.permute.xlu0 %6062
      %6064 = vrot.lane.b32.xlu0 %v4382, 60
      %v6065 = vpop.permute.xlu0 %6064
      %6066 = vrot.lane.b32.xlu0 %v4383, 60
      %v6067 = vpop.permute.xlu0 %6066
      %6068 = vrot.lane.b32.xlu0 %v4384, 60
      %v6069 = vpop.permute.xlu0 %6068
      %6070 = vrot.lane.b32.xlu0 %v4385, 60
      %v6071 = vpop.permute.xlu0 %6070
      %6072 = vrot.lane.b32.xlu0 %v4386, 60
      %v6073 = vpop.permute.xlu0 %6072
      %6074 = vrot.lane.b32.xlu0 %v4387, 60
      %v6075 = vpop.permute.xlu0 %6074
      %6076 = vrot.lane.b32.xlu0 %v4388, 60
      %v6077 = vpop.permute.xlu0 %6076
      %6078 = vrot.lane.b32.xlu0 %v4389, 60
      %v6079 = vpop.permute.xlu0 %6078
      %6080 = vrot.lane.b32.xlu0 %v4390, 60
      %v6081 = vpop.permute.xlu0 %6080
      %6082 = vrot.lane.b32.xlu0 %v4391, 60
      %v6083 = vpop.permute.xlu0 %6082
      %6084 = vrot.lane.b32.xlu0 %v4392, 60
      %v6085 = vpop.permute.xlu0 %6084
      %6086 = vrot.lane.b32.xlu0 %v4393, 60
      %v6087 = vpop.permute.xlu0 %6086
      %6088 = vrot.lane.b32.xlu0 %v4394, 60
      %v6089 = vpop.permute.xlu0 %6088
      %6090 = vrot.lane.b32.xlu0 %v4395, 60
      %v6091 = vpop.permute.xlu0 %6090
      %6092 = vrot.lane.b32.xlu0 %v4396, 60
      %v6093 = vpop.permute.xlu0 %6092
      %6094 = vrot.lane.b32.xlu0 %v4397, 60
      %v6095 = vpop.permute.xlu0 %6094
      %6096 = vrot.lane.b32.xlu0 %v4398, 60
      %v6097 = vpop.permute.xlu0 %6096
      %6098 = vrot.lane.b32.xlu0 %v4399, 60
      %v6099 = vpop.permute.xlu0 %6098
      %6100 = vrot.lane.b32.xlu0 %v4400, 60
      %v6101 = vpop.permute.xlu0 %6100
      %6102 = vrot.lane.b32.xlu0 %v4401, 60
      %v6103 = vpop.permute.xlu0 %6102
      %6104 = vrot.lane.b32.xlu0 %v4402, 60
      %v6105 = vpop.permute.xlu0 %6104
      %6106 = vrot.lane.b32.xlu0 %v4403, 60
      %v6107 = vpop.permute.xlu0 %6106
      %6108 = vrot.lane.b32.xlu0 %v4404, 60
      %v6109 = vpop.permute.xlu0 %6108
      %6110 = vrot.lane.b32.xlu0 %v4405, 60
      %v6111 = vpop.permute.xlu0 %6110
      %6112 = vrot.lane.b32.xlu0 %v4406, 60
      %v6113 = vpop.permute.xlu0 %6112
      %6114 = vrot.lane.b32.xlu0 %v4407, 60
      %v6115 = vpop.permute.xlu0 %6114
      %6116 = vrot.lane.b32.xlu0 %v4408, 60
      %v6117 = vpop.permute.xlu0 %6116
      %6118 = vrot.lane.b32.xlu0 %v4409, 60
      %v6119 = vpop.permute.xlu0 %6118
      %6120 = vrot.lane.b32.xlu0 %v4410, 60
      %v6121 = vpop.permute.xlu0 %6120
      %6122 = vrot.lane.b32.xlu0 %v4411, 60
      %v6123 = vpop.permute.xlu0 %6122
      %6124 = vrot.lane.b32.xlu0 %v4412, 60
      %v6125 = vpop.permute.xlu0 %6124
      %6126 = vrot.lane.b32.xlu0 %v4413, 60
      %v6127 = vpop.permute.xlu0 %6126
      %6128 = vrot.lane.b32.xlu0 %v4414, 60
      %v6129 = vpop.permute.xlu0 %6128
      %6130 = vrot.lane.b32.xlu0 %v4415, 60
      %v6131 = vpop.permute.xlu0 %6130
      %6132 = vrot.lane.b32.xlu0 %v4416, 60
      %v6133 = vpop.permute.xlu0 %6132
      %6134 = vrot.lane.b32.xlu0 %v4417, 60
      %v6135 = vpop.permute.xlu0 %6134
      %6136 = vrot.lane.b32.xlu0 %v4418, 60
      %v6137 = vpop.permute.xlu0 %6136
      %6138 = vrot.lane.b32.xlu0 %v4419, 60
      %v6139 = vpop.permute.xlu0 %6138
      %6140 = vrot.lane.b32.xlu0 %v4420, 60
      %v6141 = vpop.permute.xlu0 %6140
      %6142 = vrot.lane.b32.xlu0 %v4421, 60
      %v6143 = vpop.permute.xlu0 %6142
      %6144 = vrot.lane.b32.xlu0 %v4422, 60
      %v6145 = vpop.permute.xlu0 %6144
      %6146 = vrot.lane.b32.xlu0 %v4423, 60
      %v6147 = vpop.permute.xlu0 %6146
      %6148 = vrot.lane.b32.xlu0 %v4958, 60
      %v6149 = vpop.permute.xlu0 %6148
      %6150 = vrot.lane.b32.xlu0 %v4959, 60
      %v6151 = vpop.permute.xlu0 %6150
      %6152 = vrot.lane.b32.xlu0 %v5494, 60
      %v6153 = vpop.permute.xlu0 %6152
      %6154 = vrot.lane.b32.xlu0 %v5495, 60
      %v6155 = vpop.permute.xlu0 %6154
      %6156 = vrot.lane.b32.xlu0 %v6030, 60
      %v6157 = vpop.permute.xlu0 %6156
      %6158 = vrot.lane.b32.xlu0 %v6031, 60
      %v6159 = vpop.permute.xlu0 %6158
      %vm6160 = vcmask 31744
      %v6163 = vsel %vm6160, %v3528, %v3785
      %v6166 = vsel %vm6160, %v3529, %v3787
      %v6169 = vsel %vm6160, %v3530, %v3789
      %v6172 = vsel %vm6160, %v3531, %v3791
      %v6175 = vsel %vm6160, %v3532, %v3793
      %v6178 = vsel %vm6160, %v3533, %v3795
      %v6181 = vsel %vm6160, %v3534, %v3797
      %v6184 = vsel %vm6160, %v3535, %v3799
      %v6187 = vsel %vm6160, %v3536, %v3801
      %v6190 = vsel %vm6160, %v3537, %v3803
      %v6193 = vsel %vm6160, %v3538, %v3805
      %v6196 = vsel %vm6160, %v3539, %v3807
      %v6199 = vsel %vm6160, %v3540, %v3809
      %v6202 = vsel %vm6160, %v3541, %v3811
      %v6205 = vsel %vm6160, %v3542, %v3813
      %v6208 = vsel %vm6160, %v3543, %v3815
      %v6211 = vsel %vm6160, %v3544, %v3817
      %v6214 = vsel %vm6160, %v3545, %v3819
      %v6217 = vsel %vm6160, %v3546, %v3821
      %v6220 = vsel %vm6160, %v3547, %v3823
      %v6223 = vsel %vm6160, %v3548, %v3825
      %v6226 = vsel %vm6160, %v3549, %v3827
      %v6229 = vsel %vm6160, %v3550, %v3829
      %v6232 = vsel %vm6160, %v3551, %v3831
      %v6235 = vsel %vm6160, %v3552, %v3833
      %v6238 = vsel %vm6160, %v3553, %v3835
      %v6241 = vsel %vm6160, %v3554, %v3837
      %v6244 = vsel %vm6160, %v3555, %v3839
      %v6247 = vsel %vm6160, %v3556, %v3841
      %v6250 = vsel %vm6160, %v3557, %v3843
      %v6253 = vsel %vm6160, %v3558, %v3845
      %v6256 = vsel %vm6160, %v3559, %v3847
      %v6259 = vsel %vm6160, %v3560, %v3849
      %v6262 = vsel %vm6160, %v3561, %v3851
      %v6265 = vsel %vm6160, %v3562, %v3853
      %v6268 = vsel %vm6160, %v3563, %v3855
      %v6271 = vsel %vm6160, %v3564, %v3857
      %v6274 = vsel %vm6160, %v3565, %v3859
      %v6277 = vsel %vm6160, %v3566, %v3861
      %v6280 = vsel %vm6160, %v3567, %v3863
      %v6283 = vsel %vm6160, %v3568, %v3865
      %v6286 = vsel %vm6160, %v3569, %v3867
      %v6289 = vsel %vm6160, %v3570, %v3869
      %v6292 = vsel %vm6160, %v3571, %v3871
      %v6295 = vsel %vm6160, %v3572, %v3873
      %v6298 = vsel %vm6160, %v3573, %v3875
      %v6301 = vsel %vm6160, %v3574, %v3877
      %v6304 = vsel %vm6160, %v3575, %v3879
      %v6307 = vsel %vm6160, %v3576, %v3881
      %v6310 = vsel %vm6160, %v3577, %v3883
      %v6313 = vsel %vm6160, %v3578, %v3885
      %v6316 = vsel %vm6160, %v3579, %v3887
      %v6319 = vsel %vm6160, %v3580, %v3889
      %v6322 = vsel %vm6160, %v3581, %v3891
      %v6325 = vsel %vm6160, %v3582, %v3893
      %v6328 = vsel %vm6160, %v3583, %v3895
      %v6331 = vsel %vm6160, %v3584, %v3897
      %v6334 = vsel %vm6160, %v3585, %v3899
      %v6337 = vsel %vm6160, %v3586, %v3901
      %v6340 = vsel %vm6160, %v3587, %v3903
      %v6343 = vsel %vm6160, %v3588, %v3905
      %v6346 = vsel %vm6160, %v3589, %v3907
      %v6349 = vsel %vm6160, %v3590, %v3909
      %v6352 = vsel %vm6160, %v3591, %v3911
      %vm6353 = vcmask 64512
      %v6355 = vsel %vm6353, %v6163, %v4105
      %v6357 = vsel %vm6353, %v6166, %v4107
      %v6359 = vsel %vm6353, %v6169, %v4109
      %v6361 = vsel %vm6353, %v6172, %v4111
      %v6363 = vsel %vm6353, %v6175, %v4113
      %v6365 = vsel %vm6353, %v6178, %v4115
      %v6367 = vsel %vm6353, %v6181, %v4117
      %v6369 = vsel %vm6353, %v6184, %v4119
      %v6371 = vsel %vm6353, %v6187, %v4121
      %v6373 = vsel %vm6353, %v6190, %v4123
      %v6375 = vsel %vm6353, %v6193, %v4125
      %v6377 = vsel %vm6353, %v6196, %v4127
      %v6379 = vsel %vm6353, %v6199, %v4129
      %v6381 = vsel %vm6353, %v6202, %v4131
      %v6383 = vsel %vm6353, %v6205, %v4133
      %v6385 = vsel %vm6353, %v6208, %v4135
      %v6387 = vsel %vm6353, %v6211, %v4137
      %v6389 = vsel %vm6353, %v6214, %v4139
      %v6391 = vsel %vm6353, %v6217, %v4141
      %v6393 = vsel %vm6353, %v6220, %v4143
      %v6395 = vsel %vm6353, %v6223, %v4145
      %v6397 = vsel %vm6353, %v6226, %v4147
      %v6399 = vsel %vm6353, %v6229, %v4149
      %v6401 = vsel %vm6353, %v6232, %v4151
      %v6403 = vsel %vm6353, %v6235, %v4153
      %v6405 = vsel %vm6353, %v6238, %v4155
      %v6407 = vsel %vm6353, %v6241, %v4157
      %v6409 = vsel %vm6353, %v6244, %v4159
      %v6411 = vsel %vm6353, %v6247, %v4161
      %v6413 = vsel %vm6353, %v6250, %v4163
      %v6415 = vsel %vm6353, %v6253, %v4165
      %v6417 = vsel %vm6353, %v6256, %v4167
      %v6419 = vsel %vm6353, %v6259, %v4169
      %v6421 = vsel %vm6353, %v6262, %v4171
      %v6423 = vsel %vm6353, %v6265, %v4173
      %v6425 = vsel %vm6353, %v6268, %v4175
      %v6427 = vsel %vm6353, %v6271, %v4177
      %v6429 = vsel %vm6353, %v6274, %v4179
      %v6431 = vsel %vm6353, %v6277, %v4181
      %v6433 = vsel %vm6353, %v6280, %v4183
      %v6435 = vsel %vm6353, %v6283, %v4185
      %v6437 = vsel %vm6353, %v6286, %v4187
      %v6439 = vsel %vm6353, %v6289, %v4189
      %v6441 = vsel %vm6353, %v6292, %v4191
      %v6443 = vsel %vm6353, %v6295, %v4193
      %v6445 = vsel %vm6353, %v6298, %v4195
      %v6447 = vsel %vm6353, %v6301, %v4197
      %v6449 = vsel %vm6353, %v6304, %v4199
      %v6451 = vsel %vm6353, %v6307, %v4201
      %v6453 = vsel %vm6353, %v6310, %v4203
      %v6455 = vsel %vm6353, %v6313, %v4205
      %v6457 = vsel %vm6353, %v6316, %v4207
      %v6459 = vsel %vm6353, %v6319, %v4209
      %v6461 = vsel %vm6353, %v6322, %v4211
      %v6463 = vsel %vm6353, %v6325, %v4213
      %v6465 = vsel %vm6353, %v6328, %v4215
      %v6467 = vsel %vm6353, %v6331, %v4217
      %v6469 = vsel %vm6353, %v6334, %v4219
      %v6471 = vsel %vm6353, %v6337, %v4221
      %v6473 = vsel %vm6353, %v6340, %v4223
      %v6475 = vsel %vm6353, %v6343, %v4225
      %v6477 = vsel %vm6353, %v6346, %v4227
      %v6479 = vsel %vm6353, %v6349, %v4229
      %v6481 = vsel %vm6353, %v6352, %v4231
      %vm6482 = vcmask 97280
      %v6484 = vsel %vm6482, %v6355, %v4425
      %v6486 = vsel %vm6482, %v6357, %v4427
      %v6488 = vsel %vm6482, %v6359, %v4429
      %v6490 = vsel %vm6482, %v6361, %v4431
      %v6492 = vsel %vm6482, %v6363, %v4433
      %v6494 = vsel %vm6482, %v6365, %v4435
      %v6496 = vsel %vm6482, %v6367, %v4437
      %v6498 = vsel %vm6482, %v6369, %v4439
      %v6500 = vsel %vm6482, %v6371, %v4441
      %v6502 = vsel %vm6482, %v6373, %v4443
      %v6504 = vsel %vm6482, %v6375, %v4445
      %v6506 = vsel %vm6482, %v6377, %v4447
      %v6508 = vsel %vm6482, %v6379, %v4449
      %v6510 = vsel %vm6482, %v6381, %v4451
      %v6512 = vsel %vm6482, %v6383, %v4453
      %v6514 = vsel %vm6482, %v6385, %v4455
      %v6516 = vsel %vm6482, %v6387, %v4457
      %v6518 = vsel %vm6482, %v6389, %v4459
      %v6520 = vsel %vm6482, %v6391, %v4461
      %v6522 = vsel %vm6482, %v6393, %v4463
      %v6524 = vsel %vm6482, %v6395, %v4465
      %v6526 = vsel %vm6482, %v6397, %v4467
      %v6528 = vsel %vm6482, %v6399, %v4469
      %v6530 = vsel %vm6482, %v6401, %v4471
      %v6532 = vsel %vm6482, %v6403, %v4473
      %v6534 = vsel %vm6482, %v6405, %v4475
      %v6536 = vsel %vm6482, %v6407, %v4477
      %v6538 = vsel %vm6482, %v6409, %v4479
      %v6540 = vsel %vm6482, %v6411, %v4481
      %v6542 = vsel %vm6482, %v6413, %v4483
      %v6544 = vsel %vm6482, %v6415, %v4485
      %v6546 = vsel %vm6482, %v6417, %v4487
      %v6548 = vsel %vm6482, %v6419, %v4489
      %v6550 = vsel %vm6482, %v6421, %v4491
      %v6552 = vsel %vm6482, %v6423, %v4493
      %v6554 = vsel %vm6482, %v6425, %v4495
      %v6556 = vsel %vm6482, %v6427, %v4497
      %v6558 = vsel %vm6482, %v6429, %v4499
      %v6560 = vsel %vm6482, %v6431, %v4501
      %v6562 = vsel %vm6482, %v6433, %v4503
      %v6564 = vsel %vm6482, %v6435, %v4505
      %v6566 = vsel %vm6482, %v6437, %v4507
      %v6568 = vsel %vm6482, %v6439, %v4509
      %v6570 = vsel %vm6482, %v6441, %v4511
      %v6572 = vsel %vm6482, %v6443, %v4513
      %v6574 = vsel %vm6482, %v6445, %v4515
      %v6576 = vsel %vm6482, %v6447, %v4517
      %v6578 = vsel %vm6482, %v6449, %v4519
      %v6580 = vsel %vm6482, %v6451, %v4521
      %v6582 = vsel %vm6482, %v6453, %v4523
      %v6584 = vsel %vm6482, %v6455, %v4525
      %v6586 = vsel %vm6482, %v6457, %v4527
      %v6588 = vsel %vm6482, %v6459, %v4529
      %v6590 = vsel %vm6482, %v6461, %v4531
      %v6592 = vsel %vm6482, %v6463, %v4533
      %v6594 = vsel %vm6482, %v6465, %v4535
      %v6596 = vsel %vm6482, %v6467, %v4537
      %v6598 = vsel %vm6482, %v6469, %v4539
      %v6600 = vsel %vm6482, %v6471, %v4541
      %v6602 = vsel %vm6482, %v6473, %v4543
      %v6604 = vsel %vm6482, %v6475, %v4545
      %v6606 = vsel %vm6482, %v6477, %v4547
      %v6608 = vsel %vm6482, %v6479, %v4549
      %v6610 = vsel %vm6482, %v6481, %v4551
      %vm6611 = vcmask 130048
      %v6613 = vsel %vm6611, %v6484, %v4559
      %v6615 = vsel %vm6611, %v6486, %v4561
      %v6617 = vsel %vm6611, %v6488, %v4563
      %v6619 = vsel %vm6611, %v6490, %v4565
      %v6621 = vsel %vm6611, %v6492, %v4567
      %v6623 = vsel %vm6611, %v6494, %v4569
      %v6625 = vsel %vm6611, %v6496, %v4571
      %v6627 = vsel %vm6611, %v6498, %v4573
      %v6629 = vsel %vm6611, %v6500, %v4575
      %v6631 = vsel %vm6611, %v6502, %v4577
      %v6633 = vsel %vm6611, %v6504, %v4579
      %v6635 = vsel %vm6611, %v6506, %v4581
      %v6637 = vsel %vm6611, %v6508, %v4583
      %v6639 = vsel %vm6611, %v6510, %v4585
      %v6641 = vsel %vm6611, %v6512, %v4587
      %v6643 = vsel %vm6611, %v6514, %v4589
      %v6645 = vsel %vm6611, %v6516, %v4591
      %v6647 = vsel %vm6611, %v6518, %v4593
      %v6649 = vsel %vm6611, %v6520, %v4595
      %v6651 = vsel %vm6611, %v6522, %v4597
      %v6653 = vsel %vm6611, %v6524, %v4599
      %v6655 = vsel %vm6611, %v6526, %v4601
      %v6657 = vsel %vm6611, %v6528, %v4603
      %v6659 = vsel %vm6611, %v6530, %v4605
      %v6661 = vsel %vm6611, %v6532, %v4607
      %v6663 = vsel %vm6611, %v6534, %v4609
      %v6665 = vsel %vm6611, %v6536, %v4611
      %v6667 = vsel %vm6611, %v6538, %v4613
      %v6669 = vsel %vm6611, %v6540, %v4615
      %v6671 = vsel %vm6611, %v6542, %v4617
      %v6673 = vsel %vm6611, %v6544, %v4619
      %v6675 = vsel %vm6611, %v6546, %v4621
      %v6677 = vsel %vm6611, %v6548, %v4623
      %v6679 = vsel %vm6611, %v6550, %v4625
      %v6681 = vsel %vm6611, %v6552, %v4627
      %v6683 = vsel %vm6611, %v6554, %v4629
      %v6685 = vsel %vm6611, %v6556, %v4631
      %v6687 = vsel %vm6611, %v6558, %v4633
      %v6689 = vsel %vm6611, %v6560, %v4635
      %v6691 = vsel %vm6611, %v6562, %v4637
      %v6693 = vsel %vm6611, %v6564, %v4639
      %v6695 = vsel %vm6611, %v6566, %v4641
      %v6697 = vsel %vm6611, %v6568, %v4643
      %v6699 = vsel %vm6611, %v6570, %v4645
      %v6701 = vsel %vm6611, %v6572, %v4647
      %v6703 = vsel %vm6611, %v6574, %v4649
      %v6705 = vsel %vm6611, %v6576, %v4651
      %v6707 = vsel %vm6611, %v6578, %v4653
      %v6709 = vsel %vm6611, %v6580, %v4655
      %v6711 = vsel %vm6611, %v6582, %v4657
      %v6713 = vsel %vm6611, %v6584, %v4659
      %v6715 = vsel %vm6611, %v6586, %v4661
      %v6717 = vsel %vm6611, %v6588, %v4663
      %v6719 = vsel %vm6611, %v6590, %v4665
      %v6721 = vsel %vm6611, %v6592, %v4667
      %v6723 = vsel %vm6611, %v6594, %v4669
      %v6725 = vsel %vm6611, %v6596, %v4671
      %v6727 = vsel %vm6611, %v6598, %v4673
      %v6729 = vsel %vm6611, %v6600, %v4675
      %v6731 = vsel %vm6611, %v6602, %v4677
      %v6733 = vsel %vm6611, %v6604, %v4679
      %v6735 = vsel %vm6611, %v6606, %v4681
      %v6737 = vsel %vm6611, %v6608, %v4683
      %v6739 = vsel %vm6611, %v6610, %v4685
      %vm6740 = vcmask 162816
      %v6742 = vsel %vm6740, %v6613, %v4693
      %v6744 = vsel %vm6740, %v6615, %v4695
      %v6746 = vsel %vm6740, %v6617, %v4697
      %v6748 = vsel %vm6740, %v6619, %v4699
      %v6750 = vsel %vm6740, %v6621, %v4701
      %v6752 = vsel %vm6740, %v6623, %v4703
      %v6754 = vsel %vm6740, %v6625, %v4705
      %v6756 = vsel %vm6740, %v6627, %v4707
      %v6758 = vsel %vm6740, %v6629, %v4709
      %v6760 = vsel %vm6740, %v6631, %v4711
      %v6762 = vsel %vm6740, %v6633, %v4713
      %v6764 = vsel %vm6740, %v6635, %v4715
      %v6766 = vsel %vm6740, %v6637, %v4717
      %v6768 = vsel %vm6740, %v6639, %v4719
      %v6770 = vsel %vm6740, %v6641, %v4721
      %v6772 = vsel %vm6740, %v6643, %v4723
      %v6774 = vsel %vm6740, %v6645, %v4725
      %v6776 = vsel %vm6740, %v6647, %v4727
      %v6778 = vsel %vm6740, %v6649, %v4729
      %v6780 = vsel %vm6740, %v6651, %v4731
      %v6782 = vsel %vm6740, %v6653, %v4733
      %v6784 = vsel %vm6740, %v6655, %v4735
      %v6786 = vsel %vm6740, %v6657, %v4737
      %v6788 = vsel %vm6740, %v6659, %v4739
      %v6790 = vsel %vm6740, %v6661, %v4741
      %v6792 = vsel %vm6740, %v6663, %v4743
      %v6794 = vsel %vm6740, %v6665, %v4745
      %v6796 = vsel %vm6740, %v6667, %v4747
      %v6798 = vsel %vm6740, %v6669, %v4749
      %v6800 = vsel %vm6740, %v6671, %v4751
      %v6802 = vsel %vm6740, %v6673, %v4753
      %v6804 = vsel %vm6740, %v6675, %v4755
      %v6806 = vsel %vm6740, %v6677, %v4757
      %v6808 = vsel %vm6740, %v6679, %v4759
      %v6810 = vsel %vm6740, %v6681, %v4761
      %v6812 = vsel %vm6740, %v6683, %v4763
      %v6814 = vsel %vm6740, %v6685, %v4765
      %v6816 = vsel %vm6740, %v6687, %v4767
      %v6818 = vsel %vm6740, %v6689, %v4769
      %v6820 = vsel %vm6740, %v6691, %v4771
      %v6822 = vsel %vm6740, %v6693, %v4773
      %v6824 = vsel %vm6740, %v6695, %v4775
      %v6826 = vsel %vm6740, %v6697, %v4777
      %v6828 = vsel %vm6740, %v6699, %v4779
      %v6830 = vsel %vm6740, %v6701, %v4781
      %v6832 = vsel %vm6740, %v6703, %v4783
      %v6834 = vsel %vm6740, %v6705, %v4785
      %v6836 = vsel %vm6740, %v6707, %v4787
      %v6838 = vsel %vm6740, %v6709, %v4789
      %v6840 = vsel %vm6740, %v6711, %v4791
      %v6842 = vsel %vm6740, %v6713, %v4793
      %v6844 = vsel %vm6740, %v6715, %v4795
      %v6846 = vsel %vm6740, %v6717, %v4797
      %v6848 = vsel %vm6740, %v6719, %v4799
      %v6850 = vsel %vm6740, %v6721, %v4801
      %v6852 = vsel %vm6740, %v6723, %v4803
      %v6854 = vsel %vm6740, %v6725, %v4805
      %v6856 = vsel %vm6740, %v6727, %v4807
      %v6858 = vsel %vm6740, %v6729, %v4809
      %v6860 = vsel %vm6740, %v6731, %v4811
      %v6862 = vsel %vm6740, %v6733, %v4813
      %v6864 = vsel %vm6740, %v6735, %v4815
      %v6866 = vsel %vm6740, %v6737, %v4817
      %v6868 = vsel %vm6740, %v6739, %v4819
      %vm6869 = vcmask 195584
      %v6871 = vsel %vm6869, %v6742, %v4827
      %v6873 = vsel %vm6869, %v6744, %v4829
      %v6875 = vsel %vm6869, %v6746, %v4831
      %v6877 = vsel %vm6869, %v6748, %v4833
      %v6879 = vsel %vm6869, %v6750, %v4835
      %v6881 = vsel %vm6869, %v6752, %v4837
      %v6883 = vsel %vm6869, %v6754, %v4839
      %v6885 = vsel %vm6869, %v6756, %v4841
      %v6887 = vsel %vm6869, %v6758, %v4843
      %v6889 = vsel %vm6869, %v6760, %v4845
      %v6891 = vsel %vm6869, %v6762, %v4847
      %v6893 = vsel %vm6869, %v6764, %v4849
      %v6895 = vsel %vm6869, %v6766, %v4851
      %v6897 = vsel %vm6869, %v6768, %v4853
      %v6899 = vsel %vm6869, %v6770, %v4855
      %v6901 = vsel %vm6869, %v6772, %v4857
      %v6903 = vsel %vm6869, %v6774, %v4859
      %v6905 = vsel %vm6869, %v6776, %v4861
      %v6907 = vsel %vm6869, %v6778, %v4863
      %v6909 = vsel %vm6869, %v6780, %v4865
      %v6911 = vsel %vm6869, %v6782, %v4867
      %v6913 = vsel %vm6869, %v6784, %v4869
      %v6915 = vsel %vm6869, %v6786, %v4871
      %v6917 = vsel %vm6869, %v6788, %v4873
      %v6919 = vsel %vm6869, %v6790, %v4875
      %v6921 = vsel %vm6869, %v6792, %v4877
      %v6923 = vsel %vm6869, %v6794, %v4879
      %v6925 = vsel %vm6869, %v6796, %v4881
      %v6927 = vsel %vm6869, %v6798, %v4883
      %v6929 = vsel %vm6869, %v6800, %v4885
      %v6931 = vsel %vm6869, %v6802, %v4887
      %v6933 = vsel %vm6869, %v6804, %v4889
      %v6935 = vsel %vm6869, %v6806, %v4891
      %v6937 = vsel %vm6869, %v6808, %v4893
      %v6939 = vsel %vm6869, %v6810, %v4895
      %v6941 = vsel %vm6869, %v6812, %v4897
      %v6943 = vsel %vm6869, %v6814, %v4899
      %v6945 = vsel %vm6869, %v6816, %v4901
      %v6947 = vsel %vm6869, %v6818, %v4903
      %v6949 = vsel %vm6869, %v6820, %v4905
      %v6951 = vsel %vm6869, %v6822, %v4907
      %v6953 = vsel %vm6869, %v6824, %v4909
      %v6955 = vsel %vm6869, %v6826, %v4911
      %v6957 = vsel %vm6869, %v6828, %v4913
      %v6959 = vsel %vm6869, %v6830, %v4915
      %v6961 = vsel %vm6869, %v6832, %v4917
      %v6963 = vsel %vm6869, %v6834, %v4919
      %v6965 = vsel %vm6869, %v6836, %v4921
      %v6967 = vsel %vm6869, %v6838, %v4923
      %v6969 = vsel %vm6869, %v6840, %v4925
      %v6971 = vsel %vm6869, %v6842, %v4927
      %v6973 = vsel %vm6869, %v6844, %v4929
      %v6975 = vsel %vm6869, %v6846, %v4931
      %v6977 = vsel %vm6869, %v6848, %v4933
      %v6979 = vsel %vm6869, %v6850, %v4935
      %v6981 = vsel %vm6869, %v6852, %v4937
      %v6983 = vsel %vm6869, %v6854, %v4939
      %v6985 = vsel %vm6869, %v6856, %v4941
      %v6987 = vsel %vm6869, %v6858, %v4943
      %v6989 = vsel %vm6869, %v6860, %v4945
      %v6991 = vsel %vm6869, %v6862, %v4947
      %v6993 = vsel %vm6869, %v6864, %v4949
      %v6995 = vsel %vm6869, %v6866, %v4951
      %v6997 = vsel %vm6869, %v6868, %v4953
      %vm6998 = vcmask 228352
      %v7000 = vsel %vm6998, %v6871, %v4961
      %v7002 = vsel %vm6998, %v6873, %v4963
      %v7004 = vsel %vm6998, %v6875, %v4965
      %v7006 = vsel %vm6998, %v6877, %v4967
      %v7008 = vsel %vm6998, %v6879, %v4969
      %v7010 = vsel %vm6998, %v6881, %v4971
      %v7012 = vsel %vm6998, %v6883, %v4973
      %v7014 = vsel %vm6998, %v6885, %v4975
      %v7016 = vsel %vm6998, %v6887, %v4977
      %v7018 = vsel %vm6998, %v6889, %v4979
      %v7020 = vsel %vm6998, %v6891, %v4981
      %v7022 = vsel %vm6998, %v6893, %v4983
      %v7024 = vsel %vm6998, %v6895, %v4985
      %v7026 = vsel %vm6998, %v6897, %v4987
      %v7028 = vsel %vm6998, %v6899, %v4989
      %v7030 = vsel %vm6998, %v6901, %v4991
      %v7032 = vsel %vm6998, %v6903, %v4993
      %v7034 = vsel %vm6998, %v6905, %v4995
      %v7036 = vsel %vm6998, %v6907, %v4997
      %v7038 = vsel %vm6998, %v6909, %v4999
      %v7040 = vsel %vm6998, %v6911, %v5001
      %v7042 = vsel %vm6998, %v6913, %v5003
      %v7044 = vsel %vm6998, %v6915, %v5005
      %v7046 = vsel %vm6998, %v6917, %v5007
      %v7048 = vsel %vm6998, %v6919, %v5009
      %v7050 = vsel %vm6998, %v6921, %v5011
      %v7052 = vsel %vm6998, %v6923, %v5013
      %v7054 = vsel %vm6998, %v6925, %v5015
      %v7056 = vsel %vm6998, %v6927, %v5017
      %v7058 = vsel %vm6998, %v6929, %v5019
      %v7060 = vsel %vm6998, %v6931, %v5021
      %v7062 = vsel %vm6998, %v6933, %v5023
      %v7064 = vsel %vm6998, %v6935, %v5025
      %v7066 = vsel %vm6998, %v6937, %v5027
      %v7068 = vsel %vm6998, %v6939, %v5029
      %v7070 = vsel %vm6998, %v6941, %v5031
      %v7072 = vsel %vm6998, %v6943, %v5033
      %v7074 = vsel %vm6998, %v6945, %v5035
      %v7076 = vsel %vm6998, %v6947, %v5037
      %v7078 = vsel %vm6998, %v6949, %v5039
      %v7080 = vsel %vm6998, %v6951, %v5041
      %v7082 = vsel %vm6998, %v6953, %v5043
      %v7084 = vsel %vm6998, %v6955, %v5045
      %v7086 = vsel %vm6998, %v6957, %v5047
      %v7088 = vsel %vm6998, %v6959, %v5049
      %v7090 = vsel %vm6998, %v6961, %v5051
      %v7092 = vsel %vm6998, %v6963, %v5053
      %v7094 = vsel %vm6998, %v6965, %v5055
      %v7096 = vsel %vm6998, %v6967, %v5057
      %v7098 = vsel %vm6998, %v6969, %v5059
      %v7100 = vsel %vm6998, %v6971, %v5061
      %v7102 = vsel %vm6998, %v6973, %v5063
      %v7104 = vsel %vm6998, %v6975, %v5065
      %v7106 = vsel %vm6998, %v6977, %v5067
      %v7108 = vsel %vm6998, %v6979, %v5069
      %v7110 = vsel %vm6998, %v6981, %v5071
      %v7112 = vsel %vm6998, %v6983, %v5073
      %v7114 = vsel %vm6998, %v6985, %v5075
      %v7116 = vsel %vm6998, %v6987, %v5077
      %v7118 = vsel %vm6998, %v6989, %v5079
      %v7120 = vsel %vm6998, %v6991, %v5081
      %v7122 = vsel %vm6998, %v6993, %v5083
      %v7124 = vsel %vm6998, %v6995, %v5085
      %v7126 = vsel %vm6998, %v6997, %v5087
      %vm7127 = vcmask 261120
      %v7129 = vsel %vm7127, %v7000, %v5095
      %v7131 = vsel %vm7127, %v7002, %v5097
      %v7133 = vsel %vm7127, %v7004, %v5099
      %v7135 = vsel %vm7127, %v7006, %v5101
      %v7137 = vsel %vm7127, %v7008, %v5103
      %v7139 = vsel %vm7127, %v7010, %v5105
      %v7141 = vsel %vm7127, %v7012, %v5107
      %v7143 = vsel %vm7127, %v7014, %v5109
      %v7145 = vsel %vm7127, %v7016, %v5111
      %v7147 = vsel %vm7127, %v7018, %v5113
      %v7149 = vsel %vm7127, %v7020, %v5115
      %v7151 = vsel %vm7127, %v7022, %v5117
      %v7153 = vsel %vm7127, %v7024, %v5119
      %v7155 = vsel %vm7127, %v7026, %v5121
      %v7157 = vsel %vm7127, %v7028, %v5123
      %v7159 = vsel %vm7127, %v7030, %v5125
      %v7161 = vsel %vm7127, %v7032, %v5127
      %v7163 = vsel %vm7127, %v7034, %v5129
      %v7165 = vsel %vm7127, %v7036, %v5131
      %v7167 = vsel %vm7127, %v7038, %v5133
      %v7169 = vsel %vm7127, %v7040, %v5135
      %v7171 = vsel %vm7127, %v7042, %v5137
      %v7173 = vsel %vm7127, %v7044, %v5139
      %v7175 = vsel %vm7127, %v7046, %v5141
      %v7177 = vsel %vm7127, %v7048, %v5143
      %v7179 = vsel %vm7127, %v7050, %v5145
      %v7181 = vsel %vm7127, %v7052, %v5147
      %v7183 = vsel %vm7127, %v7054, %v5149
      %v7185 = vsel %vm7127, %v7056, %v5151
      %v7187 = vsel %vm7127, %v7058, %v5153
      %v7189 = vsel %vm7127, %v7060, %v5155
      %v7191 = vsel %vm7127, %v7062, %v5157
      %v7193 = vsel %vm7127, %v7064, %v5159
      %v7195 = vsel %vm7127, %v7066, %v5161
      %v7197 = vsel %vm7127, %v7068, %v5163
      %v7199 = vsel %vm7127, %v7070, %v5165
      %v7201 = vsel %vm7127, %v7072, %v5167
      %v7203 = vsel %vm7127, %v7074, %v5169
      %v7205 = vsel %vm7127, %v7076, %v5171
      %v7207 = vsel %vm7127, %v7078, %v5173
      %v7209 = vsel %vm7127, %v7080, %v5175
      %v7211 = vsel %vm7127, %v7082, %v5177
      %v7213 = vsel %vm7127, %v7084, %v5179
      %v7215 = vsel %vm7127, %v7086, %v5181
      %v7217 = vsel %vm7127, %v7088, %v5183
      %v7219 = vsel %vm7127, %v7090, %v5185
      %v7221 = vsel %vm7127, %v7092, %v5187
      %v7223 = vsel %vm7127, %v7094, %v5189
      %v7225 = vsel %vm7127, %v7096, %v5191
      %v7227 = vsel %vm7127, %v7098, %v5193
      %v7229 = vsel %vm7127, %v7100, %v5195
      %v7231 = vsel %vm7127, %v7102, %v5197
      %v7233 = vsel %vm7127, %v7104, %v5199
      %v7235 = vsel %vm7127, %v7106, %v5201
      %v7237 = vsel %vm7127, %v7108, %v5203
      %v7239 = vsel %vm7127, %v7110, %v5205
      %v7241 = vsel %vm7127, %v7112, %v5207
      %v7243 = vsel %vm7127, %v7114, %v5209
      %v7245 = vsel %vm7127, %v7116, %v5211
      %v7247 = vsel %vm7127, %v7118, %v5213
      %v7249 = vsel %vm7127, %v7120, %v5215
      %v7251 = vsel %vm7127, %v7122, %v5217
      %v7253 = vsel %vm7127, %v7124, %v5219
      %v7255 = vsel %vm7127, %v7126, %v5221
      %vm7256 = vcmask 293888
      %v7258 = vsel %vm7256, %v7129, %v5229
      %v7260 = vsel %vm7256, %v7131, %v5231
      %v7262 = vsel %vm7256, %v7133, %v5233
      %v7264 = vsel %vm7256, %v7135, %v5235
      %v7266 = vsel %vm7256, %v7137, %v5237
      %v7268 = vsel %vm7256, %v7139, %v5239
      %v7270 = vsel %vm7256, %v7141, %v5241
      %v7272 = vsel %vm7256, %v7143, %v5243
      %v7274 = vsel %vm7256, %v7145, %v5245
      %v7276 = vsel %vm7256, %v7147, %v5247
      %v7278 = vsel %vm7256, %v7149, %v5249
      %v7280 = vsel %vm7256, %v7151, %v5251
      %v7282 = vsel %vm7256, %v7153, %v5253
      %v7284 = vsel %vm7256, %v7155, %v5255
      %v7286 = vsel %vm7256, %v7157, %v5257
      %v7288 = vsel %vm7256, %v7159, %v5259
      %v7290 = vsel %vm7256, %v7161, %v5261
      %v7292 = vsel %vm7256, %v7163, %v5263
      %v7294 = vsel %vm7256, %v7165, %v5265
      %v7296 = vsel %vm7256, %v7167, %v5267
      %v7298 = vsel %vm7256, %v7169, %v5269
      %v7300 = vsel %vm7256, %v7171, %v5271
      %v7302 = vsel %vm7256, %v7173, %v5273
      %v7304 = vsel %vm7256, %v7175, %v5275
      %v7306 = vsel %vm7256, %v7177, %v5277
      %v7308 = vsel %vm7256, %v7179, %v5279
      %v7310 = vsel %vm7256, %v7181, %v5281
      %v7312 = vsel %vm7256, %v7183, %v5283
      %v7314 = vsel %vm7256, %v7185, %v5285
      %v7316 = vsel %vm7256, %v7187, %v5287
      %v7318 = vsel %vm7256, %v7189, %v5289
      %v7320 = vsel %vm7256, %v7191, %v5291
      %v7322 = vsel %vm7256, %v7193, %v5293
      %v7324 = vsel %vm7256, %v7195, %v5295
      %v7326 = vsel %vm7256, %v7197, %v5297
      %v7328 = vsel %vm7256, %v7199, %v5299
      %v7330 = vsel %vm7256, %v7201, %v5301
      %v7332 = vsel %vm7256, %v7203, %v5303
      %v7334 = vsel %vm7256, %v7205, %v5305
      %v7336 = vsel %vm7256, %v7207, %v5307
      %v7338 = vsel %vm7256, %v7209, %v5309
      %v7340 = vsel %vm7256, %v7211, %v5311
      %v7342 = vsel %vm7256, %v7213, %v5313
      %v7344 = vsel %vm7256, %v7215, %v5315
      %v7346 = vsel %vm7256, %v7217, %v5317
      %v7348 = vsel %vm7256, %v7219, %v5319
      %v7350 = vsel %vm7256, %v7221, %v5321
      %v7352 = vsel %vm7256, %v7223, %v5323
      %v7354 = vsel %vm7256, %v7225, %v5325
      %v7356 = vsel %vm7256, %v7227, %v5327
      %v7358 = vsel %vm7256, %v7229, %v5329
      %v7360 = vsel %vm7256, %v7231, %v5331
      %v7362 = vsel %vm7256, %v7233, %v5333
      %v7364 = vsel %vm7256, %v7235, %v5335
      %v7366 = vsel %vm7256, %v7237, %v5337
      %v7368 = vsel %vm7256, %v7239, %v5339
      %v7370 = vsel %vm7256, %v7241, %v5341
      %v7372 = vsel %vm7256, %v7243, %v5343
      %v7374 = vsel %vm7256, %v7245, %v5345
      %v7376 = vsel %vm7256, %v7247, %v5347
      %v7378 = vsel %vm7256, %v7249, %v5349
      %v7380 = vsel %vm7256, %v7251, %v5351
      %v7382 = vsel %vm7256, %v7253, %v5353
      %v7384 = vsel %vm7256, %v7255, %v5355
      %vm7385 = vcmask 326656
      %v7387 = vsel %vm7385, %v7258, %v5363
      %v7389 = vsel %vm7385, %v7260, %v5365
      %v7391 = vsel %vm7385, %v7262, %v5367
      %v7393 = vsel %vm7385, %v7264, %v5369
      %v7395 = vsel %vm7385, %v7266, %v5371
      %v7397 = vsel %vm7385, %v7268, %v5373
      %v7399 = vsel %vm7385, %v7270, %v5375
      %v7401 = vsel %vm7385, %v7272, %v5377
      %v7403 = vsel %vm7385, %v7274, %v5379
      %v7405 = vsel %vm7385, %v7276, %v5381
      %v7407 = vsel %vm7385, %v7278, %v5383
      %v7409 = vsel %vm7385, %v7280, %v5385
      %v7411 = vsel %vm7385, %v7282, %v5387
      %v7413 = vsel %vm7385, %v7284, %v5389
      %v7415 = vsel %vm7385, %v7286, %v5391
      %v7417 = vsel %vm7385, %v7288, %v5393
      %v7419 = vsel %vm7385, %v7290, %v5395
      %v7421 = vsel %vm7385, %v7292, %v5397
      %v7423 = vsel %vm7385, %v7294, %v5399
      %v7425 = vsel %vm7385, %v7296, %v5401
      %v7427 = vsel %vm7385, %v7298, %v5403
      %v7429 = vsel %vm7385, %v7300, %v5405
      %v7431 = vsel %vm7385, %v7302, %v5407
      %v7433 = vsel %vm7385, %v7304, %v5409
      %v7435 = vsel %vm7385, %v7306, %v5411
      %v7437 = vsel %vm7385, %v7308, %v5413
      %v7439 = vsel %vm7385, %v7310, %v5415
      %v7441 = vsel %vm7385, %v7312, %v5417
      %v7443 = vsel %vm7385, %v7314, %v5419
      %v7445 = vsel %vm7385, %v7316, %v5421
      %v7447 = vsel %vm7385, %v7318, %v5423
      %v7449 = vsel %vm7385, %v7320, %v5425
      %v7451 = vsel %vm7385, %v7322, %v5427
      %v7453 = vsel %vm7385, %v7324, %v5429
      %v7455 = vsel %vm7385, %v7326, %v5431
      %v7457 = vsel %vm7385, %v7328, %v5433
      %v7459 = vsel %vm7385, %v7330, %v5435
      %v7461 = vsel %vm7385, %v7332, %v5437
      %v7463 = vsel %vm7385, %v7334, %v5439
      %v7465 = vsel %vm7385, %v7336, %v5441
      %v7467 = vsel %vm7385, %v7338, %v5443
      %v7469 = vsel %vm7385, %v7340, %v5445
      %v7471 = vsel %vm7385, %v7342, %v5447
      %v7473 = vsel %vm7385, %v7344, %v5449
      %v7475 = vsel %vm7385, %v7346, %v5451
      %v7477 = vsel %vm7385, %v7348, %v5453
      %v7479 = vsel %vm7385, %v7350, %v5455
      %v7481 = vsel %vm7385, %v7352, %v5457
      %v7483 = vsel %vm7385, %v7354, %v5459
      %v7485 = vsel %vm7385, %v7356, %v5461
      %v7487 = vsel %vm7385, %v7358, %v5463
      %v7489 = vsel %vm7385, %v7360, %v5465
      %v7491 = vsel %vm7385, %v7362, %v5467
      %v7493 = vsel %vm7385, %v7364, %v5469
      %v7495 = vsel %vm7385, %v7366, %v5471
      %v7497 = vsel %vm7385, %v7368, %v5473
      %v7499 = vsel %vm7385, %v7370, %v5475
      %v7501 = vsel %vm7385, %v7372, %v5477
      %v7503 = vsel %vm7385, %v7374, %v5479
      %v7505 = vsel %vm7385, %v7376, %v5481
      %v7507 = vsel %vm7385, %v7378, %v5483
      %v7509 = vsel %vm7385, %v7380, %v5485
      %v7511 = vsel %vm7385, %v7382, %v5487
      %v7513 = vsel %vm7385, %v7384, %v5489
      %vm7514 = vcmask 359424
      %v7516 = vsel %vm7514, %v7387, %v5497
      %v7518 = vsel %vm7514, %v7389, %v5499
      %v7520 = vsel %vm7514, %v7391, %v5501
      %v7522 = vsel %vm7514, %v7393, %v5503
      %v7524 = vsel %vm7514, %v7395, %v5505
      %v7526 = vsel %vm7514, %v7397, %v5507
      %v7528 = vsel %vm7514, %v7399, %v5509
      %v7530 = vsel %vm7514, %v7401, %v5511
      %v7532 = vsel %vm7514, %v7403, %v5513
      %v7534 = vsel %vm7514, %v7405, %v5515
      %v7536 = vsel %vm7514, %v7407, %v5517
      %v7538 = vsel %vm7514, %v7409, %v5519
      %v7540 = vsel %vm7514, %v7411, %v5521
      %v7542 = vsel %vm7514, %v7413, %v5523
      %v7544 = vsel %vm7514, %v7415, %v5525
      %v7546 = vsel %vm7514, %v7417, %v5527
      %v7548 = vsel %vm7514, %v7419, %v5529
      %v7550 = vsel %vm7514, %v7421, %v5531
      %v7552 = vsel %vm7514, %v7423, %v5533
      %v7554 = vsel %vm7514, %v7425, %v5535
      %v7556 = vsel %vm7514, %v7427, %v5537
      %v7558 = vsel %vm7514, %v7429, %v5539
      %v7560 = vsel %vm7514, %v7431, %v5541
      %v7562 = vsel %vm7514, %v7433, %v5543
      %v7564 = vsel %vm7514, %v7435, %v5545
      %v7566 = vsel %vm7514, %v7437, %v5547
      %v7568 = vsel %vm7514, %v7439, %v5549
      %v7570 = vsel %vm7514, %v7441, %v5551
      %v7572 = vsel %vm7514, %v7443, %v5553
      %v7574 = vsel %vm7514, %v7445, %v5555
      %v7576 = vsel %vm7514, %v7447, %v5557
      %v7578 = vsel %vm7514, %v7449, %v5559
      %v7580 = vsel %vm7514, %v7451, %v5561
      %v7582 = vsel %vm7514, %v7453, %v5563
      %v7584 = vsel %vm7514, %v7455, %v5565
      %v7586 = vsel %vm7514, %v7457, %v5567
      %v7588 = vsel %vm7514, %v7459, %v5569
      %v7590 = vsel %vm7514, %v7461, %v5571
      %v7592 = vsel %vm7514, %v7463, %v5573
      %v7594 = vsel %vm7514, %v7465, %v5575
      %v7596 = vsel %vm7514, %v7467, %v5577
      %v7598 = vsel %vm7514, %v7469, %v5579
      %v7600 = vsel %vm7514, %v7471, %v5581
      %v7602 = vsel %vm7514, %v7473, %v5583
      %v7604 = vsel %vm7514, %v7475, %v5585
      %v7606 = vsel %vm7514, %v7477, %v5587
      %v7608 = vsel %vm7514, %v7479, %v5589
      %v7610 = vsel %vm7514, %v7481, %v5591
      %v7612 = vsel %vm7514, %v7483, %v5593
      %v7614 = vsel %vm7514, %v7485, %v5595
      %v7616 = vsel %vm7514, %v7487, %v5597
      %v7618 = vsel %vm7514, %v7489, %v5599
      %v7620 = vsel %vm7514, %v7491, %v5601
      %v7622 = vsel %vm7514, %v7493, %v5603
      %v7624 = vsel %vm7514, %v7495, %v5605
      %v7626 = vsel %vm7514, %v7497, %v5607
      %v7628 = vsel %vm7514, %v7499, %v5609
      %v7630 = vsel %vm7514, %v7501, %v5611
      %v7632 = vsel %vm7514, %v7503, %v5613
      %v7634 = vsel %vm7514, %v7505, %v5615
      %v7636 = vsel %vm7514, %v7507, %v5617
      %v7638 = vsel %vm7514, %v7509, %v5619
      %v7640 = vsel %vm7514, %v7511, %v5621
      %v7642 = vsel %vm7514, %v7513, %v5623
      %vm7643 = vcmask 392192
      %v7645 = vsel %vm7643, %v7516, %v5631
      %v7647 = vsel %vm7643, %v7518, %v5633
      %v7649 = vsel %vm7643, %v7520, %v5635
      %v7651 = vsel %vm7643, %v7522, %v5637
      %v7653 = vsel %vm7643, %v7524, %v5639
      %v7655 = vsel %vm7643, %v7526, %v5641
      %v7657 = vsel %vm7643, %v7528, %v5643
      %v7659 = vsel %vm7643, %v7530, %v5645
      %v7661 = vsel %vm7643, %v7532, %v5647
      %v7663 = vsel %vm7643, %v7534, %v5649
      %v7665 = vsel %vm7643, %v7536, %v5651
      %v7667 = vsel %vm7643, %v7538, %v5653
      %v7669 = vsel %vm7643, %v7540, %v5655
      %v7671 = vsel %vm7643, %v7542, %v5657
      %v7673 = vsel %vm7643, %v7544, %v5659
      %v7675 = vsel %vm7643, %v7546, %v5661
      %v7677 = vsel %vm7643, %v7548, %v5663
      %v7679 = vsel %vm7643, %v7550, %v5665
      %v7681 = vsel %vm7643, %v7552, %v5667
      %v7683 = vsel %vm7643, %v7554, %v5669
      %v7685 = vsel %vm7643, %v7556, %v5671
      %v7687 = vsel %vm7643, %v7558, %v5673
      %v7689 = vsel %vm7643, %v7560, %v5675
      %v7691 = vsel %vm7643, %v7562, %v5677
      %v7693 = vsel %vm7643, %v7564, %v5679
      %v7695 = vsel %vm7643, %v7566, %v5681
      %v7697 = vsel %vm7643, %v7568, %v5683
      %v7699 = vsel %vm7643, %v7570, %v5685
      %v7701 = vsel %vm7643, %v7572, %v5687
      %v7703 = vsel %vm7643, %v7574, %v5689
      %v7705 = vsel %vm7643, %v7576, %v5691
      %v7707 = vsel %vm7643, %v7578, %v5693
      %v7709 = vsel %vm7643, %v7580, %v5695
      %v7711 = vsel %vm7643, %v7582, %v5697
      %v7713 = vsel %vm7643, %v7584, %v5699
      %v7715 = vsel %vm7643, %v7586, %v5701
      %v7717 = vsel %vm7643, %v7588, %v5703
      %v7719 = vsel %vm7643, %v7590, %v5705
      %v7721 = vsel %vm7643, %v7592, %v5707
      %v7723 = vsel %vm7643, %v7594, %v5709
      %v7725 = vsel %vm7643, %v7596, %v5711
      %v7727 = vsel %vm7643, %v7598, %v5713
      %v7729 = vsel %vm7643, %v7600, %v5715
      %v7731 = vsel %vm7643, %v7602, %v5717
      %v7733 = vsel %vm7643, %v7604, %v5719
      %v7735 = vsel %vm7643, %v7606, %v5721
      %v7737 = vsel %vm7643, %v7608, %v5723
      %v7739 = vsel %vm7643, %v7610, %v5725
      %v7741 = vsel %vm7643, %v7612, %v5727
      %v7743 = vsel %vm7643, %v7614, %v5729
      %v7745 = vsel %vm7643, %v7616, %v5731
      %v7747 = vsel %vm7643, %v7618, %v5733
      %v7749 = vsel %vm7643, %v7620, %v5735
      %v7751 = vsel %vm7643, %v7622, %v5737
      %v7753 = vsel %vm7643, %v7624, %v5739
      %v7755 = vsel %vm7643, %v7626, %v5741
      %v7757 = vsel %vm7643, %v7628, %v5743
      %v7759 = vsel %vm7643, %v7630, %v5745
      %v7761 = vsel %vm7643, %v7632, %v5747
      %v7763 = vsel %vm7643, %v7634, %v5749
      %v7765 = vsel %vm7643, %v7636, %v5751
      %v7767 = vsel %vm7643, %v7638, %v5753
      %v7769 = vsel %vm7643, %v7640, %v5755
      %v7771 = vsel %vm7643, %v7642, %v5757
      %vm7772 = vcmask 424960
      %v7774 = vsel %vm7772, %v7645, %v5765
      %v7776 = vsel %vm7772, %v7647, %v5767
      %v7778 = vsel %vm7772, %v7649, %v5769
      %v7780 = vsel %vm7772, %v7651, %v5771
      %v7782 = vsel %vm7772, %v7653, %v5773
      %v7784 = vsel %vm7772, %v7655, %v5775
      %v7786 = vsel %vm7772, %v7657, %v5777
      %v7788 = vsel %vm7772, %v7659, %v5779
      %v7790 = vsel %vm7772, %v7661, %v5781
      %v7792 = vsel %vm7772, %v7663, %v5783
      %v7794 = vsel %vm7772, %v7665, %v5785
      %v7796 = vsel %vm7772, %v7667, %v5787
      %v7798 = vsel %vm7772, %v7669, %v5789
      %v7800 = vsel %vm7772, %v7671, %v5791
      %v7802 = vsel %vm7772, %v7673, %v5793
      %v7804 = vsel %vm7772, %v7675, %v5795
      %v7806 = vsel %vm7772, %v7677, %v5797
      %v7808 = vsel %vm7772, %v7679, %v5799
      %v7810 = vsel %vm7772, %v7681, %v5801
      %v7812 = vsel %vm7772, %v7683, %v5803
      %v7814 = vsel %vm7772, %v7685, %v5805
      %v7816 = vsel %vm7772, %v7687, %v5807
      %v7818 = vsel %vm7772, %v7689, %v5809
      %v7820 = vsel %vm7772, %v7691, %v5811
      %v7822 = vsel %vm7772, %v7693, %v5813
      %v7824 = vsel %vm7772, %v7695, %v5815
      %v7826 = vsel %vm7772, %v7697, %v5817
      %v7828 = vsel %vm7772, %v7699, %v5819
      %v7830 = vsel %vm7772, %v7701, %v5821
      %v7832 = vsel %vm7772, %v7703, %v5823
      %v7834 = vsel %vm7772, %v7705, %v5825
      %v7836 = vsel %vm7772, %v7707, %v5827
      %v7838 = vsel %vm7772, %v7709, %v5829
      %v7840 = vsel %vm7772, %v7711, %v5831
      %v7842 = vsel %vm7772, %v7713, %v5833
      %v7844 = vsel %vm7772, %v7715, %v5835
      %v7846 = vsel %vm7772, %v7717, %v5837
      %v7848 = vsel %vm7772, %v7719, %v5839
      %v7850 = vsel %vm7772, %v7721, %v5841
      %v7852 = vsel %vm7772, %v7723, %v5843
      %v7854 = vsel %vm7772, %v7725, %v5845
      %v7856 = vsel %vm7772, %v7727, %v5847
      %v7858 = vsel %vm7772, %v7729, %v5849
      %v7860 = vsel %vm7772, %v7731, %v5851
      %v7862 = vsel %vm7772, %v7733, %v5853
      %v7864 = vsel %vm7772, %v7735, %v5855
      %v7866 = vsel %vm7772, %v7737, %v5857
      %v7868 = vsel %vm7772, %v7739, %v5859
      %v7870 = vsel %vm7772, %v7741, %v5861
      %v7872 = vsel %vm7772, %v7743, %v5863
      %v7874 = vsel %vm7772, %v7745, %v5865
      %v7876 = vsel %vm7772, %v7747, %v5867
      %v7878 = vsel %vm7772, %v7749, %v5869
      %v7880 = vsel %vm7772, %v7751, %v5871
      %v7882 = vsel %vm7772, %v7753, %v5873
      %v7884 = vsel %vm7772, %v7755, %v5875
      %v7886 = vsel %vm7772, %v7757, %v5877
      %v7888 = vsel %vm7772, %v7759, %v5879
      %v7890 = vsel %vm7772, %v7761, %v5881
      %v7892 = vsel %vm7772, %v7763, %v5883
      %v7894 = vsel %vm7772, %v7765, %v5885
      %v7896 = vsel %vm7772, %v7767, %v5887
      %v7898 = vsel %vm7772, %v7769, %v5889
      %v7900 = vsel %vm7772, %v7771, %v5891
      %vm7901 = vcmask 457728
      %v7903 = vsel %vm7901, %v7774, %v5899
      %v7905 = vsel %vm7901, %v7776, %v5901
      %v7907 = vsel %vm7901, %v7778, %v5903
      %v7909 = vsel %vm7901, %v7780, %v5905
      %v7911 = vsel %vm7901, %v7782, %v5907
      %v7913 = vsel %vm7901, %v7784, %v5909
      %v7915 = vsel %vm7901, %v7786, %v5911
      %v7917 = vsel %vm7901, %v7788, %v5913
      %v7919 = vsel %vm7901, %v7790, %v5915
      %v7921 = vsel %vm7901, %v7792, %v5917
      %v7923 = vsel %vm7901, %v7794, %v5919
      %v7925 = vsel %vm7901, %v7796, %v5921
      %v7927 = vsel %vm7901, %v7798, %v5923
      %v7929 = vsel %vm7901, %v7800, %v5925
      %v7931 = vsel %vm7901, %v7802, %v5927
      %v7933 = vsel %vm7901, %v7804, %v5929
      %v7935 = vsel %vm7901, %v7806, %v5931
      %v7937 = vsel %vm7901, %v7808, %v5933
      %v7939 = vsel %vm7901, %v7810, %v5935
      %v7941 = vsel %vm7901, %v7812, %v5937
      %v7943 = vsel %vm7901, %v7814, %v5939
      %v7945 = vsel %vm7901, %v7816, %v5941
      %v7947 = vsel %vm7901, %v7818, %v5943
      %v7949 = vsel %vm7901, %v7820, %v5945
      %v7951 = vsel %vm7901, %v7822, %v5947
      %v7953 = vsel %vm7901, %v7824, %v5949
      %v7955 = vsel %vm7901, %v7826, %v5951
      %v7957 = vsel %vm7901, %v7828, %v5953
      %v7959 = vsel %vm7901, %v7830, %v5955
      %v7961 = vsel %vm7901, %v7832, %v5957
      %v7963 = vsel %vm7901, %v7834, %v5959
      %v7965 = vsel %vm7901, %v7836, %v5961
      %v7967 = vsel %vm7901, %v7838, %v5963
      %v7969 = vsel %vm7901, %v7840, %v5965
      %v7971 = vsel %vm7901, %v7842, %v5967
      %v7973 = vsel %vm7901, %v7844, %v5969
      %v7975 = vsel %vm7901, %v7846, %v5971
      %v7977 = vsel %vm7901, %v7848, %v5973
      %v7979 = vsel %vm7901, %v7850, %v5975
      %v7981 = vsel %vm7901, %v7852, %v5977
      %v7983 = vsel %vm7901, %v7854, %v5979
      %v7985 = vsel %vm7901, %v7856, %v5981
      %v7987 = vsel %vm7901, %v7858, %v5983
      %v7989 = vsel %vm7901, %v7860, %v5985
      %v7991 = vsel %vm7901, %v7862, %v5987
      %v7993 = vsel %vm7901, %v7864, %v5989
      %v7995 = vsel %vm7901, %v7866, %v5991
      %v7997 = vsel %vm7901, %v7868, %v5993
      %v7999 = vsel %vm7901, %v7870, %v5995
      %v8001 = vsel %vm7901, %v7872, %v5997
      %v8003 = vsel %vm7901, %v7874, %v5999
      %v8005 = vsel %vm7901, %v7876, %v6001
      %v8007 = vsel %vm7901, %v7878, %v6003
      %v8009 = vsel %vm7901, %v7880, %v6005
      %v8011 = vsel %vm7901, %v7882, %v6007
      %v8013 = vsel %vm7901, %v7884, %v6009
      %v8015 = vsel %vm7901, %v7886, %v6011
      %v8017 = vsel %vm7901, %v7888, %v6013
      %v8019 = vsel %vm7901, %v7890, %v6015
      %v8021 = vsel %vm7901, %v7892, %v6017
      %v8023 = vsel %vm7901, %v7894, %v6019
      %v8025 = vsel %vm7901, %v7896, %v6021
      %v8027 = vsel %vm7901, %v7898, %v6023
      %v8029 = vsel %vm7901, %v7900, %v6025
      %vm8030 = vcmask 490496
      %v8032 = vsel %vm8030, %v7903, %v6033
      %v8034 = vsel %vm8030, %v7905, %v6035
      %v8036 = vsel %vm8030, %v7907, %v6037
      %v8038 = vsel %vm8030, %v7909, %v6039
      %v8040 = vsel %vm8030, %v7911, %v6041
      %v8042 = vsel %vm8030, %v7913, %v6043
      %v8044 = vsel %vm8030, %v7915, %v6045
      %v8046 = vsel %vm8030, %v7917, %v6047
      %v8048 = vsel %vm8030, %v7919, %v6049
      %v8050 = vsel %vm8030, %v7921, %v6051
      %v8052 = vsel %vm8030, %v7923, %v6053
      %v8054 = vsel %vm8030, %v7925, %v6055
      %v8056 = vsel %vm8030, %v7927, %v6057
      %v8058 = vsel %vm8030, %v7929, %v6059
      %v8060 = vsel %vm8030, %v7931, %v6061
      %v8062 = vsel %vm8030, %v7933, %v6063
      %v8064 = vsel %vm8030, %v7935, %v6065
      %v8066 = vsel %vm8030, %v7937, %v6067
      %v8068 = vsel %vm8030, %v7939, %v6069
      %v8070 = vsel %vm8030, %v7941, %v6071
      %v8072 = vsel %vm8030, %v7943, %v6073
      %v8074 = vsel %vm8030, %v7945, %v6075
      %v8076 = vsel %vm8030, %v7947, %v6077
      %v8078 = vsel %vm8030, %v7949, %v6079
      %v8080 = vsel %vm8030, %v7951, %v6081
      %v8082 = vsel %vm8030, %v7953, %v6083
      %v8084 = vsel %vm8030, %v7955, %v6085
      %v8086 = vsel %vm8030, %v7957, %v6087
      %v8088 = vsel %vm8030, %v7959, %v6089
      %v8090 = vsel %vm8030, %v7961, %v6091
      %v8092 = vsel %vm8030, %v7963, %v6093
      %v8094 = vsel %vm8030, %v7965, %v6095
      %v8096 = vsel %vm8030, %v7967, %v6097
      %v8098 = vsel %vm8030, %v7969, %v6099
      %v8100 = vsel %vm8030, %v7971, %v6101
      %v8102 = vsel %vm8030, %v7973, %v6103
      %v8104 = vsel %vm8030, %v7975, %v6105
      %v8106 = vsel %vm8030, %v7977, %v6107
      %v8108 = vsel %vm8030, %v7979, %v6109
      %v8110 = vsel %vm8030, %v7981, %v6111
      %v8112 = vsel %vm8030, %v7983, %v6113
      %v8114 = vsel %vm8030, %v7985, %v6115
      %v8116 = vsel %vm8030, %v7987, %v6117
      %v8118 = vsel %vm8030, %v7989, %v6119
      %v8120 = vsel %vm8030, %v7991, %v6121
      %v8122 = vsel %vm8030, %v7993, %v6123
      %v8124 = vsel %vm8030, %v7995, %v6125
      %v8126 = vsel %vm8030, %v7997, %v6127
      %v8128 = vsel %vm8030, %v7999, %v6129
      %v8130 = vsel %vm8030, %v8001, %v6131
      %v8132 = vsel %vm8030, %v8003, %v6133
      %v8134 = vsel %vm8030, %v8005, %v6135
      %v8136 = vsel %vm8030, %v8007, %v6137
      %v8138 = vsel %vm8030, %v8009, %v6139
      %v8140 = vsel %vm8030, %v8011, %v6141
      %v8142 = vsel %vm8030, %v8013, %v6143
      %v8144 = vsel %vm8030, %v8015, %v6145
      %v8146 = vsel %vm8030, %v8017, %v6147
      %v8148 = vsel %vm8030, %v8019, %v6149
      %v8150 = vsel %vm8030, %v8021, %v6151
      %v8152 = vsel %vm8030, %v8023, %v6153
      %v8154 = vsel %vm8030, %v8025, %v6155
      %v8156 = vsel %vm8030, %v8027, %v6157
      %v8158 = vsel %vm8030, %v8029, %v6159
      %v8159 = vld [vmem:[%s1] sm:$0xf]
      %v8160 = vld [vmem:[%s2] sm:$0xff]
      %8162 = vset.pattern.permute.xlu0 0
      %8163 = vperm.xlu0 %8162, %v8160
      %v8164 = vpop.permute.xlu0 %8163
      %vm8166 = vcmask 523264
      %v8168 = vsel %vm8166, %v8159, 0
      %v8170 = vsel %vm8166, %v8032, 0
      %v8172 = vsel %vm8166, %v8034, 0
      %v8174 = vsel %vm8166, %v8036, 0
      %v8176 = vsel %vm8166, %v8038, 0
      %v8178 = vsel %vm8166, %v8040, 0
      %v8180 = vsel %vm8166, %v8042, 0
      %v8182 = vsel %vm8166, %v8044, 0
      %v8184 = vsel %vm8166, %v8046, 0
      %v8186 = vsel %vm8166, %v8048, 0
      %v8188 = vsel %vm8166, %v8050, 0
      %v8190 = vsel %vm8166, %v8052, 0
      %v8192 = vsel %vm8166, %v8054, 0
      %v8194 = vsel %vm8166, %v8056, 0
      %v8196 = vsel %vm8166, %v8058, 0
      %v8198 = vsel %vm8166, %v8060, 0
      %v8200 = vsel %vm8166, %v8062, 0
      %v8202 = vsel %vm8166, %v8064, 0
      %v8204 = vsel %vm8166, %v8066, 0
      %v8206 = vsel %vm8166, %v8068, 0
      %v8208 = vsel %vm8166, %v8070, 0
      %v8210 = vsel %vm8166, %v8072, 0
      %v8212 = vsel %vm8166, %v8074, 0
      %v8214 = vsel %vm8166, %v8076, 0
      %v8216 = vsel %vm8166, %v8078, 0
      %v8218 = vsel %vm8166, %v8080, 0
      %v8220 = vsel %vm8166, %v8082, 0
      %v8222 = vsel %vm8166, %v8084, 0
      %v8224 = vsel %vm8166, %v8086, 0
      %v8226 = vsel %vm8166, %v8088, 0
      %v8228 = vsel %vm8166, %v8090, 0
      %v8230 = vsel %vm8166, %v8092, 0
      %v8232 = vsel %vm8166, %v8094, 0
      %v8234 = vsel %vm8166, %v8096, 0
      %v8236 = vsel %vm8166, %v8098, 0
      %v8238 = vsel %vm8166, %v8100, 0
      %v8240 = vsel %vm8166, %v8102, 0
      %v8242 = vsel %vm8166, %v8104, 0
      %v8244 = vsel %vm8166, %v8106, 0
      %v8246 = vsel %vm8166, %v8108, 0
      %v8248 = vsel %vm8166, %v8110, 0
      %v8250 = vsel %vm8166, %v8112, 0
      %v8252 = vsel %vm8166, %v8114, 0
      %v8254 = vsel %vm8166, %v8116, 0
      %v8256 = vsel %vm8166, %v8118, 0
      %v8258 = vsel %vm8166, %v8120, 0
      %v8260 = vsel %vm8166, %v8122, 0
      %v8262 = vsel %vm8166, %v8124, 0
      %v8264 = vsel %vm8166, %v8126, 0
      %v8266 = vsel %vm8166, %v8128, 0
      %v8268 = vsel %vm8166, %v8130, 0
      %v8270 = vsel %vm8166, %v8132, 0
      %v8272 = vsel %vm8166, %v8134, 0
      %v8274 = vsel %vm8166, %v8136, 0
      %v8276 = vsel %vm8166, %v8138, 0
      %v8278 = vsel %vm8166, %v8140, 0
      %v8280 = vsel %vm8166, %v8142, 0
      %v8282 = vsel %vm8166, %v8144, 0
      %v8284 = vsel %vm8166, %v8146, 0
      %v8286 = vsel %vm8166, %v8148, 0
      %v8288 = vsel %vm8166, %v8150, 0
      %v8290 = vsel %vm8166, %v8152, 0
      %v8292 = vsel %vm8166, %v8154, 0
      %v8294 = vsel %vm8166, %v8156, 0
      %v8296 = vsel %vm8166, %v8158, 0
      %8298 = vmatpush.bf16.xpose.msra.mxu0 %v8184
      %8299 = vmatpush.bf16.xpose.msra.mxu0 %v8182
      %8300 = vmatpush.bf16.xpose.msra.mxu0 %v8180
      %8301 = vmatpush.bf16.xpose.msra.mxu0 %v8178
      %8302 = vmatpush.bf16.xpose.msra.mxu0 %v8176
      %8303 = vmatpush.bf16.xpose.msra.mxu0 %v8174
      %8304 = vmatpush.bf16.xpose.msra.mxu0 %v8172
      %8305 = vmatpush.bf16.xpose.msra.mxu0 %v8170
      %8306 = vmatmul.bf16.gmra.mxu0 %v8168
      %v8307 = vpop.f32.mrf.mxu0
      %v8308 = vadd.f32 %v8164, %v8307
      %v8309 = vpop.f32.mrf.mxu0
      %8310 = vdwg.mxu0
      %8311 = vmatpush.bf16.xpose.msra.mxu0 %v8200
      %8312 = vmatpush.bf16.xpose.msra.mxu0 %v8198
      %8313 = vmatpush.bf16.xpose.msra.mxu0 %v8196
      %8314 = vmatpush.bf16.xpose.msra.mxu0 %v8194
      %8315 = vmatpush.bf16.xpose.msra.mxu0 %v8192
      %8316 = vmatpush.bf16.xpose.msra.mxu0 %v8190
      %8317 = vmatpush.bf16.xpose.msra.mxu0 %v8188
      %8318 = vmatpush.bf16.xpose.msra.mxu0 %v8186
      %8319 = vmatmul.bf16.gmra.mxu0 %v8168
      %v8320 = vpop.f32.mrf.mxu0
      %v8321 = vadd.f32 %v8164, %v8320
      %v8322 = vpop.f32.mrf.mxu0
      %8323 = vdwg.mxu0
      %8324 = vmatpush.bf16.xpose.msra.mxu0 %v8216
      %8325 = vmatpush.bf16.xpose.msra.mxu0 %v8214
      %8326 = vmatpush.bf16.xpose.msra.mxu0 %v8212
      %8327 = vmatpush.bf16.xpose.msra.mxu0 %v8210
      %8328 = vmatpush.bf16.xpose.msra.mxu0 %v8208
      %8329 = vmatpush.bf16.xpose.msra.mxu0 %v8206
      %8330 = vmatpush.bf16.xpose.msra.mxu0 %v8204
      %8331 = vmatpush.bf16.xpose.msra.mxu0 %v8202
      %8332 = vmatmul.bf16.gmra.mxu0 %v8168
      %v8333 = vpop.f32.mrf.mxu0
      %v8334 = vadd.f32 %v8164, %v8333
      %v8335 = vpop.f32.mrf.mxu0
      %8336 = vdwg.mxu0
      %8337 = vmatpush.bf16.xpose.msra.mxu0 %v8232
      %8338 = vmatpush.bf16.xpose.msra.mxu0 %v8230
      %8339 = vmatpush.bf16.xpose.msra.mxu0 %v8228
      %8340 = vmatpush.bf16.xpose.msra.mxu0 %v8226
      %8341 = vmatpush.bf16.xpose.msra.mxu0 %v8224
      %8342 = vmatpush.bf16.xpose.msra.mxu0 %v8222
      %8343 = vmatpush.bf16.xpose.msra.mxu0 %v8220
      %8344 = vmatpush.bf16.xpose.msra.mxu0 %v8218
      %8345 = vmatmul.bf16.gmra.mxu0 %v8168
      %v8346 = vpop.f32.mrf.mxu0
      %v8347 = vadd.f32 %v8164, %v8346
      %v8348 = vpop.f32.mrf.mxu0
      %8349 = vdwg.mxu0
      %8350 = vmatpush.bf16.xpose.msra.mxu0 %v8248
      %8351 = vmatpush.bf16.xpose.msra.mxu0 %v8246
      %8352 = vmatpush.bf16.xpose.msra.mxu0 %v8244
      %8353 = vmatpush.bf16.xpose.msra.mxu0 %v8242
      %8354 = vmatpush.bf16.xpose.msra.mxu0 %v8240
      %8355 = vmatpush.bf16.xpose.msra.mxu0 %v8238
      %8356 = vmatpush.bf16.xpose.msra.mxu0 %v8236
      %8357 = vmatpush.bf16.xpose.msra.mxu0 %v8234
      %8358 = vmatmul.bf16.gmra.mxu0 %v8168
      %v8359 = vpop.f32.mrf.mxu0
      %v8360 = vadd.f32 %v8164, %v8359
      %v8361 = vpop.f32.mrf.mxu0
      %8362 = vdwg.mxu0
      %8363 = vmatpush.bf16.xpose.msra.mxu0 %v8264
      %8364 = vmatpush.bf16.xpose.msra.mxu0 %v8262
      %8365 = vmatpush.bf16.xpose.msra.mxu0 %v8260
      %8366 = vmatpush.bf16.xpose.msra.mxu0 %v8258
      %8367 = vmatpush.bf16.xpose.msra.mxu0 %v8256
      %8368 = vmatpush.bf16.xpose.msra.mxu0 %v8254
      %8369 = vmatpush.bf16.xpose.msra.mxu0 %v8252
      %8370 = vmatpush.bf16.xpose.msra.mxu0 %v8250
      %8371 = vmatmul.bf16.gmra.mxu0 %v8168
      %v8372 = vpop.f32.mrf.mxu0
      %v8373 = vadd.f32 %v8164, %v8372
      %v8374 = vpop.f32.mrf.mxu0
      %8375 = vdwg.mxu0
      %8376 = vmatpush.bf16.xpose.msra.mxu0 %v8280
      %8377 = vmatpush.bf16.xpose.msra.mxu0 %v8278
      %8378 = vmatpush.bf16.xpose.msra.mxu0 %v8276
      %8379 = vmatpush.bf16.xpose.msra.mxu0 %v8274
      %8380 = vmatpush.bf16.xpose.msra.mxu0 %v8272
      %8381 = vmatpush.bf16.xpose.msra.mxu0 %v8270
      %8382 = vmatpush.bf16.xpose.msra.mxu0 %v8268
      %8383 = vmatpush.bf16.xpose.msra.mxu0 %v8266
      %8384 = vmatmul.bf16.gmra.mxu0 %v8168
      %v8385 = vpop.f32.mrf.mxu0
      %v8386 = vadd.f32 %v8164, %v8385
      %v8387 = vpop.f32.mrf.mxu0
      %8388 = vdwg.mxu0
      %8389 = vmatpush.bf16.xpose.msra.mxu0 %v8296
      %8390 = vmatpush.bf16.xpose.msra.mxu0 %v8294
      %8391 = vmatpush.bf16.xpose.msra.mxu0 %v8292
      %8392 = vmatpush.bf16.xpose.msra.mxu0 %v8290
      %8393 = vmatpush.bf16.xpose.msra.mxu0 %v8288
      %8394 = vmatpush.bf16.xpose.msra.mxu0 %v8286
      %8395 = vmatpush.bf16.xpose.msra.mxu0 %v8284
      %8396 = vmatpush.bf16.xpose.msra.mxu0 %v8282
      %8397 = vmatmul.bf16.gmra.mxu0 %v8168
      %v8398 = vpop.f32.mrf.mxu0
      %v8399 = vadd.f32 %v8164, %v8398
      %v8400 = vpop.f32.mrf.mxu0
      %8401 = vdwg.mxu0
      %vm8402 = vcmp.ge.f32.partialorder %v8308, 0.0
      %vm8403 = vcmp.ge.f32.partialorder %v8321, 0.0
      %vm8404 = vcmp.ge.f32.partialorder %v8334, 0.0
      %vm8405 = vcmp.ge.f32.partialorder %v8347, 0.0
      %vm8406 = vcmp.ge.f32.partialorder %v8360, 0.0
      %vm8407 = vcmp.ge.f32.partialorder %v8373, 0.0
      %vm8408 = vcmp.ge.f32.partialorder %v8386, 0.0
      %vm8409 = vcmp.ge.f32.partialorder %v8399, 0.0
      %v8410 = vmul.f32 %v8308, 0.2
      %v8411 = vmul.f32 %v8321, 0.2
      %v8412 = vmul.f32 %v8334, 0.2
      %v8413 = vmul.f32 %v8347, 0.2
      %v8414 = vmul.f32 %v8360, 0.2
      %v8415 = vmul.f32 %v8373, 0.2
      %v8416 = vmul.f32 %v8386, 0.2
      %v8417 = vmul.f32 %v8399, 0.2
      %v8418 = vsel %vm8402, %v8308, %v8410
      %v8419 = vsel %vm8403, %v8321, %v8411
      %v8420 = vsel %vm8404, %v8334, %v8412
      %v8421 = vsel %vm8405, %v8347, %v8413
      %v8422 = vsel %vm8406, %v8360, %v8414
      %v8423 = vsel %vm8407, %v8373, %v8415
      %v8424 = vsel %vm8408, %v8386, %v8416
      %v8425 = vsel %vm8409, %v8399, %v8417
      %8426 = vst [vmem:[%s170] sm:$0xff] %v8418
      %8427 = vst [vmem:[%s170 + $0x8] sm:$0xff] %v8419
      %8428 = vst [vmem:[%s170 + $0x10] sm:$0xff] %v8420
      %8429 = vst [vmem:[%s170 + $0x18] sm:$0xff] %v8421
      %8430 = vst [vmem:[%s170 + $0x20] sm:$0xff] %v8422
      %8431 = vst [vmem:[%s170 + $0x28] sm:$0xff] %v8423
      %8432 = vst [vmem:[%s170 + $0x30] sm:$0xff] %v8424
      %8433 = vst [vmem:[%s170 + $0x38] sm:$0xff] %v8425
      %p8434 = scmp.lt.s32.totalorder %s14, 1
      %s8435 = scalar_select %p8434, %s14, 1
      %s8436 = smul.addr %s8435, 8
      %s8437 = smul.addr %s8436, 8
      %s8438 = scalar_lea.vmem %s3, %s8437
      // Predicated region
      $region33: #{conv_unit_transpose.1} parent=31 // pred_check
        %p8439 = pneg %p100
      $region34: #{conv_unit_transpose.1} parent=31 // pred_check_branch
        %8441 = sbr.rel (%p8439) target = $region36
      $region35: #{conv_unit_transpose.1} parent=31 // pred_region
        _
      $region36: #{conv_unit_transpose.1} parent=31 // pred_fallthru
        _
    $region32: #{conv_unit_transpose.1} parent=5 // pred_fallthru
      _
    %p8442 = scmp.le.s32.totalorder 2, %s9
    // Predicated region
    $region37: #{conv_unit_transpose.1} parent=5 // pred_check
      %p8443 = pneg %p8442
    $region38: #{conv_unit_transpose.1} parent=5 // pred_check_branch
      %8445 = sbr.rel (%p8443) target = $region40
    $region39: #{conv_unit_transpose.1} parent=5 // pred_region
      %s8446 = ssub.s32 %s9, 2
      // Predicated region
      $region41: #{conv_unit_transpose.1} parent=39 // pred_check
        %p8447 = pneg %p106
      $region42: #{conv_unit_transpose.1} parent=39 // pred_check_branch
        %8449 = sbr.rel (%p8447) target = $region44
      $region43: #{conv_unit_transpose.1} parent=39 // pred_region
        %p8450 = scmp.lt.s32.totalorder %s15, 1
        %s8451 = scalar_select %p8450, %s15, 1
        %s8452 = smul.addr %s8451, 8
        %s8453 = smul.addr %s8452, 8
        %s8454 = scalar_lea.vmem %s3, %s8453
      $region44: #{conv_unit_transpose.1} parent=39 // pred_fallthru
        _
    $region40: #{conv_unit_transpose.1} parent=5 // pred_fallthru
      _
  $region6: #{conv_unit_transpose.1} parent=0 // loop_footer
    %s13 = sadd.s32 1, %s9
  $region7: #{conv_unit_transpose.1} parent=0 // loop_footer_branch
    %8 = sbr.rel target = $region3
  $region8: #{conv_unit_transpose.1} parent=0 // loop_exit
    _

</llo_original>
